<compile_context>
chip_gen: v6e
topology: v6e:2x2x1
jax: 0.10.0
libtpu: 0.0.40
codegen_flags: <defaults>
</compile_context>

<pallas_src>
import math

import jax
import jax.numpy as jnp
from jax.experimental import pallas as pl
from jax.experimental.pallas import tpu as pltpu

EPS = 1e-5
LOG_EPS = math.log(EPS)
LOG_ONE_MINUS_EPS = math.log(1.0 - EPS)
NEG_SLOPE = 0.01          # torch.nn.LeakyReLU default negative slope

B = 8           # batch
DFEAT = 64      # D: data dimensionality
LATENT = 16     # L: latent dimensionality
M = 128         # hidden width of encoder / decoder MLPs
NUM_VALS = 256  # categorical likelihood classes (num_vals)
DBLK = 32       # features handled per grid step
NBLK = DFEAT // DBLK


def _leaky(h):
    return jnp.maximum(h, NEG_SLOPE * h)


def _vae_kernel(x_ref, lab_ref, eps_ref,
                w1_ref, w2_ref, w3_ref, bias_ref, b3_ref,
                v1_ref, v2_ref,
                v3_ref, c3_ref,
                loss_ref,
                h2_scr, acc_scr):
    i = pl.program_id(0)

    # Step 0: encoder MLP, reparameterization, KL term, first two decoder layers.
    @pl.when(i == 0)
    def _encode_and_prep():
        b1 = bias_ref[0:1, :]
        b2 = bias_ref[1:2, :]
        c1 = bias_ref[2:3, :]
        c2 = bias_ref[3:4, :]
        x = x_ref[...]                                                       # (B, DFEAT) f32
        h = _leaky(jnp.dot(x, w1_ref[...], preferred_element_type=jnp.float32) + b1)
        h = _leaky(jnp.dot(h, w2_ref[...], preferred_element_type=jnp.float32) + b2)
        muv = jnp.dot(h, w3_ref[...], preferred_element_type=jnp.float32) + b3_ref[...]
        mu = muv[:, :LATENT]                                                 # chunk(..., 2, dim=1)
        log_var = muv[:, LATENT:]
        z = mu + jnp.exp(0.5 * log_var) * eps_ref[...]                       # reparameterization
        # KL per element (constant -0.5*L*log(2pi) terms cancel between prior and posterior)
        kl = -0.5 * z * z + 0.5 * log_var + 0.5 * jnp.exp(-log_var) * (z - mu) ** 2
        acc_scr[...] = jnp.sum(kl, axis=-1, keepdims=True)                   # (B, 1): per-batch KL
        # first two decoder layers (reused by every grid step); store bf16 for the MXU
        hd = _leaky(jnp.dot(z, v1_ref[...], preferred_element_type=jnp.float32) + c1)
        hd = _leaky(jnp.dot(hd, v2_ref[...], preferred_element_type=jnp.float32) + c2)
        h2_scr[...] = hd.astype(jnp.bfloat16)

    # Reconstruction term for DBLK features: per feature, one small bf16 MXU matmul
    # (static lane-aligned slice of the streamed v3 block) -> log-sum-exp -> target pick.
    h2 = h2_scr[...]                                                         # (B, M) bf16
    lab = lab_ref[i]                                                         # (B, DBLK) int32
    iota_k = jax.lax.broadcasted_iota(jnp.int32, (B, NUM_VALS), 1)           # hoisted out of loop

    re_step = jnp.zeros((B, 1), jnp.float32)
    for j in range(DBLK):                                                    # static, unrolled
        lg = (jnp.dot(h2, v3_ref[:, j * NUM_VALS:(j + 1) * NUM_VALS],
                      preferred_element_type=jnp.float32)
              + c3_ref[:, j * NUM_VALS:(j + 1) * NUM_VALS])                  # (B, NUM_VALS) f32
        mmax = jnp.max(lg, axis=-1, keepdims=True)
        lse = mmax + jnp.log(jnp.sum(jnp.exp(lg - mmax), axis=-1, keepdims=True))
        lab_j = lab[:, j:j + 1]                                              # (B, 1)
        tgt = jnp.sum(jnp.where(iota_k == lab_j, lg, 0.0), axis=-1, keepdims=True)
        # log(clip(softmax, EPS, 1-EPS)) at target class == clip(logit - lse, logEPS, log1mEPS)
        logp = jnp.clip(tgt - lse, LOG_EPS, LOG_ONE_MINUS_EPS)
        re_step = re_step + logp

    acc_scr[...] = acc_scr[...] + re_step                                    # per-batch RE accumulation

    # reduction='avg':  loss = -(RE + KL).mean() = -sum_b(RE_b + KL_b) / B
    @pl.when(i == pl.num_programs(0) - 1)
    def _finish():
        loss_ref[0] = -jnp.sum(acc_scr[...]) / B


def _rep(shape):
    """BlockSpec for an array that is fully resident / grid-invariant."""
    n = len(shape)
    return pl.BlockSpec(shape, lambda i, n=n: (0,) * n)


def vae_loss_pallas(x_float, labels, eps, params):
    (w1, b1, w2, b2, w3m, b3m, w3v, b3v, v1, c1, v2, c2, v3, c3) = params

    # Labels fully resident in lane-friendly tiles: (NBLK, B, DBLK); indexed lab_ref[i].
    lab3d = labels.astype(jnp.int32).reshape(B, NBLK, DBLK).transpose(1, 0, 2)
    # Decoder output weight flattened + cast to bf16 (the HBM-dominant stream):
    # v3_2d[m, d*NUM_VALS + k] == v3[d, m, k]
    v3_2d = jnp.transpose(v3, (1, 0, 2)).reshape(M, DFEAT * NUM_VALS).astype(jnp.bfloat16)
    c3_2d = c3.reshape(1, DFEAT * NUM_VALS)
    # Packed small weights: encoder output layer and the four 1-row hidden biases.
    w3 = jnp.concatenate([w3m, w3v], axis=1)         # (M, 2L): [mu | log_var] halves
    b3 = jnp.concatenate([b3m, b3v], axis=1)         # (1, 2L)
    bias4 = jnp.concatenate([b1, b2, c1, c2], axis=0)  # (4, M): rows = b1, b2, c1, c2

    grid_spec = pltpu.PrefetchScalarGridSpec(
        num_scalar_prefetch=0,
        grid=(NBLK,),
        in_specs=[
            _rep((B, DFEAT)),                                           # x (float)
            _rep((NBLK, B, DBLK)),                                      # labels (int32, resident)
            _rep((B, LATENT)),                                          # eps
            _rep((DFEAT, M)),                                           # w1
            _rep((M, M)),                                               # w2
            _rep((M, 2 * LATENT)),                                      # w3 = [w3m | w3v]
            _rep((4, M)),                                               # bias4 = [b1;b2;c1;c2]
            _rep((1, 2 * LATENT)),                                      # b3 = [b3m | b3v]
            _rep((LATENT, M)),                                          # v1
            _rep((M, M)),                                               # v2
            pl.BlockSpec((M, DBLK * NUM_VALS), lambda i: (0, i)),       # v3 block (bf16, lane dense)
            pl.BlockSpec((1, DBLK * NUM_VALS), lambda i: (0, i)),       # c3 block
        ],
        out_specs=pl.BlockSpec(memory_space=pltpu.MemorySpace.SMEM),
        scratch_shapes=[
            pltpu.VMEM((B, M), jnp.bfloat16),   # decoder hidden h2 (persists across grid)
            pltpu.VMEM((B, 1), jnp.float32),    # per-batch (RE + KL) accumulator
        ],
    )

    loss = pl.pallas_call(
        _vae_kernel,
        out_shape=jax.ShapeDtypeStruct((1,), jnp.float32),
        grid_spec=grid_spec,
        compiler_params=pltpu.CompilerParams(dimension_semantics=("arbitrary",)),
    )(x_float, lab3d, eps, w1, w2, w3, bias4, b3, v1, v2, v3_2d, c3_2d)
    return loss[0]


def vae_loss_reference(x_float, labels, eps, params):
    """Pure-JAX reference of the same forward pass (f32 end to end)."""
    (w1, b1, w2, b2, w3m, b3m, w3v, b3v, v1, c1, v2, c2, v3, c3) = params
    h = _leaky(x_float @ w1 + b1)
    h = _leaky(h @ w2 + b2)
    mu = h @ w3m + b3m
    log_var = h @ w3v + b3v
    z = mu + jnp.exp(0.5 * log_var) * eps
    hd = _leaky(z @ v1 + c1)
    hd = _leaky(hd @ v2 + c2)
    logits = jnp.einsum('bm,dmk->bdk', hd, v3) + c3[None]
    p = jax.nn.softmax(logits, axis=-1)
    logp = jnp.log(jnp.clip(p, EPS, 1.0 - EPS))
    oh = jax.nn.one_hot(labels, NUM_VALS, dtype=jnp.float32)
    re = jnp.sum(oh * logp, axis=(1, 2))
    kl = jnp.sum(-0.5 * z * z + 0.5 * log_var
                 + 0.5 * jnp.exp(-log_var) * (z - mu) ** 2, axis=-1)
    return -jnp.mean(re + kl)


def init_params(key):
    """Deterministic synthetic parameters (shapes implied by the module's MLP nets)."""
    ks = jax.random.split(key, 7)

    def w(k, shape, fan_in):
        return (0.1 / jnp.sqrt(float(fan_in))) * jax.random.normal(k, shape, dtype=jnp.float32)

    w1 = w(ks[0], (DFEAT, M), DFEAT)
    b1 = jnp.zeros((1, M), jnp.float32)
    w2 = w(ks[1], (M, M), M)
    b2 = jnp.zeros((1, M), jnp.float32)
    # encoder output layer: torch.chunk(h_e, 2, dim=1) == two separate (M, L) halves
    w3m = w(ks[2], (M, LATENT), M)
    b3m = jnp.zeros((1, LATENT), jnp.float32)
    w3v = w(ks[3], (M, LATENT), M)
    b3v = jnp.zeros((1, LATENT), jnp.float32)
    v1 = w(ks[4], (LATENT, M), LATENT)
    c1 = jnp.zeros((1, M), jnp.float32)
    v2 = w(ks[5], (M, M), M)
    c2 = jnp.zeros((1, M), jnp.float32)
    # decoder output layer stored as [D, M, NUM_VALS] (== Linear(M, D*NUM_VALS) reshaped)
    v3 = w(ks[6], (DFEAT, M, NUM_VALS), M)
    c3 = jnp.zeros((DFEAT, NUM_VALS), jnp.float32)
    return (w1, b1, w2, b2, w3m, b3m, w3v, b3v, v1, c1, v2, c2, v3, c3)


if __name__ == "__main__":
    key = jax.random.PRNGKey(0)
    kx, keps, kp = jax.random.split(key, 3)

    labels = jax.random.randint(kx, (B, DFEAT), 0, 16, dtype=jnp.int32)  # class indices < NUM_VALS
    x_float = labels.astype(jnp.float32)                                 # encoder input
    eps = jax.random.normal(keps, (B, LATENT), dtype=jnp.float32)        # reparam noise
    params = init_params(kp)

    loss = jax.block_until_ready(vae_loss_pallas(x_float, labels, eps, params))
    ref = jax.block_until_ready(vae_loss_reference(x_float, labels, eps, params))

    assert bool(jnp.isfinite(loss)), "loss is not finite"
    assert abs(float(loss) - float(ref)) <= 5e-2 * (1.0 + abs(float(ref))), (float(loss), float(ref))
    print("KERNEL_OK")
</pallas_src>

<mosaic_0001>
module attributes {stable_mosaic.version = 11 : i64} {
  func.func @_vae_kernel(%arg0: i32, %arg1: memref<8x64xf32, #tpu.memory_space<vmem>>, %arg2: memref<2x8x32xi32, #tpu.memory_space<vmem>>, %arg3: memref<8x16xf32, #tpu.memory_space<vmem>>, %arg4: memref<64x128xf32, #tpu.memory_space<vmem>>, %arg5: memref<128x128xf32, #tpu.memory_space<vmem>>, %arg6: memref<128x32xf32, #tpu.memory_space<vmem>>, %arg7: memref<4x128xf32, #tpu.memory_space<vmem>>, %arg8: memref<1x32xf32, #tpu.memory_space<vmem>>, %arg9: memref<16x128xf32, #tpu.memory_space<vmem>>, %arg10: memref<128x128xf32, #tpu.memory_space<vmem>>, %arg11: memref<128x8192xbf16, #tpu.memory_space<vmem>>, %arg12: memref<1x8192xf32, #tpu.memory_space<vmem>>, %arg13: memref<1xf32, #tpu.memory_space<smem>>, %arg14: memref<8x128xbf16, #tpu.memory_space<vmem>>, %arg15: memref<8x1xf32, #tpu.memory_space<vmem>>) attributes {dimension_semantics = [#tpu.dimension_semantics<arbitrary>], iteration_bounds = array<i64: 2>, scalar_prefetch = 0 : i64, scratch_operands = 2 : i64, tpu.core_type = #tpu.core_type<tc>, window_params = [{pipeline_mode = #tpu.pipeline_mode<synchronous>, transform_indices = @transform_0, window_bounds = array<i64: 8, 64>}, {pipeline_mode = #tpu.pipeline_mode<synchronous>, transform_indices = @transform_1, window_bounds = array<i64: 2, 8, 32>}, {pipeline_mode = #tpu.pipeline_mode<synchronous>, transform_indices = @transform_2, window_bounds = array<i64: 8, 16>}, {pipeline_mode = #tpu.pipeline_mode<synchronous>, transform_indices = @transform_3, window_bounds = array<i64: 64, 128>}, {pipeline_mode = #tpu.pipeline_mode<synchronous>, transform_indices = @transform_4, window_bounds = array<i64: 128, 128>}, {pipeline_mode = #tpu.pipeline_mode<synchronous>, transform_indices = @transform_5, window_bounds = array<i64: 128, 32>}, {pipeline_mode = #tpu.pipeline_mode<synchronous>, transform_indices = @transform_6, window_bounds = array<i64: 4, 128>}, {pipeline_mode = #tpu.pipeline_mode<synchronous>, transform_indices = @transform_7, window_bounds = array<i64: 1, 32>}, {pipeline_mode = #tpu.pipeline_mode<synchronous>, transform_indices = @transform_8, window_bounds = array<i64: 16, 128>}, {pipeline_mode = #tpu.pipeline_mode<synchronous>, transform_indices = @transform_9, window_bounds = array<i64: 128, 128>}, {transform_indices = @transform_10, window_bounds = array<i64: 128, 8192>}, {transform_indices = @transform_11, window_bounds = array<i64: 1, 8192>}, {transform_indices = @transform_12, window_bounds = array<i64: 1>}]} {
    %c0_i32 = arith.constant 0 : i32
    %0 = arith.cmpi eq, %arg0, %c0_i32 : i32
    %1 = arith.extui %0 : i1 to i32
    %c0_i32_0 = arith.constant 0 : i32
    %2 = arith.cmpi ne, %1, %c0_i32_0 : i32
    scf.if %2 {
      %c0_330 = arith.constant 0 : index
      %c0_331 = arith.constant 0 : index
      %879 = vector.load %arg7[%c0_330, %c0_331] : memref<4x128xf32, #tpu.memory_space<vmem>>, vector<1x128xf32>
      %c1 = arith.constant 1 : index
      %c0_332 = arith.constant 0 : index
      %880 = vector.load %arg7[%c1, %c0_332] : memref<4x128xf32, #tpu.memory_space<vmem>>, vector<1x128xf32>
      %c2 = arith.constant 2 : index
      %c0_333 = arith.constant 0 : index
      %881 = vector.load %arg7[%c2, %c0_333] : memref<4x128xf32, #tpu.memory_space<vmem>>, vector<1x128xf32>
      %c3 = arith.constant 3 : index
      %c0_334 = arith.constant 0 : index
      %882 = vector.load %arg7[%c3, %c0_334] : memref<4x128xf32, #tpu.memory_space<vmem>>, vector<1x128xf32>
      %c0_335 = arith.constant 0 : index
      %c0_336 = arith.constant 0 : index
      %883 = vector.load %arg1[%c0_335, %c0_336] : memref<8x64xf32, #tpu.memory_space<vmem>>, vector<8x64xf32>
      %c0_337 = arith.constant 0 : index
      %c0_338 = arith.constant 0 : index
      %884 = vector.load %arg4[%c0_337, %c0_338] : memref<64x128xf32, #tpu.memory_space<vmem>>, vector<64x128xf32>
      %cst_339 = arith.constant dense<0.000000e+00> : vector<8x128xf32>
      %885 = tpu.matmul %883, %884, %cst_339 {dimension_numbers = #tpu.dot_dimension_numbers<[1], [0], [0], [1], [0, 0, 1, 1], [], []>} : vector<8x64xf32>, vector<64x128xf32>, vector<8x128xf32> -> vector<8x128xf32>
      %886 = vector.broadcast %879 : vector<1x128xf32> to vector<8x128xf32>
      %887 = arith.addf %885, %886 : vector<8x128xf32>
      %cst_340 = arith.constant 0.00999999977 : f32
      %888 = vector.broadcast %cst_340 : f32 to vector<8x128xf32>
      %889 = arith.mulf %888, %887 : vector<8x128xf32>
      %890 = arith.maximumf %887, %889 : vector<8x128xf32>
      %c0_341 = arith.constant 0 : index
      %c0_342 = arith.constant 0 : index
      %891 = vector.load %arg5[%c0_341, %c0_342] : memref<128x128xf32, #tpu.memory_space<vmem>>, vector<128x128xf32>
      %cst_343 = arith.constant dense<0.000000e+00> : vector<8x128xf32>
      %892 = tpu.matmul %890, %891, %cst_343 {dimension_numbers = #tpu.dot_dimension_numbers<[1], [0], [0], [1], [0, 0, 1, 1], [], []>} : vector<8x128xf32>, vector<128x128xf32>, vector<8x128xf32> -> vector<8x128xf32>
      %893 = vector.broadcast %880 : vector<1x128xf32> to vector<8x128xf32>
      %894 = arith.addf %892, %893 : vector<8x128xf32>
      %cst_344 = arith.constant 0.00999999977 : f32
      %895 = vector.broadcast %cst_344 : f32 to vector<8x128xf32>
      %896 = arith.mulf %895, %894 : vector<8x128xf32>
      %897 = arith.maximumf %894, %896 : vector<8x128xf32>
      %c0_345 = arith.constant 0 : index
      %c0_346 = arith.constant 0 : index
      %898 = vector.load %arg6[%c0_345, %c0_346] : memref<128x32xf32, #tpu.memory_space<vmem>>, vector<128x32xf32>
      %cst_347 = arith.constant dense<0.000000e+00> : vector<8x32xf32>
      %899 = tpu.matmul %897, %898, %cst_347 {dimension_numbers = #tpu.dot_dimension_numbers<[1], [0], [0], [1], [0, 0, 1, 1], [], []>} : vector<8x128xf32>, vector<128x32xf32>, vector<8x32xf32> -> vector<8x32xf32>
      %c0_348 = arith.constant 0 : index
      %c0_349 = arith.constant 0 : index
      %900 = vector.load %arg8[%c0_348, %c0_349] : memref<1x32xf32, #tpu.memory_space<vmem>>, vector<1x32xf32>
      %901 = vector.broadcast %900 : vector<1x32xf32> to vector<8x32xf32>
      %902 = arith.addf %899, %901 : vector<8x32xf32>
      %903 = vector.extract_strided_slice %902 {offsets = [0, 0], sizes = [8, 16], strides = [1, 1]} : vector<8x32xf32> to vector<8x16xf32>
      %904 = vector.extract_strided_slice %902 {offsets = [0, 16], sizes = [8, 16], strides = [1, 1]} : vector<8x32xf32> to vector<8x16xf32>
      %cst_350 = arith.constant 5.000000e-01 : f32
      %905 = vector.broadcast %cst_350 : f32 to vector<8x16xf32>
      %906 = arith.mulf %905, %904 : vector<8x16xf32>
      %907 = math.exp %906 : vector<8x16xf32>
      %c0_351 = arith.constant 0 : index
      %c0_352 = arith.constant 0 : index
      %908 = vector.load %arg3[%c0_351, %c0_352] : memref<8x16xf32, #tpu.memory_space<vmem>>, vector<8x16xf32>
      %909 = arith.mulf %907, %908 : vector<8x16xf32>
      %910 = arith.addf %903, %909 : vector<8x16xf32>
      %cst_353 = arith.constant -5.000000e-01 : f32
      %911 = vector.broadcast %cst_353 : f32 to vector<8x16xf32>
      %912 = arith.mulf %911, %910 : vector<8x16xf32>
      %913 = arith.mulf %912, %910 : vector<8x16xf32>
      %cst_354 = arith.constant 5.000000e-01 : f32
      %914 = vector.broadcast %cst_354 : f32 to vector<8x16xf32>
      %915 = arith.mulf %914, %904 : vector<8x16xf32>
      %916 = arith.addf %913, %915 : vector<8x16xf32>
      %cst_355 = arith.constant 0.000000e+00 : f32
      %917 = vector.broadcast %cst_355 : f32 to vector<8x16xf32>
      %918 = arith.subf %917, %904 : vector<8x16xf32>
      %919 = math.exp %918 : vector<8x16xf32>
      %cst_356 = arith.constant 5.000000e-01 : f32
      %920 = vector.broadcast %cst_356 : f32 to vector<8x16xf32>
      %921 = arith.mulf %920, %919 : vector<8x16xf32>
      %922 = arith.subf %910, %903 : vector<8x16xf32>
      %923 = arith.mulf %922, %922 : vector<8x16xf32>
      %924 = arith.mulf %921, %923 : vector<8x16xf32>
      %925 = arith.addf %916, %924 : vector<8x16xf32>
      %cst_357 = arith.constant dense<0.000000e+00> : vector<8xf32>
      %926 = vector.multi_reduction <add>, %925, %cst_357 [1] : vector<8x16xf32> to vector<8xf32>
      %927 = vector.shape_cast %926 : vector<8xf32> to vector<8x1xf32>
      %c0_358 = arith.constant 0 : index
      %c0_359 = arith.constant 0 : index
      %928 = vector.load %arg15[%c0_358, %c0_359] : memref<8x1xf32, #tpu.memory_space<vmem>>, vector<8x1xf32>
      tpu.vector_store %arg15[%c0_358, %c0_359], %927 {strides = array<i32>} : memref<8x1xf32, #tpu.memory_space<vmem>>, vector<8x1xf32>,
      %c0_360 = arith.constant 0 : index
      %c0_361 = arith.constant 0 : index
      %929 = vector.load %arg9[%c0_360, %c0_361] : memref<16x128xf32, #tpu.memory_space<vmem>>, vector<16x128xf32>
      %cst_362 = arith.constant dense<0.000000e+00> : vector<8x128xf32>
      %930 = tpu.matmul %910, %929, %cst_362 {dimension_numbers = #tpu.dot_dimension_numbers<[1], [0], [0], [1], [0, 0, 1, 1], [], []>} : vector<8x16xf32>, vector<16x128xf32>, vector<8x128xf32> -> vector<8x128xf32>
      %931 = vector.broadcast %881 : vector<1x128xf32> to vector<8x128xf32>
      %932 = arith.addf %930, %931 : vector<8x128xf32>
      %cst_363 = arith.constant 0.00999999977 : f32
      %933 = vector.broadcast %cst_363 : f32 to vector<8x128xf32>
      %934 = arith.mulf %933, %932 : vector<8x128xf32>
      %935 = arith.maximumf %932, %934 : vector<8x128xf32>
      %c0_364 = arith.constant 0 : index
      %c0_365 = arith.constant 0 : index
      %936 = vector.load %arg10[%c0_364, %c0_365] : memref<128x128xf32, #tpu.memory_space<vmem>>, vector<128x128xf32>
      %cst_366 = arith.constant dense<0.000000e+00> : vector<8x128xf32>
      %937 = tpu.matmul %935, %936, %cst_366 {dimension_numbers = #tpu.dot_dimension_numbers<[1], [0], [0], [1], [0, 0, 1, 1], [], []>} : vector<8x128xf32>, vector<128x128xf32>, vector<8x128xf32> -> vector<8x128xf32>
      %938 = vector.broadcast %882 : vector<1x128xf32> to vector<8x128xf32>
      %939 = arith.addf %937, %938 : vector<8x128xf32>
      %cst_367 = arith.constant 0.00999999977 : f32
      %940 = vector.broadcast %cst_367 : f32 to vector<8x128xf32>
      %941 = arith.mulf %940, %939 : vector<8x128xf32>
      %942 = arith.maximumf %939, %941 : vector<8x128xf32>
      %943 = arith.truncf %942 : vector<8x128xf32> to vector<8x128xbf16>
      %c0_368 = arith.constant 0 : index
      %c0_369 = arith.constant 0 : index
      %944 = vector.load %arg14[%c0_368, %c0_369] : memref<8x128xbf16, #tpu.memory_space<vmem>>, vector<8x128xbf16>
      tpu.vector_store %arg14[%c0_368, %c0_369], %943 {strides = array<i32>} : memref<8x128xbf16, #tpu.memory_space<vmem>>, vector<8x128xbf16>,
    } else {
    }
    %c0 = arith.constant 0 : index
    %c0_1 = arith.constant 0 : index
    %3 = vector.load %arg14[%c0, %c0_1] : memref<8x128xbf16, #tpu.memory_space<vmem>>, vector<8x128xbf16>
    %4 = arith.index_cast %arg0 : i32 to index
    %c0_2 = arith.constant 0 : index
    %c0_3 = arith.constant 0 : index
    %5 = vector.load %arg2[%4, %c0_2, %c0_3] : memref<2x8x32xi32, #tpu.memory_space<vmem>>, vector<1x8x32xi32>
    %6 = vector.shape_cast %5 : vector<1x8x32xi32> to vector<8x32xi32>
    %7 = tpu.iota {dimensions = array<i32: 1>} : vector<8x256xi32>
    %cst = arith.constant 0.000000e+00 : f32
    %8 = vector.broadcast %cst : f32 to vector<8x1xf32>
    %c0_4 = arith.constant 0 : index
    %c0_5 = arith.constant 0 : index
    %9 = vector.load %arg11[%c0_4, %c0_5] : memref<128x8192xbf16, #tpu.memory_space<vmem>>, vector<128x256xbf16>
    %cst_6 = arith.constant dense<0.000000e+00> : vector<8x256xf32>
    %10 = tpu.matmul %3, %9, %cst_6 {dimension_numbers = #tpu.dot_dimension_numbers<[1], [0], [0], [1], [0, 0, 1, 1], [], []>} : vector<8x128xbf16>, vector<128x256xbf16>, vector<8x256xf32> -> vector<8x256xf32>
    %c0_7 = arith.constant 0 : index
    %c0_8 = arith.constant 0 : index
    %11 = vector.load %arg12[%c0_7, %c0_8] : memref<1x8192xf32, #tpu.memory_space<vmem>>, vector<1x256xf32>
    %12 = vector.broadcast %11 : vector<1x256xf32> to vector<8x256xf32>
    %13 = arith.addf %10, %12 : vector<8x256xf32>
    %cst_9 = arith.constant dense<0xFF800000> : vector<8xf32>
    %14 = vector.multi_reduction <maximumf>, %13, %cst_9 [1] : vector<8x256xf32> to vector<8xf32>
    %15 = vector.shape_cast %14 : vector<8xf32> to vector<8x1xf32>
    %16 = vector.broadcast %15 : vector<8x1xf32> to vector<8x256xf32>
    %17 = arith.subf %13, %16 : vector<8x256xf32>
    %18 = math.exp %17 : vector<8x256xf32>
    %cst_10 = arith.constant dense<0.000000e+00> : vector<8xf32>
    %19 = vector.multi_reduction <add>, %18, %cst_10 [1] : vector<8x256xf32> to vector<8xf32>
    %20 = vector.shape_cast %19 : vector<8xf32> to vector<8x1xf32>
    %21 = math.log %20 : vector<8x1xf32>
    %22 = arith.addf %15, %21 : vector<8x1xf32>
    %23 = vector.extract_strided_slice %6 {offsets = [0, 0], sizes = [8, 1], strides = [1, 1]} : vector<8x32xi32> to vector<8x1xi32>
    %24 = vector.broadcast %23 : vector<8x1xi32> to vector<8x256xi32>
    %25 = arith.cmpi eq, %7, %24 : vector<8x256xi32>
    %cst_11 = arith.constant 0.000000e+00 : f32
    %26 = vector.broadcast %cst_11 : f32 to vector<8x256xf32>
    %27 = arith.select %25, %13, %26 : vector<8x256xi1>, vector<8x256xf32>
    %cst_12 = arith.constant dense<0.000000e+00> : vector<8xf32>
    %28 = vector.multi_reduction <add>, %27, %cst_12 [1] : vector<8x256xf32> to vector<8xf32>
    %29 = vector.shape_cast %28 : vector<8xf32> to vector<8x1xf32>
    %30 = arith.subf %29, %22 : vector<8x1xf32>
    %cst_13 = arith.constant -11.5129251 : f32
    %cst_14 = arith.constant -1.00000498E-5 : f32
    %31 = vector.broadcast %cst_13 : f32 to vector<8x1xf32>
    %32 = arith.maximumf %31, %30 : vector<8x1xf32>
    %33 = vector.broadcast %cst_14 : f32 to vector<8x1xf32>
    %34 = arith.minimumf %33, %32 : vector<8x1xf32>
    %35 = arith.addf %8, %34 : vector<8x1xf32>
    %c0_15 = arith.constant 0 : index
    %c256 = arith.constant 256 : index
    %36 = vector.load %arg11[%c0_15, %c256] : memref<128x8192xbf16, #tpu.memory_space<vmem>>, vector<128x256xbf16>
    %cst_16 = arith.constant dense<0.000000e+00> : vector<8x256xf32>
    %37 = tpu.matmul %3, %36, %cst_16 {dimension_numbers = #tpu.dot_dimension_numbers<[1], [0], [0], [1], [0, 0, 1, 1], [], []>} : vector<8x128xbf16>, vector<128x256xbf16>, vector<8x256xf32> -> vector<8x256xf32>
    %c0_17 = arith.constant 0 : index
    %c256_18 = arith.constant 256 : index
    %38 = vector.load %arg12[%c0_17, %c256_18] : memref<1x8192xf32, #tpu.memory_space<vmem>>, vector<1x256xf32>
    %39 = vector.broadcast %38 : vector<1x256xf32> to vector<8x256xf32>
    %40 = arith.addf %37, %39 : vector<8x256xf32>
    %cst_19 = arith.constant dense<0xFF800000> : vector<8xf32>
    %41 = vector.multi_reduction <maximumf>, %40, %cst_19 [1] : vector<8x256xf32> to vector<8xf32>
    %42 = vector.shape_cast %41 : vector<8xf32> to vector<8x1xf32>
    %43 = vector.broadcast %42 : vector<8x1xf32> to vector<8x256xf32>
    %44 = arith.subf %40, %43 : vector<8x256xf32>
    %45 = math.exp %44 : vector<8x256xf32>
    %cst_20 = arith.constant dense<0.000000e+00> : vector<8xf32>
    %46 = vector.multi_reduction <add>, %45, %cst_20 [1] : vector<8x256xf32> to vector<8xf32>
    %47 = vector.shape_cast %46 : vector<8xf32> to vector<8x1xf32>
    %48 = math.log %47 : vector<8x1xf32>
    %49 = arith.addf %42, %48 : vector<8x1xf32>
    %50 = vector.extract_strided_slice %6 {offsets = [0, 1], sizes = [8, 1], strides = [1, 1]} : vector<8x32xi32> to vector<8x1xi32>
    %51 = vector.broadcast %50 : vector<8x1xi32> to vector<8x256xi32>
    %52 = arith.cmpi eq, %7, %51 : vector<8x256xi32>
    %cst_21 = arith.constant 0.000000e+00 : f32
    %53 = vector.broadcast %cst_21 : f32 to vector<8x256xf32>
    %54 = arith.select %52, %40, %53 : vector<8x256xi1>, vector<8x256xf32>
    %cst_22 = arith.constant dense<0.000000e+00> : vector<8xf32>
    %55 = vector.multi_reduction <add>, %54, %cst_22 [1] : vector<8x256xf32> to vector<8xf32>
    %56 = vector.shape_cast %55 : vector<8xf32> to vector<8x1xf32>
    %57 = arith.subf %56, %49 : vector<8x1xf32>
    %cst_23 = arith.constant -11.5129251 : f32
    %cst_24 = arith.constant -1.00000498E-5 : f32
    %58 = vector.broadcast %cst_23 : f32 to vector<8x1xf32>
    %59 = arith.maximumf %58, %57 : vector<8x1xf32>
    %60 = vector.broadcast %cst_24 : f32 to vector<8x1xf32>
    %61 = arith.minimumf %60, %59 : vector<8x1xf32>
    %62 = arith.addf %35, %61 : vector<8x1xf32>
    %c0_25 = arith.constant 0 : index
    %c512 = arith.constant 512 : index
    %63 = vector.load %arg11[%c0_25, %c512] : memref<128x8192xbf16, #tpu.memory_space<vmem>>, vector<128x256xbf16>
    %cst_26 = arith.constant dense<0.000000e+00> : vector<8x256xf32>
    %64 = tpu.matmul %3, %63, %cst_26 {dimension_numbers = #tpu.dot_dimension_numbers<[1], [0], [0], [1], [0, 0, 1, 1], [], []>} : vector<8x128xbf16>, vector<128x256xbf16>, vector<8x256xf32> -> vector<8x256xf32>
    %c0_27 = arith.constant 0 : index
    %c512_28 = arith.constant 512 : index
    %65 = vector.load %arg12[%c0_27, %c512_28] : memref<1x8192xf32, #tpu.memory_space<vmem>>, vector<1x256xf32>
    %66 = vector.broadcast %65 : vector<1x256xf32> to vector<8x256xf32>
    %67 = arith.addf %64, %66 : vector<8x256xf32>
    %cst_29 = arith.constant dense<0xFF800000> : vector<8xf32>
    %68 = vector.multi_reduction <maximumf>, %67, %cst_29 [1] : vector<8x256xf32> to vector<8xf32>
    %69 = vector.shape_cast %68 : vector<8xf32> to vector<8x1xf32>
    %70 = vector.broadcast %69 : vector<8x1xf32> to vector<8x256xf32>
    %71 = arith.subf %67, %70 : vector<8x256xf32>
    %72 = math.exp %71 : vector<8x256xf32>
    %cst_30 = arith.constant dense<0.000000e+00> : vector<8xf32>
    %73 = vector.multi_reduction <add>, %72, %cst_30 [1] : vector<8x256xf32> to vector<8xf32>
    %74 = vector.shape_cast %73 : vector<8xf32> to vector<8x1xf32>
    %75 = math.log %74 : vector<8x1xf32>
    %76 = arith.addf %69, %75 : vector<8x1xf32>
    %77 = vector.extract_strided_slice %6 {offsets = [0, 2], sizes = [8, 1], strides = [1, 1]} : vector<8x32xi32> to vector<8x1xi32>
    %78 = vector.broadcast %77 : vector<8x1xi32> to vector<8x256xi32>
    %79 = arith.cmpi eq, %7, %78 : vector<8x256xi32>
    %cst_31 = arith.constant 0.000000e+00 : f32
    %80 = vector.broadcast %cst_31 : f32 to vector<8x256xf32>
    %81 = arith.select %79, %67, %80 : vector<8x256xi1>, vector<8x256xf32>
    %cst_32 = arith.constant dense<0.000000e+00> : vector<8xf32>
    %82 = vector.multi_reduction <add>, %81, %cst_32 [1] : vector<8x256xf32> to vector<8xf32>
    %83 = vector.shape_cast %82 : vector<8xf32> to vector<8x1xf32>
    %84 = arith.subf %83, %76 : vector<8x1xf32>
    %cst_33 = arith.constant -11.5129251 : f32
    %cst_34 = arith.constant -1.00000498E-5 : f32
    %85 = vector.broadcast %cst_33 : f32 to vector<8x1xf32>
    %86 = arith.maximumf %85, %84 : vector<8x1xf32>
    %87 = vector.broadcast %cst_34 : f32 to vector<8x1xf32>
    %88 = arith.minimumf %87, %86 : vector<8x1xf32>
    %89 = arith.addf %62, %88 : vector<8x1xf32>
    %c0_35 = arith.constant 0 : index
    %c768 = arith.constant 768 : index
    %90 = vector.load %arg11[%c0_35, %c768] : memref<128x8192xbf16, #tpu.memory_space<vmem>>, vector<128x256xbf16>
    %cst_36 = arith.constant dense<0.000000e+00> : vector<8x256xf32>
    %91 = tpu.matmul %3, %90, %cst_36 {dimension_numbers = #tpu.dot_dimension_numbers<[1], [0], [0], [1], [0, 0, 1, 1], [], []>} : vector<8x128xbf16>, vector<128x256xbf16>, vector<8x256xf32> -> vector<8x256xf32>
    %c0_37 = arith.constant 0 : index
    %c768_38 = arith.constant 768 : index
    %92 = vector.load %arg12[%c0_37, %c768_38] : memref<1x8192xf32, #tpu.memory_space<vmem>>, vector<1x256xf32>
    %93 = vector.broadcast %92 : vector<1x256xf32> to vector<8x256xf32>
    %94 = arith.addf %91, %93 : vector<8x256xf32>
    %cst_39 = arith.constant dense<0xFF800000> : vector<8xf32>
    %95 = vector.multi_reduction <maximumf>, %94, %cst_39 [1] : vector<8x256xf32> to vector<8xf32>
    %96 = vector.shape_cast %95 : vector<8xf32> to vector<8x1xf32>
    %97 = vector.broadcast %96 : vector<8x1xf32> to vector<8x256xf32>
    %98 = arith.subf %94, %97 : vector<8x256xf32>
    %99 = math.exp %98 : vector<8x256xf32>
    %cst_40 = arith.constant dense<0.000000e+00> : vector<8xf32>
    %100 = vector.multi_reduction <add>, %99, %cst_40 [1] : vector<8x256xf32> to vector<8xf32>
    %101 = vector.shape_cast %100 : vector<8xf32> to vector<8x1xf32>
    %102 = math.log %101 : vector<8x1xf32>
    %103 = arith.addf %96, %102 : vector<8x1xf32>
    %104 = vector.extract_strided_slice %6 {offsets = [0, 3], sizes = [8, 1], strides = [1, 1]} : vector<8x32xi32> to vector<8x1xi32>
    %105 = vector.broadcast %104 : vector<8x1xi32> to vector<8x256xi32>
    %106 = arith.cmpi eq, %7, %105 : vector<8x256xi32>
    %cst_41 = arith.constant 0.000000e+00 : f32
    %107 = vector.broadcast %cst_41 : f32 to vector<8x256xf32>
    %108 = arith.select %106, %94, %107 : vector<8x256xi1>, vector<8x256xf32>
    %cst_42 = arith.constant dense<0.000000e+00> : vector<8xf32>
    %109 = vector.multi_reduction <add>, %108, %cst_42 [1] : vector<8x256xf32> to vector<8xf32>
    %110 = vector.shape_cast %109 : vector<8xf32> to vector<8x1xf32>
    %111 = arith.subf %110, %103 : vector<8x1xf32>
    %cst_43 = arith.constant -11.5129251 : f32
    %cst_44 = arith.constant -1.00000498E-5 : f32
    %112 = vector.broadcast %cst_43 : f32 to vector<8x1xf32>
    %113 = arith.maximumf %112, %111 : vector<8x1xf32>
    %114 = vector.broadcast %cst_44 : f32 to vector<8x1xf32>
    %115 = arith.minimumf %114, %113 : vector<8x1xf32>
    %116 = arith.addf %89, %115 : vector<8x1xf32>
    %c0_45 = arith.constant 0 : index
    %c1024 = arith.constant 1024 : index
    %117 = vector.load %arg11[%c0_45, %c1024] : memref<128x8192xbf16, #tpu.memory_space<vmem>>, vector<128x256xbf16>
    %cst_46 = arith.constant dense<0.000000e+00> : vector<8x256xf32>
    %118 = tpu.matmul %3, %117, %cst_46 {dimension_numbers = #tpu.dot_dimension_numbers<[1], [0], [0], [1], [0, 0, 1, 1], [], []>} : vector<8x128xbf16>, vector<128x256xbf16>, vector<8x256xf32> -> vector<8x256xf32>
    %c0_47 = arith.constant 0 : index
    %c1024_48 = arith.constant 1024 : index
    %119 = vector.load %arg12[%c0_47, %c1024_48] : memref<1x8192xf32, #tpu.memory_space<vmem>>, vector<1x256xf32>
    %120 = vector.broadcast %119 : vector<1x256xf32> to vector<8x256xf32>
    %121 = arith.addf %118, %120 : vector<8x256xf32>
    %cst_49 = arith.constant dense<0xFF800000> : vector<8xf32>
    %122 = vector.multi_reduction <maximumf>, %121, %cst_49 [1] : vector<8x256xf32> to vector<8xf32>
    %123 = vector.shape_cast %122 : vector<8xf32> to vector<8x1xf32>
    %124 = vector.broadcast %123 : vector<8x1xf32> to vector<8x256xf32>
    %125 = arith.subf %121, %124 : vector<8x256xf32>
    %126 = math.exp %125 : vector<8x256xf32>
    %cst_50 = arith.constant dense<0.000000e+00> : vector<8xf32>
    %127 = vector.multi_reduction <add>, %126, %cst_50 [1] : vector<8x256xf32> to vector<8xf32>
    %128 = vector.shape_cast %127 : vector<8xf32> to vector<8x1xf32>
    %129 = math.log %128 : vector<8x1xf32>
    %130 = arith.addf %123, %129 : vector<8x1xf32>
    %131 = vector.extract_strided_slice %6 {offsets = [0, 4], sizes = [8, 1], strides = [1, 1]} : vector<8x32xi32> to vector<8x1xi32>
    %132 = vector.broadcast %131 : vector<8x1xi32> to vector<8x256xi32>
    %133 = arith.cmpi eq, %7, %132 : vector<8x256xi32>
    %cst_51 = arith.constant 0.000000e+00 : f32
    %134 = vector.broadcast %cst_51 : f32 to vector<8x256xf32>
    %135 = arith.select %133, %121, %134 : vector<8x256xi1>, vector<8x256xf32>
    %cst_52 = arith.constant dense<0.000000e+00> : vector<8xf32>
    %136 = vector.multi_reduction <add>, %135, %cst_52 [1] : vector<8x256xf32> to vector<8xf32>
    %137 = vector.shape_cast %136 : vector<8xf32> to vector<8x1xf32>
    %138 = arith.subf %137, %130 : vector<8x1xf32>
    %cst_53 = arith.constant -11.5129251 : f32
    %cst_54 = arith.constant -1.00000498E-5 : f32
    %139 = vector.broadcast %cst_53 : f32 to vector<8x1xf32>
    %140 = arith.maximumf %139, %138 : vector<8x1xf32>
    %141 = vector.broadcast %cst_54 : f32 to vector<8x1xf32>
    %142 = arith.minimumf %141, %140 : vector<8x1xf32>
    %143 = arith.addf %116, %142 : vector<8x1xf32>
    %c0_55 = arith.constant 0 : index
    %c1280 = arith.constant 1280 : index
    %144 = vector.load %arg11[%c0_55, %c1280] : memref<128x8192xbf16, #tpu.memory_space<vmem>>, vector<128x256xbf16>
    %cst_56 = arith.constant dense<0.000000e+00> : vector<8x256xf32>
    %145 = tpu.matmul %3, %144, %cst_56 {dimension_numbers = #tpu.dot_dimension_numbers<[1], [0], [0], [1], [0, 0, 1, 1], [], []>} : vector<8x128xbf16>, vector<128x256xbf16>, vector<8x256xf32> -> vector<8x256xf32>
    %c0_57 = arith.constant 0 : index
    %c1280_58 = arith.constant 1280 : index
    %146 = vector.load %arg12[%c0_57, %c1280_58] : memref<1x8192xf32, #tpu.memory_space<vmem>>, vector<1x256xf32>
    %147 = vector.broadcast %146 : vector<1x256xf32> to vector<8x256xf32>
    %148 = arith.addf %145, %147 : vector<8x256xf32>
    %cst_59 = arith.constant dense<0xFF800000> : vector<8xf32>
    %149 = vector.multi_reduction <maximumf>, %148, %cst_59 [1] : vector<8x256xf32> to vector<8xf32>
    %150 = vector.shape_cast %149 : vector<8xf32> to vector<8x1xf32>
    %151 = vector.broadcast %150 : vector<8x1xf32> to vector<8x256xf32>
    %152 = arith.subf %148, %151 : vector<8x256xf32>
    %153 = math.exp %152 : vector<8x256xf32>
    %cst_60 = arith.constant dense<0.000000e+00> : vector<8xf32>
    %154 = vector.multi_reduction <add>, %153, %cst_60 [1] : vector<8x256xf32> to vector<8xf32>
    %155 = vector.shape_cast %154 : vector<8xf32> to vector<8x1xf32>
    %156 = math.log %155 : vector<8x1xf32>
    %157 = arith.addf %150, %156 : vector<8x1xf32>
    %158 = vector.extract_strided_slice %6 {offsets = [0, 5], sizes = [8, 1], strides = [1, 1]} : vector<8x32xi32> to vector<8x1xi32>
    %159 = vector.broadcast %158 : vector<8x1xi32> to vector<8x256xi32>
    %160 = arith.cmpi eq, %7, %159 : vector<8x256xi32>
    %cst_61 = arith.constant 0.000000e+00 : f32
    %161 = vector.broadcast %cst_61 : f32 to vector<8x256xf32>
    %162 = arith.select %160, %148, %161 : vector<8x256xi1>, vector<8x256xf32>
    %cst_62 = arith.constant dense<0.000000e+00> : vector<8xf32>
    %163 = vector.multi_reduction <add>, %162, %cst_62 [1] : vector<8x256xf32> to vector<8xf32>
    %164 = vector.shape_cast %163 : vector<8xf32> to vector<8x1xf32>
    %165 = arith.subf %164, %157 : vector<8x1xf32>
    %cst_63 = arith.constant -11.5129251 : f32
    %cst_64 = arith.constant -1.00000498E-5 : f32
    %166 = vector.broadcast %cst_63 : f32 to vector<8x1xf32>
    %167 = arith.maximumf %166, %165 : vector<8x1xf32>
    %168 = vector.broadcast %cst_64 : f32 to vector<8x1xf32>
    %169 = arith.minimumf %168, %167 : vector<8x1xf32>
    %170 = arith.addf %143, %169 : vector<8x1xf32>
    %c0_65 = arith.constant 0 : index
    %c1536 = arith.constant 1536 : index
    %171 = vector.load %arg11[%c0_65, %c1536] : memref<128x8192xbf16, #tpu.memory_space<vmem>>, vector<128x256xbf16>
    %cst_66 = arith.constant dense<0.000000e+00> : vector<8x256xf32>
    %172 = tpu.matmul %3, %171, %cst_66 {dimension_numbers = #tpu.dot_dimension_numbers<[1], [0], [0], [1], [0, 0, 1, 1], [], []>} : vector<8x128xbf16>, vector<128x256xbf16>, vector<8x256xf32> -> vector<8x256xf32>
    %c0_67 = arith.constant 0 : index
    %c1536_68 = arith.constant 1536 : index
    %173 = vector.load %arg12[%c0_67, %c1536_68] : memref<1x8192xf32, #tpu.memory_space<vmem>>, vector<1x256xf32>
    %174 = vector.broadcast %173 : vector<1x256xf32> to vector<8x256xf32>
    %175 = arith.addf %172, %174 : vector<8x256xf32>
    %cst_69 = arith.constant dense<0xFF800000> : vector<8xf32>
    %176 = vector.multi_reduction <maximumf>, %175, %cst_69 [1] : vector<8x256xf32> to vector<8xf32>
    %177 = vector.shape_cast %176 : vector<8xf32> to vector<8x1xf32>
    %178 = vector.broadcast %177 : vector<8x1xf32> to vector<8x256xf32>
    %179 = arith.subf %175, %178 : vector<8x256xf32>
    %180 = math.exp %179 : vector<8x256xf32>
    %cst_70 = arith.constant dense<0.000000e+00> : vector<8xf32>
    %181 = vector.multi_reduction <add>, %180, %cst_70 [1] : vector<8x256xf32> to vector<8xf32>
    %182 = vector.shape_cast %181 : vector<8xf32> to vector<8x1xf32>
    %183 = math.log %182 : vector<8x1xf32>
    %184 = arith.addf %177, %183 : vector<8x1xf32>
    %185 = vector.extract_strided_slice %6 {offsets = [0, 6], sizes = [8, 1], strides = [1, 1]} : vector<8x32xi32> to vector<8x1xi32>
    %186 = vector.broadcast %185 : vector<8x1xi32> to vector<8x256xi32>
    %187 = arith.cmpi eq, %7, %186 : vector<8x256xi32>
    %cst_71 = arith.constant 0.000000e+00 : f32
    %188 = vector.broadcast %cst_71 : f32 to vector<8x256xf32>
    %189 = arith.select %187, %175, %188 : vector<8x256xi1>, vector<8x256xf32>
    %cst_72 = arith.constant dense<0.000000e+00> : vector<8xf32>
    %190 = vector.multi_reduction <add>, %189, %cst_72 [1] : vector<8x256xf32> to vector<8xf32>
    %191 = vector.shape_cast %190 : vector<8xf32> to vector<8x1xf32>
    %192 = arith.subf %191, %184 : vector<8x1xf32>
    %cst_73 = arith.constant -11.5129251 : f32
    %cst_74 = arith.constant -1.00000498E-5 : f32
    %193 = vector.broadcast %cst_73 : f32 to vector<8x1xf32>
    %194 = arith.maximumf %193, %192 : vector<8x1xf32>
    %195 = vector.broadcast %cst_74 : f32 to vector<8x1xf32>
    %196 = arith.minimumf %195, %194 : vector<8x1xf32>
    %197 = arith.addf %170, %196 : vector<8x1xf32>
    %c0_75 = arith.constant 0 : index
    %c1792 = arith.constant 1792 : index
    %198 = vector.load %arg11[%c0_75, %c1792] : memref<128x8192xbf16, #tpu.memory_space<vmem>>, vector<128x256xbf16>
    %cst_76 = arith.constant dense<0.000000e+00> : vector<8x256xf32>
    %199 = tpu.matmul %3, %198, %cst_76 {dimension_numbers = #tpu.dot_dimension_numbers<[1], [0], [0], [1], [0, 0, 1, 1], [], []>} : vector<8x128xbf16>, vector<128x256xbf16>, vector<8x256xf32> -> vector<8x256xf32>
    %c0_77 = arith.constant 0 : index
    %c1792_78 = arith.constant 1792 : index
    %200 = vector.load %arg12[%c0_77, %c1792_78] : memref<1x8192xf32, #tpu.memory_space<vmem>>, vector<1x256xf32>
    %201 = vector.broadcast %200 : vector<1x256xf32> to vector<8x256xf32>
    %202 = arith.addf %199, %201 : vector<8x256xf32>
    %cst_79 = arith.constant dense<0xFF800000> : vector<8xf32>
    %203 = vector.multi_reduction <maximumf>, %202, %cst_79 [1] : vector<8x256xf32> to vector<8xf32>
    %204 = vector.shape_cast %203 : vector<8xf32> to vector<8x1xf32>
    %205 = vector.broadcast %204 : vector<8x1xf32> to vector<8x256xf32>
    %206 = arith.subf %202, %205 : vector<8x256xf32>
    %207 = math.exp %206 : vector<8x256xf32>
    %cst_80 = arith.constant dense<0.000000e+00> : vector<8xf32>
    %208 = vector.multi_reduction <add>, %207, %cst_80 [1] : vector<8x256xf32> to vector<8xf32>
    %209 = vector.shape_cast %208 : vector<8xf32> to vector<8x1xf32>
    %210 = math.log %209 : vector<8x1xf32>
    %211 = arith.addf %204, %210 : vector<8x1xf32>
    %212 = vector.extract_strided_slice %6 {offsets = [0, 7], sizes = [8, 1], strides = [1, 1]} : vector<8x32xi32> to vector<8x1xi32>
    %213 = vector.broadcast %212 : vector<8x1xi32> to vector<8x256xi32>
    %214 = arith.cmpi eq, %7, %213 : vector<8x256xi32>
    %cst_81 = arith.constant 0.000000e+00 : f32
    %215 = vector.broadcast %cst_81 : f32 to vector<8x256xf32>
    %216 = arith.select %214, %202, %215 : vector<8x256xi1>, vector<8x256xf32>
    %cst_82 = arith.constant dense<0.000000e+00> : vector<8xf32>
    %217 = vector.multi_reduction <add>, %216, %cst_82 [1] : vector<8x256xf32> to vector<8xf32>
    %218 = vector.shape_cast %217 : vector<8xf32> to vector<8x1xf32>
    %219 = arith.subf %218, %211 : vector<8x1xf32>
    %cst_83 = arith.constant -11.5129251 : f32
    %cst_84 = arith.constant -1.00000498E-5 : f32
    %220 = vector.broadcast %cst_83 : f32 to vector<8x1xf32>
    %221 = arith.maximumf %220, %219 : vector<8x1xf32>
    %222 = vector.broadcast %cst_84 : f32 to vector<8x1xf32>
    %223 = arith.minimumf %222, %221 : vector<8x1xf32>
    %224 = arith.addf %197, %223 : vector<8x1xf32>
    %c0_85 = arith.constant 0 : index
    %c2048 = arith.constant 2048 : index
    %225 = vector.load %arg11[%c0_85, %c2048] : memref<128x8192xbf16, #tpu.memory_space<vmem>>, vector<128x256xbf16>
    %cst_86 = arith.constant dense<0.000000e+00> : vector<8x256xf32>
    %226 = tpu.matmul %3, %225, %cst_86 {dimension_numbers = #tpu.dot_dimension_numbers<[1], [0], [0], [1], [0, 0, 1, 1], [], []>} : vector<8x128xbf16>, vector<128x256xbf16>, vector<8x256xf32> -> vector<8x256xf32>
    %c0_87 = arith.constant 0 : index
    %c2048_88 = arith.constant 2048 : index
    %227 = vector.load %arg12[%c0_87, %c2048_88] : memref<1x8192xf32, #tpu.memory_space<vmem>>, vector<1x256xf32>
    %228 = vector.broadcast %227 : vector<1x256xf32> to vector<8x256xf32>
    %229 = arith.addf %226, %228 : vector<8x256xf32>
    %cst_89 = arith.constant dense<0xFF800000> : vector<8xf32>
    %230 = vector.multi_reduction <maximumf>, %229, %cst_89 [1] : vector<8x256xf32> to vector<8xf32>
    %231 = vector.shape_cast %230 : vector<8xf32> to vector<8x1xf32>
    %232 = vector.broadcast %231 : vector<8x1xf32> to vector<8x256xf32>
    %233 = arith.subf %229, %232 : vector<8x256xf32>
    %234 = math.exp %233 : vector<8x256xf32>
    %cst_90 = arith.constant dense<0.000000e+00> : vector<8xf32>
    %235 = vector.multi_reduction <add>, %234, %cst_90 [1] : vector<8x256xf32> to vector<8xf32>
    %236 = vector.shape_cast %235 : vector<8xf32> to vector<8x1xf32>
    %237 = math.log %236 : vector<8x1xf32>
    %238 = arith.addf %231, %237 : vector<8x1xf32>
    %239 = vector.extract_strided_slice %6 {offsets = [0, 8], sizes = [8, 1], strides = [1, 1]} : vector<8x32xi32> to vector<8x1xi32>
    %240 = vector.broadcast %239 : vector<8x1xi32> to vector<8x256xi32>
    %241 = arith.cmpi eq, %7, %240 : vector<8x256xi32>
    %cst_91 = arith.constant 0.000000e+00 : f32
    %242 = vector.broadcast %cst_91 : f32 to vector<8x256xf32>
    %243 = arith.select %241, %229, %242 : vector<8x256xi1>, vector<8x256xf32>
    %cst_92 = arith.constant dense<0.000000e+00> : vector<8xf32>
    %244 = vector.multi_reduction <add>, %243, %cst_92 [1] : vector<8x256xf32> to vector<8xf32>
    %245 = vector.shape_cast %244 : vector<8xf32> to vector<8x1xf32>
    %246 = arith.subf %245, %238 : vector<8x1xf32>
    %cst_93 = arith.constant -11.5129251 : f32
    %cst_94 = arith.constant -1.00000498E-5 : f32
    %247 = vector.broadcast %cst_93 : f32 to vector<8x1xf32>
    %248 = arith.maximumf %247, %246 : vector<8x1xf32>
    %249 = vector.broadcast %cst_94 : f32 to vector<8x1xf32>
    %250 = arith.minimumf %249, %248 : vector<8x1xf32>
    %251 = arith.addf %224, %250 : vector<8x1xf32>
    %c0_95 = arith.constant 0 : index
    %c2304 = arith.constant 2304 : index
    %252 = vector.load %arg11[%c0_95, %c2304] : memref<128x8192xbf16, #tpu.memory_space<vmem>>, vector<128x256xbf16>
    %cst_96 = arith.constant dense<0.000000e+00> : vector<8x256xf32>
    %253 = tpu.matmul %3, %252, %cst_96 {dimension_numbers = #tpu.dot_dimension_numbers<[1], [0], [0], [1], [0, 0, 1, 1], [], []>} : vector<8x128xbf16>, vector<128x256xbf16>, vector<8x256xf32> -> vector<8x256xf32>
    %c0_97 = arith.constant 0 : index
    %c2304_98 = arith.constant 2304 : index
    %254 = vector.load %arg12[%c0_97, %c2304_98] : memref<1x8192xf32, #tpu.memory_space<vmem>>, vector<1x256xf32>
    %255 = vector.broadcast %254 : vector<1x256xf32> to vector<8x256xf32>
    %256 = arith.addf %253, %255 : vector<8x256xf32>
    %cst_99 = arith.constant dense<0xFF800000> : vector<8xf32>
    %257 = vector.multi_reduction <maximumf>, %256, %cst_99 [1] : vector<8x256xf32> to vector<8xf32>
    %258 = vector.shape_cast %257 : vector<8xf32> to vector<8x1xf32>
    %259 = vector.broadcast %258 : vector<8x1xf32> to vector<8x256xf32>
    %260 = arith.subf %256, %259 : vector<8x256xf32>
    %261 = math.exp %260 : vector<8x256xf32>
    %cst_100 = arith.constant dense<0.000000e+00> : vector<8xf32>
    %262 = vector.multi_reduction <add>, %261, %cst_100 [1] : vector<8x256xf32> to vector<8xf32>
    %263 = vector.shape_cast %262 : vector<8xf32> to vector<8x1xf32>
    %264 = math.log %263 : vector<8x1xf32>
    %265 = arith.addf %258, %264 : vector<8x1xf32>
    %266 = vector.extract_strided_slice %6 {offsets = [0, 9], sizes = [8, 1], strides = [1, 1]} : vector<8x32xi32> to vector<8x1xi32>
    %267 = vector.broadcast %266 : vector<8x1xi32> to vector<8x256xi32>
    %268 = arith.cmpi eq, %7, %267 : vector<8x256xi32>
    %cst_101 = arith.constant 0.000000e+00 : f32
    %269 = vector.broadcast %cst_101 : f32 to vector<8x256xf32>
    %270 = arith.select %268, %256, %269 : vector<8x256xi1>, vector<8x256xf32>
    %cst_102 = arith.constant dense<0.000000e+00> : vector<8xf32>
    %271 = vector.multi_reduction <add>, %270, %cst_102 [1] : vector<8x256xf32> to vector<8xf32>
    %272 = vector.shape_cast %271 : vector<8xf32> to vector<8x1xf32>
    %273 = arith.subf %272, %265 : vector<8x1xf32>
    %cst_103 = arith.constant -11.5129251 : f32
    %cst_104 = arith.constant -1.00000498E-5 : f32
    %274 = vector.broadcast %cst_103 : f32 to vector<8x1xf32>
    %275 = arith.maximumf %274, %273 : vector<8x1xf32>
    %276 = vector.broadcast %cst_104 : f32 to vector<8x1xf32>
    %277 = arith.minimumf %276, %275 : vector<8x1xf32>
    %278 = arith.addf %251, %277 : vector<8x1xf32>
    %c0_105 = arith.constant 0 : index
    %c2560 = arith.constant 2560 : index
    %279 = vector.load %arg11[%c0_105, %c2560] : memref<128x8192xbf16, #tpu.memory_space<vmem>>, vector<128x256xbf16>
    %cst_106 = arith.constant dense<0.000000e+00> : vector<8x256xf32>
    %280 = tpu.matmul %3, %279, %cst_106 {dimension_numbers = #tpu.dot_dimension_numbers<[1], [0], [0], [1], [0, 0, 1, 1], [], []>} : vector<8x128xbf16>, vector<128x256xbf16>, vector<8x256xf32> -> vector<8x256xf32>
    %c0_107 = arith.constant 0 : index
    %c2560_108 = arith.constant 2560 : index
    %281 = vector.load %arg12[%c0_107, %c2560_108] : memref<1x8192xf32, #tpu.memory_space<vmem>>, vector<1x256xf32>
    %282 = vector.broadcast %281 : vector<1x256xf32> to vector<8x256xf32>
    %283 = arith.addf %280, %282 : vector<8x256xf32>
    %cst_109 = arith.constant dense<0xFF800000> : vector<8xf32>
    %284 = vector.multi_reduction <maximumf>, %283, %cst_109 [1] : vector<8x256xf32> to vector<8xf32>
    %285 = vector.shape_cast %284 : vector<8xf32> to vector<8x1xf32>
    %286 = vector.broadcast %285 : vector<8x1xf32> to vector<8x256xf32>
    %287 = arith.subf %283, %286 : vector<8x256xf32>
    %288 = math.exp %287 : vector<8x256xf32>
    %cst_110 = arith.constant dense<0.000000e+00> : vector<8xf32>
    %289 = vector.multi_reduction <add>, %288, %cst_110 [1] : vector<8x256xf32> to vector<8xf32>
    %290 = vector.shape_cast %289 : vector<8xf32> to vector<8x1xf32>
    %291 = math.log %290 : vector<8x1xf32>
    %292 = arith.addf %285, %291 : vector<8x1xf32>
    %293 = vector.extract_strided_slice %6 {offsets = [0, 10], sizes = [8, 1], strides = [1, 1]} : vector<8x32xi32> to vector<8x1xi32>
    %294 = vector.broadcast %293 : vector<8x1xi32> to vector<8x256xi32>
    %295 = arith.cmpi eq, %7, %294 : vector<8x256xi32>
    %cst_111 = arith.constant 0.000000e+00 : f32
    %296 = vector.broadcast %cst_111 : f32 to vector<8x256xf32>
    %297 = arith.select %295, %283, %296 : vector<8x256xi1>, vector<8x256xf32>
    %cst_112 = arith.constant dense<0.000000e+00> : vector<8xf32>
    %298 = vector.multi_reduction <add>, %297, %cst_112 [1] : vector<8x256xf32> to vector<8xf32>
    %299 = vector.shape_cast %298 : vector<8xf32> to vector<8x1xf32>
    %300 = arith.subf %299, %292 : vector<8x1xf32>
    %cst_113 = arith.constant -11.5129251 : f32
    %cst_114 = arith.constant -1.00000498E-5 : f32
    %301 = vector.broadcast %cst_113 : f32 to vector<8x1xf32>
    %302 = arith.maximumf %301, %300 : vector<8x1xf32>
    %303 = vector.broadcast %cst_114 : f32 to vector<8x1xf32>
    %304 = arith.minimumf %303, %302 : vector<8x1xf32>
    %305 = arith.addf %278, %304 : vector<8x1xf32>
    %c0_115 = arith.constant 0 : index
    %c2816 = arith.constant 2816 : index
    %306 = vector.load %arg11[%c0_115, %c2816] : memref<128x8192xbf16, #tpu.memory_space<vmem>>, vector<128x256xbf16>
    %cst_116 = arith.constant dense<0.000000e+00> : vector<8x256xf32>
    %307 = tpu.matmul %3, %306, %cst_116 {dimension_numbers = #tpu.dot_dimension_numbers<[1], [0], [0], [1], [0, 0, 1, 1], [], []>} : vector<8x128xbf16>, vector<128x256xbf16>, vector<8x256xf32> -> vector<8x256xf32>
    %c0_117 = arith.constant 0 : index
    %c2816_118 = arith.constant 2816 : index
    %308 = vector.load %arg12[%c0_117, %c2816_118] : memref<1x8192xf32, #tpu.memory_space<vmem>>, vector<1x256xf32>
    %309 = vector.broadcast %308 : vector<1x256xf32> to vector<8x256xf32>
    %310 = arith.addf %307, %309 : vector<8x256xf32>
    %cst_119 = arith.constant dense<0xFF800000> : vector<8xf32>
    %311 = vector.multi_reduction <maximumf>, %310, %cst_119 [1] : vector<8x256xf32> to vector<8xf32>
    %312 = vector.shape_cast %311 : vector<8xf32> to vector<8x1xf32>
    %313 = vector.broadcast %312 : vector<8x1xf32> to vector<8x256xf32>
    %314 = arith.subf %310, %313 : vector<8x256xf32>
    %315 = math.exp %314 : vector<8x256xf32>
    %cst_120 = arith.constant dense<0.000000e+00> : vector<8xf32>
    %316 = vector.multi_reduction <add>, %315, %cst_120 [1] : vector<8x256xf32> to vector<8xf32>
    %317 = vector.shape_cast %316 : vector<8xf32> to vector<8x1xf32>
    %318 = math.log %317 : vector<8x1xf32>
    %319 = arith.addf %312, %318 : vector<8x1xf32>
    %320 = vector.extract_strided_slice %6 {offsets = [0, 11], sizes = [8, 1], strides = [1, 1]} : vector<8x32xi32> to vector<8x1xi32>
    %321 = vector.broadcast %320 : vector<8x1xi32> to vector<8x256xi32>
    %322 = arith.cmpi eq, %7, %321 : vector<8x256xi32>
    %cst_121 = arith.constant 0.000000e+00 : f32
    %323 = vector.broadcast %cst_121 : f32 to vector<8x256xf32>
    %324 = arith.select %322, %310, %323 : vector<8x256xi1>, vector<8x256xf32>
    %cst_122 = arith.constant dense<0.000000e+00> : vector<8xf32>
    %325 = vector.multi_reduction <add>, %324, %cst_122 [1] : vector<8x256xf32> to vector<8xf32>
    %326 = vector.shape_cast %325 : vector<8xf32> to vector<8x1xf32>
    %327 = arith.subf %326, %319 : vector<8x1xf32>
    %cst_123 = arith.constant -11.5129251 : f32
    %cst_124 = arith.constant -1.00000498E-5 : f32
    %328 = vector.broadcast %cst_123 : f32 to vector<8x1xf32>
    %329 = arith.maximumf %328, %327 : vector<8x1xf32>
    %330 = vector.broadcast %cst_124 : f32 to vector<8x1xf32>
    %331 = arith.minimumf %330, %329 : vector<8x1xf32>
    %332 = arith.addf %305, %331 : vector<8x1xf32>
    %c0_125 = arith.constant 0 : index
    %c3072 = arith.constant 3072 : index
    %333 = vector.load %arg11[%c0_125, %c3072] : memref<128x8192xbf16, #tpu.memory_space<vmem>>, vector<128x256xbf16>
    %cst_126 = arith.constant dense<0.000000e+00> : vector<8x256xf32>
    %334 = tpu.matmul %3, %333, %cst_126 {dimension_numbers = #tpu.dot_dimension_numbers<[1], [0], [0], [1], [0, 0, 1, 1], [], []>} : vector<8x128xbf16>, vector<128x256xbf16>, vector<8x256xf32> -> vector<8x256xf32>
    %c0_127 = arith.constant 0 : index
    %c3072_128 = arith.constant 3072 : index
    %335 = vector.load %arg12[%c0_127, %c3072_128] : memref<1x8192xf32, #tpu.memory_space<vmem>>, vector<1x256xf32>
    %336 = vector.broadcast %335 : vector<1x256xf32> to vector<8x256xf32>
    %337 = arith.addf %334, %336 : vector<8x256xf32>
    %cst_129 = arith.constant dense<0xFF800000> : vector<8xf32>
    %338 = vector.multi_reduction <maximumf>, %337, %cst_129 [1] : vector<8x256xf32> to vector<8xf32>
    %339 = vector.shape_cast %338 : vector<8xf32> to vector<8x1xf32>
    %340 = vector.broadcast %339 : vector<8x1xf32> to vector<8x256xf32>
    %341 = arith.subf %337, %340 : vector<8x256xf32>
    %342 = math.exp %341 : vector<8x256xf32>
    %cst_130 = arith.constant dense<0.000000e+00> : vector<8xf32>
    %343 = vector.multi_reduction <add>, %342, %cst_130 [1] : vector<8x256xf32> to vector<8xf32>
    %344 = vector.shape_cast %343 : vector<8xf32> to vector<8x1xf32>
    %345 = math.log %344 : vector<8x1xf32>
    %346 = arith.addf %339, %345 : vector<8x1xf32>
    %347 = vector.extract_strided_slice %6 {offsets = [0, 12], sizes = [8, 1], strides = [1, 1]} : vector<8x32xi32> to vector<8x1xi32>
    %348 = vector.broadcast %347 : vector<8x1xi32> to vector<8x256xi32>
    %349 = arith.cmpi eq, %7, %348 : vector<8x256xi32>
    %cst_131 = arith.constant 0.000000e+00 : f32
    %350 = vector.broadcast %cst_131 : f32 to vector<8x256xf32>
    %351 = arith.select %349, %337, %350 : vector<8x256xi1>, vector<8x256xf32>
    %cst_132 = arith.constant dense<0.000000e+00> : vector<8xf32>
    %352 = vector.multi_reduction <add>, %351, %cst_132 [1] : vector<8x256xf32> to vector<8xf32>
    %353 = vector.shape_cast %352 : vector<8xf32> to vector<8x1xf32>
    %354 = arith.subf %353, %346 : vector<8x1xf32>
    %cst_133 = arith.constant -11.5129251 : f32
    %cst_134 = arith.constant -1.00000498E-5 : f32
    %355 = vector.broadcast %cst_133 : f32 to vector<8x1xf32>
    %356 = arith.maximumf %355, %354 : vector<8x1xf32>
    %357 = vector.broadcast %cst_134 : f32 to vector<8x1xf32>
    %358 = arith.minimumf %357, %356 : vector<8x1xf32>
    %359 = arith.addf %332, %358 : vector<8x1xf32>
    %c0_135 = arith.constant 0 : index
    %c3328 = arith.constant 3328 : index
    %360 = vector.load %arg11[%c0_135, %c3328] : memref<128x8192xbf16, #tpu.memory_space<vmem>>, vector<128x256xbf16>
    %cst_136 = arith.constant dense<0.000000e+00> : vector<8x256xf32>
    %361 = tpu.matmul %3, %360, %cst_136 {dimension_numbers = #tpu.dot_dimension_numbers<[1], [0], [0], [1], [0, 0, 1, 1], [], []>} : vector<8x128xbf16>, vector<128x256xbf16>, vector<8x256xf32> -> vector<8x256xf32>
    %c0_137 = arith.constant 0 : index
    %c3328_138 = arith.constant 3328 : index
    %362 = vector.load %arg12[%c0_137, %c3328_138] : memref<1x8192xf32, #tpu.memory_space<vmem>>, vector<1x256xf32>
    %363 = vector.broadcast %362 : vector<1x256xf32> to vector<8x256xf32>
    %364 = arith.addf %361, %363 : vector<8x256xf32>
    %cst_139 = arith.constant dense<0xFF800000> : vector<8xf32>
    %365 = vector.multi_reduction <maximumf>, %364, %cst_139 [1] : vector<8x256xf32> to vector<8xf32>
    %366 = vector.shape_cast %365 : vector<8xf32> to vector<8x1xf32>
    %367 = vector.broadcast %366 : vector<8x1xf32> to vector<8x256xf32>
    %368 = arith.subf %364, %367 : vector<8x256xf32>
    %369 = math.exp %368 : vector<8x256xf32>
    %cst_140 = arith.constant dense<0.000000e+00> : vector<8xf32>
    %370 = vector.multi_reduction <add>, %369, %cst_140 [1] : vector<8x256xf32> to vector<8xf32>
    %371 = vector.shape_cast %370 : vector<8xf32> to vector<8x1xf32>
    %372 = math.log %371 : vector<8x1xf32>
    %373 = arith.addf %366, %372 : vector<8x1xf32>
    %374 = vector.extract_strided_slice %6 {offsets = [0, 13], sizes = [8, 1], strides = [1, 1]} : vector<8x32xi32> to vector<8x1xi32>
    %375 = vector.broadcast %374 : vector<8x1xi32> to vector<8x256xi32>
    %376 = arith.cmpi eq, %7, %375 : vector<8x256xi32>
    %cst_141 = arith.constant 0.000000e+00 : f32
    %377 = vector.broadcast %cst_141 : f32 to vector<8x256xf32>
    %378 = arith.select %376, %364, %377 : vector<8x256xi1>, vector<8x256xf32>
    %cst_142 = arith.constant dense<0.000000e+00> : vector<8xf32>
    %379 = vector.multi_reduction <add>, %378, %cst_142 [1] : vector<8x256xf32> to vector<8xf32>
    %380 = vector.shape_cast %379 : vector<8xf32> to vector<8x1xf32>
    %381 = arith.subf %380, %373 : vector<8x1xf32>
    %cst_143 = arith.constant -11.5129251 : f32
    %cst_144 = arith.constant -1.00000498E-5 : f32
    %382 = vector.broadcast %cst_143 : f32 to vector<8x1xf32>
    %383 = arith.maximumf %382, %381 : vector<8x1xf32>
    %384 = vector.broadcast %cst_144 : f32 to vector<8x1xf32>
    %385 = arith.minimumf %384, %383 : vector<8x1xf32>
    %386 = arith.addf %359, %385 : vector<8x1xf32>
    %c0_145 = arith.constant 0 : index
    %c3584 = arith.constant 3584 : index
    %387 = vector.load %arg11[%c0_145, %c3584] : memref<128x8192xbf16, #tpu.memory_space<vmem>>, vector<128x256xbf16>
    %cst_146 = arith.constant dense<0.000000e+00> : vector<8x256xf32>
    %388 = tpu.matmul %3, %387, %cst_146 {dimension_numbers = #tpu.dot_dimension_numbers<[1], [0], [0], [1], [0, 0, 1, 1], [], []>} : vector<8x128xbf16>, vector<128x256xbf16>, vector<8x256xf32> -> vector<8x256xf32>
    %c0_147 = arith.constant 0 : index
    %c3584_148 = arith.constant 3584 : index
    %389 = vector.load %arg12[%c0_147, %c3584_148] : memref<1x8192xf32, #tpu.memory_space<vmem>>, vector<1x256xf32>
    %390 = vector.broadcast %389 : vector<1x256xf32> to vector<8x256xf32>
    %391 = arith.addf %388, %390 : vector<8x256xf32>
    %cst_149 = arith.constant dense<0xFF800000> : vector<8xf32>
    %392 = vector.multi_reduction <maximumf>, %391, %cst_149 [1] : vector<8x256xf32> to vector<8xf32>
    %393 = vector.shape_cast %392 : vector<8xf32> to vector<8x1xf32>
    %394 = vector.broadcast %393 : vector<8x1xf32> to vector<8x256xf32>
    %395 = arith.subf %391, %394 : vector<8x256xf32>
    %396 = math.exp %395 : vector<8x256xf32>
    %cst_150 = arith.constant dense<0.000000e+00> : vector<8xf32>
    %397 = vector.multi_reduction <add>, %396, %cst_150 [1] : vector<8x256xf32> to vector<8xf32>
    %398 = vector.shape_cast %397 : vector<8xf32> to vector<8x1xf32>
    %399 = math.log %398 : vector<8x1xf32>
    %400 = arith.addf %393, %399 : vector<8x1xf32>
    %401 = vector.extract_strided_slice %6 {offsets = [0, 14], sizes = [8, 1], strides = [1, 1]} : vector<8x32xi32> to vector<8x1xi32>
    %402 = vector.broadcast %401 : vector<8x1xi32> to vector<8x256xi32>
    %403 = arith.cmpi eq, %7, %402 : vector<8x256xi32>
    %cst_151 = arith.constant 0.000000e+00 : f32
    %404 = vector.broadcast %cst_151 : f32 to vector<8x256xf32>
    %405 = arith.select %403, %391, %404 : vector<8x256xi1>, vector<8x256xf32>
    %cst_152 = arith.constant dense<0.000000e+00> : vector<8xf32>
    %406 = vector.multi_reduction <add>, %405, %cst_152 [1] : vector<8x256xf32> to vector<8xf32>
    %407 = vector.shape_cast %406 : vector<8xf32> to vector<8x1xf32>
    %408 = arith.subf %407, %400 : vector<8x1xf32>
    %cst_153 = arith.constant -11.5129251 : f32
    %cst_154 = arith.constant -1.00000498E-5 : f32
    %409 = vector.broadcast %cst_153 : f32 to vector<8x1xf32>
    %410 = arith.maximumf %409, %408 : vector<8x1xf32>
    %411 = vector.broadcast %cst_154 : f32 to vector<8x1xf32>
    %412 = arith.minimumf %411, %410 : vector<8x1xf32>
    %413 = arith.addf %386, %412 : vector<8x1xf32>
    %c0_155 = arith.constant 0 : index
    %c3840 = arith.constant 3840 : index
    %414 = vector.load %arg11[%c0_155, %c3840] : memref<128x8192xbf16, #tpu.memory_space<vmem>>, vector<128x256xbf16>
    %cst_156 = arith.constant dense<0.000000e+00> : vector<8x256xf32>
    %415 = tpu.matmul %3, %414, %cst_156 {dimension_numbers = #tpu.dot_dimension_numbers<[1], [0], [0], [1], [0, 0, 1, 1], [], []>} : vector<8x128xbf16>, vector<128x256xbf16>, vector<8x256xf32> -> vector<8x256xf32>
    %c0_157 = arith.constant 0 : index
    %c3840_158 = arith.constant 3840 : index
    %416 = vector.load %arg12[%c0_157, %c3840_158] : memref<1x8192xf32, #tpu.memory_space<vmem>>, vector<1x256xf32>
    %417 = vector.broadcast %416 : vector<1x256xf32> to vector<8x256xf32>
    %418 = arith.addf %415, %417 : vector<8x256xf32>
    %cst_159 = arith.constant dense<0xFF800000> : vector<8xf32>
    %419 = vector.multi_reduction <maximumf>, %418, %cst_159 [1] : vector<8x256xf32> to vector<8xf32>
    %420 = vector.shape_cast %419 : vector<8xf32> to vector<8x1xf32>
    %421 = vector.broadcast %420 : vector<8x1xf32> to vector<8x256xf32>
    %422 = arith.subf %418, %421 : vector<8x256xf32>
    %423 = math.exp %422 : vector<8x256xf32>
    %cst_160 = arith.constant dense<0.000000e+00> : vector<8xf32>
    %424 = vector.multi_reduction <add>, %423, %cst_160 [1] : vector<8x256xf32> to vector<8xf32>
    %425 = vector.shape_cast %424 : vector<8xf32> to vector<8x1xf32>
    %426 = math.log %425 : vector<8x1xf32>
    %427 = arith.addf %420, %426 : vector<8x1xf32>
    %428 = vector.extract_strided_slice %6 {offsets = [0, 15], sizes = [8, 1], strides = [1, 1]} : vector<8x32xi32> to vector<8x1xi32>
    %429 = vector.broadcast %428 : vector<8x1xi32> to vector<8x256xi32>
    %430 = arith.cmpi eq, %7, %429 : vector<8x256xi32>
    %cst_161 = arith.constant 0.000000e+00 : f32
    %431 = vector.broadcast %cst_161 : f32 to vector<8x256xf32>
    %432 = arith.select %430, %418, %431 : vector<8x256xi1>, vector<8x256xf32>
    %cst_162 = arith.constant dense<0.000000e+00> : vector<8xf32>
    %433 = vector.multi_reduction <add>, %432, %cst_162 [1] : vector<8x256xf32> to vector<8xf32>
    %434 = vector.shape_cast %433 : vector<8xf32> to vector<8x1xf32>
    %435 = arith.subf %434, %427 : vector<8x1xf32>
    %cst_163 = arith.constant -11.5129251 : f32
    %cst_164 = arith.constant -1.00000498E-5 : f32
    %436 = vector.broadcast %cst_163 : f32 to vector<8x1xf32>
    %437 = arith.maximumf %436, %435 : vector<8x1xf32>
    %438 = vector.broadcast %cst_164 : f32 to vector<8x1xf32>
    %439 = arith.minimumf %438, %437 : vector<8x1xf32>
    %440 = arith.addf %413, %439 : vector<8x1xf32>
    %c0_165 = arith.constant 0 : index
    %c4096 = arith.constant 4096 : index
    %441 = vector.load %arg11[%c0_165, %c4096] : memref<128x8192xbf16, #tpu.memory_space<vmem>>, vector<128x256xbf16>
    %cst_166 = arith.constant dense<0.000000e+00> : vector<8x256xf32>
    %442 = tpu.matmul %3, %441, %cst_166 {dimension_numbers = #tpu.dot_dimension_numbers<[1], [0], [0], [1], [0, 0, 1, 1], [], []>} : vector<8x128xbf16>, vector<128x256xbf16>, vector<8x256xf32> -> vector<8x256xf32>
    %c0_167 = arith.constant 0 : index
    %c4096_168 = arith.constant 4096 : index
    %443 = vector.load %arg12[%c0_167, %c4096_168] : memref<1x8192xf32, #tpu.memory_space<vmem>>, vector<1x256xf32>
    %444 = vector.broadcast %443 : vector<1x256xf32> to vector<8x256xf32>
    %445 = arith.addf %442, %444 : vector<8x256xf32>
    %cst_169 = arith.constant dense<0xFF800000> : vector<8xf32>
    %446 = vector.multi_reduction <maximumf>, %445, %cst_169 [1] : vector<8x256xf32> to vector<8xf32>
    %447 = vector.shape_cast %446 : vector<8xf32> to vector<8x1xf32>
    %448 = vector.broadcast %447 : vector<8x1xf32> to vector<8x256xf32>
    %449 = arith.subf %445, %448 : vector<8x256xf32>
    %450 = math.exp %449 : vector<8x256xf32>
    %cst_170 = arith.constant dense<0.000000e+00> : vector<8xf32>
    %451 = vector.multi_reduction <add>, %450, %cst_170 [1] : vector<8x256xf32> to vector<8xf32>
    %452 = vector.shape_cast %451 : vector<8xf32> to vector<8x1xf32>
    %453 = math.log %452 : vector<8x1xf32>
    %454 = arith.addf %447, %453 : vector<8x1xf32>
    %455 = vector.extract_strided_slice %6 {offsets = [0, 16], sizes = [8, 1], strides = [1, 1]} : vector<8x32xi32> to vector<8x1xi32>
    %456 = vector.broadcast %455 : vector<8x1xi32> to vector<8x256xi32>
    %457 = arith.cmpi eq, %7, %456 : vector<8x256xi32>
    %cst_171 = arith.constant 0.000000e+00 : f32
    %458 = vector.broadcast %cst_171 : f32 to vector<8x256xf32>
    %459 = arith.select %457, %445, %458 : vector<8x256xi1>, vector<8x256xf32>
    %cst_172 = arith.constant dense<0.000000e+00> : vector<8xf32>
    %460 = vector.multi_reduction <add>, %459, %cst_172 [1] : vector<8x256xf32> to vector<8xf32>
    %461 = vector.shape_cast %460 : vector<8xf32> to vector<8x1xf32>
    %462 = arith.subf %461, %454 : vector<8x1xf32>
    %cst_173 = arith.constant -11.5129251 : f32
    %cst_174 = arith.constant -1.00000498E-5 : f32
    %463 = vector.broadcast %cst_173 : f32 to vector<8x1xf32>
    %464 = arith.maximumf %463, %462 : vector<8x1xf32>
    %465 = vector.broadcast %cst_174 : f32 to vector<8x1xf32>
    %466 = arith.minimumf %465, %464 : vector<8x1xf32>
    %467 = arith.addf %440, %466 : vector<8x1xf32>
    %c0_175 = arith.constant 0 : index
    %c4352 = arith.constant 4352 : index
    %468 = vector.load %arg11[%c0_175, %c4352] : memref<128x8192xbf16, #tpu.memory_space<vmem>>, vector<128x256xbf16>
    %cst_176 = arith.constant dense<0.000000e+00> : vector<8x256xf32>
    %469 = tpu.matmul %3, %468, %cst_176 {dimension_numbers = #tpu.dot_dimension_numbers<[1], [0], [0], [1], [0, 0, 1, 1], [], []>} : vector<8x128xbf16>, vector<128x256xbf16>, vector<8x256xf32> -> vector<8x256xf32>
    %c0_177 = arith.constant 0 : index
    %c4352_178 = arith.constant 4352 : index
    %470 = vector.load %arg12[%c0_177, %c4352_178] : memref<1x8192xf32, #tpu.memory_space<vmem>>, vector<1x256xf32>
    %471 = vector.broadcast %470 : vector<1x256xf32> to vector<8x256xf32>
    %472 = arith.addf %469, %471 : vector<8x256xf32>
    %cst_179 = arith.constant dense<0xFF800000> : vector<8xf32>
    %473 = vector.multi_reduction <maximumf>, %472, %cst_179 [1] : vector<8x256xf32> to vector<8xf32>
    %474 = vector.shape_cast %473 : vector<8xf32> to vector<8x1xf32>
    %475 = vector.broadcast %474 : vector<8x1xf32> to vector<8x256xf32>
    %476 = arith.subf %472, %475 : vector<8x256xf32>
    %477 = math.exp %476 : vector<8x256xf32>
    %cst_180 = arith.constant dense<0.000000e+00> : vector<8xf32>
    %478 = vector.multi_reduction <add>, %477, %cst_180 [1] : vector<8x256xf32> to vector<8xf32>
    %479 = vector.shape_cast %478 : vector<8xf32> to vector<8x1xf32>
    %480 = math.log %479 : vector<8x1xf32>
    %481 = arith.addf %474, %480 : vector<8x1xf32>
    %482 = vector.extract_strided_slice %6 {offsets = [0, 17], sizes = [8, 1], strides = [1, 1]} : vector<8x32xi32> to vector<8x1xi32>
    %483 = vector.broadcast %482 : vector<8x1xi32> to vector<8x256xi32>
    %484 = arith.cmpi eq, %7, %483 : vector<8x256xi32>
    %cst_181 = arith.constant 0.000000e+00 : f32
    %485 = vector.broadcast %cst_181 : f32 to vector<8x256xf32>
    %486 = arith.select %484, %472, %485 : vector<8x256xi1>, vector<8x256xf32>
    %cst_182 = arith.constant dense<0.000000e+00> : vector<8xf32>
    %487 = vector.multi_reduction <add>, %486, %cst_182 [1] : vector<8x256xf32> to vector<8xf32>
    %488 = vector.shape_cast %487 : vector<8xf32> to vector<8x1xf32>
    %489 = arith.subf %488, %481 : vector<8x1xf32>
    %cst_183 = arith.constant -11.5129251 : f32
    %cst_184 = arith.constant -1.00000498E-5 : f32
    %490 = vector.broadcast %cst_183 : f32 to vector<8x1xf32>
    %491 = arith.maximumf %490, %489 : vector<8x1xf32>
    %492 = vector.broadcast %cst_184 : f32 to vector<8x1xf32>
    %493 = arith.minimumf %492, %491 : vector<8x1xf32>
    %494 = arith.addf %467, %493 : vector<8x1xf32>
    %c0_185 = arith.constant 0 : index
    %c4608 = arith.constant 4608 : index
    %495 = vector.load %arg11[%c0_185, %c4608] : memref<128x8192xbf16, #tpu.memory_space<vmem>>, vector<128x256xbf16>
    %cst_186 = arith.constant dense<0.000000e+00> : vector<8x256xf32>
    %496 = tpu.matmul %3, %495, %cst_186 {dimension_numbers = #tpu.dot_dimension_numbers<[1], [0], [0], [1], [0, 0, 1, 1], [], []>} : vector<8x128xbf16>, vector<128x256xbf16>, vector<8x256xf32> -> vector<8x256xf32>
    %c0_187 = arith.constant 0 : index
    %c4608_188 = arith.constant 4608 : index
    %497 = vector.load %arg12[%c0_187, %c4608_188] : memref<1x8192xf32, #tpu.memory_space<vmem>>, vector<1x256xf32>
    %498 = vector.broadcast %497 : vector<1x256xf32> to vector<8x256xf32>
    %499 = arith.addf %496, %498 : vector<8x256xf32>
    %cst_189 = arith.constant dense<0xFF800000> : vector<8xf32>
    %500 = vector.multi_reduction <maximumf>, %499, %cst_189 [1] : vector<8x256xf32> to vector<8xf32>
    %501 = vector.shape_cast %500 : vector<8xf32> to vector<8x1xf32>
    %502 = vector.broadcast %501 : vector<8x1xf32> to vector<8x256xf32>
    %503 = arith.subf %499, %502 : vector<8x256xf32>
    %504 = math.exp %503 : vector<8x256xf32>
    %cst_190 = arith.constant dense<0.000000e+00> : vector<8xf32>
    %505 = vector.multi_reduction <add>, %504, %cst_190 [1] : vector<8x256xf32> to vector<8xf32>
    %506 = vector.shape_cast %505 : vector<8xf32> to vector<8x1xf32>
    %507 = math.log %506 : vector<8x1xf32>
    %508 = arith.addf %501, %507 : vector<8x1xf32>
    %509 = vector.extract_strided_slice %6 {offsets = [0, 18], sizes = [8, 1], strides = [1, 1]} : vector<8x32xi32> to vector<8x1xi32>
    %510 = vector.broadcast %509 : vector<8x1xi32> to vector<8x256xi32>
    %511 = arith.cmpi eq, %7, %510 : vector<8x256xi32>
    %cst_191 = arith.constant 0.000000e+00 : f32
    %512 = vector.broadcast %cst_191 : f32 to vector<8x256xf32>
    %513 = arith.select %511, %499, %512 : vector<8x256xi1>, vector<8x256xf32>
    %cst_192 = arith.constant dense<0.000000e+00> : vector<8xf32>
    %514 = vector.multi_reduction <add>, %513, %cst_192 [1] : vector<8x256xf32> to vector<8xf32>
    %515 = vector.shape_cast %514 : vector<8xf32> to vector<8x1xf32>
    %516 = arith.subf %515, %508 : vector<8x1xf32>
    %cst_193 = arith.constant -11.5129251 : f32
    %cst_194 = arith.constant -1.00000498E-5 : f32
    %517 = vector.broadcast %cst_193 : f32 to vector<8x1xf32>
    %518 = arith.maximumf %517, %516 : vector<8x1xf32>
    %519 = vector.broadcast %cst_194 : f32 to vector<8x1xf32>
    %520 = arith.minimumf %519, %518 : vector<8x1xf32>
    %521 = arith.addf %494, %520 : vector<8x1xf32>
    %c0_195 = arith.constant 0 : index
    %c4864 = arith.constant 4864 : index
    %522 = vector.load %arg11[%c0_195, %c4864] : memref<128x8192xbf16, #tpu.memory_space<vmem>>, vector<128x256xbf16>
    %cst_196 = arith.constant dense<0.000000e+00> : vector<8x256xf32>
    %523 = tpu.matmul %3, %522, %cst_196 {dimension_numbers = #tpu.dot_dimension_numbers<[1], [0], [0], [1], [0, 0, 1, 1], [], []>} : vector<8x128xbf16>, vector<128x256xbf16>, vector<8x256xf32> -> vector<8x256xf32>
    %c0_197 = arith.constant 0 : index
    %c4864_198 = arith.constant 4864 : index
    %524 = vector.load %arg12[%c0_197, %c4864_198] : memref<1x8192xf32, #tpu.memory_space<vmem>>, vector<1x256xf32>
    %525 = vector.broadcast %524 : vector<1x256xf32> to vector<8x256xf32>
    %526 = arith.addf %523, %525 : vector<8x256xf32>
    %cst_199 = arith.constant dense<0xFF800000> : vector<8xf32>
    %527 = vector.multi_reduction <maximumf>, %526, %cst_199 [1] : vector<8x256xf32> to vector<8xf32>
    %528 = vector.shape_cast %527 : vector<8xf32> to vector<8x1xf32>
    %529 = vector.broadcast %528 : vector<8x1xf32> to vector<8x256xf32>
    %530 = arith.subf %526, %529 : vector<8x256xf32>
    %531 = math.exp %530 : vector<8x256xf32>
    %cst_200 = arith.constant dense<0.000000e+00> : vector<8xf32>
    %532 = vector.multi_reduction <add>, %531, %cst_200 [1] : vector<8x256xf32> to vector<8xf32>
    %533 = vector.shape_cast %532 : vector<8xf32> to vector<8x1xf32>
    %534 = math.log %533 : vector<8x1xf32>
    %535 = arith.addf %528, %534 : vector<8x1xf32>
    %536 = vector.extract_strided_slice %6 {offsets = [0, 19], sizes = [8, 1], strides = [1, 1]} : vector<8x32xi32> to vector<8x1xi32>
    %537 = vector.broadcast %536 : vector<8x1xi32> to vector<8x256xi32>
    %538 = arith.cmpi eq, %7, %537 : vector<8x256xi32>
    %cst_201 = arith.constant 0.000000e+00 : f32
    %539 = vector.broadcast %cst_201 : f32 to vector<8x256xf32>
    %540 = arith.select %538, %526, %539 : vector<8x256xi1>, vector<8x256xf32>
    %cst_202 = arith.constant dense<0.000000e+00> : vector<8xf32>
    %541 = vector.multi_reduction <add>, %540, %cst_202 [1] : vector<8x256xf32> to vector<8xf32>
    %542 = vector.shape_cast %541 : vector<8xf32> to vector<8x1xf32>
    %543 = arith.subf %542, %535 : vector<8x1xf32>
    %cst_203 = arith.constant -11.5129251 : f32
    %cst_204 = arith.constant -1.00000498E-5 : f32
    %544 = vector.broadcast %cst_203 : f32 to vector<8x1xf32>
    %545 = arith.maximumf %544, %543 : vector<8x1xf32>
    %546 = vector.broadcast %cst_204 : f32 to vector<8x1xf32>
    %547 = arith.minimumf %546, %545 : vector<8x1xf32>
    %548 = arith.addf %521, %547 : vector<8x1xf32>
    %c0_205 = arith.constant 0 : index
    %c5120 = arith.constant 5120 : index
    %549 = vector.load %arg11[%c0_205, %c5120] : memref<128x8192xbf16, #tpu.memory_space<vmem>>, vector<128x256xbf16>
    %cst_206 = arith.constant dense<0.000000e+00> : vector<8x256xf32>
    %550 = tpu.matmul %3, %549, %cst_206 {dimension_numbers = #tpu.dot_dimension_numbers<[1], [0], [0], [1], [0, 0, 1, 1], [], []>} : vector<8x128xbf16>, vector<128x256xbf16>, vector<8x256xf32> -> vector<8x256xf32>
    %c0_207 = arith.constant 0 : index
    %c5120_208 = arith.constant 5120 : index
    %551 = vector.load %arg12[%c0_207, %c5120_208] : memref<1x8192xf32, #tpu.memory_space<vmem>>, vector<1x256xf32>
    %552 = vector.broadcast %551 : vector<1x256xf32> to vector<8x256xf32>
    %553 = arith.addf %550, %552 : vector<8x256xf32>
    %cst_209 = arith.constant dense<0xFF800000> : vector<8xf32>
    %554 = vector.multi_reduction <maximumf>, %553, %cst_209 [1] : vector<8x256xf32> to vector<8xf32>
    %555 = vector.shape_cast %554 : vector<8xf32> to vector<8x1xf32>
    %556 = vector.broadcast %555 : vector<8x1xf32> to vector<8x256xf32>
    %557 = arith.subf %553, %556 : vector<8x256xf32>
    %558 = math.exp %557 : vector<8x256xf32>
    %cst_210 = arith.constant dense<0.000000e+00> : vector<8xf32>
    %559 = vector.multi_reduction <add>, %558, %cst_210 [1] : vector<8x256xf32> to vector<8xf32>
    %560 = vector.shape_cast %559 : vector<8xf32> to vector<8x1xf32>
    %561 = math.log %560 : vector<8x1xf32>
    %562 = arith.addf %555, %561 : vector<8x1xf32>
    %563 = vector.extract_strided_slice %6 {offsets = [0, 20], sizes = [8, 1], strides = [1, 1]} : vector<8x32xi32> to vector<8x1xi32>
    %564 = vector.broadcast %563 : vector<8x1xi32> to vector<8x256xi32>
    %565 = arith.cmpi eq, %7, %564 : vector<8x256xi32>
    %cst_211 = arith.constant 0.000000e+00 : f32
    %566 = vector.broadcast %cst_211 : f32 to vector<8x256xf32>
    %567 = arith.select %565, %553, %566 : vector<8x256xi1>, vector<8x256xf32>
    %cst_212 = arith.constant dense<0.000000e+00> : vector<8xf32>
    %568 = vector.multi_reduction <add>, %567, %cst_212 [1] : vector<8x256xf32> to vector<8xf32>
    %569 = vector.shape_cast %568 : vector<8xf32> to vector<8x1xf32>
    %570 = arith.subf %569, %562 : vector<8x1xf32>
    %cst_213 = arith.constant -11.5129251 : f32
    %cst_214 = arith.constant -1.00000498E-5 : f32
    %571 = vector.broadcast %cst_213 : f32 to vector<8x1xf32>
    %572 = arith.maximumf %571, %570 : vector<8x1xf32>
    %573 = vector.broadcast %cst_214 : f32 to vector<8x1xf32>
    %574 = arith.minimumf %573, %572 : vector<8x1xf32>
    %575 = arith.addf %548, %574 : vector<8x1xf32>
    %c0_215 = arith.constant 0 : index
    %c5376 = arith.constant 5376 : index
    %576 = vector.load %arg11[%c0_215, %c5376] : memref<128x8192xbf16, #tpu.memory_space<vmem>>, vector<128x256xbf16>
    %cst_216 = arith.constant dense<0.000000e+00> : vector<8x256xf32>
    %577 = tpu.matmul %3, %576, %cst_216 {dimension_numbers = #tpu.dot_dimension_numbers<[1], [0], [0], [1], [0, 0, 1, 1], [], []>} : vector<8x128xbf16>, vector<128x256xbf16>, vector<8x256xf32> -> vector<8x256xf32>
    %c0_217 = arith.constant 0 : index
    %c5376_218 = arith.constant 5376 : index
    %578 = vector.load %arg12[%c0_217, %c5376_218] : memref<1x8192xf32, #tpu.memory_space<vmem>>, vector<1x256xf32>
    %579 = vector.broadcast %578 : vector<1x256xf32> to vector<8x256xf32>
    %580 = arith.addf %577, %579 : vector<8x256xf32>
    %cst_219 = arith.constant dense<0xFF800000> : vector<8xf32>
    %581 = vector.multi_reduction <maximumf>, %580, %cst_219 [1] : vector<8x256xf32> to vector<8xf32>
    %582 = vector.shape_cast %581 : vector<8xf32> to vector<8x1xf32>
    %583 = vector.broadcast %582 : vector<8x1xf32> to vector<8x256xf32>
    %584 = arith.subf %580, %583 : vector<8x256xf32>
    %585 = math.exp %584 : vector<8x256xf32>
    %cst_220 = arith.constant dense<0.000000e+00> : vector<8xf32>
    %586 = vector.multi_reduction <add>, %585, %cst_220 [1] : vector<8x256xf32> to vector<8xf32>
    %587 = vector.shape_cast %586 : vector<8xf32> to vector<8x1xf32>
    %588 = math.log %587 : vector<8x1xf32>
    %589 = arith.addf %582, %588 : vector<8x1xf32>
    %590 = vector.extract_strided_slice %6 {offsets = [0, 21], sizes = [8, 1], strides = [1, 1]} : vector<8x32xi32> to vector<8x1xi32>
    %591 = vector.broadcast %590 : vector<8x1xi32> to vector<8x256xi32>
    %592 = arith.cmpi eq, %7, %591 : vector<8x256xi32>
    %cst_221 = arith.constant 0.000000e+00 : f32
    %593 = vector.broadcast %cst_221 : f32 to vector<8x256xf32>
    %594 = arith.select %592, %580, %593 : vector<8x256xi1>, vector<8x256xf32>
    %cst_222 = arith.constant dense<0.000000e+00> : vector<8xf32>
    %595 = vector.multi_reduction <add>, %594, %cst_222 [1] : vector<8x256xf32> to vector<8xf32>
    %596 = vector.shape_cast %595 : vector<8xf32> to vector<8x1xf32>
    %597 = arith.subf %596, %589 : vector<8x1xf32>
    %cst_223 = arith.constant -11.5129251 : f32
    %cst_224 = arith.constant -1.00000498E-5 : f32
    %598 = vector.broadcast %cst_223 : f32 to vector<8x1xf32>
    %599 = arith.maximumf %598, %597 : vector<8x1xf32>
    %600 = vector.broadcast %cst_224 : f32 to vector<8x1xf32>
    %601 = arith.minimumf %600, %599 : vector<8x1xf32>
    %602 = arith.addf %575, %601 : vector<8x1xf32>
    %c0_225 = arith.constant 0 : index
    %c5632 = arith.constant 5632 : index
    %603 = vector.load %arg11[%c0_225, %c5632] : memref<128x8192xbf16, #tpu.memory_space<vmem>>, vector<128x256xbf16>
    %cst_226 = arith.constant dense<0.000000e+00> : vector<8x256xf32>
    %604 = tpu.matmul %3, %603, %cst_226 {dimension_numbers = #tpu.dot_dimension_numbers<[1], [0], [0], [1], [0, 0, 1, 1], [], []>} : vector<8x128xbf16>, vector<128x256xbf16>, vector<8x256xf32> -> vector<8x256xf32>
    %c0_227 = arith.constant 0 : index
    %c5632_228 = arith.constant 5632 : index
    %605 = vector.load %arg12[%c0_227, %c5632_228] : memref<1x8192xf32, #tpu.memory_space<vmem>>, vector<1x256xf32>
    %606 = vector.broadcast %605 : vector<1x256xf32> to vector<8x256xf32>
    %607 = arith.addf %604, %606 : vector<8x256xf32>
    %cst_229 = arith.constant dense<0xFF800000> : vector<8xf32>
    %608 = vector.multi_reduction <maximumf>, %607, %cst_229 [1] : vector<8x256xf32> to vector<8xf32>
    %609 = vector.shape_cast %608 : vector<8xf32> to vector<8x1xf32>
    %610 = vector.broadcast %609 : vector<8x1xf32> to vector<8x256xf32>
    %611 = arith.subf %607, %610 : vector<8x256xf32>
    %612 = math.exp %611 : vector<8x256xf32>
    %cst_230 = arith.constant dense<0.000000e+00> : vector<8xf32>
    %613 = vector.multi_reduction <add>, %612, %cst_230 [1] : vector<8x256xf32> to vector<8xf32>
    %614 = vector.shape_cast %613 : vector<8xf32> to vector<8x1xf32>
    %615 = math.log %614 : vector<8x1xf32>
    %616 = arith.addf %609, %615 : vector<8x1xf32>
    %617 = vector.extract_strided_slice %6 {offsets = [0, 22], sizes = [8, 1], strides = [1, 1]} : vector<8x32xi32> to vector<8x1xi32>
    %618 = vector.broadcast %617 : vector<8x1xi32> to vector<8x256xi32>
    %619 = arith.cmpi eq, %7, %618 : vector<8x256xi32>
    %cst_231 = arith.constant 0.000000e+00 : f32
    %620 = vector.broadcast %cst_231 : f32 to vector<8x256xf32>
    %621 = arith.select %619, %607, %620 : vector<8x256xi1>, vector<8x256xf32>
    %cst_232 = arith.constant dense<0.000000e+00> : vector<8xf32>
    %622 = vector.multi_reduction <add>, %621, %cst_232 [1] : vector<8x256xf32> to vector<8xf32>
    %623 = vector.shape_cast %622 : vector<8xf32> to vector<8x1xf32>
    %624 = arith.subf %623, %616 : vector<8x1xf32>
    %cst_233 = arith.constant -11.5129251 : f32
    %cst_234 = arith.constant -1.00000498E-5 : f32
    %625 = vector.broadcast %cst_233 : f32 to vector<8x1xf32>
    %626 = arith.maximumf %625, %624 : vector<8x1xf32>
    %627 = vector.broadcast %cst_234 : f32 to vector<8x1xf32>
    %628 = arith.minimumf %627, %626 : vector<8x1xf32>
    %629 = arith.addf %602, %628 : vector<8x1xf32>
    %c0_235 = arith.constant 0 : index
    %c5888 = arith.constant 5888 : index
    %630 = vector.load %arg11[%c0_235, %c5888] : memref<128x8192xbf16, #tpu.memory_space<vmem>>, vector<128x256xbf16>
    %cst_236 = arith.constant dense<0.000000e+00> : vector<8x256xf32>
    %631 = tpu.matmul %3, %630, %cst_236 {dimension_numbers = #tpu.dot_dimension_numbers<[1], [0], [0], [1], [0, 0, 1, 1], [], []>} : vector<8x128xbf16>, vector<128x256xbf16>, vector<8x256xf32> -> vector<8x256xf32>
    %c0_237 = arith.constant 0 : index
    %c5888_238 = arith.constant 5888 : index
    %632 = vector.load %arg12[%c0_237, %c5888_238] : memref<1x8192xf32, #tpu.memory_space<vmem>>, vector<1x256xf32>
    %633 = vector.broadcast %632 : vector<1x256xf32> to vector<8x256xf32>
    %634 = arith.addf %631, %633 : vector<8x256xf32>
    %cst_239 = arith.constant dense<0xFF800000> : vector<8xf32>
    %635 = vector.multi_reduction <maximumf>, %634, %cst_239 [1] : vector<8x256xf32> to vector<8xf32>
    %636 = vector.shape_cast %635 : vector<8xf32> to vector<8x1xf32>
    %637 = vector.broadcast %636 : vector<8x1xf32> to vector<8x256xf32>
    %638 = arith.subf %634, %637 : vector<8x256xf32>
    %639 = math.exp %638 : vector<8x256xf32>
    %cst_240 = arith.constant dense<0.000000e+00> : vector<8xf32>
    %640 = vector.multi_reduction <add>, %639, %cst_240 [1] : vector<8x256xf32> to vector<8xf32>
    %641 = vector.shape_cast %640 : vector<8xf32> to vector<8x1xf32>
    %642 = math.log %641 : vector<8x1xf32>
    %643 = arith.addf %636, %642 : vector<8x1xf32>
    %644 = vector.extract_strided_slice %6 {offsets = [0, 23], sizes = [8, 1], strides = [1, 1]} : vector<8x32xi32> to vector<8x1xi32>
    %645 = vector.broadcast %644 : vector<8x1xi32> to vector<8x256xi32>
    %646 = arith.cmpi eq, %7, %645 : vector<8x256xi32>
    %cst_241 = arith.constant 0.000000e+00 : f32
    %647 = vector.broadcast %cst_241 : f32 to vector<8x256xf32>
    %648 = arith.select %646, %634, %647 : vector<8x256xi1>, vector<8x256xf32>
    %cst_242 = arith.constant dense<0.000000e+00> : vector<8xf32>
    %649 = vector.multi_reduction <add>, %648, %cst_242 [1] : vector<8x256xf32> to vector<8xf32>
    %650 = vector.shape_cast %649 : vector<8xf32> to vector<8x1xf32>
    %651 = arith.subf %650, %643 : vector<8x1xf32>
    %cst_243 = arith.constant -11.5129251 : f32
    %cst_244 = arith.constant -1.00000498E-5 : f32
    %652 = vector.broadcast %cst_243 : f32 to vector<8x1xf32>
    %653 = arith.maximumf %652, %651 : vector<8x1xf32>
    %654 = vector.broadcast %cst_244 : f32 to vector<8x1xf32>
    %655 = arith.minimumf %654, %653 : vector<8x1xf32>
    %656 = arith.addf %629, %655 : vector<8x1xf32>
    %c0_245 = arith.constant 0 : index
    %c6144 = arith.constant 6144 : index
    %657 = vector.load %arg11[%c0_245, %c6144] : memref<128x8192xbf16, #tpu.memory_space<vmem>>, vector<128x256xbf16>
    %cst_246 = arith.constant dense<0.000000e+00> : vector<8x256xf32>
    %658 = tpu.matmul %3, %657, %cst_246 {dimension_numbers = #tpu.dot_dimension_numbers<[1], [0], [0], [1], [0, 0, 1, 1], [], []>} : vector<8x128xbf16>, vector<128x256xbf16>, vector<8x256xf32> -> vector<8x256xf32>
    %c0_247 = arith.constant 0 : index
    %c6144_248 = arith.constant 6144 : index
    %659 = vector.load %arg12[%c0_247, %c6144_248] : memref<1x8192xf32, #tpu.memory_space<vmem>>, vector<1x256xf32>
    %660 = vector.broadcast %659 : vector<1x256xf32> to vector<8x256xf32>
    %661 = arith.addf %658, %660 : vector<8x256xf32>
    %cst_249 = arith.constant dense<0xFF800000> : vector<8xf32>
    %662 = vector.multi_reduction <maximumf>, %661, %cst_249 [1] : vector<8x256xf32> to vector<8xf32>
    %663 = vector.shape_cast %662 : vector<8xf32> to vector<8x1xf32>
    %664 = vector.broadcast %663 : vector<8x1xf32> to vector<8x256xf32>
    %665 = arith.subf %661, %664 : vector<8x256xf32>
    %666 = math.exp %665 : vector<8x256xf32>
    %cst_250 = arith.constant dense<0.000000e+00> : vector<8xf32>
    %667 = vector.multi_reduction <add>, %666, %cst_250 [1] : vector<8x256xf32> to vector<8xf32>
    %668 = vector.shape_cast %667 : vector<8xf32> to vector<8x1xf32>
    %669 = math.log %668 : vector<8x1xf32>
    %670 = arith.addf %663, %669 : vector<8x1xf32>
    %671 = vector.extract_strided_slice %6 {offsets = [0, 24], sizes = [8, 1], strides = [1, 1]} : vector<8x32xi32> to vector<8x1xi32>
    %672 = vector.broadcast %671 : vector<8x1xi32> to vector<8x256xi32>
    %673 = arith.cmpi eq, %7, %672 : vector<8x256xi32>
    %cst_251 = arith.constant 0.000000e+00 : f32
    %674 = vector.broadcast %cst_251 : f32 to vector<8x256xf32>
    %675 = arith.select %673, %661, %674 : vector<8x256xi1>, vector<8x256xf32>
    %cst_252 = arith.constant dense<0.000000e+00> : vector<8xf32>
    %676 = vector.multi_reduction <add>, %675, %cst_252 [1] : vector<8x256xf32> to vector<8xf32>
    %677 = vector.shape_cast %676 : vector<8xf32> to vector<8x1xf32>
    %678 = arith.subf %677, %670 : vector<8x1xf32>
    %cst_253 = arith.constant -11.5129251 : f32
    %cst_254 = arith.constant -1.00000498E-5 : f32
    %679 = vector.broadcast %cst_253 : f32 to vector<8x1xf32>
    %680 = arith.maximumf %679, %678 : vector<8x1xf32>
    %681 = vector.broadcast %cst_254 : f32 to vector<8x1xf32>
    %682 = arith.minimumf %681, %680 : vector<8x1xf32>
    %683 = arith.addf %656, %682 : vector<8x1xf32>
    %c0_255 = arith.constant 0 : index
    %c6400 = arith.constant 6400 : index
    %684 = vector.load %arg11[%c0_255, %c6400] : memref<128x8192xbf16, #tpu.memory_space<vmem>>, vector<128x256xbf16>
    %cst_256 = arith.constant dense<0.000000e+00> : vector<8x256xf32>
    %685 = tpu.matmul %3, %684, %cst_256 {dimension_numbers = #tpu.dot_dimension_numbers<[1], [0], [0], [1], [0, 0, 1, 1], [], []>} : vector<8x128xbf16>, vector<128x256xbf16>, vector<8x256xf32> -> vector<8x256xf32>
    %c0_257 = arith.constant 0 : index
    %c6400_258 = arith.constant 6400 : index
    %686 = vector.load %arg12[%c0_257, %c6400_258] : memref<1x8192xf32, #tpu.memory_space<vmem>>, vector<1x256xf32>
    %687 = vector.broadcast %686 : vector<1x256xf32> to vector<8x256xf32>
    %688 = arith.addf %685, %687 : vector<8x256xf32>
    %cst_259 = arith.constant dense<0xFF800000> : vector<8xf32>
    %689 = vector.multi_reduction <maximumf>, %688, %cst_259 [1] : vector<8x256xf32> to vector<8xf32>
    %690 = vector.shape_cast %689 : vector<8xf32> to vector<8x1xf32>
    %691 = vector.broadcast %690 : vector<8x1xf32> to vector<8x256xf32>
    %692 = arith.subf %688, %691 : vector<8x256xf32>
    %693 = math.exp %692 : vector<8x256xf32>
    %cst_260 = arith.constant dense<0.000000e+00> : vector<8xf32>
    %694 = vector.multi_reduction <add>, %693, %cst_260 [1] : vector<8x256xf32> to vector<8xf32>
    %695 = vector.shape_cast %694 : vector<8xf32> to vector<8x1xf32>
    %696 = math.log %695 : vector<8x1xf32>
    %697 = arith.addf %690, %696 : vector<8x1xf32>
    %698 = vector.extract_strided_slice %6 {offsets = [0, 25], sizes = [8, 1], strides = [1, 1]} : vector<8x32xi32> to vector<8x1xi32>
    %699 = vector.broadcast %698 : vector<8x1xi32> to vector<8x256xi32>
    %700 = arith.cmpi eq, %7, %699 : vector<8x256xi32>
    %cst_261 = arith.constant 0.000000e+00 : f32
    %701 = vector.broadcast %cst_261 : f32 to vector<8x256xf32>
    %702 = arith.select %700, %688, %701 : vector<8x256xi1>, vector<8x256xf32>
    %cst_262 = arith.constant dense<0.000000e+00> : vector<8xf32>
    %703 = vector.multi_reduction <add>, %702, %cst_262 [1] : vector<8x256xf32> to vector<8xf32>
    %704 = vector.shape_cast %703 : vector<8xf32> to vector<8x1xf32>
    %705 = arith.subf %704, %697 : vector<8x1xf32>
    %cst_263 = arith.constant -11.5129251 : f32
    %cst_264 = arith.constant -1.00000498E-5 : f32
    %706 = vector.broadcast %cst_263 : f32 to vector<8x1xf32>
    %707 = arith.maximumf %706, %705 : vector<8x1xf32>
    %708 = vector.broadcast %cst_264 : f32 to vector<8x1xf32>
    %709 = arith.minimumf %708, %707 : vector<8x1xf32>
    %710 = arith.addf %683, %709 : vector<8x1xf32>
    %c0_265 = arith.constant 0 : index
    %c6656 = arith.constant 6656 : index
    %711 = vector.load %arg11[%c0_265, %c6656] : memref<128x8192xbf16, #tpu.memory_space<vmem>>, vector<128x256xbf16>
    %cst_266 = arith.constant dense<0.000000e+00> : vector<8x256xf32>
    %712 = tpu.matmul %3, %711, %cst_266 {dimension_numbers = #tpu.dot_dimension_numbers<[1], [0], [0], [1], [0, 0, 1, 1], [], []>} : vector<8x128xbf16>, vector<128x256xbf16>, vector<8x256xf32> -> vector<8x256xf32>
    %c0_267 = arith.constant 0 : index
    %c6656_268 = arith.constant 6656 : index
    %713 = vector.load %arg12[%c0_267, %c6656_268] : memref<1x8192xf32, #tpu.memory_space<vmem>>, vector<1x256xf32>
    %714 = vector.broadcast %713 : vector<1x256xf32> to vector<8x256xf32>
    %715 = arith.addf %712, %714 : vector<8x256xf32>
    %cst_269 = arith.constant dense<0xFF800000> : vector<8xf32>
    %716 = vector.multi_reduction <maximumf>, %715, %cst_269 [1] : vector<8x256xf32> to vector<8xf32>
    %717 = vector.shape_cast %716 : vector<8xf32> to vector<8x1xf32>
    %718 = vector.broadcast %717 : vector<8x1xf32> to vector<8x256xf32>
    %719 = arith.subf %715, %718 : vector<8x256xf32>
    %720 = math.exp %719 : vector<8x256xf32>
    %cst_270 = arith.constant dense<0.000000e+00> : vector<8xf32>
    %721 = vector.multi_reduction <add>, %720, %cst_270 [1] : vector<8x256xf32> to vector<8xf32>
    %722 = vector.shape_cast %721 : vector<8xf32> to vector<8x1xf32>
    %723 = math.log %722 : vector<8x1xf32>
    %724 = arith.addf %717, %723 : vector<8x1xf32>
    %725 = vector.extract_strided_slice %6 {offsets = [0, 26], sizes = [8, 1], strides = [1, 1]} : vector<8x32xi32> to vector<8x1xi32>
    %726 = vector.broadcast %725 : vector<8x1xi32> to vector<8x256xi32>
    %727 = arith.cmpi eq, %7, %726 : vector<8x256xi32>
    %cst_271 = arith.constant 0.000000e+00 : f32
    %728 = vector.broadcast %cst_271 : f32 to vector<8x256xf32>
    %729 = arith.select %727, %715, %728 : vector<8x256xi1>, vector<8x256xf32>
    %cst_272 = arith.constant dense<0.000000e+00> : vector<8xf32>
    %730 = vector.multi_reduction <add>, %729, %cst_272 [1] : vector<8x256xf32> to vector<8xf32>
    %731 = vector.shape_cast %730 : vector<8xf32> to vector<8x1xf32>
    %732 = arith.subf %731, %724 : vector<8x1xf32>
    %cst_273 = arith.constant -11.5129251 : f32
    %cst_274 = arith.constant -1.00000498E-5 : f32
    %733 = vector.broadcast %cst_273 : f32 to vector<8x1xf32>
    %734 = arith.maximumf %733, %732 : vector<8x1xf32>
    %735 = vector.broadcast %cst_274 : f32 to vector<8x1xf32>
    %736 = arith.minimumf %735, %734 : vector<8x1xf32>
    %737 = arith.addf %710, %736 : vector<8x1xf32>
    %c0_275 = arith.constant 0 : index
    %c6912 = arith.constant 6912 : index
    %738 = vector.load %arg11[%c0_275, %c6912] : memref<128x8192xbf16, #tpu.memory_space<vmem>>, vector<128x256xbf16>
    %cst_276 = arith.constant dense<0.000000e+00> : vector<8x256xf32>
    %739 = tpu.matmul %3, %738, %cst_276 {dimension_numbers = #tpu.dot_dimension_numbers<[1], [0], [0], [1], [0, 0, 1, 1], [], []>} : vector<8x128xbf16>, vector<128x256xbf16>, vector<8x256xf32> -> vector<8x256xf32>
    %c0_277 = arith.constant 0 : index
    %c6912_278 = arith.constant 6912 : index
    %740 = vector.load %arg12[%c0_277, %c6912_278] : memref<1x8192xf32, #tpu.memory_space<vmem>>, vector<1x256xf32>
    %741 = vector.broadcast %740 : vector<1x256xf32> to vector<8x256xf32>
    %742 = arith.addf %739, %741 : vector<8x256xf32>
    %cst_279 = arith.constant dense<0xFF800000> : vector<8xf32>
    %743 = vector.multi_reduction <maximumf>, %742, %cst_279 [1] : vector<8x256xf32> to vector<8xf32>
    %744 = vector.shape_cast %743 : vector<8xf32> to vector<8x1xf32>
    %745 = vector.broadcast %744 : vector<8x1xf32> to vector<8x256xf32>
    %746 = arith.subf %742, %745 : vector<8x256xf32>
    %747 = math.exp %746 : vector<8x256xf32>
    %cst_280 = arith.constant dense<0.000000e+00> : vector<8xf32>
    %748 = vector.multi_reduction <add>, %747, %cst_280 [1] : vector<8x256xf32> to vector<8xf32>
    %749 = vector.shape_cast %748 : vector<8xf32> to vector<8x1xf32>
    %750 = math.log %749 : vector<8x1xf32>
    %751 = arith.addf %744, %750 : vector<8x1xf32>
    %752 = vector.extract_strided_slice %6 {offsets = [0, 27], sizes = [8, 1], strides = [1, 1]} : vector<8x32xi32> to vector<8x1xi32>
    %753 = vector.broadcast %752 : vector<8x1xi32> to vector<8x256xi32>
    %754 = arith.cmpi eq, %7, %753 : vector<8x256xi32>
    %cst_281 = arith.constant 0.000000e+00 : f32
    %755 = vector.broadcast %cst_281 : f32 to vector<8x256xf32>
    %756 = arith.select %754, %742, %755 : vector<8x256xi1>, vector<8x256xf32>
    %cst_282 = arith.constant dense<0.000000e+00> : vector<8xf32>
    %757 = vector.multi_reduction <add>, %756, %cst_282 [1] : vector<8x256xf32> to vector<8xf32>
    %758 = vector.shape_cast %757 : vector<8xf32> to vector<8x1xf32>
    %759 = arith.subf %758, %751 : vector<8x1xf32>
    %cst_283 = arith.constant -11.5129251 : f32
    %cst_284 = arith.constant -1.00000498E-5 : f32
    %760 = vector.broadcast %cst_283 : f32 to vector<8x1xf32>
    %761 = arith.maximumf %760, %759 : vector<8x1xf32>
    %762 = vector.broadcast %cst_284 : f32 to vector<8x1xf32>
    %763 = arith.minimumf %762, %761 : vector<8x1xf32>
    %764 = arith.addf %737, %763 : vector<8x1xf32>
    %c0_285 = arith.constant 0 : index
    %c7168 = arith.constant 7168 : index
    %765 = vector.load %arg11[%c0_285, %c7168] : memref<128x8192xbf16, #tpu.memory_space<vmem>>, vector<128x256xbf16>
    %cst_286 = arith.constant dense<0.000000e+00> : vector<8x256xf32>
    %766 = tpu.matmul %3, %765, %cst_286 {dimension_numbers = #tpu.dot_dimension_numbers<[1], [0], [0], [1], [0, 0, 1, 1], [], []>} : vector<8x128xbf16>, vector<128x256xbf16>, vector<8x256xf32> -> vector<8x256xf32>
    %c0_287 = arith.constant 0 : index
    %c7168_288 = arith.constant 7168 : index
    %767 = vector.load %arg12[%c0_287, %c7168_288] : memref<1x8192xf32, #tpu.memory_space<vmem>>, vector<1x256xf32>
    %768 = vector.broadcast %767 : vector<1x256xf32> to vector<8x256xf32>
    %769 = arith.addf %766, %768 : vector<8x256xf32>
    %cst_289 = arith.constant dense<0xFF800000> : vector<8xf32>
    %770 = vector.multi_reduction <maximumf>, %769, %cst_289 [1] : vector<8x256xf32> to vector<8xf32>
    %771 = vector.shape_cast %770 : vector<8xf32> to vector<8x1xf32>
    %772 = vector.broadcast %771 : vector<8x1xf32> to vector<8x256xf32>
    %773 = arith.subf %769, %772 : vector<8x256xf32>
    %774 = math.exp %773 : vector<8x256xf32>
    %cst_290 = arith.constant dense<0.000000e+00> : vector<8xf32>
    %775 = vector.multi_reduction <add>, %774, %cst_290 [1] : vector<8x256xf32> to vector<8xf32>
    %776 = vector.shape_cast %775 : vector<8xf32> to vector<8x1xf32>
    %777 = math.log %776 : vector<8x1xf32>
    %778 = arith.addf %771, %777 : vector<8x1xf32>
    %779 = vector.extract_strided_slice %6 {offsets = [0, 28], sizes = [8, 1], strides = [1, 1]} : vector<8x32xi32> to vector<8x1xi32>
    %780 = vector.broadcast %779 : vector<8x1xi32> to vector<8x256xi32>
    %781 = arith.cmpi eq, %7, %780 : vector<8x256xi32>
    %cst_291 = arith.constant 0.000000e+00 : f32
    %782 = vector.broadcast %cst_291 : f32 to vector<8x256xf32>
    %783 = arith.select %781, %769, %782 : vector<8x256xi1>, vector<8x256xf32>
    %cst_292 = arith.constant dense<0.000000e+00> : vector<8xf32>
    %784 = vector.multi_reduction <add>, %783, %cst_292 [1] : vector<8x256xf32> to vector<8xf32>
    %785 = vector.shape_cast %784 : vector<8xf32> to vector<8x1xf32>
    %786 = arith.subf %785, %778 : vector<8x1xf32>
    %cst_293 = arith.constant -11.5129251 : f32
    %cst_294 = arith.constant -1.00000498E-5 : f32
    %787 = vector.broadcast %cst_293 : f32 to vector<8x1xf32>
    %788 = arith.maximumf %787, %786 : vector<8x1xf32>
    %789 = vector.broadcast %cst_294 : f32 to vector<8x1xf32>
    %790 = arith.minimumf %789, %788 : vector<8x1xf32>
    %791 = arith.addf %764, %790 : vector<8x1xf32>
    %c0_295 = arith.constant 0 : index
    %c7424 = arith.constant 7424 : index
    %792 = vector.load %arg11[%c0_295, %c7424] : memref<128x8192xbf16, #tpu.memory_space<vmem>>, vector<128x256xbf16>
    %cst_296 = arith.constant dense<0.000000e+00> : vector<8x256xf32>
    %793 = tpu.matmul %3, %792, %cst_296 {dimension_numbers = #tpu.dot_dimension_numbers<[1], [0], [0], [1], [0, 0, 1, 1], [], []>} : vector<8x128xbf16>, vector<128x256xbf16>, vector<8x256xf32> -> vector<8x256xf32>
    %c0_297 = arith.constant 0 : index
    %c7424_298 = arith.constant 7424 : index
    %794 = vector.load %arg12[%c0_297, %c7424_298] : memref<1x8192xf32, #tpu.memory_space<vmem>>, vector<1x256xf32>
    %795 = vector.broadcast %794 : vector<1x256xf32> to vector<8x256xf32>
    %796 = arith.addf %793, %795 : vector<8x256xf32>
    %cst_299 = arith.constant dense<0xFF800000> : vector<8xf32>
    %797 = vector.multi_reduction <maximumf>, %796, %cst_299 [1] : vector<8x256xf32> to vector<8xf32>
    %798 = vector.shape_cast %797 : vector<8xf32> to vector<8x1xf32>
    %799 = vector.broadcast %798 : vector<8x1xf32> to vector<8x256xf32>
    %800 = arith.subf %796, %799 : vector<8x256xf32>
    %801 = math.exp %800 : vector<8x256xf32>
    %cst_300 = arith.constant dense<0.000000e+00> : vector<8xf32>
    %802 = vector.multi_reduction <add>, %801, %cst_300 [1] : vector<8x256xf32> to vector<8xf32>
    %803 = vector.shape_cast %802 : vector<8xf32> to vector<8x1xf32>
    %804 = math.log %803 : vector<8x1xf32>
    %805 = arith.addf %798, %804 : vector<8x1xf32>
    %806 = vector.extract_strided_slice %6 {offsets = [0, 29], sizes = [8, 1], strides = [1, 1]} : vector<8x32xi32> to vector<8x1xi32>
    %807 = vector.broadcast %806 : vector<8x1xi32> to vector<8x256xi32>
    %808 = arith.cmpi eq, %7, %807 : vector<8x256xi32>
    %cst_301 = arith.constant 0.000000e+00 : f32
    %809 = vector.broadcast %cst_301 : f32 to vector<8x256xf32>
    %810 = arith.select %808, %796, %809 : vector<8x256xi1>, vector<8x256xf32>
    %cst_302 = arith.constant dense<0.000000e+00> : vector<8xf32>
    %811 = vector.multi_reduction <add>, %810, %cst_302 [1] : vector<8x256xf32> to vector<8xf32>
    %812 = vector.shape_cast %811 : vector<8xf32> to vector<8x1xf32>
    %813 = arith.subf %812, %805 : vector<8x1xf32>
    %cst_303 = arith.constant -11.5129251 : f32
    %cst_304 = arith.constant -1.00000498E-5 : f32
    %814 = vector.broadcast %cst_303 : f32 to vector<8x1xf32>
    %815 = arith.maximumf %814, %813 : vector<8x1xf32>
    %816 = vector.broadcast %cst_304 : f32 to vector<8x1xf32>
    %817 = arith.minimumf %816, %815 : vector<8x1xf32>
    %818 = arith.addf %791, %817 : vector<8x1xf32>
    %c0_305 = arith.constant 0 : index
    %c7680 = arith.constant 7680 : index
    %819 = vector.load %arg11[%c0_305, %c7680] : memref<128x8192xbf16, #tpu.memory_space<vmem>>, vector<128x256xbf16>
    %cst_306 = arith.constant dense<0.000000e+00> : vector<8x256xf32>
    %820 = tpu.matmul %3, %819, %cst_306 {dimension_numbers = #tpu.dot_dimension_numbers<[1], [0], [0], [1], [0, 0, 1, 1], [], []>} : vector<8x128xbf16>, vector<128x256xbf16>, vector<8x256xf32> -> vector<8x256xf32>
    %c0_307 = arith.constant 0 : index
    %c7680_308 = arith.constant 7680 : index
    %821 = vector.load %arg12[%c0_307, %c7680_308] : memref<1x8192xf32, #tpu.memory_space<vmem>>, vector<1x256xf32>
    %822 = vector.broadcast %821 : vector<1x256xf32> to vector<8x256xf32>
    %823 = arith.addf %820, %822 : vector<8x256xf32>
    %cst_309 = arith.constant dense<0xFF800000> : vector<8xf32>
    %824 = vector.multi_reduction <maximumf>, %823, %cst_309 [1] : vector<8x256xf32> to vector<8xf32>
    %825 = vector.shape_cast %824 : vector<8xf32> to vector<8x1xf32>
    %826 = vector.broadcast %825 : vector<8x1xf32> to vector<8x256xf32>
    %827 = arith.subf %823, %826 : vector<8x256xf32>
    %828 = math.exp %827 : vector<8x256xf32>
    %cst_310 = arith.constant dense<0.000000e+00> : vector<8xf32>
    %829 = vector.multi_reduction <add>, %828, %cst_310 [1] : vector<8x256xf32> to vector<8xf32>
    %830 = vector.shape_cast %829 : vector<8xf32> to vector<8x1xf32>
    %831 = math.log %830 : vector<8x1xf32>
    %832 = arith.addf %825, %831 : vector<8x1xf32>
    %833 = vector.extract_strided_slice %6 {offsets = [0, 30], sizes = [8, 1], strides = [1, 1]} : vector<8x32xi32> to vector<8x1xi32>
    %834 = vector.broadcast %833 : vector<8x1xi32> to vector<8x256xi32>
    %835 = arith.cmpi eq, %7, %834 : vector<8x256xi32>
    %cst_311 = arith.constant 0.000000e+00 : f32
    %836 = vector.broadcast %cst_311 : f32 to vector<8x256xf32>
    %837 = arith.select %835, %823, %836 : vector<8x256xi1>, vector<8x256xf32>
    %cst_312 = arith.constant dense<0.000000e+00> : vector<8xf32>
    %838 = vector.multi_reduction <add>, %837, %cst_312 [1] : vector<8x256xf32> to vector<8xf32>
    %839 = vector.shape_cast %838 : vector<8xf32> to vector<8x1xf32>
    %840 = arith.subf %839, %832 : vector<8x1xf32>
    %cst_313 = arith.constant -11.5129251 : f32
    %cst_314 = arith.constant -1.00000498E-5 : f32
    %841 = vector.broadcast %cst_313 : f32 to vector<8x1xf32>
    %842 = arith.maximumf %841, %840 : vector<8x1xf32>
    %843 = vector.broadcast %cst_314 : f32 to vector<8x1xf32>
    %844 = arith.minimumf %843, %842 : vector<8x1xf32>
    %845 = arith.addf %818, %844 : vector<8x1xf32>
    %c0_315 = arith.constant 0 : index
    %c7936 = arith.constant 7936 : index
    %846 = vector.load %arg11[%c0_315, %c7936] : memref<128x8192xbf16, #tpu.memory_space<vmem>>, vector<128x256xbf16>
    %cst_316 = arith.constant dense<0.000000e+00> : vector<8x256xf32>
    %847 = tpu.matmul %3, %846, %cst_316 {dimension_numbers = #tpu.dot_dimension_numbers<[1], [0], [0], [1], [0, 0, 1, 1], [], []>} : vector<8x128xbf16>, vector<128x256xbf16>, vector<8x256xf32> -> vector<8x256xf32>
    %c0_317 = arith.constant 0 : index
    %c7936_318 = arith.constant 7936 : index
    %848 = vector.load %arg12[%c0_317, %c7936_318] : memref<1x8192xf32, #tpu.memory_space<vmem>>, vector<1x256xf32>
    %849 = vector.broadcast %848 : vector<1x256xf32> to vector<8x256xf32>
    %850 = arith.addf %847, %849 : vector<8x256xf32>
    %cst_319 = arith.constant dense<0xFF800000> : vector<8xf32>
    %851 = vector.multi_reduction <maximumf>, %850, %cst_319 [1] : vector<8x256xf32> to vector<8xf32>
    %852 = vector.shape_cast %851 : vector<8xf32> to vector<8x1xf32>
    %853 = vector.broadcast %852 : vector<8x1xf32> to vector<8x256xf32>
    %854 = arith.subf %850, %853 : vector<8x256xf32>
    %855 = math.exp %854 : vector<8x256xf32>
    %cst_320 = arith.constant dense<0.000000e+00> : vector<8xf32>
    %856 = vector.multi_reduction <add>, %855, %cst_320 [1] : vector<8x256xf32> to vector<8xf32>
    %857 = vector.shape_cast %856 : vector<8xf32> to vector<8x1xf32>
    %858 = math.log %857 : vector<8x1xf32>
    %859 = arith.addf %852, %858 : vector<8x1xf32>
    %860 = vector.extract_strided_slice %6 {offsets = [0, 31], sizes = [8, 1], strides = [1, 1]} : vector<8x32xi32> to vector<8x1xi32>
    %861 = vector.broadcast %860 : vector<8x1xi32> to vector<8x256xi32>
    %862 = arith.cmpi eq, %7, %861 : vector<8x256xi32>
    %cst_321 = arith.constant 0.000000e+00 : f32
    %863 = vector.broadcast %cst_321 : f32 to vector<8x256xf32>
    %864 = arith.select %862, %850, %863 : vector<8x256xi1>, vector<8x256xf32>
    %cst_322 = arith.constant dense<0.000000e+00> : vector<8xf32>
    %865 = vector.multi_reduction <add>, %864, %cst_322 [1] : vector<8x256xf32> to vector<8xf32>
    %866 = vector.shape_cast %865 : vector<8xf32> to vector<8x1xf32>
    %867 = arith.subf %866, %859 : vector<8x1xf32>
    %cst_323 = arith.constant -11.5129251 : f32
    %cst_324 = arith.constant -1.00000498E-5 : f32
    %868 = vector.broadcast %cst_323 : f32 to vector<8x1xf32>
    %869 = arith.maximumf %868, %867 : vector<8x1xf32>
    %870 = vector.broadcast %cst_324 : f32 to vector<8x1xf32>
    %871 = arith.minimumf %870, %869 : vector<8x1xf32>
    %872 = arith.addf %845, %871 : vector<8x1xf32>
    %c0_325 = arith.constant 0 : index
    %c0_326 = arith.constant 0 : index
    %873 = vector.load %arg15[%c0_325, %c0_326] : memref<8x1xf32, #tpu.memory_space<vmem>>, vector<8x1xf32>
    %874 = arith.addf %873, %872 : vector<8x1xf32>
    %c0_327 = arith.constant 0 : index
    %c0_328 = arith.constant 0 : index
    %875 = vector.load %arg15[%c0_327, %c0_328] : memref<8x1xf32, #tpu.memory_space<vmem>>, vector<8x1xf32>
    tpu.vector_store %arg15[%c0_327, %c0_328], %874 {strides = array<i32>} : memref<8x1xf32, #tpu.memory_space<vmem>>, vector<8x1xf32>,
    %c1_i32 = arith.constant 1 : i32
    %876 = arith.cmpi eq, %arg0, %c1_i32 : i32
    %877 = arith.extui %876 : i1 to i32
    %c0_i32_329 = arith.constant 0 : i32
    %878 = arith.cmpi ne, %877, %c0_i32_329 : i32
    scf.if %878 {
      %c0_330 = arith.constant 0 : index
      %c0_331 = arith.constant 0 : index
      %879 = vector.load %arg15[%c0_330, %c0_331] : memref<8x1xf32, #tpu.memory_space<vmem>>, vector<8x1xf32>
      %880 = vector.shape_cast %879 : vector<8x1xf32> to vector<1x8x1xf32>
      %cst_332 = arith.constant dense<0.000000e+00> : vector<1xf32>
      %881 = vector.multi_reduction <add>, %880, %cst_332 [1, 2] : vector<1x8x1xf32> to vector<1xf32>
      %882 = vector.shape_cast %881 : vector<1xf32> to vector<1x1x1xf32>
      %883 = vector.extract %882[0, 0, 0] : f32 from vector<1x1x1xf32>
      %cst_333 = arith.constant 0.000000e+00 : f32
      %884 = arith.subf %cst_333, %883 : f32
      %cst_334 = arith.constant 8.000000e+00 : f32
      %885 = arith.divf %884, %cst_334 : f32
      %c0_335 = arith.constant 0 : index
      %886 = memref.load %arg13[%c0_335] : memref<1xf32, #tpu.memory_space<smem>>
      memref.store %885, %arg13[%c0_335] : memref<1xf32, #tpu.memory_space<smem>>
    } else {
    }
    return
  }
  func.func @transform_0(%arg0: i32) -> (i32, i32) {
    %c0_i32 = arith.constant 0 : i32
    %c0_i32_0 = arith.constant 0 : i32
    %c0_i32_1 = arith.constant 0 : i32
    return %c0_i32, %c0_i32_0 : i32, i32
  }
  func.func @transform_1(%arg0: i32) -> (i32, i32, i32) {
    %c0_i32 = arith.constant 0 : i32
    %c0_i32_0 = arith.constant 0 : i32
    %c0_i32_1 = arith.constant 0 : i32
    %c0_i32_2 = arith.constant 0 : i32
    return %c0_i32, %c0_i32_0, %c0_i32_1 : i32, i32, i32
  }
  func.func @transform_2(%arg0: i32) -> (i32, i32) {
    %c0_i32 = arith.constant 0 : i32
    %c0_i32_0 = arith.constant 0 : i32
    %c0_i32_1 = arith.constant 0 : i32
    return %c0_i32, %c0_i32_0 : i32, i32
  }
  func.func @transform_3(%arg0: i32) -> (i32, i32) {
    %c0_i32 = arith.constant 0 : i32
    %c0_i32_0 = arith.constant 0 : i32
    %c0_i32_1 = arith.constant 0 : i32
    return %c0_i32, %c0_i32_0 : i32, i32
  }
  func.func @transform_4(%arg0: i32) -> (i32, i32) {
    %c0_i32 = arith.constant 0 : i32
    %c0_i32_0 = arith.constant 0 : i32
    %c0_i32_1 = arith.constant 0 : i32
    return %c0_i32, %c0_i32_0 : i32, i32
  }
  func.func @transform_5(%arg0: i32) -> (i32, i32) {
    %c0_i32 = arith.constant 0 : i32
    %c0_i32_0 = arith.constant 0 : i32
    %c0_i32_1 = arith.constant 0 : i32
    return %c0_i32, %c0_i32_0 : i32, i32
  }
  func.func @transform_6(%arg0: i32) -> (i32, i32) {
    %c0_i32 = arith.constant 0 : i32
    %c0_i32_0 = arith.constant 0 : i32
    %c0_i32_1 = arith.constant 0 : i32
    return %c0_i32, %c0_i32_0 : i32, i32
  }
  func.func @transform_7(%arg0: i32) -> (i32, i32) {
    %c0_i32 = arith.constant 0 : i32
    %c0_i32_0 = arith.constant 0 : i32
    %c0_i32_1 = arith.constant 0 : i32
    return %c0_i32, %c0_i32_0 : i32, i32
  }
  func.func @transform_8(%arg0: i32) -> (i32, i32) {
    %c0_i32 = arith.constant 0 : i32
    %c0_i32_0 = arith.constant 0 : i32
    %c0_i32_1 = arith.constant 0 : i32
    return %c0_i32, %c0_i32_0 : i32, i32
  }
  func.func @transform_9(%arg0: i32) -> (i32, i32) {
    %c0_i32 = arith.constant 0 : i32
    %c0_i32_0 = arith.constant 0 : i32
    %c0_i32_1 = arith.constant 0 : i32
    return %c0_i32, %c0_i32_0 : i32, i32
  }
  func.func @transform_10(%arg0: i32) -> (i32, i32) {
    %c0_i32 = arith.constant 0 : i32
    %c0_i32_0 = arith.constant 0 : i32
    return %c0_i32, %arg0 : i32, i32
  }
  func.func @transform_11(%arg0: i32) -> (i32, i32) {
    %c0_i32 = arith.constant 0 : i32
    %c0_i32_0 = arith.constant 0 : i32
    return %c0_i32, %arg0 : i32, i32
  }
  func.func @transform_12(%arg0: i32) -> i32 {
    %c0_i32 = arith.constant 0 : i32
    %c0_i32_0 = arith.constant 0 : i32
    return %c0_i32 : i32
  }
}

</mosaic_0001>

<llo_original>
// kernel: tpu_custom_call.1
$region0: #{tpu_custom_call.1}
  #allocation0 [shape = 'u32[]', space=smem, size = 0x4, offset = 0x4, fixed_abs, tag = 'smem constant byte address 0x4 - core index']
  #allocation1 [shape = 'u32[144,128]{1,0:T(1,128)}', space=vmem, size = 0x12000, scoped, tag = 'internal scratch']
  #allocation2 [shape = 'bf16[8,128]{1,0:T(8,128)(2,1)}', space=vmem, size = 0x800, scoped, tag = 'scratch operand']
  #allocation3 [shape = 'f32[8,1]{1,0:T(8,128)}', space=vmem, size = 0x1000, scoped, tag = 'scratch operand']
  %s0 = inlined_call_operand.hbm [shape: f32[8,64], index: 0, kind: input, shape index: {}]
  %s1 = inlined_call_operand.hbm [shape: s32[2,8,32], index: 1, kind: input, shape index: {}]
  %s2 = inlined_call_operand.hbm [shape: f32[8,16], index: 2, kind: input, shape index: {}]
  %s3 = inlined_call_operand.hbm [shape: f32[64,128], index: 3, kind: input, shape index: {}]
  %s4 = inlined_call_operand.hbm [shape: f32[128,128], index: 4, kind: input, shape index: {}]
  %s5 = inlined_call_operand.vmem [shape: f32[128,32], index: 5, kind: input, shape index: {}]
  %s6 = inlined_call_operand.hbm [shape: f32[4,128], index: 6, kind: input, shape index: {}]
  %s7 = inlined_call_operand.hbm [shape: f32[1,32], index: 7, kind: input, shape index: {}]
  %s8 = inlined_call_operand.hbm [shape: f32[16,128], index: 8, kind: input, shape index: {}]
  %s9 = inlined_call_operand.hbm [shape: f32[128,128], index: 9, kind: input, shape index: {}]
  %s10 = inlined_call_operand.hbm [shape: bf16[128,16384], index: 10, kind: input, shape index: {}]
  %s11 = inlined_call_operand.hbm [shape: f32[1,16384], index: 11, kind: input, shape index: {}]
  %s12 = inlined_call_operand.hbm [shape: f32[1], index: 12, kind: output, shape index: {}]
  %s13 = sld [smem:[#allocation0]]
  $region133: #{tpu_custom_call.1} parent=0
    _
  %s15 = ssub.s32 1, %s13
  %s16 = scalar_select 0, %s15, %s13
  $region1: #{tpu_custom_call.1} parent=0
    #allocation4 [shape = 'u8[4096]{0}', space=vmem, size = 0x1000, scoped, tag = 'input window, operand 0, single buffered']
    #allocation5 [shape = 's32[2]{0}', space=sflag, size = 0x8, scoped, tag = 'scoped memory for tpu_custom_call.1']
    #allocation6 [shape = 's32[2]{0}', space=sflag, size = 0x8, scoped, tag = 'scoped memory for tpu_custom_call.1']
    #allocation7 [shape = 'u8[8192]{0}', space=vmem, size = 0x2000, scoped, tag = 'input window, operand 1, single buffered']
    #allocation8 [shape = 's32[1]{0}', space=sflag, size = 0x4, scoped, tag = 'scoped memory for tpu_custom_call.1']
    #allocation9 [shape = 'u8[4096]{0}', space=vmem, size = 0x1000, scoped, tag = 'input window, operand 2, single buffered']
    #allocation10 [shape = 'u8[32768]{0}', space=vmem, size = 0x8000, scoped, tag = 'input window, operand 3, single buffered']
    #allocation11 [shape = 's32[1]{0}', space=sflag, size = 0x4, scoped, tag = 'scoped memory for tpu_custom_call.1']
    #allocation12 [shape = 'u8[65536]{0}', space=vmem, size = 0x10000, scoped, tag = 'input window, operand 4, single buffered']
    #allocation13 [shape = 'u8[2048]{0}', space=vmem, size = 0x800, scoped, tag = 'input window, operand 6, single buffered']
    #allocation14 [shape = 's32[1]{0}', space=sflag, size = 0x4, scoped, tag = 'scoped memory for tpu_custom_call.1']
    #allocation15 [shape = 'u8[512]{0}', space=vmem, size = 0x400, scoped, tag = 'input window, operand 7, single buffered']
    #allocation16 [shape = 'u8[8192]{0}', space=vmem, size = 0x2000, scoped, tag = 'input window, operand 8, single buffered']
    #allocation17 [shape = 's32[1]{0}', space=sflag, size = 0x4, scoped, tag = 'scoped memory for tpu_custom_call.1']
    #allocation18 [shape = 'u8[65536]{0}', space=vmem, size = 0x10000, scoped, tag = 'input window, operand 9, single buffered']
    #allocation19 [shape = 'u8[4194304]{0}', space=vmem, size = 0x400000, scoped, tag = 'input window, operand 10']
    #allocation20 [shape = 's32[2]{0}', space=sflag, size = 0x8, scoped, tag = 'scoped memory for tpu_custom_call.1']
    #allocation21 [shape = 'u8[65536]{0}', space=vmem, size = 0x10000, scoped, tag = 'input window, operand 11']
    #allocation22 [shape = 'u8[512]{0}', space=smem, size = 0x200, scoped, tag = 'output window, operand 0, single buffered']
    %17 = vsyncpa [#allocation5], 0
    %18 = vsyncpa [#allocation8], 0
    %19 = vsyncpa [#allocation11], 0
    %20 = vsyncpa [#allocation14], 0
    %21 = vsyncpa [#allocation17], 0
    %22 = vsyncpa [#allocation20], 0
    %s23 = scalar_lea.sflag [#allocation20], 1
    %24 = vsyncpa %s23, 0
    %25 = vsyncpa [#allocation6], 0
    loop: start=0, step=1, limit=4
    $region2: #{tpu_custom_call.1} parent=1 // loop_pre_header
      _
    $region3: #{tpu_custom_call.1} parent=1 // loop_header
      %s27 = sphi 0, %s31
      %p28 = scmp.ge.s32.totalorder %s27, 4
      %s35 = sphi 0, %s35
      %s37 = sphi 0, %s35
      %s38 = sphi 0, %s37
      %s52 = sphi 0, %s38
      %s56 = sphi 0, %s56
      %s58 = sphi 0, %s56
      %s59 = sphi 0, %s58
      %s73 = sphi 0, %s59
      %s77 = sphi 0, %s77
      %s79 = sphi 0, %s77
      %s80 = sphi 0, %s79
      %s94 = sphi 0, %s80
      %s98 = sphi 0, %s98
      %s100 = sphi 0, %s98
      %s101 = sphi 0, %s100
      %s115 = sphi 0, %s101
      %s119 = sphi 0, %s119
      %s121 = sphi 0, %s119
      %s122 = sphi 0, %s121
      %s136 = sphi 0, %s122
      %s140 = sphi 0, %s140
      %s142 = sphi 0, %s140
      %s143 = sphi 0, %s142
      %s157 = sphi 0, %s143
      %s161 = sphi 0, %s161
      %s163 = sphi 0, %s161
      %s164 = sphi 0, %s163
      %s178 = sphi 0, %s164
      %s182 = sphi 0, %s182
      %s184 = sphi 0, %s182
      %s185 = sphi 0, %s184
      %s199 = sphi 0, %s185
      %s203 = sphi 0, %s203
      %s205 = sphi 0, %s203
      %s206 = sphi 0, %s205
      %s220 = sphi 0, %s206
      %s224 = sphi 0, %s224
      %s226 = sphi 0, %s224
      %s227 = sphi 0, %s226
      %s241 = sphi 0, %s227
      %s247 = sphi 0, %s249
      %s250 = sphi 0, %s247
      %s251 = sphi 0, %s250
      %s267 = sphi 0, %s251
      %s273 = sphi 0, %s275
      %s276 = sphi 0, %s273
      %s277 = sphi 0, %s276
      %s293 = sphi 0, %s277
      %s297 = sphi 0, %s297
      %s299 = sphi 0, %s297
      %s300 = sphi 0, %s299
      %s314 = sphi 0, %s300
    $region4: #{tpu_custom_call.1} parent=1 // loop_header_branch
      %30 = sbr.rel (%p28) target = $region8
    $region5: #{tpu_custom_call.1} parent=1 // loop_body
      %s32 = ssub.s32 %s27, 1
      %s33 = ssub.s32 %s27, 2
      %s34 = sadd.s32 %s27, 1
      %s36 = sadd.s32 %s35, 1
      %p39 = scmp.eq.s32.totalorder %s27, 1
      %p40 = scmp.ne.s32.totalorder %s35, %s37
      %p41 = scmp.eq.s32.totalorder %s27, 0
      %p42 = por %p40, %p41
      %p43 = scmp.ne.s32.totalorder %s35, %s37
      %p44 = scmp.eq.s32.totalorder %s32, 1
      %p45 = por %p43, %p44
      %p46 = scmp.ne.s32.totalorder %s37, %s38
      %p47 = scmp.eq.s32.totalorder %s32, 0
      %p48 = por %p46, %p47
      %p49 = scmp.ne.s32.totalorder %s37, %s38
      %p50 = scmp.eq.s32.totalorder %s33, 1
      %p51 = por %p49, %p50
      %p53 = scmp.ne.s32.totalorder %s38, %s52
      %p54 = scmp.eq.s32.totalorder %s33, 0
      %p55 = por %p53, %p54
      %s57 = sadd.s32 %s56, 1
      %p60 = scmp.eq.s32.totalorder %s27, 1
      %p61 = scmp.ne.s32.totalorder %s56, %s58
      %p62 = scmp.eq.s32.totalorder %s27, 0
      %p63 = por %p61, %p62
      %p64 = scmp.ne.s32.totalorder %s56, %s58
      %p65 = scmp.eq.s32.totalorder %s32, 1
      %p66 = por %p64, %p65
      %p67 = scmp.ne.s32.totalorder %s58, %s59
      %p68 = scmp.eq.s32.totalorder %s32, 0
      %p69 = por %p67, %p68
      %p70 = scmp.ne.s32.totalorder %s58, %s59
      %p71 = scmp.eq.s32.totalorder %s33, 1
      %p72 = por %p70, %p71
      %p74 = scmp.ne.s32.totalorder %s59, %s73
      %p75 = scmp.eq.s32.totalorder %s33, 0
      %p76 = por %p74, %p75
      %s78 = sadd.s32 %s77, 1
      %p81 = scmp.eq.s32.totalorder %s27, 1
      %p82 = scmp.ne.s32.totalorder %s77, %s79
      %p83 = scmp.eq.s32.totalorder %s27, 0
      %p84 = por %p82, %p83
      %p85 = scmp.ne.s32.totalorder %s77, %s79
      %p86 = scmp.eq.s32.totalorder %s32, 1
      %p87 = por %p85, %p86
      %p88 = scmp.ne.s32.totalorder %s79, %s80
      %p89 = scmp.eq.s32.totalorder %s32, 0
      %p90 = por %p88, %p89
      %p91 = scmp.ne.s32.totalorder %s79, %s80
      %p92 = scmp.eq.s32.totalorder %s33, 1
      %p93 = por %p91, %p92
      %p95 = scmp.ne.s32.totalorder %s80, %s94
      %p96 = scmp.eq.s32.totalorder %s33, 0
      %p97 = por %p95, %p96
      %s99 = sadd.s32 %s98, 1
      %p102 = scmp.eq.s32.totalorder %s27, 1
      %p103 = scmp.ne.s32.totalorder %s98, %s100
      %p104 = scmp.eq.s32.totalorder %s27, 0
      %p105 = por %p103, %p104
      %p106 = scmp.ne.s32.totalorder %s98, %s100
      %p107 = scmp.eq.s32.totalorder %s32, 1
      %p108 = por %p106, %p107
      %p109 = scmp.ne.s32.totalorder %s100, %s101
      %p110 = scmp.eq.s32.totalorder %s32, 0
      %p111 = por %p109, %p110
      %p112 = scmp.ne.s32.totalorder %s100, %s101
      %p113 = scmp.eq.s32.totalorder %s33, 1
      %p114 = por %p112, %p113
      %p116 = scmp.ne.s32.totalorder %s101, %s115
      %p117 = scmp.eq.s32.totalorder %s33, 0
      %p118 = por %p116, %p117
      %s120 = sadd.s32 %s119, 1
      %p123 = scmp.eq.s32.totalorder %s27, 1
      %p124 = scmp.ne.s32.totalorder %s119, %s121
      %p125 = scmp.eq.s32.totalorder %s27, 0
      %p126 = por %p124, %p125
      %p127 = scmp.ne.s32.totalorder %s119, %s121
      %p128 = scmp.eq.s32.totalorder %s32, 1
      %p129 = por %p127, %p128
      %p130 = scmp.ne.s32.totalorder %s121, %s122
      %p131 = scmp.eq.s32.totalorder %s32, 0
      %p132 = por %p130, %p131
      %p133 = scmp.ne.s32.totalorder %s121, %s122
      %p134 = scmp.eq.s32.totalorder %s33, 1
      %p135 = por %p133, %p134
      %p137 = scmp.ne.s32.totalorder %s122, %s136
      %p138 = scmp.eq.s32.totalorder %s33, 0
      %p139 = por %p137, %p138
      %s141 = sadd.s32 %s140, 1
      %p144 = scmp.eq.s32.totalorder %s27, 1
      %p145 = scmp.ne.s32.totalorder %s140, %s142
      %p146 = scmp.eq.s32.totalorder %s27, 0
      %p147 = por %p145, %p146
      %p148 = scmp.ne.s32.totalorder %s140, %s142
      %p149 = scmp.eq.s32.totalorder %s32, 1
      %p150 = por %p148, %p149
      %p151 = scmp.ne.s32.totalorder %s142, %s143
      %p152 = scmp.eq.s32.totalorder %s32, 0
      %p153 = por %p151, %p152
      %p154 = scmp.ne.s32.totalorder %s142, %s143
      %p155 = scmp.eq.s32.totalorder %s33, 1
      %p156 = por %p154, %p155
      %p158 = scmp.ne.s32.totalorder %s143, %s157
      %p159 = scmp.eq.s32.totalorder %s33, 0
      %p160 = por %p158, %p159
      %s162 = sadd.s32 %s161, 1
      %p165 = scmp.eq.s32.totalorder %s27, 1
      %p166 = scmp.ne.s32.totalorder %s161, %s163
      %p167 = scmp.eq.s32.totalorder %s27, 0
      %p168 = por %p166, %p167
      %p169 = scmp.ne.s32.totalorder %s161, %s163
      %p170 = scmp.eq.s32.totalorder %s32, 1
      %p171 = por %p169, %p170
      %p172 = scmp.ne.s32.totalorder %s163, %s164
      %p173 = scmp.eq.s32.totalorder %s32, 0
      %p174 = por %p172, %p173
      %p175 = scmp.ne.s32.totalorder %s163, %s164
      %p176 = scmp.eq.s32.totalorder %s33, 1
      %p177 = por %p175, %p176
      %p179 = scmp.ne.s32.totalorder %s164, %s178
      %p180 = scmp.eq.s32.totalorder %s33, 0
      %p181 = por %p179, %p180
      %s183 = sadd.s32 %s182, 1
      %p186 = scmp.eq.s32.totalorder %s27, 1
      %p187 = scmp.ne.s32.totalorder %s182, %s184
      %p188 = scmp.eq.s32.totalorder %s27, 0
      %p189 = por %p187, %p188
      %p190 = scmp.ne.s32.totalorder %s182, %s184
      %p191 = scmp.eq.s32.totalorder %s32, 1
      %p192 = por %p190, %p191
      %p193 = scmp.ne.s32.totalorder %s184, %s185
      %p194 = scmp.eq.s32.totalorder %s32, 0
      %p195 = por %p193, %p194
      %p196 = scmp.ne.s32.totalorder %s184, %s185
      %p197 = scmp.eq.s32.totalorder %s33, 1
      %p198 = por %p196, %p197
      %p200 = scmp.ne.s32.totalorder %s185, %s199
      %p201 = scmp.eq.s32.totalorder %s33, 0
      %p202 = por %p200, %p201
      %s204 = sadd.s32 %s203, 1
      %p207 = scmp.eq.s32.totalorder %s27, 1
      %p208 = scmp.ne.s32.totalorder %s203, %s205
      %p209 = scmp.eq.s32.totalorder %s27, 0
      %p210 = por %p208, %p209
      %p211 = scmp.ne.s32.totalorder %s203, %s205
      %p212 = scmp.eq.s32.totalorder %s32, 1
      %p213 = por %p211, %p212
      %p214 = scmp.ne.s32.totalorder %s205, %s206
      %p215 = scmp.eq.s32.totalorder %s32, 0
      %p216 = por %p214, %p215
      %p217 = scmp.ne.s32.totalorder %s205, %s206
      %p218 = scmp.eq.s32.totalorder %s33, 1
      %p219 = por %p217, %p218
      %p221 = scmp.ne.s32.totalorder %s206, %s220
      %p222 = scmp.eq.s32.totalorder %s33, 0
      %p223 = por %p221, %p222
      %s225 = sadd.s32 %s224, 1
      %p228 = scmp.eq.s32.totalorder %s27, 1
      %p229 = scmp.ne.s32.totalorder %s224, %s226
      %p230 = scmp.eq.s32.totalorder %s27, 0
      %p231 = por %p229, %p230
      %p232 = scmp.ne.s32.totalorder %s224, %s226
      %p233 = scmp.eq.s32.totalorder %s32, 1
      %p234 = por %p232, %p233
      %p235 = scmp.ne.s32.totalorder %s226, %s227
      %p236 = scmp.eq.s32.totalorder %s32, 0
      %p237 = por %p235, %p236
      %p238 = scmp.ne.s32.totalorder %s226, %s227
      %p239 = scmp.eq.s32.totalorder %s33, 1
      %p240 = por %p238, %p239
      %p242 = scmp.ne.s32.totalorder %s227, %s241
      %p243 = scmp.eq.s32.totalorder %s33, 0
      %p244 = por %p242, %p243
      %s245 = ssub.s32 %s27, %s34
      %p246 = scmp.eq.s32.totalorder %s245, 0
      %s248 = sadd.s32 %s247, 1
      %s249 = scalar_select %p246, %s247, %s248
      %p252 = pneg %p246
      %p253 = scmp.eq.s32.totalorder %s27, 1
      %p254 = por %p252, %p253
      %p255 = scmp.ne.s32.totalorder %s247, %s250
      %p256 = scmp.eq.s32.totalorder %s27, 0
      %p257 = por %p255, %p256
      %p258 = scmp.ne.s32.totalorder %s247, %s250
      %p259 = scmp.eq.s32.totalorder %s32, 1
      %p260 = por %p258, %p259
      %p261 = scmp.ne.s32.totalorder %s250, %s251
      %p262 = scmp.eq.s32.totalorder %s32, 0
      %p263 = por %p261, %p262
      %p264 = scmp.ne.s32.totalorder %s250, %s251
      %p265 = scmp.eq.s32.totalorder %s33, 1
      %p266 = por %p264, %p265
      %p268 = scmp.ne.s32.totalorder %s251, %s267
      %p269 = scmp.eq.s32.totalorder %s33, 0
      %p270 = por %p268, %p269
      %s271 = ssub.s32 %s27, %s34
      %p272 = scmp.eq.s32.totalorder %s271, 0
      %s274 = sadd.s32 %s273, 1
      %s275 = scalar_select %p272, %s273, %s274
      %p278 = pneg %p272
      %p279 = scmp.eq.s32.totalorder %s27, 1
      %p280 = por %p278, %p279
      %p281 = scmp.ne.s32.totalorder %s273, %s276
      %p282 = scmp.eq.s32.totalorder %s27, 0
      %p283 = por %p281, %p282
      %p284 = scmp.ne.s32.totalorder %s273, %s276
      %p285 = scmp.eq.s32.totalorder %s32, 1
      %p286 = por %p284, %p285
      %p287 = scmp.ne.s32.totalorder %s276, %s277
      %p288 = scmp.eq.s32.totalorder %s32, 0
      %p289 = por %p287, %p288
      %p290 = scmp.ne.s32.totalorder %s276, %s277
      %p291 = scmp.eq.s32.totalorder %s33, 1
      %p292 = por %p290, %p291
      %p294 = scmp.ne.s32.totalorder %s277, %s293
      %p295 = scmp.eq.s32.totalorder %s33, 0
      %p296 = por %p294, %p295
      %s298 = sadd.s32 %s297, 1
      %p301 = scmp.eq.s32.totalorder %s27, 1
      %p302 = scmp.ne.s32.totalorder %s297, %s299
      %p303 = scmp.eq.s32.totalorder %s27, 0
      %p304 = por %p302, %p303
      %p305 = scmp.ne.s32.totalorder %s297, %s299
      %p306 = scmp.eq.s32.totalorder %s32, 1
      %p307 = por %p305, %p306
      %p308 = scmp.ne.s32.totalorder %s299, %s300
      %p309 = scmp.eq.s32.totalorder %s32, 0
      %p310 = por %p308, %p309
      %p311 = scmp.ne.s32.totalorder %s299, %s300
      %p312 = scmp.eq.s32.totalorder %s33, 1
      %p313 = por %p311, %p312
      %p315 = scmp.ne.s32.totalorder %s300, %s314
      %p316 = scmp.eq.s32.totalorder %s33, 0
      %p317 = por %p315, %p316
      %p318 = scmp.le.s32.totalorder 1, %s27
      %p319 = scmp.lt.s32.totalorder %s27, 3
      %p320 = pnand %p318, %p319
      %p321 = pneg %p320
      // Predicated region
      $region9: #{tpu_custom_call.1} parent=5 // pred_check
        _
      $region10: #{tpu_custom_call.1} parent=5 // pred_check_branch
        %323 = sbr.rel (%p320) target = $region12
      $region11: #{tpu_custom_call.1} parent=5 // pred_region
        %s324 = ssub.s32 %s27, 1
        // Predicated region
        $region13: #{tpu_custom_call.1} parent=11 // pred_check
          %p325 = pneg %p48
        $region14: #{tpu_custom_call.1} parent=11 // pred_check_branch
          %327 = sbr.rel (%p325) target = $region16
        $region15: #{tpu_custom_call.1} parent=11 // pred_region
          %s329 = ssub.s32 128, 128
          %330 = vsyncadd [#allocation5], %s329
          %s332 = sshll.u32 [#allocation4], 4
          %s333 = int_to_ptr.vmem [resolvable:$true] %s332
          %335 = dma.hbm_to_vmem [thread:$0]  %s0, 128, %s333, [#allocation5]
        $region16: #{tpu_custom_call.1} parent=11 // pred_fallthru
          _
        // Predicated region
        $region17: #{tpu_custom_call.1} parent=11 // pred_check
          %p336 = pneg %p69
        $region18: #{tpu_custom_call.1} parent=11 // pred_check_branch
          %338 = sbr.rel (%p336) target = $region20
        $region19: #{tpu_custom_call.1} parent=11 // pred_region
          %s340 = ssub.s32 256, 256
          %341 = vsyncadd [#allocation8], %s340
          %s342 = sshll.u32 [#allocation7], 4
          %s343 = int_to_ptr.vmem [resolvable:$true] %s342
          %348 = dma.hbm_to_vmem [thread:$0]  %s1, 256, %s343, [#allocation8], 128, 128, 8
        $region20: #{tpu_custom_call.1} parent=11 // pred_fallthru
          _
        // Predicated region
        $region21: #{tpu_custom_call.1} parent=11 // pred_check
          %p349 = pneg %p90
        $region22: #{tpu_custom_call.1} parent=11 // pred_check_branch
          %351 = sbr.rel (%p349) target = $region24
        $region23: #{tpu_custom_call.1} parent=11 // pred_region
          %s353 = ssub.s32 128, 128
          %354 = vsyncadd [#allocation8], %s353
          %s356 = sshll.u32 [#allocation9], 4
          %s357 = int_to_ptr.vmem [resolvable:$true] %s356
          %359 = dma.hbm_to_vmem [thread:$0]  %s2, 128, %s357, [#allocation8]
        $region24: #{tpu_custom_call.1} parent=11 // pred_fallthru
          _
        // Predicated region
        $region25: #{tpu_custom_call.1} parent=11 // pred_check
          %p360 = pneg %p111
        $region26: #{tpu_custom_call.1} parent=11 // pred_check_branch
          %362 = sbr.rel (%p360) target = $region28
        $region27: #{tpu_custom_call.1} parent=11 // pred_region
          %s364 = ssub.s32 1024, 1024
          %365 = vsyncadd [#allocation11], %s364
          %s366 = sshll.u32 [#allocation10], 4
          %s367 = int_to_ptr.vmem [resolvable:$true] %s366
          %372 = dma.hbm_to_vmem [thread:$0]  %s3, 1024, %s367, [#allocation11], 128, 128, 8
        $region28: #{tpu_custom_call.1} parent=11 // pred_fallthru
          _
        // Predicated region
        $region29: #{tpu_custom_call.1} parent=11 // pred_check
          %p373 = pneg %p132
        $region30: #{tpu_custom_call.1} parent=11 // pred_check_branch
          %375 = sbr.rel (%p373) target = $region32
        $region31: #{tpu_custom_call.1} parent=11 // pred_region
          %s377 = ssub.s32 2048, 2048
          %378 = vsyncadd [#allocation11], %s377
          %s379 = sshll.u32 [#allocation12], 4
          %s380 = int_to_ptr.vmem [resolvable:$true] %s379
          %385 = dma.hbm_to_vmem [thread:$0]  %s4, 2048, %s380, [#allocation11], 128, 128, 8
        $region32: #{tpu_custom_call.1} parent=11 // pred_fallthru
          _
        // Predicated region
        $region33: #{tpu_custom_call.1} parent=11 // pred_check
          %p386 = pneg %p153
        $region34: #{tpu_custom_call.1} parent=11 // pred_check_branch
          %388 = sbr.rel (%p386) target = $region36
        $region35: #{tpu_custom_call.1} parent=11 // pred_region
          _
        $region36: #{tpu_custom_call.1} parent=11 // pred_fallthru
          _
        // Predicated region
        $region37: #{tpu_custom_call.1} parent=11 // pred_check
          %p389 = pneg %p174
        $region38: #{tpu_custom_call.1} parent=11 // pred_check_branch
          %391 = sbr.rel (%p389) target = $region40
        $region39: #{tpu_custom_call.1} parent=11 // pred_region
          %s393 = ssub.s32 64, 64
          %394 = vsyncadd [#allocation14], %s393
          %s396 = sshll.u32 [#allocation13], 4
          %s397 = int_to_ptr.vmem [resolvable:$true] %s396
          %399 = dma.hbm_to_vmem [thread:$0]  %s6, 64, %s397, [#allocation14]
        $region40: #{tpu_custom_call.1} parent=11 // pred_fallthru
          _
        // Predicated region
        $region41: #{tpu_custom_call.1} parent=11 // pred_check
          %p400 = pneg %p195
        $region42: #{tpu_custom_call.1} parent=11 // pred_check_branch
          %402 = sbr.rel (%p400) target = $region44
        $region43: #{tpu_custom_call.1} parent=11 // pred_region
          %s404 = ssub.s32 16, 16
          %405 = vsyncadd [#allocation14], %s404
          %s407 = sshll.u32 [#allocation15], 4
          %s408 = int_to_ptr.vmem [resolvable:$true] %s407
          %410 = dma.hbm_to_vmem [thread:$0]  %s7, 16, %s408, [#allocation14]
        $region44: #{tpu_custom_call.1} parent=11 // pred_fallthru
          _
        // Predicated region
        $region45: #{tpu_custom_call.1} parent=11 // pred_check
          %p411 = pneg %p216
        $region46: #{tpu_custom_call.1} parent=11 // pred_check_branch
          %413 = sbr.rel (%p411) target = $region48
        $region47: #{tpu_custom_call.1} parent=11 // pred_region
          %s415 = ssub.s32 256, 256
          %416 = vsyncadd [#allocation17], %s415
          %s417 = sshll.u32 [#allocation16], 4
          %s418 = int_to_ptr.vmem [resolvable:$true] %s417
          %423 = dma.hbm_to_vmem [thread:$0]  %s8, 256, %s418, [#allocation17], 128, 128, 8
        $region48: #{tpu_custom_call.1} parent=11 // pred_fallthru
          _
        // Predicated region
        $region49: #{tpu_custom_call.1} parent=11 // pred_check
          %p424 = pneg %p237
        $region50: #{tpu_custom_call.1} parent=11 // pred_check_branch
          %426 = sbr.rel (%p424) target = $region52
        $region51: #{tpu_custom_call.1} parent=11 // pred_region
          %s428 = ssub.s32 2048, 2048
          %429 = vsyncadd [#allocation17], %s428
          %s430 = sshll.u32 [#allocation18], 4
          %s431 = int_to_ptr.vmem [resolvable:$true] %s430
          %436 = dma.hbm_to_vmem [thread:$0]  %s9, 2048, %s431, [#allocation17], 128, 128, 8
        $region52: #{tpu_custom_call.1} parent=11 // pred_fallthru
          _
      $region12: #{tpu_custom_call.1} parent=5 // pred_fallthru
        _
      %p437 = scmp.lt.s32.totalorder %s27, 2
      // Predicated region
      $region53: #{tpu_custom_call.1} parent=5 // pred_check
        %p438 = pneg %p437
      $region54: #{tpu_custom_call.1} parent=5 // pred_check_branch
        %440 = sbr.rel (%p438) target = $region56
      $region55: #{tpu_custom_call.1} parent=5 // pred_region
        // Predicated region
        $region57: #{tpu_custom_call.1} parent=55 // pred_check
          %p441 = pneg %p257
        $region58: #{tpu_custom_call.1} parent=55 // pred_check_branch
          %443 = sbr.rel (%p441) target = $region60
        $region59: #{tpu_custom_call.1} parent=55 // pred_region
          %s444 = sand.u32 %s27, 1
          %s445 = scalar_lea.sflag [#allocation20], %s444
          %s446 = sand.u32 %s247, 1
          %s447 = smul.addr %s446, 4096
          %s448 = scalar_lea.vmem [#allocation19], %s447
          %s449 = smul.u32 64, %s27
          %s451 = ssub.s32 65536, 65536
          %452 = vsyncadd %s445, %s451
          %s453 = smul.addr %s449, 64
          %s454 = scalar_lea.hbm %s10, %s453
          %s455 = sshll.u32 %s448, 4
          %s456 = int_to_ptr.vmem [resolvable:$true] %s455
          %461 = dma.hbm_to_vmem [thread:$0]  %s454, 65536, %s456, %s445, 8192, 4096, 256
        $region60: #{tpu_custom_call.1} parent=55 // pred_fallthru
          _
        // Predicated region
        $region61: #{tpu_custom_call.1} parent=55 // pred_check
          %p462 = pneg %p283
        $region62: #{tpu_custom_call.1} parent=55 // pred_check_branch
          %464 = sbr.rel (%p462) target = $region64
        $region63: #{tpu_custom_call.1} parent=55 // pred_region
          %s465 = sand.u32 %s27, 1
          %s466 = scalar_lea.sflag [#allocation20], %s465
          %s467 = sand.u32 %s273, 1
          %s468 = smul.addr %s467, 64
          %s469 = scalar_lea.vmem [#allocation21], %s468
          %s470 = smul.u32 64, %s27
          %s472 = ssub.s32 1024, 1024
          %473 = vsyncadd %s466, %s472
          %s474 = smul.addr %s470, 16
          %s475 = scalar_lea.hbm %s11, %s474
          %s477 = sshll.u32 %s469, 4
          %s478 = int_to_ptr.vmem [resolvable:$true] %s477
          %480 = dma.hbm_to_vmem [thread:$0]  %s475, 1024, %s478, %s466
        $region64: #{tpu_custom_call.1} parent=55 // pred_fallthru
          _
      $region56: #{tpu_custom_call.1} parent=5 // pred_fallthru
        _
      %p481 = scmp.le.s32.totalorder 1, %s27
      %p482 = scmp.lt.s32.totalorder %s27, 3
      %p483 = pnand %p481, %p482
      %p484 = pneg %p483
      // Predicated region
      $region65: #{tpu_custom_call.1} parent=5 // pred_check
        _
      $region66: #{tpu_custom_call.1} parent=5 // pred_check_branch
        %486 = sbr.rel (%p483) target = $region68
      $region67: #{tpu_custom_call.1} parent=5 // pred_region
        %s487 = ssub.s32 %s27, 1
        // Predicated region
        $region69: #{tpu_custom_call.1} parent=67 // pred_check
          %p488 = pneg %p48
        $region70: #{tpu_custom_call.1} parent=67 // pred_check_branch
          %490 = sbr.rel (%p488) target = $region72
        $region71: #{tpu_custom_call.1} parent=67 // pred_region
          %491 = dma.done [#allocation5], 128
        $region72: #{tpu_custom_call.1} parent=67 // pred_fallthru
          _
        // Predicated region
        $region73: #{tpu_custom_call.1} parent=67 // pred_check
          %p492 = pneg %p69
        $region74: #{tpu_custom_call.1} parent=67 // pred_check_branch
          %494 = sbr.rel (%p492) target = $region76
        $region75: #{tpu_custom_call.1} parent=67 // pred_region
          %495 = dma.done [#allocation8], 256
        $region76: #{tpu_custom_call.1} parent=67 // pred_fallthru
          _
        // Predicated region
        $region77: #{tpu_custom_call.1} parent=67 // pred_check
          %p496 = pneg %p90
        $region78: #{tpu_custom_call.1} parent=67 // pred_check_branch
          %498 = sbr.rel (%p496) target = $region80
        $region79: #{tpu_custom_call.1} parent=67 // pred_region
          %499 = dma.done [#allocation8], 128
        $region80: #{tpu_custom_call.1} parent=67 // pred_fallthru
          _
        // Predicated region
        $region81: #{tpu_custom_call.1} parent=67 // pred_check
          %p500 = pneg %p111
        $region82: #{tpu_custom_call.1} parent=67 // pred_check_branch
          %502 = sbr.rel (%p500) target = $region84
        $region83: #{tpu_custom_call.1} parent=67 // pred_region
          %503 = dma.done [#allocation11], 1024
        $region84: #{tpu_custom_call.1} parent=67 // pred_fallthru
          _
        // Predicated region
        $region85: #{tpu_custom_call.1} parent=67 // pred_check
          %p504 = pneg %p132
        $region86: #{tpu_custom_call.1} parent=67 // pred_check_branch
          %506 = sbr.rel (%p504) target = $region88
        $region87: #{tpu_custom_call.1} parent=67 // pred_region
          %507 = dma.done [#allocation11], 2048
        $region88: #{tpu_custom_call.1} parent=67 // pred_fallthru
          _
        // Predicated region
        $region89: #{tpu_custom_call.1} parent=67 // pred_check
          %p508 = pneg %p174
        $region90: #{tpu_custom_call.1} parent=67 // pred_check_branch
          %510 = sbr.rel (%p508) target = $region92
        $region91: #{tpu_custom_call.1} parent=67 // pred_region
          %511 = dma.done [#allocation14], 64
        $region92: #{tpu_custom_call.1} parent=67 // pred_fallthru
          _
        // Predicated region
        $region93: #{tpu_custom_call.1} parent=67 // pred_check
          %p512 = pneg %p195
        $region94: #{tpu_custom_call.1} parent=67 // pred_check_branch
          %514 = sbr.rel (%p512) target = $region96
        $region95: #{tpu_custom_call.1} parent=67 // pred_region
          %515 = dma.done [#allocation14], 16
        $region96: #{tpu_custom_call.1} parent=67 // pred_fallthru
          _
        // Predicated region
        $region97: #{tpu_custom_call.1} parent=67 // pred_check
          %p516 = pneg %p216
        $region98: #{tpu_custom_call.1} parent=67 // pred_check_branch
          %518 = sbr.rel (%p516) target = $region100
        $region99: #{tpu_custom_call.1} parent=67 // pred_region
          %519 = dma.done [#allocation17], 256
        $region100: #{tpu_custom_call.1} parent=67 // pred_fallthru
          _
        // Predicated region
        $region101: #{tpu_custom_call.1} parent=67 // pred_check
          %p520 = pneg %p237
        $region102: #{tpu_custom_call.1} parent=67 // pred_check_branch
          %522 = sbr.rel (%p520) target = $region104
        $region103: #{tpu_custom_call.1} parent=67 // pred_region
          %523 = dma.done [#allocation17], 2048
        $region104: #{tpu_custom_call.1} parent=67 // pred_fallthru
          _
        %s524 = sand.u32 %s32, 1
        %s525 = scalar_lea.sflag [#allocation20], %s524
        %s526 = sand.u32 %s250, 1
        %s527 = smul.addr %s526, 4096
        %s528 = scalar_lea.vmem [#allocation19], %s527
        // Predicated region
        $region105: #{tpu_custom_call.1} parent=67 // pred_check
          %p529 = pneg %p263
        $region106: #{tpu_custom_call.1} parent=67 // pred_check_branch
          %531 = sbr.rel (%p529) target = $region108
        $region107: #{tpu_custom_call.1} parent=67 // pred_region
          %532 = dma.done %s525, 65536
        $region108: #{tpu_custom_call.1} parent=67 // pred_fallthru
          _
        %s533 = sand.u32 %s32, 1
        %s534 = scalar_lea.sflag [#allocation20], %s533
        %s535 = sand.u32 %s276, 1
        %s536 = smul.addr %s535, 64
        %s537 = scalar_lea.vmem [#allocation21], %s536
        // Predicated region
        $region109: #{tpu_custom_call.1} parent=67 // pred_check
          %p538 = pneg %p289
        $region110: #{tpu_custom_call.1} parent=67 // pred_check_branch
          %540 = sbr.rel (%p538) target = $region112
        $region111: #{tpu_custom_call.1} parent=67 // pred_region
          %541 = dma.done %s534, 1024
        $region112: #{tpu_custom_call.1} parent=67 // pred_fallthru
          _
        %p542 = pneg %p48
        %p543 = pneg %p45
        %p544 = pneg %p69
        %p545 = pneg %p66
        %p546 = pneg %p90
        %p547 = pneg %p87
        %p548 = pneg %p111
        %p549 = pneg %p108
        %p550 = pneg %p132
        %p551 = pneg %p129
        %p552 = pneg %p153
        %p553 = pneg %p150
        %p554 = pneg %p174
        %p555 = pneg %p171
        %p556 = pneg %p195
        %p557 = pneg %p192
        %p558 = pneg %p216
        %p559 = pneg %p213
        %p560 = pneg %p237
        %p561 = pneg %p234
        %s562 = sand.u32 %s32, 1
        %s563 = scalar_lea.sflag [#allocation20], %s562
        %s564 = sand.u32 %s250, 1
        %s565 = smul.addr %s564, 4096
        %s566 = scalar_lea.vmem [#allocation19], %s565
        %p567 = pneg %p263
        %p568 = pneg %p260
        %s569 = sand.u32 %s32, 1
        %s570 = scalar_lea.sflag [#allocation20], %s569
        %s571 = sand.u32 %s276, 1
        %s572 = smul.addr %s571, 64
        %s573 = scalar_lea.vmem [#allocation21], %s572
        %p574 = pneg %p289
        %p575 = pneg %p286
        %p576 = pneg %p310
        %p577 = pneg %p307
        %s578 = smul.u32 64, %s32
        %s579 = smul.u32 64, %s32
        %p581 = scmp.eq.s32.totalorder %s32, 0
        // Predicated region
        $region113: #{tpu_custom_call.1} parent=67 // pred_check
          %p582 = pneg %p581
        $region114: #{tpu_custom_call.1} parent=67 // pred_check_branch
          %584 = sbr.rel (%p582) target = $region116
        $region115: #{tpu_custom_call.1} parent=67 // pred_region
          %v585 = vld [vmem:[#allocation13] sm:$0x1]
          %v586 = vld [vmem:[#allocation13 + $0x1] sm:$0x1]
          %v587 = vld [vmem:[#allocation13 + $0x2] sm:$0x1]
          %v588 = vld [vmem:[#allocation13 + $0x3] sm:$0x1]
          %v589 = vld [vmem:[#allocation4] sm:$0xff]
          %v590 = vld [vmem:[#allocation10] sm:$0xff]
          %v591 = vld [vmem:[#allocation10 + $0x8] sm:$0xff]
          %v592 = vld [vmem:[#allocation10 + $0x10] sm:$0xff]
          %v593 = vld [vmem:[#allocation10 + $0x18] sm:$0xff]
          %v594 = vld [vmem:[#allocation10 + $0x20] sm:$0xff]
          %v595 = vld [vmem:[#allocation10 + $0x28] sm:$0xff]
          %v596 = vld [vmem:[#allocation10 + $0x30] sm:$0xff]
          %v597 = vld [vmem:[#allocation10 + $0x38] sm:$0xff]
          %v598 = vlaneseq
          %v599 = vshrl.u32 %v598, 7
          %v600 = vsub.s32 0, %v599
          %v601 = vrot.slane %v585, %v600
          %vm602 = vcmask 523264
          %v604 = vsel %vm602, %v589, 0
          %606 = vmatprep.subr.mxu0 0.0
          %607 = vmatpush1.msra.mxu0 0.0
          %608 = vmatprep.subr.mxu0 0.0
          %609 = vmatpush1.msra.mxu0 0.0
          %610 = vmatprep.subr.mxu0 0.0
          %611 = vmatpush1.msra.mxu0 0.0
          %612 = vmatprep.subr.mxu0 0.0
          %613 = vmatpush1.msra.mxu0 0.0
          %614 = vmatprep.subr.mxu0 0.0
          %615 = vmatpush1.msra.mxu0 0.0
          %616 = vmatprep.subr.mxu0 0.0
          %617 = vmatpush1.msra.mxu0 0.0
          %618 = vmatprep.subr.mxu0 0.0
          %619 = vmatpush1.msra.mxu0 0.0
          %620 = vmatprep.subr.mxu0 0.0
          %621 = vmatpush1.msra.mxu0 0.0
          %622 = vmatprep.subr.mxu0 0.0
          %623 = vmatpush1.msra.mxu0 %v597
          %624 = vmatprep.subr.mxu0 0.0
          %625 = vmatpush1.msra.mxu0 %v596
          %626 = vmatprep.subr.mxu0 0.0
          %627 = vmatpush1.msra.mxu0 %v595
          %628 = vmatprep.subr.mxu0 0.0
          %629 = vmatpush1.msra.mxu0 %v594
          %630 = vmatprep.subr.mxu0 0.0
          %631 = vmatpush1.msra.mxu0 %v593
          %632 = vmatprep.subr.mxu0 0.0
          %633 = vmatpush1.msra.mxu0 %v592
          %634 = vmatprep.subr.mxu0 0.0
          %635 = vmatpush1.msra.mxu0 %v591
          %636 = vmatprep.subr.mxu0 0.0
          %637 = vmatpush1.msra.mxu0 %v590
          %638 = vmatprep.subr.mxu0 0.0
          %639 = vmatpush2.msra.mxu0 0.0
          %640 = vmatprep.subr.mxu0 0.0
          %641 = vmatpush2.msra.mxu0 0.0
          %642 = vmatprep.subr.mxu0 0.0
          %643 = vmatpush2.msra.mxu0 0.0
          %644 = vmatprep.subr.mxu0 0.0
          %645 = vmatpush2.msra.mxu0 0.0
          %646 = vmatprep.subr.mxu0 0.0
          %647 = vmatpush2.msra.mxu0 0.0
          %648 = vmatprep.subr.mxu0 0.0
          %649 = vmatpush2.msra.mxu0 0.0
          %650 = vmatprep.subr.mxu0 0.0
          %651 = vmatpush2.msra.mxu0 0.0
          %652 = vmatprep.subr.mxu0 0.0
          %653 = vmatpush2.msra.mxu0 0.0
          %654 = vmatprep.subr.mxu0 0.0
          %655 = vmatpush2.msra.mxu0 0.0
          %656 = vmatprep.subr.mxu0 0.0
          %657 = vmatpush2.msra.mxu0 0.0
          %658 = vmatprep.subr.mxu0 0.0
          %659 = vmatpush2.msra.mxu0 0.0
          %660 = vmatprep.subr.mxu0 0.0
          %661 = vmatpush2.msra.mxu0 0.0
          %662 = vmatprep.subr.mxu0 0.0
          %663 = vmatpush2.msra.mxu0 0.0
          %664 = vmatprep.subr.mxu0 0.0
          %665 = vmatpush2.msra.mxu0 0.0
          %666 = vmatprep.subr.mxu0 0.0
          %667 = vmatpush2.msra.mxu0 0.0
          %668 = vmatprep.subr.mxu0 0.0
          %669 = vmatpush2.msra.mxu0 0.0
          %670 = vmatprep.mubr.f32.mxu0 0.0
          %671 = vmatmul.mubr.f32.gmra.mxu0 %v604
          %v672 = vpop.f32.mrf.mxu0
          %v673 = vadd.f32 %v601, %v672
          %v674 = vpop.f32.mrf.mxu0
          %675 = vdwg.mxu0
          %v676 = vmul.f32 %v673, 0.01
          %v677 = vmax.f32 %v673, %v676
          %v678 = vld [vmem:[#allocation12] sm:$0xff]
          %v679 = vld [vmem:[#allocation12 + $0x8] sm:$0xff]
          %v680 = vld [vmem:[#allocation12 + $0x10] sm:$0xff]
          %v681 = vld [vmem:[#allocation12 + $0x18] sm:$0xff]
          %v682 = vld [vmem:[#allocation12 + $0x20] sm:$0xff]
          %v683 = vld [vmem:[#allocation12 + $0x28] sm:$0xff]
          %v684 = vld [vmem:[#allocation12 + $0x30] sm:$0xff]
          %v685 = vld [vmem:[#allocation12 + $0x38] sm:$0xff]
          %v686 = vld [vmem:[#allocation12 + $0x40] sm:$0xff]
          %v687 = vld [vmem:[#allocation12 + $0x48] sm:$0xff]
          %v688 = vld [vmem:[#allocation12 + $0x50] sm:$0xff]
          %v689 = vld [vmem:[#allocation12 + $0x58] sm:$0xff]
          %v690 = vld [vmem:[#allocation12 + $0x60] sm:$0xff]
          %v691 = vld [vmem:[#allocation12 + $0x68] sm:$0xff]
          %v692 = vld [vmem:[#allocation12 + $0x70] sm:$0xff]
          %v693 = vld [vmem:[#allocation12 + $0x78] sm:$0xff]
          %v694 = vlaneseq
          %v695 = vshrl.u32 %v694, 7
          %v696 = vsub.s32 0, %v695
          %v697 = vrot.slane %v586, %v696
          %698 = vmatprep.subr.mxu0 0.0
          %699 = vmatpush1.msra.mxu0 %v693
          %700 = vmatprep.subr.mxu0 0.0
          %701 = vmatpush1.msra.mxu0 %v692
          %702 = vmatprep.subr.mxu0 0.0
          %703 = vmatpush1.msra.mxu0 %v691
          %704 = vmatprep.subr.mxu0 0.0
          %705 = vmatpush1.msra.mxu0 %v690
          %706 = vmatprep.subr.mxu0 0.0
          %707 = vmatpush1.msra.mxu0 %v689
          %708 = vmatprep.subr.mxu0 0.0
          %709 = vmatpush1.msra.mxu0 %v688
          %710 = vmatprep.subr.mxu0 0.0
          %711 = vmatpush1.msra.mxu0 %v687
          %712 = vmatprep.subr.mxu0 0.0
          %713 = vmatpush1.msra.mxu0 %v686
          %714 = vmatprep.subr.mxu0 0.0
          %715 = vmatpush1.msra.mxu0 %v685
          %716 = vmatprep.subr.mxu0 0.0
          %717 = vmatpush1.msra.mxu0 %v684
          %718 = vmatprep.subr.mxu0 0.0
          %719 = vmatpush1.msra.mxu0 %v683
          %720 = vmatprep.subr.mxu0 0.0
          %721 = vmatpush1.msra.mxu0 %v682
          %722 = vmatprep.subr.mxu0 0.0
          %723 = vmatpush1.msra.mxu0 %v681
          %724 = vmatprep.subr.mxu0 0.0
          %725 = vmatpush1.msra.mxu0 %v680
          %726 = vmatprep.subr.mxu0 0.0
          %727 = vmatpush1.msra.mxu0 %v679
          %728 = vmatprep.subr.mxu0 0.0
          %729 = vmatpush1.msra.mxu0 %v678
          %730 = vmatprep.subr.mxu0 0.0
          %731 = vmatpush2.msra.mxu0 0.0
          %732 = vmatprep.subr.mxu0 0.0
          %733 = vmatpush2.msra.mxu0 0.0
          %734 = vmatprep.subr.mxu0 0.0
          %735 = vmatpush2.msra.mxu0 0.0
          %736 = vmatprep.subr.mxu0 0.0
          %737 = vmatpush2.msra.mxu0 0.0
          %738 = vmatprep.subr.mxu0 0.0
          %739 = vmatpush2.msra.mxu0 0.0
          %740 = vmatprep.subr.mxu0 0.0
          %741 = vmatpush2.msra.mxu0 0.0
          %742 = vmatprep.subr.mxu0 0.0
          %743 = vmatpush2.msra.mxu0 0.0
          %744 = vmatprep.subr.mxu0 0.0
          %745 = vmatpush2.msra.mxu0 0.0
          %746 = vmatprep.subr.mxu0 0.0
          %747 = vmatpush2.msra.mxu0 0.0
          %748 = vmatprep.subr.mxu0 0.0
          %749 = vmatpush2.msra.mxu0 0.0
          %750 = vmatprep.subr.mxu0 0.0
          %751 = vmatpush2.msra.mxu0 0.0
          %752 = vmatprep.subr.mxu0 0.0
          %753 = vmatpush2.msra.mxu0 0.0
          %754 = vmatprep.subr.mxu0 0.0
          %755 = vmatpush2.msra.mxu0 0.0
          %756 = vmatprep.subr.mxu0 0.0
          %757 = vmatpush2.msra.mxu0 0.0
          %758 = vmatprep.subr.mxu0 0.0
          %759 = vmatpush2.msra.mxu0 0.0
          %760 = vmatprep.subr.mxu0 0.0
          %761 = vmatpush2.msra.mxu0 0.0
          %762 = vmatprep.mubr.f32.mxu0 0.0
          %763 = vmatmul.mubr.f32.gmra.mxu0 %v677
          %v764 = vpop.f32.mrf.mxu0
          %v765 = vadd.f32 %v697, %v764
          %v766 = vpop.f32.mrf.mxu0
          %767 = vdwg.mxu0
          %v768 = vmul.f32 %v765, 0.01
          %v769 = vmax.f32 %v765, %v768
          %v770 = vld [vmem:[%s5] sm:$0xff]
          %v771 = vld [vmem:[%s5 + $0x8] sm:$0xff]
          %v772 = vld [vmem:[%s5 + $0x10] sm:$0xff]
          %v773 = vld [vmem:[%s5 + $0x18] sm:$0xff]
          %v774 = vld [vmem:[%s5 + $0x20] sm:$0xff]
          %v775 = vld [vmem:[%s5 + $0x28] sm:$0xff]
          %v776 = vld [vmem:[%s5 + $0x30] sm:$0xff]
          %v777 = vld [vmem:[%s5 + $0x38] sm:$0xff]
          %v778 = vld [vmem:[%s5 + $0x40] sm:$0xff]
          %v779 = vld [vmem:[%s5 + $0x48] sm:$0xff]
          %v780 = vld [vmem:[%s5 + $0x50] sm:$0xff]
          %v781 = vld [vmem:[%s5 + $0x58] sm:$0xff]
          %v782 = vld [vmem:[%s5 + $0x60] sm:$0xff]
          %v783 = vld [vmem:[%s5 + $0x68] sm:$0xff]
          %v784 = vld [vmem:[%s5 + $0x70] sm:$0xff]
          %v785 = vld [vmem:[%s5 + $0x78] sm:$0xff]
          %v786 = vld [vmem:[#allocation15] sm:$0x1]
          %v788 = vlaneseq
          %v789 = vshrl.u32 %v788, 7
          %v790 = vsub.s32 0, %v789
          %v791 = vrot.slane %v786, %v790
          %793 = vmatprep.subr.mxu0 0.0
          %794 = vmatpush1.msra.mxu0 %v785
          %795 = vmatprep.subr.mxu0 0.0
          %796 = vmatpush1.msra.mxu0 %v784
          %797 = vmatprep.subr.mxu0 0.0
          %798 = vmatpush1.msra.mxu0 %v783
          %799 = vmatprep.subr.mxu0 0.0
          %800 = vmatpush1.msra.mxu0 %v782
          %801 = vmatprep.subr.mxu0 0.0
          %802 = vmatpush1.msra.mxu0 %v781
          %803 = vmatprep.subr.mxu0 0.0
          %804 = vmatpush1.msra.mxu0 %v780
          %805 = vmatprep.subr.mxu0 0.0
          %806 = vmatpush1.msra.mxu0 %v779
          %807 = vmatprep.subr.mxu0 0.0
          %808 = vmatpush1.msra.mxu0 %v778
          %809 = vmatprep.subr.mxu0 0.0
          %810 = vmatpush1.msra.mxu0 %v777
          %811 = vmatprep.subr.mxu0 0.0
          %812 = vmatpush1.msra.mxu0 %v776
          %813 = vmatprep.subr.mxu0 0.0
          %814 = vmatpush1.msra.mxu0 %v775
          %815 = vmatprep.subr.mxu0 0.0
          %816 = vmatpush1.msra.mxu0 %v774
          %817 = vmatprep.subr.mxu0 0.0
          %818 = vmatpush1.msra.mxu0 %v773
          %819 = vmatprep.subr.mxu0 0.0
          %820 = vmatpush1.msra.mxu0 %v772
          %821 = vmatprep.subr.mxu0 0.0
          %822 = vmatpush1.msra.mxu0 %v771
          %823 = vmatprep.subr.mxu0 0.0
          %824 = vmatpush1.msra.mxu0 %v770
          %825 = vmatprep.subr.mxu0 0.0
          %826 = vmatpush2.msra.mxu0 0.0
          %827 = vmatprep.subr.mxu0 0.0
          %828 = vmatpush2.msra.mxu0 0.0
          %829 = vmatprep.subr.mxu0 0.0
          %830 = vmatpush2.msra.mxu0 0.0
          %831 = vmatprep.subr.mxu0 0.0
          %832 = vmatpush2.msra.mxu0 0.0
          %833 = vmatprep.subr.mxu0 0.0
          %834 = vmatpush2.msra.mxu0 0.0
          %835 = vmatprep.subr.mxu0 0.0
          %836 = vmatpush2.msra.mxu0 0.0
          %837 = vmatprep.subr.mxu0 0.0
          %838 = vmatpush2.msra.mxu0 0.0
          %839 = vmatprep.subr.mxu0 0.0
          %840 = vmatpush2.msra.mxu0 0.0
          %841 = vmatprep.subr.mxu0 0.0
          %842 = vmatpush2.msra.mxu0 0.0
          %843 = vmatprep.subr.mxu0 0.0
          %844 = vmatpush2.msra.mxu0 0.0
          %845 = vmatprep.subr.mxu0 0.0
          %846 = vmatpush2.msra.mxu0 0.0
          %847 = vmatprep.subr.mxu0 0.0
          %848 = vmatpush2.msra.mxu0 0.0
          %849 = vmatprep.subr.mxu0 0.0
          %850 = vmatpush2.msra.mxu0 0.0
          %851 = vmatprep.subr.mxu0 0.0
          %852 = vmatpush2.msra.mxu0 0.0
          %853 = vmatprep.subr.mxu0 0.0
          %854 = vmatpush2.msra.mxu0 0.0
          %855 = vmatprep.subr.mxu0 0.0
          %856 = vmatpush2.msra.mxu0 0.0
          %857 = vmatprep.mubr.f32.mxu0 0.0
          %858 = vmatmul.mubr.f32.gmra.mxu0 %v769
          %v859 = vpop.f32.mrf.mxu0
          %v860 = vadd.f32 %v791, %v859
          %v861 = vpop.f32.mrf.mxu0
          %862 = vdwg.mxu0
          %v863 = vmul.f32 %v860, 0.5
          %v864 = vmul.f32 %v863, 1.442695
          %v865 = vpow.pop %v864
          %v866 = vld [vmem:[#allocation9] sm:$0xff]
          %868 = vrot.lane.b32.xlu0 %v866, 16
          %v869 = vpop.permute.xlu0 %868
          %v871 = vmul.f32 %v865, %v869
          %873 = vrot.lane.b32.xlu0 %v871, 112
          %v874 = vpop.permute.xlu0 %873
          %v876 = vadd.f32 %v860, %v874
          %v877 = vmul.f32 %v876, -0.5
          %v878 = vmul.f32 %v877, %v876
          %880 = vrot.lane.b32.xlu0 %v863, 112
          %v881 = vpop.permute.xlu0 %880
          %v883 = vadd.f32 %v878, %v881
          %v884 = vsub.f32 0.0, %v860
          %v885 = vmul.f32 %v884, 1.442695
          %v886 = vpow.pop %v885
          %v887 = vmul.f32 %v886, 0.5
          %v888 = vsub.f32 %v876, %v860
          %v889 = vmul.f32 %v888, %v888
          %891 = vrot.lane.b32.xlu0 %v889, 16
          %v892 = vpop.permute.xlu0 %891
          %v894 = vmul.f32 %v887, %v892
          %896 = vrot.lane.b32.xlu0 %v894, 112
          %v897 = vpop.permute.xlu0 %896
          %v899 = vadd.f32 %v883, %v897
          %vm900 = vcmask 130048
          %v901 = vsel %vm900, %v899, 0.0
          %902 = vadd.xlane.f32.xlu0 %v901
          %v903 = vpop.xlane.xlu0 %902
          %vm904 = vcmask 7168
          %905 = vst.msk [vmem:[#allocation3] sm:$0xff] %vm904, %v903
          %v906 = vld [vmem:[#allocation16] sm:$0xff]
          %v907 = vld [vmem:[#allocation16 + $0x8] sm:$0xff]
          %v908 = vlaneseq
          %v909 = vshrl.u32 %v908, 7
          %v910 = vsub.s32 0, %v909
          %v911 = vrot.slane %v587, %v910
          %v913 = vsel %vm900, %v876, 0
          %915 = vmatprep.subr.mxu0 0.0
          %916 = vmatpush1.msra.mxu0 0.0
          %917 = vmatprep.subr.mxu0 0.0
          %918 = vmatpush1.msra.mxu0 0.0
          %919 = vmatprep.subr.mxu0 0.0
          %920 = vmatpush1.msra.mxu0 0.0
          %921 = vmatprep.subr.mxu0 0.0
          %922 = vmatpush1.msra.mxu0 0.0
          %923 = vmatprep.subr.mxu0 0.0
          %924 = vmatpush1.msra.mxu0 0.0
          %925 = vmatprep.subr.mxu0 0.0
          %926 = vmatpush1.msra.mxu0 0.0
          %927 = vmatprep.subr.mxu0 0.0
          %928 = vmatpush1.msra.mxu0 0.0
          %929 = vmatprep.subr.mxu0 0.0
          %930 = vmatpush1.msra.mxu0 0.0
          %931 = vmatprep.subr.mxu0 0.0
          %932 = vmatpush1.msra.mxu0 0.0
          %933 = vmatprep.subr.mxu0 0.0
          %934 = vmatpush1.msra.mxu0 0.0
          %935 = vmatprep.subr.mxu0 0.0
          %936 = vmatpush1.msra.mxu0 0.0
          %937 = vmatprep.subr.mxu0 0.0
          %938 = vmatpush1.msra.mxu0 0.0
          %939 = vmatprep.subr.mxu0 0.0
          %940 = vmatpush1.msra.mxu0 0.0
          %941 = vmatprep.subr.mxu0 0.0
          %942 = vmatpush1.msra.mxu0 0.0
          %943 = vmatprep.subr.mxu0 0.0
          %944 = vmatpush1.msra.mxu0 %v907
          %945 = vmatprep.subr.mxu0 0.0
          %946 = vmatpush1.msra.mxu0 %v906
          %947 = vmatprep.subr.mxu0 0.0
          %948 = vmatpush2.msra.mxu0 0.0
          %949 = vmatprep.subr.mxu0 0.0
          %950 = vmatpush2.msra.mxu0 0.0
          %951 = vmatprep.subr.mxu0 0.0
          %952 = vmatpush2.msra.mxu0 0.0
          %953 = vmatprep.subr.mxu0 0.0
          %954 = vmatpush2.msra.mxu0 0.0
          %955 = vmatprep.subr.mxu0 0.0
          %956 = vmatpush2.msra.mxu0 0.0
          %957 = vmatprep.subr.mxu0 0.0
          %958 = vmatpush2.msra.mxu0 0.0
          %959 = vmatprep.subr.mxu0 0.0
          %960 = vmatpush2.msra.mxu0 0.0
          %961 = vmatprep.subr.mxu0 0.0
          %962 = vmatpush2.msra.mxu0 0.0
          %963 = vmatprep.subr.mxu0 0.0
          %964 = vmatpush2.msra.mxu0 0.0
          %965 = vmatprep.subr.mxu0 0.0
          %966 = vmatpush2.msra.mxu0 0.0
          %967 = vmatprep.subr.mxu0 0.0
          %968 = vmatpush2.msra.mxu0 0.0
          %969 = vmatprep.subr.mxu0 0.0
          %970 = vmatpush2.msra.mxu0 0.0
          %971 = vmatprep.subr.mxu0 0.0
          %972 = vmatpush2.msra.mxu0 0.0
          %973 = vmatprep.subr.mxu0 0.0
          %974 = vmatpush2.msra.mxu0 0.0
          %975 = vmatprep.subr.mxu0 0.0
          %976 = vmatpush2.msra.mxu0 0.0
          %977 = vmatprep.subr.mxu0 0.0
          %978 = vmatpush2.msra.mxu0 0.0
          %979 = vmatprep.mubr.f32.mxu0 0.0
          %980 = vmatmul.mubr.f32.gmra.mxu0 %v913
          %v981 = vpop.f32.mrf.mxu0
          %v982 = vadd.f32 %v911, %v981
          %v983 = vpop.f32.mrf.mxu0
          %984 = vdwg.mxu0
          %v985 = vmul.f32 %v982, 0.01
          %v986 = vmax.f32 %v982, %v985
          %v987 = vld [vmem:[#allocation18] sm:$0xff]
          %v988 = vld [vmem:[#allocation18 + $0x8] sm:$0xff]
          %v989 = vld [vmem:[#allocation18 + $0x10] sm:$0xff]
          %v990 = vld [vmem:[#allocation18 + $0x18] sm:$0xff]
          %v991 = vld [vmem:[#allocation18 + $0x20] sm:$0xff]
          %v992 = vld [vmem:[#allocation18 + $0x28] sm:$0xff]
          %v993 = vld [vmem:[#allocation18 + $0x30] sm:$0xff]
          %v994 = vld [vmem:[#allocation18 + $0x38] sm:$0xff]
          %v995 = vld [vmem:[#allocation18 + $0x40] sm:$0xff]
          %v996 = vld [vmem:[#allocation18 + $0x48] sm:$0xff]
          %v997 = vld [vmem:[#allocation18 + $0x50] sm:$0xff]
          %v998 = vld [vmem:[#allocation18 + $0x58] sm:$0xff]
          %v999 = vld [vmem:[#allocation18 + $0x60] sm:$0xff]
          %v1000 = vld [vmem:[#allocation18 + $0x68] sm:$0xff]
          %v1001 = vld [vmem:[#allocation18 + $0x70] sm:$0xff]
          %v1002 = vld [vmem:[#allocation18 + $0x78] sm:$0xff]
          %v1003 = vlaneseq
          %v1004 = vshrl.u32 %v1003, 7
          %v1005 = vsub.s32 0, %v1004
          %v1006 = vrot.slane %v588, %v1005
          %1007 = vmatprep.subr.mxu0 0.0
          %1008 = vmatpush1.msra.mxu0 %v1002
          %1009 = vmatprep.subr.mxu0 0.0
          %1010 = vmatpush1.msra.mxu0 %v1001
          %1011 = vmatprep.subr.mxu0 0.0
          %1012 = vmatpush1.msra.mxu0 %v1000
          %1013 = vmatprep.subr.mxu0 0.0
          %1014 = vmatpush1.msra.mxu0 %v999
          %1015 = vmatprep.subr.mxu0 0.0
          %1016 = vmatpush1.msra.mxu0 %v998
          %1017 = vmatprep.subr.mxu0 0.0
          %1018 = vmatpush1.msra.mxu0 %v997
          %1019 = vmatprep.subr.mxu0 0.0
          %1020 = vmatpush1.msra.mxu0 %v996
          %1021 = vmatprep.subr.mxu0 0.0
          %1022 = vmatpush1.msra.mxu0 %v995
          %1023 = vmatprep.subr.mxu0 0.0
          %1024 = vmatpush1.msra.mxu0 %v994
          %1025 = vmatprep.subr.mxu0 0.0
          %1026 = vmatpush1.msra.mxu0 %v993
          %1027 = vmatprep.subr.mxu0 0.0
          %1028 = vmatpush1.msra.mxu0 %v992
          %1029 = vmatprep.subr.mxu0 0.0
          %1030 = vmatpush1.msra.mxu0 %v991
          %1031 = vmatprep.subr.mxu0 0.0
          %1032 = vmatpush1.msra.mxu0 %v990
          %1033 = vmatprep.subr.mxu0 0.0
          %1034 = vmatpush1.msra.mxu0 %v989
          %1035 = vmatprep.subr.mxu0 0.0
          %1036 = vmatpush1.msra.mxu0 %v988
          %1037 = vmatprep.subr.mxu0 0.0
          %1038 = vmatpush1.msra.mxu0 %v987
          %1039 = vmatprep.subr.mxu0 0.0
          %1040 = vmatpush2.msra.mxu0 0.0
          %1041 = vmatprep.subr.mxu0 0.0
          %1042 = vmatpush2.msra.mxu0 0.0
          %1043 = vmatprep.subr.mxu0 0.0
          %1044 = vmatpush2.msra.mxu0 0.0
          %1045 = vmatprep.subr.mxu0 0.0
          %1046 = vmatpush2.msra.mxu0 0.0
          %1047 = vmatprep.subr.mxu0 0.0
          %1048 = vmatpush2.msra.mxu0 0.0
          %1049 = vmatprep.subr.mxu0 0.0
          %1050 = vmatpush2.msra.mxu0 0.0
          %1051 = vmatprep.subr.mxu0 0.0
          %1052 = vmatpush2.msra.mxu0 0.0
          %1053 = vmatprep.subr.mxu0 0.0
          %1054 = vmatpush2.msra.mxu0 0.0
          %1055 = vmatprep.subr.mxu0 0.0
          %1056 = vmatpush2.msra.mxu0 0.0
          %1057 = vmatprep.subr.mxu0 0.0
          %1058 = vmatpush2.msra.mxu0 0.0
          %1059 = vmatprep.subr.mxu0 0.0
          %1060 = vmatpush2.msra.mxu0 0.0
          %1061 = vmatprep.subr.mxu0 0.0
          %1062 = vmatpush2.msra.mxu0 0.0
          %1063 = vmatprep.subr.mxu0 0.0
          %1064 = vmatpush2.msra.mxu0 0.0
          %1065 = vmatprep.subr.mxu0 0.0
          %1066 = vmatpush2.msra.mxu0 0.0
          %1067 = vmatprep.subr.mxu0 0.0
          %1068 = vmatpush2.msra.mxu0 0.0
          %1069 = vmatprep.subr.mxu0 0.0
          %1070 = vmatpush2.msra.mxu0 0.0
          %1071 = vmatprep.mubr.f32.mxu0 0.0
          %1072 = vmatmul.mubr.f32.gmra.mxu0 %v986
          %v1073 = vpop.f32.mrf.mxu0
          %v1074 = vadd.f32 %v1006, %v1073
          %v1075 = vpop.f32.mrf.mxu0
          %1076 = vdwg.mxu0
          %v1077 = vmul.f32 %v1074, 0.01
          %v1078 = vmax.f32 %v1074, %v1077
          %v1079 = vpack.c.bf16 %v1078, %v1078
          %1080 = vst [vmem:[#allocation2] sm:$0xf] %v1079
        $region116: #{tpu_custom_call.1} parent=67 // pred_fallthru
          _
        %v1081 = vld [vmem:[#allocation2] sm:$0xf]
        %s1082 = smul.u32 %s32, 8
        %s1083 = scalar_lea.vmem [#allocation7], %s1082
        %v1084 = vld [vmem:[%s1083] sm:$0xff]
        %v1085 = vlaneseq
        %v1086 = vand.u32 %v1085, 127
        %v1087 = vadd.s32 %v1086, 128
        %v1088 = vld [vmem:[%s528] sm:$0xff]
        %v1089 = vld [vmem:[%s528 + $0x100] sm:$0xff]
        %v1090 = vld [vmem:[%s528 + $0x200] sm:$0xff]
        %v1091 = vld [vmem:[%s528 + $0x300] sm:$0xff]
        %v1092 = vld [vmem:[%s528 + $0x400] sm:$0xff]
        %v1093 = vld [vmem:[%s528 + $0x500] sm:$0xff]
        %v1094 = vld [vmem:[%s528 + $0x600] sm:$0xff]
        %v1095 = vld [vmem:[%s528 + $0x700] sm:$0xff]
        %v1096 = vld [vmem:[%s528 + $0x800] sm:$0xff]
        %v1097 = vld [vmem:[%s528 + $0x900] sm:$0xff]
        %v1098 = vld [vmem:[%s528 + $0xa00] sm:$0xff]
        %v1099 = vld [vmem:[%s528 + $0xb00] sm:$0xff]
        %v1100 = vld [vmem:[%s528 + $0xc00] sm:$0xff]
        %v1101 = vld [vmem:[%s528 + $0xd00] sm:$0xff]
        %v1102 = vld [vmem:[%s528 + $0xe00] sm:$0xff]
        %v1103 = vld [vmem:[%s528 + $0xf00] sm:$0xff]
        %v1104 = vld [vmem:[%s537] sm:$0x3]
        %v1106 = vlaneseq
        %v1107 = vshrl.u32 %v1106, 7
        %v1108 = vsub.s32 0, %v1107
        %v1109 = vrot.slane %v1104, %v1108
        %v1110 = vlaneseq
        %v1111 = vshrl.u32 %v1110, 7
        %v1112 = vsub.s32 1, %v1111
        %v1113 = vrot.slane %v1104, %v1112
        %v1132 = vunpack.c.l.b16 %v1088
        %v1133 = vunpack.c.h.b16 %v1088
        %v1134 = vunpack.c.l.b16 %v1089
        %v1135 = vunpack.c.h.b16 %v1089
        %v1136 = vunpack.c.l.b16 %v1090
        %v1137 = vunpack.c.h.b16 %v1090
        %v1138 = vunpack.c.l.b16 %v1091
        %v1139 = vunpack.c.h.b16 %v1091
        %v1140 = vunpack.c.l.b16 %v1092
        %v1141 = vunpack.c.h.b16 %v1092
        %v1142 = vunpack.c.l.b16 %v1093
        %v1143 = vunpack.c.h.b16 %v1093
        %v1144 = vunpack.c.l.b16 %v1094
        %v1145 = vunpack.c.h.b16 %v1094
        %v1146 = vunpack.c.l.b16 %v1095
        %v1147 = vunpack.c.h.b16 %v1095
        %v1148 = vunpack.c.l.b16 %v1096
        %v1149 = vunpack.c.h.b16 %v1096
        %v1150 = vunpack.c.l.b16 %v1097
        %v1151 = vunpack.c.h.b16 %v1097
        %v1152 = vunpack.c.l.b16 %v1098
        %v1153 = vunpack.c.h.b16 %v1098
        %v1154 = vunpack.c.l.b16 %v1099
        %v1155 = vunpack.c.h.b16 %v1099
        %v1156 = vunpack.c.l.b16 %v1100
        %v1157 = vunpack.c.h.b16 %v1100
        %v1158 = vunpack.c.l.b16 %v1101
        %v1159 = vunpack.c.h.b16 %v1101
        %v1160 = vunpack.c.l.b16 %v1102
        %v1161 = vunpack.c.h.b16 %v1102
        %v1162 = vunpack.c.l.b16 %v1103
        %v1163 = vunpack.c.h.b16 %v1103
        %v1164 = vpack.c.b16 %v1134, %v1132
        %v1165 = vpack.c.b16 %v1135, %v1133
        %v1166 = vpack.c.b16 %v1138, %v1136
        %v1167 = vpack.c.b16 %v1139, %v1137
        %v1168 = vpack.c.b16 %v1142, %v1140
        %v1169 = vpack.c.b16 %v1143, %v1141
        %v1170 = vpack.c.b16 %v1146, %v1144
        %v1171 = vpack.c.b16 %v1147, %v1145
        %v1172 = vpack.c.b16 %v1150, %v1148
        %v1173 = vpack.c.b16 %v1151, %v1149
        %v1174 = vpack.c.b16 %v1154, %v1152
        %v1175 = vpack.c.b16 %v1155, %v1153
        %v1176 = vpack.c.b16 %v1158, %v1156
        %v1177 = vpack.c.b16 %v1159, %v1157
        %v1178 = vpack.c.b16 %v1162, %v1160
        %v1179 = vpack.c.b16 %v1163, %v1161
        %1196 = vmatprep.subr.bf16.mxu0 %v1179
        %1197 = vmatpush1.bf16.msra.mxu0 %v1178
        %1198 = vmatprep.subr.bf16.mxu0 %v1177
        %1199 = vmatpush1.bf16.msra.mxu0 %v1176
        %1200 = vmatprep.subr.bf16.mxu0 %v1175
        %1201 = vmatpush1.bf16.msra.mxu0 %v1174
        %1202 = vmatprep.subr.bf16.mxu0 %v1173
        %1203 = vmatpush1.bf16.msra.mxu0 %v1172
        %1204 = vmatprep.subr.bf16.mxu0 %v1171
        %1205 = vmatpush1.bf16.msra.mxu0 %v1170
        %1206 = vmatprep.subr.bf16.mxu0 %v1169
        %1207 = vmatpush1.bf16.msra.mxu0 %v1168
        %1208 = vmatprep.subr.bf16.mxu0 %v1167
        %1209 = vmatpush1.bf16.msra.mxu0 %v1166
        %1210 = vmatprep.subr.bf16.mxu0 %v1165
        %1211 = vmatpush1.bf16.msra.mxu0 %v1164
        %1212 = vmatprep.subr.bf16.mxu0 0
        %1213 = vmatpush2.bf16.msra.mxu0 0
        %1214 = vmatprep.subr.bf16.mxu0 0
        %1215 = vmatpush2.bf16.msra.mxu0 0
        %1216 = vmatprep.subr.bf16.mxu0 0
        %1217 = vmatpush2.bf16.msra.mxu0 0
        %1218 = vmatprep.subr.bf16.mxu0 0
        %1219 = vmatpush2.bf16.msra.mxu0 0
        %1220 = vmatprep.subr.bf16.mxu0 0
        %1221 = vmatpush2.bf16.msra.mxu0 0
        %1222 = vmatprep.subr.bf16.mxu0 0
        %1223 = vmatpush2.bf16.msra.mxu0 0
        %1224 = vmatprep.subr.bf16.mxu0 0
        %1225 = vmatpush2.bf16.msra.mxu0 0
        %1226 = vmatprep.subr.bf16.mxu0 0
        %1227 = vmatpush2.bf16.msra.mxu0 0
        %1228 = vmatprep.mubr.bf16.mxu0 0
        %1229 = vmatmul.mubr.bf16.gmra.mxu0 %v1081
        %v1230 = vpop.f32.mrf.mxu0
        %v1231 = vadd.f32 %v1109, %v1230
        %v1232 = vpop.f32.mrf.mxu0
        %v1233 = vadd.f32 %v1113, %v1232
        %v1234 = vpop.f32.mrf.mxu0
        %v1235 = vpop.f32.mrf.mxu0
        %1236 = vdwg.mxu0
        %v1237 = vmax.f32 %v1231, %v1233
        %1238 = vmax.xlane.f32.xlu0 %v1237
        %v1239 = vpop.xlane.xlu0 %1238
        %v1240 = vsub.f32 %v1231, %v1239
        %v1241 = vsub.f32 %v1233, %v1239
        %v1242 = vmul.f32 %v1240, 1.442695
        %v1243 = vpow.pop %v1242
        %v1244 = vmul.f32 %v1241, 1.442695
        %v1245 = vpow.pop %v1244
        %v1246 = vadd.f32 %v1243, %v1245
        %1247 = vadd.xlane.f32.xlu0 %v1246
        %v1248 = vpop.xlane.xlu0 %1247
        %v1249 = vlog2.pop %v1248
        %v1250 = vmul.f32 %v1249, 0.6931472
        %v1251 = vadd.f32 %v1239, %v1250
        %1252 = vset.pattern.permute.xlu0 0
        %1253 = vperm.xlu0 %1252, %v1084
        %v1254 = vpop.permute.xlu0 %1253
        %vm1255 = vcmp.eq.s32.totalorder %v1086, %v1254
        %vm1256 = vcmp.eq.s32.totalorder %v1087, %v1254
        %v1257 = vsel %vm1255, %v1231, 0.0
        %v1258 = vsel %vm1256, %v1233, 0.0
        %v1259 = vadd.f32 %v1257, %v1258
        %1260 = vadd.xlane.f32.xlu0 %v1259
        %v1261 = vpop.xlane.xlu0 %1260
        %v1262 = vsub.f32 %v1261, %v1251
        %v1263 = vmax.f32 %v1262, -11.512925
        %v1264 = vmin.f32 %v1263, -1.000005e-05
        %v1265 = vadd.f32 %v1264, 0.0
        %v1266 = vld [vmem:[%s528 + $0x8] sm:$0xff]
        %v1267 = vld [vmem:[%s528 + $0x108] sm:$0xff]
        %v1268 = vld [vmem:[%s528 + $0x208] sm:$0xff]
        %v1269 = vld [vmem:[%s528 + $0x308] sm:$0xff]
        %v1270 = vld [vmem:[%s528 + $0x408] sm:$0xff]
        %v1271 = vld [vmem:[%s528 + $0x508] sm:$0xff]
        %v1272 = vld [vmem:[%s528 + $0x608] sm:$0xff]
        %v1273 = vld [vmem:[%s528 + $0x708] sm:$0xff]
        %v1274 = vld [vmem:[%s528 + $0x808] sm:$0xff]
        %v1275 = vld [vmem:[%s528 + $0x908] sm:$0xff]
        %v1276 = vld [vmem:[%s528 + $0xa08] sm:$0xff]
        %v1277 = vld [vmem:[%s528 + $0xb08] sm:$0xff]
        %v1278 = vld [vmem:[%s528 + $0xc08] sm:$0xff]
        %v1279 = vld [vmem:[%s528 + $0xd08] sm:$0xff]
        %v1280 = vld [vmem:[%s528 + $0xe08] sm:$0xff]
        %v1281 = vld [vmem:[%s528 + $0xf08] sm:$0xff]
        %v1282 = vld [vmem:[%s537 + $0x2] sm:$0x3]
        %v1284 = vlaneseq
        %v1285 = vshrl.u32 %v1284, 7
        %v1286 = vsub.s32 0, %v1285
        %v1287 = vrot.slane %v1282, %v1286
        %v1288 = vlaneseq
        %v1289 = vshrl.u32 %v1288, 7
        %v1290 = vsub.s32 1, %v1289
        %v1291 = vrot.slane %v1282, %v1290
        %v1310 = vunpack.c.l.b16 %v1266
        %v1311 = vunpack.c.h.b16 %v1266
        %v1312 = vunpack.c.l.b16 %v1267
        %v1313 = vunpack.c.h.b16 %v1267
        %v1314 = vunpack.c.l.b16 %v1268
        %v1315 = vunpack.c.h.b16 %v1268
        %v1316 = vunpack.c.l.b16 %v1269
        %v1317 = vunpack.c.h.b16 %v1269
        %v1318 = vunpack.c.l.b16 %v1270
        %v1319 = vunpack.c.h.b16 %v1270
        %v1320 = vunpack.c.l.b16 %v1271
        %v1321 = vunpack.c.h.b16 %v1271
        %v1322 = vunpack.c.l.b16 %v1272
        %v1323 = vunpack.c.h.b16 %v1272
        %v1324 = vunpack.c.l.b16 %v1273
        %v1325 = vunpack.c.h.b16 %v1273
        %v1326 = vunpack.c.l.b16 %v1274
        %v1327 = vunpack.c.h.b16 %v1274
        %v1328 = vunpack.c.l.b16 %v1275
        %v1329 = vunpack.c.h.b16 %v1275
        %v1330 = vunpack.c.l.b16 %v1276
        %v1331 = vunpack.c.h.b16 %v1276
        %v1332 = vunpack.c.l.b16 %v1277
        %v1333 = vunpack.c.h.b16 %v1277
        %v1334 = vunpack.c.l.b16 %v1278
        %v1335 = vunpack.c.h.b16 %v1278
        %v1336 = vunpack.c.l.b16 %v1279
        %v1337 = vunpack.c.h.b16 %v1279
        %v1338 = vunpack.c.l.b16 %v1280
        %v1339 = vunpack.c.h.b16 %v1280
        %v1340 = vunpack.c.l.b16 %v1281
        %v1341 = vunpack.c.h.b16 %v1281
        %v1342 = vpack.c.b16 %v1312, %v1310
        %v1343 = vpack.c.b16 %v1313, %v1311
        %v1344 = vpack.c.b16 %v1316, %v1314
        %v1345 = vpack.c.b16 %v1317, %v1315
        %v1346 = vpack.c.b16 %v1320, %v1318
        %v1347 = vpack.c.b16 %v1321, %v1319
        %v1348 = vpack.c.b16 %v1324, %v1322
        %v1349 = vpack.c.b16 %v1325, %v1323
        %v1350 = vpack.c.b16 %v1328, %v1326
        %v1351 = vpack.c.b16 %v1329, %v1327
        %v1352 = vpack.c.b16 %v1332, %v1330
        %v1353 = vpack.c.b16 %v1333, %v1331
        %v1354 = vpack.c.b16 %v1336, %v1334
        %v1355 = vpack.c.b16 %v1337, %v1335
        %v1356 = vpack.c.b16 %v1340, %v1338
        %v1357 = vpack.c.b16 %v1341, %v1339
        %1374 = vmatprep.subr.bf16.mxu0 %v1357
        %1375 = vmatpush1.bf16.msra.mxu0 %v1356
        %1376 = vmatprep.subr.bf16.mxu0 %v1355
        %1377 = vmatpush1.bf16.msra.mxu0 %v1354
        %1378 = vmatprep.subr.bf16.mxu0 %v1353
        %1379 = vmatpush1.bf16.msra.mxu0 %v1352
        %1380 = vmatprep.subr.bf16.mxu0 %v1351
        %1381 = vmatpush1.bf16.msra.mxu0 %v1350
        %1382 = vmatprep.subr.bf16.mxu0 %v1349
        %1383 = vmatpush1.bf16.msra.mxu0 %v1348
        %1384 = vmatprep.subr.bf16.mxu0 %v1347
        %1385 = vmatpush1.bf16.msra.mxu0 %v1346
        %1386 = vmatprep.subr.bf16.mxu0 %v1345
        %1387 = vmatpush1.bf16.msra.mxu0 %v1344
        %1388 = vmatprep.subr.bf16.mxu0 %v1343
        %1389 = vmatpush1.bf16.msra.mxu0 %v1342
        %1390 = vmatprep.subr.bf16.mxu0 0
        %1391 = vmatpush2.bf16.msra.mxu0 0
        %1392 = vmatprep.subr.bf16.mxu0 0
        %1393 = vmatpush2.bf16.msra.mxu0 0
        %1394 = vmatprep.subr.bf16.mxu0 0
        %1395 = vmatpush2.bf16.msra.mxu0 0
        %1396 = vmatprep.subr.bf16.mxu0 0
        %1397 = vmatpush2.bf16.msra.mxu0 0
        %1398 = vmatprep.subr.bf16.mxu0 0
        %1399 = vmatpush2.bf16.msra.mxu0 0
        %1400 = vmatprep.subr.bf16.mxu0 0
        %1401 = vmatpush2.bf16.msra.mxu0 0
        %1402 = vmatprep.subr.bf16.mxu0 0
        %1403 = vmatpush2.bf16.msra.mxu0 0
        %1404 = vmatprep.subr.bf16.mxu0 0
        %1405 = vmatpush2.bf16.msra.mxu0 0
        %1406 = vmatprep.mubr.bf16.mxu0 0
        %1407 = vmatmul.mubr.bf16.gmra.mxu0 %v1081
        %v1408 = vpop.f32.mrf.mxu0
        %v1409 = vadd.f32 %v1287, %v1408
        %v1410 = vpop.f32.mrf.mxu0
        %v1411 = vadd.f32 %v1291, %v1410
        %v1412 = vpop.f32.mrf.mxu0
        %v1413 = vpop.f32.mrf.mxu0
        %1414 = vdwg.mxu0
        %v1415 = vmax.f32 %v1409, %v1411
        %1416 = vmax.xlane.f32.xlu0 %v1415
        %v1417 = vpop.xlane.xlu0 %1416
        %v1418 = vsub.f32 %v1409, %v1417
        %v1419 = vsub.f32 %v1411, %v1417
        %v1420 = vmul.f32 %v1418, 1.442695
        %v1421 = vpow.pop %v1420
        %v1422 = vmul.f32 %v1419, 1.442695
        %v1423 = vpow.pop %v1422
        %v1424 = vadd.f32 %v1421, %v1423
        %1425 = vadd.xlane.f32.xlu0 %v1424
        %v1426 = vpop.xlane.xlu0 %1425
        %v1427 = vlog2.pop %v1426
        %v1428 = vmul.f32 %v1427, 0.6931472
        %v1429 = vadd.f32 %v1417, %v1428
        %1430 = vset.pattern.permute.xlu0 1
        %1431 = vperm.xlu0 %1430, %v1084
        %v1432 = vpop.permute.xlu0 %1431
        %vm1433 = vcmp.eq.s32.totalorder %v1086, %v1432
        %vm1434 = vcmp.eq.s32.totalorder %v1087, %v1432
        %v1435 = vsel %vm1433, %v1409, 0.0
        %v1436 = vsel %vm1434, %v1411, 0.0
        %v1437 = vadd.f32 %v1435, %v1436
        %1438 = vadd.xlane.f32.xlu0 %v1437
        %v1439 = vpop.xlane.xlu0 %1438
        %v1440 = vsub.f32 %v1439, %v1429
        %v1441 = vmax.f32 %v1440, -11.512925
        %v1442 = vmin.f32 %v1441, -1.000005e-05
        %v1443 = vadd.f32 %v1265, %v1442
        %v1444 = vld [vmem:[%s528 + $0x10] sm:$0xff]
        %v1445 = vld [vmem:[%s528 + $0x110] sm:$0xff]
        %v1446 = vld [vmem:[%s528 + $0x210] sm:$0xff]
        %v1447 = vld [vmem:[%s528 + $0x310] sm:$0xff]
        %v1448 = vld [vmem:[%s528 + $0x410] sm:$0xff]
        %v1449 = vld [vmem:[%s528 + $0x510] sm:$0xff]
        %v1450 = vld [vmem:[%s528 + $0x610] sm:$0xff]
        %v1451 = vld [vmem:[%s528 + $0x710] sm:$0xff]
        %v1452 = vld [vmem:[%s528 + $0x810] sm:$0xff]
        %v1453 = vld [vmem:[%s528 + $0x910] sm:$0xff]
        %v1454 = vld [vmem:[%s528 + $0xa10] sm:$0xff]
        %v1455 = vld [vmem:[%s528 + $0xb10] sm:$0xff]
        %v1456 = vld [vmem:[%s528 + $0xc10] sm:$0xff]
        %v1457 = vld [vmem:[%s528 + $0xd10] sm:$0xff]
        %v1458 = vld [vmem:[%s528 + $0xe10] sm:$0xff]
        %v1459 = vld [vmem:[%s528 + $0xf10] sm:$0xff]
        %v1460 = vld [vmem:[%s537 + $0x4] sm:$0x3]
        %v1462 = vlaneseq
        %v1463 = vshrl.u32 %v1462, 7
        %v1464 = vsub.s32 0, %v1463
        %v1465 = vrot.slane %v1460, %v1464
        %v1466 = vlaneseq
        %v1467 = vshrl.u32 %v1466, 7
        %v1468 = vsub.s32 1, %v1467
        %v1469 = vrot.slane %v1460, %v1468
        %v1488 = vunpack.c.l.b16 %v1444
        %v1489 = vunpack.c.h.b16 %v1444
        %v1490 = vunpack.c.l.b16 %v1445
        %v1491 = vunpack.c.h.b16 %v1445
        %v1492 = vunpack.c.l.b16 %v1446
        %v1493 = vunpack.c.h.b16 %v1446
        %v1494 = vunpack.c.l.b16 %v1447
        %v1495 = vunpack.c.h.b16 %v1447
        %v1496 = vunpack.c.l.b16 %v1448
        %v1497 = vunpack.c.h.b16 %v1448
        %v1498 = vunpack.c.l.b16 %v1449
        %v1499 = vunpack.c.h.b16 %v1449
        %v1500 = vunpack.c.l.b16 %v1450
        %v1501 = vunpack.c.h.b16 %v1450
        %v1502 = vunpack.c.l.b16 %v1451
        %v1503 = vunpack.c.h.b16 %v1451
        %v1504 = vunpack.c.l.b16 %v1452
        %v1505 = vunpack.c.h.b16 %v1452
        %v1506 = vunpack.c.l.b16 %v1453
        %v1507 = vunpack.c.h.b16 %v1453
        %v1508 = vunpack.c.l.b16 %v1454
        %v1509 = vunpack.c.h.b16 %v1454
        %v1510 = vunpack.c.l.b16 %v1455
        %v1511 = vunpack.c.h.b16 %v1455
        %v1512 = vunpack.c.l.b16 %v1456
        %v1513 = vunpack.c.h.b16 %v1456
        %v1514 = vunpack.c.l.b16 %v1457
        %v1515 = vunpack.c.h.b16 %v1457
        %v1516 = vunpack.c.l.b16 %v1458
        %v1517 = vunpack.c.h.b16 %v1458
        %v1518 = vunpack.c.l.b16 %v1459
        %v1519 = vunpack.c.h.b16 %v1459
        %v1520 = vpack.c.b16 %v1490, %v1488
        %v1521 = vpack.c.b16 %v1491, %v1489
        %v1522 = vpack.c.b16 %v1494, %v1492
        %v1523 = vpack.c.b16 %v1495, %v1493
        %v1524 = vpack.c.b16 %v1498, %v1496
        %v1525 = vpack.c.b16 %v1499, %v1497
        %v1526 = vpack.c.b16 %v1502, %v1500
        %v1527 = vpack.c.b16 %v1503, %v1501
        %v1528 = vpack.c.b16 %v1506, %v1504
        %v1529 = vpack.c.b16 %v1507, %v1505
        %v1530 = vpack.c.b16 %v1510, %v1508
        %v1531 = vpack.c.b16 %v1511, %v1509
        %v1532 = vpack.c.b16 %v1514, %v1512
        %v1533 = vpack.c.b16 %v1515, %v1513
        %v1534 = vpack.c.b16 %v1518, %v1516
        %v1535 = vpack.c.b16 %v1519, %v1517
        %1552 = vmatprep.subr.bf16.mxu0 %v1535
        %1553 = vmatpush1.bf16.msra.mxu0 %v1534
        %1554 = vmatprep.subr.bf16.mxu0 %v1533
        %1555 = vmatpush1.bf16.msra.mxu0 %v1532
        %1556 = vmatprep.subr.bf16.mxu0 %v1531
        %1557 = vmatpush1.bf16.msra.mxu0 %v1530
        %1558 = vmatprep.subr.bf16.mxu0 %v1529
        %1559 = vmatpush1.bf16.msra.mxu0 %v1528
        %1560 = vmatprep.subr.bf16.mxu0 %v1527
        %1561 = vmatpush1.bf16.msra.mxu0 %v1526
        %1562 = vmatprep.subr.bf16.mxu0 %v1525
        %1563 = vmatpush1.bf16.msra.mxu0 %v1524
        %1564 = vmatprep.subr.bf16.mxu0 %v1523
        %1565 = vmatpush1.bf16.msra.mxu0 %v1522
        %1566 = vmatprep.subr.bf16.mxu0 %v1521
        %1567 = vmatpush1.bf16.msra.mxu0 %v1520
        %1568 = vmatprep.subr.bf16.mxu0 0
        %1569 = vmatpush2.bf16.msra.mxu0 0
        %1570 = vmatprep.subr.bf16.mxu0 0
        %1571 = vmatpush2.bf16.msra.mxu0 0
        %1572 = vmatprep.subr.bf16.mxu0 0
        %1573 = vmatpush2.bf16.msra.mxu0 0
        %1574 = vmatprep.subr.bf16.mxu0 0
        %1575 = vmatpush2.bf16.msra.mxu0 0
        %1576 = vmatprep.subr.bf16.mxu0 0
        %1577 = vmatpush2.bf16.msra.mxu0 0
        %1578 = vmatprep.subr.bf16.mxu0 0
        %1579 = vmatpush2.bf16.msra.mxu0 0
        %1580 = vmatprep.subr.bf16.mxu0 0
        %1581 = vmatpush2.bf16.msra.mxu0 0
        %1582 = vmatprep.subr.bf16.mxu0 0
        %1583 = vmatpush2.bf16.msra.mxu0 0
        %1584 = vmatprep.mubr.bf16.mxu0 0
        %1585 = vmatmul.mubr.bf16.gmra.mxu0 %v1081
        %v1586 = vpop.f32.mrf.mxu0
        %v1587 = vadd.f32 %v1465, %v1586
        %v1588 = vpop.f32.mrf.mxu0
        %v1589 = vadd.f32 %v1469, %v1588
        %v1590 = vpop.f32.mrf.mxu0
        %v1591 = vpop.f32.mrf.mxu0
        %1592 = vdwg.mxu0
        %v1593 = vmax.f32 %v1587, %v1589
        %1594 = vmax.xlane.f32.xlu0 %v1593
        %v1595 = vpop.xlane.xlu0 %1594
        %v1596 = vsub.f32 %v1587, %v1595
        %v1597 = vsub.f32 %v1589, %v1595
        %v1598 = vmul.f32 %v1596, 1.442695
        %v1599 = vpow.pop %v1598
        %v1600 = vmul.f32 %v1597, 1.442695
        %v1601 = vpow.pop %v1600
        %v1602 = vadd.f32 %v1599, %v1601
        %1603 = vadd.xlane.f32.xlu0 %v1602
        %v1604 = vpop.xlane.xlu0 %1603
        %v1605 = vlog2.pop %v1604
        %v1606 = vmul.f32 %v1605, 0.6931472
        %v1607 = vadd.f32 %v1595, %v1606
        %1608 = vset.pattern.permute.xlu0 2
        %1609 = vperm.xlu0 %1608, %v1084
        %v1610 = vpop.permute.xlu0 %1609
        %vm1611 = vcmp.eq.s32.totalorder %v1086, %v1610
        %vm1612 = vcmp.eq.s32.totalorder %v1087, %v1610
        %v1613 = vsel %vm1611, %v1587, 0.0
        %v1614 = vsel %vm1612, %v1589, 0.0
        %v1615 = vadd.f32 %v1613, %v1614
        %1616 = vadd.xlane.f32.xlu0 %v1615
        %v1617 = vpop.xlane.xlu0 %1616
        %v1618 = vsub.f32 %v1617, %v1607
        %v1619 = vmax.f32 %v1618, -11.512925
        %v1620 = vmin.f32 %v1619, -1.000005e-05
        %v1621 = vadd.f32 %v1443, %v1620
        %v1622 = vld [vmem:[%s528 + $0x18] sm:$0xff]
        %v1623 = vld [vmem:[%s528 + $0x118] sm:$0xff]
        %v1624 = vld [vmem:[%s528 + $0x218] sm:$0xff]
        %v1625 = vld [vmem:[%s528 + $0x318] sm:$0xff]
        %v1626 = vld [vmem:[%s528 + $0x418] sm:$0xff]
        %v1627 = vld [vmem:[%s528 + $0x518] sm:$0xff]
        %v1628 = vld [vmem:[%s528 + $0x618] sm:$0xff]
        %v1629 = vld [vmem:[%s528 + $0x718] sm:$0xff]
        %v1630 = vld [vmem:[%s528 + $0x818] sm:$0xff]
        %v1631 = vld [vmem:[%s528 + $0x918] sm:$0xff]
        %v1632 = vld [vmem:[%s528 + $0xa18] sm:$0xff]
        %v1633 = vld [vmem:[%s528 + $0xb18] sm:$0xff]
        %v1634 = vld [vmem:[%s528 + $0xc18] sm:$0xff]
        %v1635 = vld [vmem:[%s528 + $0xd18] sm:$0xff]
        %v1636 = vld [vmem:[%s528 + $0xe18] sm:$0xff]
        %v1637 = vld [vmem:[%s528 + $0xf18] sm:$0xff]
        %v1638 = vld [vmem:[%s537 + $0x6] sm:$0x3]
        %v1640 = vlaneseq
        %v1641 = vshrl.u32 %v1640, 7
        %v1642 = vsub.s32 0, %v1641
        %v1643 = vrot.slane %v1638, %v1642
        %v1644 = vlaneseq
        %v1645 = vshrl.u32 %v1644, 7
        %v1646 = vsub.s32 1, %v1645
        %v1647 = vrot.slane %v1638, %v1646
        %v1666 = vunpack.c.l.b16 %v1622
        %v1667 = vunpack.c.h.b16 %v1622
        %v1668 = vunpack.c.l.b16 %v1623
        %v1669 = vunpack.c.h.b16 %v1623
        %v1670 = vunpack.c.l.b16 %v1624
        %v1671 = vunpack.c.h.b16 %v1624
        %v1672 = vunpack.c.l.b16 %v1625
        %v1673 = vunpack.c.h.b16 %v1625
        %v1674 = vunpack.c.l.b16 %v1626
        %v1675 = vunpack.c.h.b16 %v1626
        %v1676 = vunpack.c.l.b16 %v1627
        %v1677 = vunpack.c.h.b16 %v1627
        %v1678 = vunpack.c.l.b16 %v1628
        %v1679 = vunpack.c.h.b16 %v1628
        %v1680 = vunpack.c.l.b16 %v1629
        %v1681 = vunpack.c.h.b16 %v1629
        %v1682 = vunpack.c.l.b16 %v1630
        %v1683 = vunpack.c.h.b16 %v1630
        %v1684 = vunpack.c.l.b16 %v1631
        %v1685 = vunpack.c.h.b16 %v1631
        %v1686 = vunpack.c.l.b16 %v1632
        %v1687 = vunpack.c.h.b16 %v1632
        %v1688 = vunpack.c.l.b16 %v1633
        %v1689 = vunpack.c.h.b16 %v1633
        %v1690 = vunpack.c.l.b16 %v1634
        %v1691 = vunpack.c.h.b16 %v1634
        %v1692 = vunpack.c.l.b16 %v1635
        %v1693 = vunpack.c.h.b16 %v1635
        %v1694 = vunpack.c.l.b16 %v1636
        %v1695 = vunpack.c.h.b16 %v1636
        %v1696 = vunpack.c.l.b16 %v1637
        %v1697 = vunpack.c.h.b16 %v1637
        %v1698 = vpack.c.b16 %v1668, %v1666
        %v1699 = vpack.c.b16 %v1669, %v1667
        %v1700 = vpack.c.b16 %v1672, %v1670
        %v1701 = vpack.c.b16 %v1673, %v1671
        %v1702 = vpack.c.b16 %v1676, %v1674
        %v1703 = vpack.c.b16 %v1677, %v1675
        %v1704 = vpack.c.b16 %v1680, %v1678
        %v1705 = vpack.c.b16 %v1681, %v1679
        %v1706 = vpack.c.b16 %v1684, %v1682
        %v1707 = vpack.c.b16 %v1685, %v1683
        %v1708 = vpack.c.b16 %v1688, %v1686
        %v1709 = vpack.c.b16 %v1689, %v1687
        %v1710 = vpack.c.b16 %v1692, %v1690
        %v1711 = vpack.c.b16 %v1693, %v1691
        %v1712 = vpack.c.b16 %v1696, %v1694
        %v1713 = vpack.c.b16 %v1697, %v1695
        %1730 = vmatprep.subr.bf16.mxu0 %v1713
        %1731 = vmatpush1.bf16.msra.mxu0 %v1712
        %1732 = vmatprep.subr.bf16.mxu0 %v1711
        %1733 = vmatpush1.bf16.msra.mxu0 %v1710
        %1734 = vmatprep.subr.bf16.mxu0 %v1709
        %1735 = vmatpush1.bf16.msra.mxu0 %v1708
        %1736 = vmatprep.subr.bf16.mxu0 %v1707
        %1737 = vmatpush1.bf16.msra.mxu0 %v1706
        %1738 = vmatprep.subr.bf16.mxu0 %v1705
        %1739 = vmatpush1.bf16.msra.mxu0 %v1704
        %1740 = vmatprep.subr.bf16.mxu0 %v1703
        %1741 = vmatpush1.bf16.msra.mxu0 %v1702
        %1742 = vmatprep.subr.bf16.mxu0 %v1701
        %1743 = vmatpush1.bf16.msra.mxu0 %v1700
        %1744 = vmatprep.subr.bf16.mxu0 %v1699
        %1745 = vmatpush1.bf16.msra.mxu0 %v1698
        %1746 = vmatprep.subr.bf16.mxu0 0
        %1747 = vmatpush2.bf16.msra.mxu0 0
        %1748 = vmatprep.subr.bf16.mxu0 0
        %1749 = vmatpush2.bf16.msra.mxu0 0
        %1750 = vmatprep.subr.bf16.mxu0 0
        %1751 = vmatpush2.bf16.msra.mxu0 0
        %1752 = vmatprep.subr.bf16.mxu0 0
        %1753 = vmatpush2.bf16.msra.mxu0 0
        %1754 = vmatprep.subr.bf16.mxu0 0
        %1755 = vmatpush2.bf16.msra.mxu0 0
        %1756 = vmatprep.subr.bf16.mxu0 0
        %1757 = vmatpush2.bf16.msra.mxu0 0
        %1758 = vmatprep.subr.bf16.mxu0 0
        %1759 = vmatpush2.bf16.msra.mxu0 0
        %1760 = vmatprep.subr.bf16.mxu0 0
        %1761 = vmatpush2.bf16.msra.mxu0 0
        %1762 = vmatprep.mubr.bf16.mxu0 0
        %1763 = vmatmul.mubr.bf16.gmra.mxu0 %v1081
        %v1764 = vpop.f32.mrf.mxu0
        %v1765 = vadd.f32 %v1643, %v1764
        %v1766 = vpop.f32.mrf.mxu0
        %v1767 = vadd.f32 %v1647, %v1766
        %v1768 = vpop.f32.mrf.mxu0
        %v1769 = vpop.f32.mrf.mxu0
        %1770 = vdwg.mxu0
        %v1771 = vmax.f32 %v1765, %v1767
        %1772 = vmax.xlane.f32.xlu0 %v1771
        %v1773 = vpop.xlane.xlu0 %1772
        %v1774 = vsub.f32 %v1765, %v1773
        %v1775 = vsub.f32 %v1767, %v1773
        %v1776 = vmul.f32 %v1774, 1.442695
        %v1777 = vpow.pop %v1776
        %v1778 = vmul.f32 %v1775, 1.442695
        %v1779 = vpow.pop %v1778
        %v1780 = vadd.f32 %v1777, %v1779
        %1781 = vadd.xlane.f32.xlu0 %v1780
        %v1782 = vpop.xlane.xlu0 %1781
        %v1783 = vlog2.pop %v1782
        %v1784 = vmul.f32 %v1783, 0.6931472
        %v1785 = vadd.f32 %v1773, %v1784
        %1786 = vset.pattern.permute.xlu0 3
        %1787 = vperm.xlu0 %1786, %v1084
        %v1788 = vpop.permute.xlu0 %1787
        %vm1789 = vcmp.eq.s32.totalorder %v1086, %v1788
        %vm1790 = vcmp.eq.s32.totalorder %v1087, %v1788
        %v1791 = vsel %vm1789, %v1765, 0.0
        %v1792 = vsel %vm1790, %v1767, 0.0
        %v1793 = vadd.f32 %v1791, %v1792
        %1794 = vadd.xlane.f32.xlu0 %v1793
        %v1795 = vpop.xlane.xlu0 %1794
        %v1796 = vsub.f32 %v1795, %v1785
        %v1797 = vmax.f32 %v1796, -11.512925
        %v1798 = vmin.f32 %v1797, -1.000005e-05
        %v1799 = vadd.f32 %v1621, %v1798
        %v1800 = vld [vmem:[%s528 + $0x20] sm:$0xff]
        %v1801 = vld [vmem:[%s528 + $0x120] sm:$0xff]
        %v1802 = vld [vmem:[%s528 + $0x220] sm:$0xff]
        %v1803 = vld [vmem:[%s528 + $0x320] sm:$0xff]
        %v1804 = vld [vmem:[%s528 + $0x420] sm:$0xff]
        %v1805 = vld [vmem:[%s528 + $0x520] sm:$0xff]
        %v1806 = vld [vmem:[%s528 + $0x620] sm:$0xff]
        %v1807 = vld [vmem:[%s528 + $0x720] sm:$0xff]
        %v1808 = vld [vmem:[%s528 + $0x820] sm:$0xff]
        %v1809 = vld [vmem:[%s528 + $0x920] sm:$0xff]
        %v1810 = vld [vmem:[%s528 + $0xa20] sm:$0xff]
        %v1811 = vld [vmem:[%s528 + $0xb20] sm:$0xff]
        %v1812 = vld [vmem:[%s528 + $0xc20] sm:$0xff]
        %v1813 = vld [vmem:[%s528 + $0xd20] sm:$0xff]
        %v1814 = vld [vmem:[%s528 + $0xe20] sm:$0xff]
        %v1815 = vld [vmem:[%s528 + $0xf20] sm:$0xff]
        %v1816 = vld [vmem:[%s537 + $0x8] sm:$0x3]
        %v1818 = vlaneseq
        %v1819 = vshrl.u32 %v1818, 7
        %v1820 = vsub.s32 0, %v1819
        %v1821 = vrot.slane %v1816, %v1820
        %v1822 = vlaneseq
        %v1823 = vshrl.u32 %v1822, 7
        %v1824 = vsub.s32 1, %v1823
        %v1825 = vrot.slane %v1816, %v1824
        %v1844 = vunpack.c.l.b16 %v1800
        %v1845 = vunpack.c.h.b16 %v1800
        %v1846 = vunpack.c.l.b16 %v1801
        %v1847 = vunpack.c.h.b16 %v1801
        %v1848 = vunpack.c.l.b16 %v1802
        %v1849 = vunpack.c.h.b16 %v1802
        %v1850 = vunpack.c.l.b16 %v1803
        %v1851 = vunpack.c.h.b16 %v1803
        %v1852 = vunpack.c.l.b16 %v1804
        %v1853 = vunpack.c.h.b16 %v1804
        %v1854 = vunpack.c.l.b16 %v1805
        %v1855 = vunpack.c.h.b16 %v1805
        %v1856 = vunpack.c.l.b16 %v1806
        %v1857 = vunpack.c.h.b16 %v1806
        %v1858 = vunpack.c.l.b16 %v1807
        %v1859 = vunpack.c.h.b16 %v1807
        %v1860 = vunpack.c.l.b16 %v1808
        %v1861 = vunpack.c.h.b16 %v1808
        %v1862 = vunpack.c.l.b16 %v1809
        %v1863 = vunpack.c.h.b16 %v1809
        %v1864 = vunpack.c.l.b16 %v1810
        %v1865 = vunpack.c.h.b16 %v1810
        %v1866 = vunpack.c.l.b16 %v1811
        %v1867 = vunpack.c.h.b16 %v1811
        %v1868 = vunpack.c.l.b16 %v1812
        %v1869 = vunpack.c.h.b16 %v1812
        %v1870 = vunpack.c.l.b16 %v1813
        %v1871 = vunpack.c.h.b16 %v1813
        %v1872 = vunpack.c.l.b16 %v1814
        %v1873 = vunpack.c.h.b16 %v1814
        %v1874 = vunpack.c.l.b16 %v1815
        %v1875 = vunpack.c.h.b16 %v1815
        %v1876 = vpack.c.b16 %v1846, %v1844
        %v1877 = vpack.c.b16 %v1847, %v1845
        %v1878 = vpack.c.b16 %v1850, %v1848
        %v1879 = vpack.c.b16 %v1851, %v1849
        %v1880 = vpack.c.b16 %v1854, %v1852
        %v1881 = vpack.c.b16 %v1855, %v1853
        %v1882 = vpack.c.b16 %v1858, %v1856
        %v1883 = vpack.c.b16 %v1859, %v1857
        %v1884 = vpack.c.b16 %v1862, %v1860
        %v1885 = vpack.c.b16 %v1863, %v1861
        %v1886 = vpack.c.b16 %v1866, %v1864
        %v1887 = vpack.c.b16 %v1867, %v1865
        %v1888 = vpack.c.b16 %v1870, %v1868
        %v1889 = vpack.c.b16 %v1871, %v1869
        %v1890 = vpack.c.b16 %v1874, %v1872
        %v1891 = vpack.c.b16 %v1875, %v1873
        %1908 = vmatprep.subr.bf16.mxu0 %v1891
        %1909 = vmatpush1.bf16.msra.mxu0 %v1890
        %1910 = vmatprep.subr.bf16.mxu0 %v1889
        %1911 = vmatpush1.bf16.msra.mxu0 %v1888
        %1912 = vmatprep.subr.bf16.mxu0 %v1887
        %1913 = vmatpush1.bf16.msra.mxu0 %v1886
        %1914 = vmatprep.subr.bf16.mxu0 %v1885
        %1915 = vmatpush1.bf16.msra.mxu0 %v1884
        %1916 = vmatprep.subr.bf16.mxu0 %v1883
        %1917 = vmatpush1.bf16.msra.mxu0 %v1882
        %1918 = vmatprep.subr.bf16.mxu0 %v1881
        %1919 = vmatpush1.bf16.msra.mxu0 %v1880
        %1920 = vmatprep.subr.bf16.mxu0 %v1879
        %1921 = vmatpush1.bf16.msra.mxu0 %v1878
        %1922 = vmatprep.subr.bf16.mxu0 %v1877
        %1923 = vmatpush1.bf16.msra.mxu0 %v1876
        %1924 = vmatprep.subr.bf16.mxu0 0
        %1925 = vmatpush2.bf16.msra.mxu0 0
        %1926 = vmatprep.subr.bf16.mxu0 0
        %1927 = vmatpush2.bf16.msra.mxu0 0
        %1928 = vmatprep.subr.bf16.mxu0 0
        %1929 = vmatpush2.bf16.msra.mxu0 0
        %1930 = vmatprep.subr.bf16.mxu0 0
        %1931 = vmatpush2.bf16.msra.mxu0 0
        %1932 = vmatprep.subr.bf16.mxu0 0
        %1933 = vmatpush2.bf16.msra.mxu0 0
        %1934 = vmatprep.subr.bf16.mxu0 0
        %1935 = vmatpush2.bf16.msra.mxu0 0
        %1936 = vmatprep.subr.bf16.mxu0 0
        %1937 = vmatpush2.bf16.msra.mxu0 0
        %1938 = vmatprep.subr.bf16.mxu0 0
        %1939 = vmatpush2.bf16.msra.mxu0 0
        %1940 = vmatprep.mubr.bf16.mxu0 0
        %1941 = vmatmul.mubr.bf16.gmra.mxu0 %v1081
        %v1942 = vpop.f32.mrf.mxu0
        %v1943 = vadd.f32 %v1821, %v1942
        %v1944 = vpop.f32.mrf.mxu0
        %v1945 = vadd.f32 %v1825, %v1944
        %v1946 = vpop.f32.mrf.mxu0
        %v1947 = vpop.f32.mrf.mxu0
        %1948 = vdwg.mxu0
        %v1949 = vmax.f32 %v1943, %v1945
        %1950 = vmax.xlane.f32.xlu0 %v1949
        %v1951 = vpop.xlane.xlu0 %1950
        %v1952 = vsub.f32 %v1943, %v1951
        %v1953 = vsub.f32 %v1945, %v1951
        %v1954 = vmul.f32 %v1952, 1.442695
        %v1955 = vpow.pop %v1954
        %v1956 = vmul.f32 %v1953, 1.442695
        %v1957 = vpow.pop %v1956
        %v1958 = vadd.f32 %v1955, %v1957
        %1959 = vadd.xlane.f32.xlu0 %v1958
        %v1960 = vpop.xlane.xlu0 %1959
        %v1961 = vlog2.pop %v1960
        %v1962 = vmul.f32 %v1961, 0.6931472
        %v1963 = vadd.f32 %v1951, %v1962
        %1964 = vset.pattern.permute.xlu0 4
        %1965 = vperm.xlu0 %1964, %v1084
        %v1966 = vpop.permute.xlu0 %1965
        %vm1967 = vcmp.eq.s32.totalorder %v1086, %v1966
        %vm1968 = vcmp.eq.s32.totalorder %v1087, %v1966
        %v1969 = vsel %vm1967, %v1943, 0.0
        %v1970 = vsel %vm1968, %v1945, 0.0
        %v1971 = vadd.f32 %v1969, %v1970
        %1972 = vadd.xlane.f32.xlu0 %v1971
        %v1973 = vpop.xlane.xlu0 %1972
        %v1974 = vsub.f32 %v1973, %v1963
        %v1975 = vmax.f32 %v1974, -11.512925
        %v1976 = vmin.f32 %v1975, -1.000005e-05
        %v1977 = vadd.f32 %v1799, %v1976
        %v1978 = vld [vmem:[%s528 + $0x28] sm:$0xff]
        %v1979 = vld [vmem:[%s528 + $0x128] sm:$0xff]
        %v1980 = vld [vmem:[%s528 + $0x228] sm:$0xff]
        %v1981 = vld [vmem:[%s528 + $0x328] sm:$0xff]
        %v1982 = vld [vmem:[%s528 + $0x428] sm:$0xff]
        %v1983 = vld [vmem:[%s528 + $0x528] sm:$0xff]
        %v1984 = vld [vmem:[%s528 + $0x628] sm:$0xff]
        %v1985 = vld [vmem:[%s528 + $0x728] sm:$0xff]
        %v1986 = vld [vmem:[%s528 + $0x828] sm:$0xff]
        %v1987 = vld [vmem:[%s528 + $0x928] sm:$0xff]
        %v1988 = vld [vmem:[%s528 + $0xa28] sm:$0xff]
        %v1989 = vld [vmem:[%s528 + $0xb28] sm:$0xff]
        %v1990 = vld [vmem:[%s528 + $0xc28] sm:$0xff]
        %v1991 = vld [vmem:[%s528 + $0xd28] sm:$0xff]
        %v1992 = vld [vmem:[%s528 + $0xe28] sm:$0xff]
        %v1993 = vld [vmem:[%s528 + $0xf28] sm:$0xff]
        %v1994 = vld [vmem:[%s537 + $0xa] sm:$0x3]
        %v1996 = vlaneseq
        %v1997 = vshrl.u32 %v1996, 7
        %v1998 = vsub.s32 0, %v1997
        %v1999 = vrot.slane %v1994, %v1998
        %v2000 = vlaneseq
        %v2001 = vshrl.u32 %v2000, 7
        %v2002 = vsub.s32 1, %v2001
        %v2003 = vrot.slane %v1994, %v2002
        %v2022 = vunpack.c.l.b16 %v1978
        %v2023 = vunpack.c.h.b16 %v1978
        %v2024 = vunpack.c.l.b16 %v1979
        %v2025 = vunpack.c.h.b16 %v1979
        %v2026 = vunpack.c.l.b16 %v1980
        %v2027 = vunpack.c.h.b16 %v1980
        %v2028 = vunpack.c.l.b16 %v1981
        %v2029 = vunpack.c.h.b16 %v1981
        %v2030 = vunpack.c.l.b16 %v1982
        %v2031 = vunpack.c.h.b16 %v1982
        %v2032 = vunpack.c.l.b16 %v1983
        %v2033 = vunpack.c.h.b16 %v1983
        %v2034 = vunpack.c.l.b16 %v1984
        %v2035 = vunpack.c.h.b16 %v1984
        %v2036 = vunpack.c.l.b16 %v1985
        %v2037 = vunpack.c.h.b16 %v1985
        %v2038 = vunpack.c.l.b16 %v1986
        %v2039 = vunpack.c.h.b16 %v1986
        %v2040 = vunpack.c.l.b16 %v1987
        %v2041 = vunpack.c.h.b16 %v1987
        %v2042 = vunpack.c.l.b16 %v1988
        %v2043 = vunpack.c.h.b16 %v1988
        %v2044 = vunpack.c.l.b16 %v1989
        %v2045 = vunpack.c.h.b16 %v1989
        %v2046 = vunpack.c.l.b16 %v1990
        %v2047 = vunpack.c.h.b16 %v1990
        %v2048 = vunpack.c.l.b16 %v1991
        %v2049 = vunpack.c.h.b16 %v1991
        %v2050 = vunpack.c.l.b16 %v1992
        %v2051 = vunpack.c.h.b16 %v1992
        %v2052 = vunpack.c.l.b16 %v1993
        %v2053 = vunpack.c.h.b16 %v1993
        %v2054 = vpack.c.b16 %v2024, %v2022
        %v2055 = vpack.c.b16 %v2025, %v2023
        %v2056 = vpack.c.b16 %v2028, %v2026
        %v2057 = vpack.c.b16 %v2029, %v2027
        %v2058 = vpack.c.b16 %v2032, %v2030
        %v2059 = vpack.c.b16 %v2033, %v2031
        %v2060 = vpack.c.b16 %v2036, %v2034
        %v2061 = vpack.c.b16 %v2037, %v2035
        %v2062 = vpack.c.b16 %v2040, %v2038
        %v2063 = vpack.c.b16 %v2041, %v2039
        %v2064 = vpack.c.b16 %v2044, %v2042
        %v2065 = vpack.c.b16 %v2045, %v2043
        %v2066 = vpack.c.b16 %v2048, %v2046
        %v2067 = vpack.c.b16 %v2049, %v2047
        %v2068 = vpack.c.b16 %v2052, %v2050
        %v2069 = vpack.c.b16 %v2053, %v2051
        %2086 = vmatprep.subr.bf16.mxu0 %v2069
        %2087 = vmatpush1.bf16.msra.mxu0 %v2068
        %2088 = vmatprep.subr.bf16.mxu0 %v2067
        %2089 = vmatpush1.bf16.msra.mxu0 %v2066
        %2090 = vmatprep.subr.bf16.mxu0 %v2065
        %2091 = vmatpush1.bf16.msra.mxu0 %v2064
        %2092 = vmatprep.subr.bf16.mxu0 %v2063
        %2093 = vmatpush1.bf16.msra.mxu0 %v2062
        %2094 = vmatprep.subr.bf16.mxu0 %v2061
        %2095 = vmatpush1.bf16.msra.mxu0 %v2060
        %2096 = vmatprep.subr.bf16.mxu0 %v2059
        %2097 = vmatpush1.bf16.msra.mxu0 %v2058
        %2098 = vmatprep.subr.bf16.mxu0 %v2057
        %2099 = vmatpush1.bf16.msra.mxu0 %v2056
        %2100 = vmatprep.subr.bf16.mxu0 %v2055
        %2101 = vmatpush1.bf16.msra.mxu0 %v2054
        %2102 = vmatprep.subr.bf16.mxu0 0
        %2103 = vmatpush2.bf16.msra.mxu0 0
        %2104 = vmatprep.subr.bf16.mxu0 0
        %2105 = vmatpush2.bf16.msra.mxu0 0
        %2106 = vmatprep.subr.bf16.mxu0 0
        %2107 = vmatpush2.bf16.msra.mxu0 0
        %2108 = vmatprep.subr.bf16.mxu0 0
        %2109 = vmatpush2.bf16.msra.mxu0 0
        %2110 = vmatprep.subr.bf16.mxu0 0
        %2111 = vmatpush2.bf16.msra.mxu0 0
        %2112 = vmatprep.subr.bf16.mxu0 0
        %2113 = vmatpush2.bf16.msra.mxu0 0
        %2114 = vmatprep.subr.bf16.mxu0 0
        %2115 = vmatpush2.bf16.msra.mxu0 0
        %2116 = vmatprep.subr.bf16.mxu0 0
        %2117 = vmatpush2.bf16.msra.mxu0 0
        %2118 = vmatprep.mubr.bf16.mxu0 0
        %2119 = vmatmul.mubr.bf16.gmra.mxu0 %v1081
        %v2120 = vpop.f32.mrf.mxu0
        %v2121 = vadd.f32 %v1999, %v2120
        %v2122 = vpop.f32.mrf.mxu0
        %v2123 = vadd.f32 %v2003, %v2122
        %v2124 = vpop.f32.mrf.mxu0
        %v2125 = vpop.f32.mrf.mxu0
        %2126 = vdwg.mxu0
        %v2127 = vmax.f32 %v2121, %v2123
        %2128 = vmax.xlane.f32.xlu0 %v2127
        %v2129 = vpop.xlane.xlu0 %2128
        %v2130 = vsub.f32 %v2121, %v2129
        %v2131 = vsub.f32 %v2123, %v2129
        %v2132 = vmul.f32 %v2130, 1.442695
        %v2133 = vpow.pop %v2132
        %v2134 = vmul.f32 %v2131, 1.442695
        %v2135 = vpow.pop %v2134
        %v2136 = vadd.f32 %v2133, %v2135
        %2137 = vadd.xlane.f32.xlu0 %v2136
        %v2138 = vpop.xlane.xlu0 %2137
        %v2139 = vlog2.pop %v2138
        %v2140 = vmul.f32 %v2139, 0.6931472
        %v2141 = vadd.f32 %v2129, %v2140
        %2142 = vset.pattern.permute.xlu0 5
        %2143 = vperm.xlu0 %2142, %v1084
        %v2144 = vpop.permute.xlu0 %2143
        %vm2145 = vcmp.eq.s32.totalorder %v1086, %v2144
        %vm2146 = vcmp.eq.s32.totalorder %v1087, %v2144
        %v2147 = vsel %vm2145, %v2121, 0.0
        %v2148 = vsel %vm2146, %v2123, 0.0
        %v2149 = vadd.f32 %v2147, %v2148
        %2150 = vadd.xlane.f32.xlu0 %v2149
        %v2151 = vpop.xlane.xlu0 %2150
        %v2152 = vsub.f32 %v2151, %v2141
        %v2153 = vmax.f32 %v2152, -11.512925
        %v2154 = vmin.f32 %v2153, -1.000005e-05
        %v2155 = vadd.f32 %v1977, %v2154
        %v2156 = vld [vmem:[%s528 + $0x30] sm:$0xff]
        %v2157 = vld [vmem:[%s528 + $0x130] sm:$0xff]
        %v2158 = vld [vmem:[%s528 + $0x230] sm:$0xff]
        %v2159 = vld [vmem:[%s528 + $0x330] sm:$0xff]
        %v2160 = vld [vmem:[%s528 + $0x430] sm:$0xff]
        %v2161 = vld [vmem:[%s528 + $0x530] sm:$0xff]
        %v2162 = vld [vmem:[%s528 + $0x630] sm:$0xff]
        %v2163 = vld [vmem:[%s528 + $0x730] sm:$0xff]
        %v2164 = vld [vmem:[%s528 + $0x830] sm:$0xff]
        %v2165 = vld [vmem:[%s528 + $0x930] sm:$0xff]
        %v2166 = vld [vmem:[%s528 + $0xa30] sm:$0xff]
        %v2167 = vld [vmem:[%s528 + $0xb30] sm:$0xff]
        %v2168 = vld [vmem:[%s528 + $0xc30] sm:$0xff]
        %v2169 = vld [vmem:[%s528 + $0xd30] sm:$0xff]
        %v2170 = vld [vmem:[%s528 + $0xe30] sm:$0xff]
        %v2171 = vld [vmem:[%s528 + $0xf30] sm:$0xff]
        %v2172 = vld [vmem:[%s537 + $0xc] sm:$0x3]
        %v2174 = vlaneseq
        %v2175 = vshrl.u32 %v2174, 7
        %v2176 = vsub.s32 0, %v2175
        %v2177 = vrot.slane %v2172, %v2176
        %v2178 = vlaneseq
        %v2179 = vshrl.u32 %v2178, 7
        %v2180 = vsub.s32 1, %v2179
        %v2181 = vrot.slane %v2172, %v2180
        %v2200 = vunpack.c.l.b16 %v2156
        %v2201 = vunpack.c.h.b16 %v2156
        %v2202 = vunpack.c.l.b16 %v2157
        %v2203 = vunpack.c.h.b16 %v2157
        %v2204 = vunpack.c.l.b16 %v2158
        %v2205 = vunpack.c.h.b16 %v2158
        %v2206 = vunpack.c.l.b16 %v2159
        %v2207 = vunpack.c.h.b16 %v2159
        %v2208 = vunpack.c.l.b16 %v2160
        %v2209 = vunpack.c.h.b16 %v2160
        %v2210 = vunpack.c.l.b16 %v2161
        %v2211 = vunpack.c.h.b16 %v2161
        %v2212 = vunpack.c.l.b16 %v2162
        %v2213 = vunpack.c.h.b16 %v2162
        %v2214 = vunpack.c.l.b16 %v2163
        %v2215 = vunpack.c.h.b16 %v2163
        %v2216 = vunpack.c.l.b16 %v2164
        %v2217 = vunpack.c.h.b16 %v2164
        %v2218 = vunpack.c.l.b16 %v2165
        %v2219 = vunpack.c.h.b16 %v2165
        %v2220 = vunpack.c.l.b16 %v2166
        %v2221 = vunpack.c.h.b16 %v2166
        %v2222 = vunpack.c.l.b16 %v2167
        %v2223 = vunpack.c.h.b16 %v2167
        %v2224 = vunpack.c.l.b16 %v2168
        %v2225 = vunpack.c.h.b16 %v2168
        %v2226 = vunpack.c.l.b16 %v2169
        %v2227 = vunpack.c.h.b16 %v2169
        %v2228 = vunpack.c.l.b16 %v2170
        %v2229 = vunpack.c.h.b16 %v2170
        %v2230 = vunpack.c.l.b16 %v2171
        %v2231 = vunpack.c.h.b16 %v2171
        %v2232 = vpack.c.b16 %v2202, %v2200
        %v2233 = vpack.c.b16 %v2203, %v2201
        %v2234 = vpack.c.b16 %v2206, %v2204
        %v2235 = vpack.c.b16 %v2207, %v2205
        %v2236 = vpack.c.b16 %v2210, %v2208
        %v2237 = vpack.c.b16 %v2211, %v2209
        %v2238 = vpack.c.b16 %v2214, %v2212
        %v2239 = vpack.c.b16 %v2215, %v2213
        %v2240 = vpack.c.b16 %v2218, %v2216
        %v2241 = vpack.c.b16 %v2219, %v2217
        %v2242 = vpack.c.b16 %v2222, %v2220
        %v2243 = vpack.c.b16 %v2223, %v2221
        %v2244 = vpack.c.b16 %v2226, %v2224
        %v2245 = vpack.c.b16 %v2227, %v2225
        %v2246 = vpack.c.b16 %v2230, %v2228
        %v2247 = vpack.c.b16 %v2231, %v2229
        %2264 = vmatprep.subr.bf16.mxu0 %v2247
        %2265 = vmatpush1.bf16.msra.mxu0 %v2246
        %2266 = vmatprep.subr.bf16.mxu0 %v2245
        %2267 = vmatpush1.bf16.msra.mxu0 %v2244
        %2268 = vmatprep.subr.bf16.mxu0 %v2243
        %2269 = vmatpush1.bf16.msra.mxu0 %v2242
        %2270 = vmatprep.subr.bf16.mxu0 %v2241
        %2271 = vmatpush1.bf16.msra.mxu0 %v2240
        %2272 = vmatprep.subr.bf16.mxu0 %v2239
        %2273 = vmatpush1.bf16.msra.mxu0 %v2238
        %2274 = vmatprep.subr.bf16.mxu0 %v2237
        %2275 = vmatpush1.bf16.msra.mxu0 %v2236
        %2276 = vmatprep.subr.bf16.mxu0 %v2235
        %2277 = vmatpush1.bf16.msra.mxu0 %v2234
        %2278 = vmatprep.subr.bf16.mxu0 %v2233
        %2279 = vmatpush1.bf16.msra.mxu0 %v2232
        %2280 = vmatprep.subr.bf16.mxu0 0
        %2281 = vmatpush2.bf16.msra.mxu0 0
        %2282 = vmatprep.subr.bf16.mxu0 0
        %2283 = vmatpush2.bf16.msra.mxu0 0
        %2284 = vmatprep.subr.bf16.mxu0 0
        %2285 = vmatpush2.bf16.msra.mxu0 0
        %2286 = vmatprep.subr.bf16.mxu0 0
        %2287 = vmatpush2.bf16.msra.mxu0 0
        %2288 = vmatprep.subr.bf16.mxu0 0
        %2289 = vmatpush2.bf16.msra.mxu0 0
        %2290 = vmatprep.subr.bf16.mxu0 0
        %2291 = vmatpush2.bf16.msra.mxu0 0
        %2292 = vmatprep.subr.bf16.mxu0 0
        %2293 = vmatpush2.bf16.msra.mxu0 0
        %2294 = vmatprep.subr.bf16.mxu0 0
        %2295 = vmatpush2.bf16.msra.mxu0 0
        %2296 = vmatprep.mubr.bf16.mxu0 0
        %2297 = vmatmul.mubr.bf16.gmra.mxu0 %v1081
        %v2298 = vpop.f32.mrf.mxu0
        %v2299 = vadd.f32 %v2177, %v2298
        %v2300 = vpop.f32.mrf.mxu0
        %v2301 = vadd.f32 %v2181, %v2300
        %v2302 = vpop.f32.mrf.mxu0
        %v2303 = vpop.f32.mrf.mxu0
        %2304 = vdwg.mxu0
        %v2305 = vmax.f32 %v2299, %v2301
        %2306 = vmax.xlane.f32.xlu0 %v2305
        %v2307 = vpop.xlane.xlu0 %2306
        %v2308 = vsub.f32 %v2299, %v2307
        %v2309 = vsub.f32 %v2301, %v2307
        %v2310 = vmul.f32 %v2308, 1.442695
        %v2311 = vpow.pop %v2310
        %v2312 = vmul.f32 %v2309, 1.442695
        %v2313 = vpow.pop %v2312
        %v2314 = vadd.f32 %v2311, %v2313
        %2315 = vadd.xlane.f32.xlu0 %v2314
        %v2316 = vpop.xlane.xlu0 %2315
        %v2317 = vlog2.pop %v2316
        %v2318 = vmul.f32 %v2317, 0.6931472
        %v2319 = vadd.f32 %v2307, %v2318
        %2320 = vset.pattern.permute.xlu0 6
        %2321 = vperm.xlu0 %2320, %v1084
        %v2322 = vpop.permute.xlu0 %2321
        %vm2323 = vcmp.eq.s32.totalorder %v1086, %v2322
        %vm2324 = vcmp.eq.s32.totalorder %v1087, %v2322
        %v2325 = vsel %vm2323, %v2299, 0.0
        %v2326 = vsel %vm2324, %v2301, 0.0
        %v2327 = vadd.f32 %v2325, %v2326
        %2328 = vadd.xlane.f32.xlu0 %v2327
        %v2329 = vpop.xlane.xlu0 %2328
        %v2330 = vsub.f32 %v2329, %v2319
        %v2331 = vmax.f32 %v2330, -11.512925
        %v2332 = vmin.f32 %v2331, -1.000005e-05
        %v2333 = vadd.f32 %v2155, %v2332
        %v2334 = vld [vmem:[%s528 + $0x38] sm:$0xff]
        %v2335 = vld [vmem:[%s528 + $0x138] sm:$0xff]
        %v2336 = vld [vmem:[%s528 + $0x238] sm:$0xff]
        %v2337 = vld [vmem:[%s528 + $0x338] sm:$0xff]
        %v2338 = vld [vmem:[%s528 + $0x438] sm:$0xff]
        %v2339 = vld [vmem:[%s528 + $0x538] sm:$0xff]
        %v2340 = vld [vmem:[%s528 + $0x638] sm:$0xff]
        %v2341 = vld [vmem:[%s528 + $0x738] sm:$0xff]
        %v2342 = vld [vmem:[%s528 + $0x838] sm:$0xff]
        %v2343 = vld [vmem:[%s528 + $0x938] sm:$0xff]
        %v2344 = vld [vmem:[%s528 + $0xa38] sm:$0xff]
        %v2345 = vld [vmem:[%s528 + $0xb38] sm:$0xff]
        %v2346 = vld [vmem:[%s528 + $0xc38] sm:$0xff]
        %v2347 = vld [vmem:[%s528 + $0xd38] sm:$0xff]
        %v2348 = vld [vmem:[%s528 + $0xe38] sm:$0xff]
        %v2349 = vld [vmem:[%s528 + $0xf38] sm:$0xff]
        %v2350 = vld [vmem:[%s537 + $0xe] sm:$0x3]
        %v2352 = vlaneseq
        %v2353 = vshrl.u32 %v2352, 7
        %v2354 = vsub.s32 0, %v2353
        %v2355 = vrot.slane %v2350, %v2354
        %v2356 = vlaneseq
        %v2357 = vshrl.u32 %v2356, 7
        %v2358 = vsub.s32 1, %v2357
        %v2359 = vrot.slane %v2350, %v2358
        %v2378 = vunpack.c.l.b16 %v2334
        %v2379 = vunpack.c.h.b16 %v2334
        %v2380 = vunpack.c.l.b16 %v2335
        %v2381 = vunpack.c.h.b16 %v2335
        %v2382 = vunpack.c.l.b16 %v2336
        %v2383 = vunpack.c.h.b16 %v2336
        %v2384 = vunpack.c.l.b16 %v2337
        %v2385 = vunpack.c.h.b16 %v2337
        %v2386 = vunpack.c.l.b16 %v2338
        %v2387 = vunpack.c.h.b16 %v2338
        %v2388 = vunpack.c.l.b16 %v2339
        %v2389 = vunpack.c.h.b16 %v2339
        %v2390 = vunpack.c.l.b16 %v2340
        %v2391 = vunpack.c.h.b16 %v2340
        %v2392 = vunpack.c.l.b16 %v2341
        %v2393 = vunpack.c.h.b16 %v2341
        %v2394 = vunpack.c.l.b16 %v2342
        %v2395 = vunpack.c.h.b16 %v2342
        %v2396 = vunpack.c.l.b16 %v2343
        %v2397 = vunpack.c.h.b16 %v2343
        %v2398 = vunpack.c.l.b16 %v2344
        %v2399 = vunpack.c.h.b16 %v2344
        %v2400 = vunpack.c.l.b16 %v2345
        %v2401 = vunpack.c.h.b16 %v2345
        %v2402 = vunpack.c.l.b16 %v2346
        %v2403 = vunpack.c.h.b16 %v2346
        %v2404 = vunpack.c.l.b16 %v2347
        %v2405 = vunpack.c.h.b16 %v2347
        %v2406 = vunpack.c.l.b16 %v2348
        %v2407 = vunpack.c.h.b16 %v2348
        %v2408 = vunpack.c.l.b16 %v2349
        %v2409 = vunpack.c.h.b16 %v2349
        %v2410 = vpack.c.b16 %v2380, %v2378
        %v2411 = vpack.c.b16 %v2381, %v2379
        %v2412 = vpack.c.b16 %v2384, %v2382
        %v2413 = vpack.c.b16 %v2385, %v2383
        %v2414 = vpack.c.b16 %v2388, %v2386
        %v2415 = vpack.c.b16 %v2389, %v2387
        %v2416 = vpack.c.b16 %v2392, %v2390
        %v2417 = vpack.c.b16 %v2393, %v2391
        %v2418 = vpack.c.b16 %v2396, %v2394
        %v2419 = vpack.c.b16 %v2397, %v2395
        %v2420 = vpack.c.b16 %v2400, %v2398
        %v2421 = vpack.c.b16 %v2401, %v2399
        %v2422 = vpack.c.b16 %v2404, %v2402
        %v2423 = vpack.c.b16 %v2405, %v2403
        %v2424 = vpack.c.b16 %v2408, %v2406
        %v2425 = vpack.c.b16 %v2409, %v2407
        %2442 = vmatprep.subr.bf16.mxu0 %v2425
        %2443 = vmatpush1.bf16.msra.mxu0 %v2424
        %2444 = vmatprep.subr.bf16.mxu0 %v2423
        %2445 = vmatpush1.bf16.msra.mxu0 %v2422
        %2446 = vmatprep.subr.bf16.mxu0 %v2421
        %2447 = vmatpush1.bf16.msra.mxu0 %v2420
        %2448 = vmatprep.subr.bf16.mxu0 %v2419
        %2449 = vmatpush1.bf16.msra.mxu0 %v2418
        %2450 = vmatprep.subr.bf16.mxu0 %v2417
        %2451 = vmatpush1.bf16.msra.mxu0 %v2416
        %2452 = vmatprep.subr.bf16.mxu0 %v2415
        %2453 = vmatpush1.bf16.msra.mxu0 %v2414
        %2454 = vmatprep.subr.bf16.mxu0 %v2413
        %2455 = vmatpush1.bf16.msra.mxu0 %v2412
        %2456 = vmatprep.subr.bf16.mxu0 %v2411
        %2457 = vmatpush1.bf16.msra.mxu0 %v2410
        %2458 = vmatprep.subr.bf16.mxu0 0
        %2459 = vmatpush2.bf16.msra.mxu0 0
        %2460 = vmatprep.subr.bf16.mxu0 0
        %2461 = vmatpush2.bf16.msra.mxu0 0
        %2462 = vmatprep.subr.bf16.mxu0 0
        %2463 = vmatpush2.bf16.msra.mxu0 0
        %2464 = vmatprep.subr.bf16.mxu0 0
        %2465 = vmatpush2.bf16.msra.mxu0 0
        %2466 = vmatprep.subr.bf16.mxu0 0
        %2467 = vmatpush2.bf16.msra.mxu0 0
        %2468 = vmatprep.subr.bf16.mxu0 0
        %2469 = vmatpush2.bf16.msra.mxu0 0
        %2470 = vmatprep.subr.bf16.mxu0 0
        %2471 = vmatpush2.bf16.msra.mxu0 0
        %2472 = vmatprep.subr.bf16.mxu0 0
        %2473 = vmatpush2.bf16.msra.mxu0 0
        %2474 = vmatprep.mubr.bf16.mxu0 0
        %2475 = vmatmul.mubr.bf16.gmra.mxu0 %v1081
        %v2476 = vpop.f32.mrf.mxu0
        %v2477 = vadd.f32 %v2355, %v2476
        %v2478 = vpop.f32.mrf.mxu0
        %v2479 = vadd.f32 %v2359, %v2478
        %v2480 = vpop.f32.mrf.mxu0
        %v2481 = vpop.f32.mrf.mxu0
        %2482 = vdwg.mxu0
        %v2483 = vmax.f32 %v2477, %v2479
        %2484 = vmax.xlane.f32.xlu0 %v2483
        %v2485 = vpop.xlane.xlu0 %2484
        %v2486 = vsub.f32 %v2477, %v2485
        %v2487 = vsub.f32 %v2479, %v2485
        %v2488 = vmul.f32 %v2486, 1.442695
        %v2489 = vpow.pop %v2488
        %v2490 = vmul.f32 %v2487, 1.442695
        %v2491 = vpow.pop %v2490
        %v2492 = vadd.f32 %v2489, %v2491
        %2493 = vadd.xlane.f32.xlu0 %v2492
        %v2494 = vpop.xlane.xlu0 %2493
        %v2495 = vlog2.pop %v2494
        %v2496 = vmul.f32 %v2495, 0.6931472
        %v2497 = vadd.f32 %v2485, %v2496
        %2498 = vset.pattern.permute.xlu0 7
        %2499 = vperm.xlu0 %2498, %v1084
        %v2500 = vpop.permute.xlu0 %2499
        %vm2501 = vcmp.eq.s32.totalorder %v1086, %v2500
        %vm2502 = vcmp.eq.s32.totalorder %v1087, %v2500
        %v2503 = vsel %vm2501, %v2477, 0.0
        %v2504 = vsel %vm2502, %v2479, 0.0
        %v2505 = vadd.f32 %v2503, %v2504
        %2506 = vadd.xlane.f32.xlu0 %v2505
        %v2507 = vpop.xlane.xlu0 %2506
        %v2508 = vsub.f32 %v2507, %v2497
        %v2509 = vmax.f32 %v2508, -11.512925
        %v2510 = vmin.f32 %v2509, -1.000005e-05
        %v2511 = vadd.f32 %v2333, %v2510
        %v2512 = vld [vmem:[%s528 + $0x40] sm:$0xff]
        %v2513 = vld [vmem:[%s528 + $0x140] sm:$0xff]
        %v2514 = vld [vmem:[%s528 + $0x240] sm:$0xff]
        %v2515 = vld [vmem:[%s528 + $0x340] sm:$0xff]
        %v2516 = vld [vmem:[%s528 + $0x440] sm:$0xff]
        %v2517 = vld [vmem:[%s528 + $0x540] sm:$0xff]
        %v2518 = vld [vmem:[%s528 + $0x640] sm:$0xff]
        %v2519 = vld [vmem:[%s528 + $0x740] sm:$0xff]
        %v2520 = vld [vmem:[%s528 + $0x840] sm:$0xff]
        %v2521 = vld [vmem:[%s528 + $0x940] sm:$0xff]
        %v2522 = vld [vmem:[%s528 + $0xa40] sm:$0xff]
        %v2523 = vld [vmem:[%s528 + $0xb40] sm:$0xff]
        %v2524 = vld [vmem:[%s528 + $0xc40] sm:$0xff]
        %v2525 = vld [vmem:[%s528 + $0xd40] sm:$0xff]
        %v2526 = vld [vmem:[%s528 + $0xe40] sm:$0xff]
        %v2527 = vld [vmem:[%s528 + $0xf40] sm:$0xff]
        %v2528 = vld [vmem:[%s537 + $0x10] sm:$0x3]
        %v2530 = vlaneseq
        %v2531 = vshrl.u32 %v2530, 7
        %v2532 = vsub.s32 0, %v2531
        %v2533 = vrot.slane %v2528, %v2532
        %v2534 = vlaneseq
        %v2535 = vshrl.u32 %v2534, 7
        %v2536 = vsub.s32 1, %v2535
        %v2537 = vrot.slane %v2528, %v2536
        %v2556 = vunpack.c.l.b16 %v2512
        %v2557 = vunpack.c.h.b16 %v2512
        %v2558 = vunpack.c.l.b16 %v2513
        %v2559 = vunpack.c.h.b16 %v2513
        %v2560 = vunpack.c.l.b16 %v2514
        %v2561 = vunpack.c.h.b16 %v2514
        %v2562 = vunpack.c.l.b16 %v2515
        %v2563 = vunpack.c.h.b16 %v2515
        %v2564 = vunpack.c.l.b16 %v2516
        %v2565 = vunpack.c.h.b16 %v2516
        %v2566 = vunpack.c.l.b16 %v2517
        %v2567 = vunpack.c.h.b16 %v2517
        %v2568 = vunpack.c.l.b16 %v2518
        %v2569 = vunpack.c.h.b16 %v2518
        %v2570 = vunpack.c.l.b16 %v2519
        %v2571 = vunpack.c.h.b16 %v2519
        %v2572 = vunpack.c.l.b16 %v2520
        %v2573 = vunpack.c.h.b16 %v2520
        %v2574 = vunpack.c.l.b16 %v2521
        %v2575 = vunpack.c.h.b16 %v2521
        %v2576 = vunpack.c.l.b16 %v2522
        %v2577 = vunpack.c.h.b16 %v2522
        %v2578 = vunpack.c.l.b16 %v2523
        %v2579 = vunpack.c.h.b16 %v2523
        %v2580 = vunpack.c.l.b16 %v2524
        %v2581 = vunpack.c.h.b16 %v2524
        %v2582 = vunpack.c.l.b16 %v2525
        %v2583 = vunpack.c.h.b16 %v2525
        %v2584 = vunpack.c.l.b16 %v2526
        %v2585 = vunpack.c.h.b16 %v2526
        %v2586 = vunpack.c.l.b16 %v2527
        %v2587 = vunpack.c.h.b16 %v2527
        %v2588 = vpack.c.b16 %v2558, %v2556
        %v2589 = vpack.c.b16 %v2559, %v2557
        %v2590 = vpack.c.b16 %v2562, %v2560
        %v2591 = vpack.c.b16 %v2563, %v2561
        %v2592 = vpack.c.b16 %v2566, %v2564
        %v2593 = vpack.c.b16 %v2567, %v2565
        %v2594 = vpack.c.b16 %v2570, %v2568
        %v2595 = vpack.c.b16 %v2571, %v2569
        %v2596 = vpack.c.b16 %v2574, %v2572
        %v2597 = vpack.c.b16 %v2575, %v2573
        %v2598 = vpack.c.b16 %v2578, %v2576
        %v2599 = vpack.c.b16 %v2579, %v2577
        %v2600 = vpack.c.b16 %v2582, %v2580
        %v2601 = vpack.c.b16 %v2583, %v2581
        %v2602 = vpack.c.b16 %v2586, %v2584
        %v2603 = vpack.c.b16 %v2587, %v2585
        %2620 = vmatprep.subr.bf16.mxu0 %v2603
        %2621 = vmatpush1.bf16.msra.mxu0 %v2602
        %2622 = vmatprep.subr.bf16.mxu0 %v2601
        %2623 = vmatpush1.bf16.msra.mxu0 %v2600
        %2624 = vmatprep.subr.bf16.mxu0 %v2599
        %2625 = vmatpush1.bf16.msra.mxu0 %v2598
        %2626 = vmatprep.subr.bf16.mxu0 %v2597
        %2627 = vmatpush1.bf16.msra.mxu0 %v2596
        %2628 = vmatprep.subr.bf16.mxu0 %v2595
        %2629 = vmatpush1.bf16.msra.mxu0 %v2594
        %2630 = vmatprep.subr.bf16.mxu0 %v2593
        %2631 = vmatpush1.bf16.msra.mxu0 %v2592
        %2632 = vmatprep.subr.bf16.mxu0 %v2591
        %2633 = vmatpush1.bf16.msra.mxu0 %v2590
        %2634 = vmatprep.subr.bf16.mxu0 %v2589
        %2635 = vmatpush1.bf16.msra.mxu0 %v2588
        %2636 = vmatprep.subr.bf16.mxu0 0
        %2637 = vmatpush2.bf16.msra.mxu0 0
        %2638 = vmatprep.subr.bf16.mxu0 0
        %2639 = vmatpush2.bf16.msra.mxu0 0
        %2640 = vmatprep.subr.bf16.mxu0 0
        %2641 = vmatpush2.bf16.msra.mxu0 0
        %2642 = vmatprep.subr.bf16.mxu0 0
        %2643 = vmatpush2.bf16.msra.mxu0 0
        %2644 = vmatprep.subr.bf16.mxu0 0
        %2645 = vmatpush2.bf16.msra.mxu0 0
        %2646 = vmatprep.subr.bf16.mxu0 0
        %2647 = vmatpush2.bf16.msra.mxu0 0
        %2648 = vmatprep.subr.bf16.mxu0 0
        %2649 = vmatpush2.bf16.msra.mxu0 0
        %2650 = vmatprep.subr.bf16.mxu0 0
        %2651 = vmatpush2.bf16.msra.mxu0 0
        %2652 = vmatprep.mubr.bf16.mxu0 0
        %2653 = vmatmul.mubr.bf16.gmra.mxu0 %v1081
        %v2654 = vpop.f32.mrf.mxu0
        %v2655 = vadd.f32 %v2533, %v2654
        %v2656 = vpop.f32.mrf.mxu0
        %v2657 = vadd.f32 %v2537, %v2656
        %v2658 = vpop.f32.mrf.mxu0
        %v2659 = vpop.f32.mrf.mxu0
        %2660 = vdwg.mxu0
        %v2661 = vmax.f32 %v2655, %v2657
        %2662 = vmax.xlane.f32.xlu0 %v2661
        %v2663 = vpop.xlane.xlu0 %2662
        %v2664 = vsub.f32 %v2655, %v2663
        %v2665 = vsub.f32 %v2657, %v2663
        %v2666 = vmul.f32 %v2664, 1.442695
        %v2667 = vpow.pop %v2666
        %v2668 = vmul.f32 %v2665, 1.442695
        %v2669 = vpow.pop %v2668
        %v2670 = vadd.f32 %v2667, %v2669
        %2671 = vadd.xlane.f32.xlu0 %v2670
        %v2672 = vpop.xlane.xlu0 %2671
        %v2673 = vlog2.pop %v2672
        %v2674 = vmul.f32 %v2673, 0.6931472
        %v2675 = vadd.f32 %v2663, %v2674
        %2676 = vset.pattern.permute.xlu0 8
        %2677 = vperm.xlu0 %2676, %v1084
        %v2678 = vpop.permute.xlu0 %2677
        %vm2679 = vcmp.eq.s32.totalorder %v1086, %v2678
        %vm2680 = vcmp.eq.s32.totalorder %v1087, %v2678
        %v2681 = vsel %vm2679, %v2655, 0.0
        %v2682 = vsel %vm2680, %v2657, 0.0
        %v2683 = vadd.f32 %v2681, %v2682
        %2684 = vadd.xlane.f32.xlu0 %v2683
        %v2685 = vpop.xlane.xlu0 %2684
        %v2686 = vsub.f32 %v2685, %v2675
        %v2687 = vmax.f32 %v2686, -11.512925
        %v2688 = vmin.f32 %v2687, -1.000005e-05
        %v2689 = vadd.f32 %v2511, %v2688
        %v2690 = vld [vmem:[%s528 + $0x48] sm:$0xff]
        %v2691 = vld [vmem:[%s528 + $0x148] sm:$0xff]
        %v2692 = vld [vmem:[%s528 + $0x248] sm:$0xff]
        %v2693 = vld [vmem:[%s528 + $0x348] sm:$0xff]
        %v2694 = vld [vmem:[%s528 + $0x448] sm:$0xff]
        %v2695 = vld [vmem:[%s528 + $0x548] sm:$0xff]
        %v2696 = vld [vmem:[%s528 + $0x648] sm:$0xff]
        %v2697 = vld [vmem:[%s528 + $0x748] sm:$0xff]
        %v2698 = vld [vmem:[%s528 + $0x848] sm:$0xff]
        %v2699 = vld [vmem:[%s528 + $0x948] sm:$0xff]
        %v2700 = vld [vmem:[%s528 + $0xa48] sm:$0xff]
        %v2701 = vld [vmem:[%s528 + $0xb48] sm:$0xff]
        %v2702 = vld [vmem:[%s528 + $0xc48] sm:$0xff]
        %v2703 = vld [vmem:[%s528 + $0xd48] sm:$0xff]
        %v2704 = vld [vmem:[%s528 + $0xe48] sm:$0xff]
        %v2705 = vld [vmem:[%s528 + $0xf48] sm:$0xff]
        %v2706 = vld [vmem:[%s537 + $0x12] sm:$0x3]
        %v2708 = vlaneseq
        %v2709 = vshrl.u32 %v2708, 7
        %v2710 = vsub.s32 0, %v2709
        %v2711 = vrot.slane %v2706, %v2710
        %v2712 = vlaneseq
        %v2713 = vshrl.u32 %v2712, 7
        %v2714 = vsub.s32 1, %v2713
        %v2715 = vrot.slane %v2706, %v2714
        %v2734 = vunpack.c.l.b16 %v2690
        %v2735 = vunpack.c.h.b16 %v2690
        %v2736 = vunpack.c.l.b16 %v2691
        %v2737 = vunpack.c.h.b16 %v2691
        %v2738 = vunpack.c.l.b16 %v2692
        %v2739 = vunpack.c.h.b16 %v2692
        %v2740 = vunpack.c.l.b16 %v2693
        %v2741 = vunpack.c.h.b16 %v2693
        %v2742 = vunpack.c.l.b16 %v2694
        %v2743 = vunpack.c.h.b16 %v2694
        %v2744 = vunpack.c.l.b16 %v2695
        %v2745 = vunpack.c.h.b16 %v2695
        %v2746 = vunpack.c.l.b16 %v2696
        %v2747 = vunpack.c.h.b16 %v2696
        %v2748 = vunpack.c.l.b16 %v2697
        %v2749 = vunpack.c.h.b16 %v2697
        %v2750 = vunpack.c.l.b16 %v2698
        %v2751 = vunpack.c.h.b16 %v2698
        %v2752 = vunpack.c.l.b16 %v2699
        %v2753 = vunpack.c.h.b16 %v2699
        %v2754 = vunpack.c.l.b16 %v2700
        %v2755 = vunpack.c.h.b16 %v2700
        %v2756 = vunpack.c.l.b16 %v2701
        %v2757 = vunpack.c.h.b16 %v2701
        %v2758 = vunpack.c.l.b16 %v2702
        %v2759 = vunpack.c.h.b16 %v2702
        %v2760 = vunpack.c.l.b16 %v2703
        %v2761 = vunpack.c.h.b16 %v2703
        %v2762 = vunpack.c.l.b16 %v2704
        %v2763 = vunpack.c.h.b16 %v2704
        %v2764 = vunpack.c.l.b16 %v2705
        %v2765 = vunpack.c.h.b16 %v2705
        %v2766 = vpack.c.b16 %v2736, %v2734
        %v2767 = vpack.c.b16 %v2737, %v2735
        %v2768 = vpack.c.b16 %v2740, %v2738
        %v2769 = vpack.c.b16 %v2741, %v2739
        %v2770 = vpack.c.b16 %v2744, %v2742
        %v2771 = vpack.c.b16 %v2745, %v2743
        %v2772 = vpack.c.b16 %v2748, %v2746
        %v2773 = vpack.c.b16 %v2749, %v2747
        %v2774 = vpack.c.b16 %v2752, %v2750
        %v2775 = vpack.c.b16 %v2753, %v2751
        %v2776 = vpack.c.b16 %v2756, %v2754
        %v2777 = vpack.c.b16 %v2757, %v2755
        %v2778 = vpack.c.b16 %v2760, %v2758
        %v2779 = vpack.c.b16 %v2761, %v2759
        %v2780 = vpack.c.b16 %v2764, %v2762
        %v2781 = vpack.c.b16 %v2765, %v2763
        %2798 = vmatprep.subr.bf16.mxu0 %v2781
        %2799 = vmatpush1.bf16.msra.mxu0 %v2780
        %2800 = vmatprep.subr.bf16.mxu0 %v2779
        %2801 = vmatpush1.bf16.msra.mxu0 %v2778
        %2802 = vmatprep.subr.bf16.mxu0 %v2777
        %2803 = vmatpush1.bf16.msra.mxu0 %v2776
        %2804 = vmatprep.subr.bf16.mxu0 %v2775
        %2805 = vmatpush1.bf16.msra.mxu0 %v2774
        %2806 = vmatprep.subr.bf16.mxu0 %v2773
        %2807 = vmatpush1.bf16.msra.mxu0 %v2772
        %2808 = vmatprep.subr.bf16.mxu0 %v2771
        %2809 = vmatpush1.bf16.msra.mxu0 %v2770
        %2810 = vmatprep.subr.bf16.mxu0 %v2769
        %2811 = vmatpush1.bf16.msra.mxu0 %v2768
        %2812 = vmatprep.subr.bf16.mxu0 %v2767
        %2813 = vmatpush1.bf16.msra.mxu0 %v2766
        %2814 = vmatprep.subr.bf16.mxu0 0
        %2815 = vmatpush2.bf16.msra.mxu0 0
        %2816 = vmatprep.subr.bf16.mxu0 0
        %2817 = vmatpush2.bf16.msra.mxu0 0
        %2818 = vmatprep.subr.bf16.mxu0 0
        %2819 = vmatpush2.bf16.msra.mxu0 0
        %2820 = vmatprep.subr.bf16.mxu0 0
        %2821 = vmatpush2.bf16.msra.mxu0 0
        %2822 = vmatprep.subr.bf16.mxu0 0
        %2823 = vmatpush2.bf16.msra.mxu0 0
        %2824 = vmatprep.subr.bf16.mxu0 0
        %2825 = vmatpush2.bf16.msra.mxu0 0
        %2826 = vmatprep.subr.bf16.mxu0 0
        %2827 = vmatpush2.bf16.msra.mxu0 0
        %2828 = vmatprep.subr.bf16.mxu0 0
        %2829 = vmatpush2.bf16.msra.mxu0 0
        %2830 = vmatprep.mubr.bf16.mxu0 0
        %2831 = vmatmul.mubr.bf16.gmra.mxu0 %v1081
        %v2832 = vpop.f32.mrf.mxu0
        %v2833 = vadd.f32 %v2711, %v2832
        %v2834 = vpop.f32.mrf.mxu0
        %v2835 = vadd.f32 %v2715, %v2834
        %v2836 = vpop.f32.mrf.mxu0
        %v2837 = vpop.f32.mrf.mxu0
        %2838 = vdwg.mxu0
        %v2839 = vmax.f32 %v2833, %v2835
        %2840 = vmax.xlane.f32.xlu0 %v2839
        %v2841 = vpop.xlane.xlu0 %2840
        %v2842 = vsub.f32 %v2833, %v2841
        %v2843 = vsub.f32 %v2835, %v2841
        %v2844 = vmul.f32 %v2842, 1.442695
        %v2845 = vpow.pop %v2844
        %v2846 = vmul.f32 %v2843, 1.442695
        %v2847 = vpow.pop %v2846
        %v2848 = vadd.f32 %v2845, %v2847
        %2849 = vadd.xlane.f32.xlu0 %v2848
        %v2850 = vpop.xlane.xlu0 %2849
        %v2851 = vlog2.pop %v2850
        %v2852 = vmul.f32 %v2851, 0.6931472
        %v2853 = vadd.f32 %v2841, %v2852
        %2854 = vset.pattern.permute.xlu0 9
        %2855 = vperm.xlu0 %2854, %v1084
        %v2856 = vpop.permute.xlu0 %2855
        %vm2857 = vcmp.eq.s32.totalorder %v1086, %v2856
        %vm2858 = vcmp.eq.s32.totalorder %v1087, %v2856
        %v2859 = vsel %vm2857, %v2833, 0.0
        %v2860 = vsel %vm2858, %v2835, 0.0
        %v2861 = vadd.f32 %v2859, %v2860
        %2862 = vadd.xlane.f32.xlu0 %v2861
        %v2863 = vpop.xlane.xlu0 %2862
        %v2864 = vsub.f32 %v2863, %v2853
        %v2865 = vmax.f32 %v2864, -11.512925
        %v2866 = vmin.f32 %v2865, -1.000005e-05
        %v2867 = vadd.f32 %v2689, %v2866
        %v2868 = vld [vmem:[%s528 + $0x50] sm:$0xff]
        %v2869 = vld [vmem:[%s528 + $0x150] sm:$0xff]
        %v2870 = vld [vmem:[%s528 + $0x250] sm:$0xff]
        %v2871 = vld [vmem:[%s528 + $0x350] sm:$0xff]
        %v2872 = vld [vmem:[%s528 + $0x450] sm:$0xff]
        %v2873 = vld [vmem:[%s528 + $0x550] sm:$0xff]
        %v2874 = vld [vmem:[%s528 + $0x650] sm:$0xff]
        %v2875 = vld [vmem:[%s528 + $0x750] sm:$0xff]
        %v2876 = vld [vmem:[%s528 + $0x850] sm:$0xff]
        %v2877 = vld [vmem:[%s528 + $0x950] sm:$0xff]
        %v2878 = vld [vmem:[%s528 + $0xa50] sm:$0xff]
        %v2879 = vld [vmem:[%s528 + $0xb50] sm:$0xff]
        %v2880 = vld [vmem:[%s528 + $0xc50] sm:$0xff]
        %v2881 = vld [vmem:[%s528 + $0xd50] sm:$0xff]
        %v2882 = vld [vmem:[%s528 + $0xe50] sm:$0xff]
        %v2883 = vld [vmem:[%s528 + $0xf50] sm:$0xff]
        %v2884 = vld [vmem:[%s537 + $0x14] sm:$0x3]
        %v2886 = vlaneseq
        %v2887 = vshrl.u32 %v2886, 7
        %v2888 = vsub.s32 0, %v2887
        %v2889 = vrot.slane %v2884, %v2888
        %v2890 = vlaneseq
        %v2891 = vshrl.u32 %v2890, 7
        %v2892 = vsub.s32 1, %v2891
        %v2893 = vrot.slane %v2884, %v2892
        %v2912 = vunpack.c.l.b16 %v2868
        %v2913 = vunpack.c.h.b16 %v2868
        %v2914 = vunpack.c.l.b16 %v2869
        %v2915 = vunpack.c.h.b16 %v2869
        %v2916 = vunpack.c.l.b16 %v2870
        %v2917 = vunpack.c.h.b16 %v2870
        %v2918 = vunpack.c.l.b16 %v2871
        %v2919 = vunpack.c.h.b16 %v2871
        %v2920 = vunpack.c.l.b16 %v2872
        %v2921 = vunpack.c.h.b16 %v2872
        %v2922 = vunpack.c.l.b16 %v2873
        %v2923 = vunpack.c.h.b16 %v2873
        %v2924 = vunpack.c.l.b16 %v2874
        %v2925 = vunpack.c.h.b16 %v2874
        %v2926 = vunpack.c.l.b16 %v2875
        %v2927 = vunpack.c.h.b16 %v2875
        %v2928 = vunpack.c.l.b16 %v2876
        %v2929 = vunpack.c.h.b16 %v2876
        %v2930 = vunpack.c.l.b16 %v2877
        %v2931 = vunpack.c.h.b16 %v2877
        %v2932 = vunpack.c.l.b16 %v2878
        %v2933 = vunpack.c.h.b16 %v2878
        %v2934 = vunpack.c.l.b16 %v2879
        %v2935 = vunpack.c.h.b16 %v2879
        %v2936 = vunpack.c.l.b16 %v2880
        %v2937 = vunpack.c.h.b16 %v2880
        %v2938 = vunpack.c.l.b16 %v2881
        %v2939 = vunpack.c.h.b16 %v2881
        %v2940 = vunpack.c.l.b16 %v2882
        %v2941 = vunpack.c.h.b16 %v2882
        %v2942 = vunpack.c.l.b16 %v2883
        %v2943 = vunpack.c.h.b16 %v2883
        %v2944 = vpack.c.b16 %v2914, %v2912
        %v2945 = vpack.c.b16 %v2915, %v2913
        %v2946 = vpack.c.b16 %v2918, %v2916
        %v2947 = vpack.c.b16 %v2919, %v2917
        %v2948 = vpack.c.b16 %v2922, %v2920
        %v2949 = vpack.c.b16 %v2923, %v2921
        %v2950 = vpack.c.b16 %v2926, %v2924
        %v2951 = vpack.c.b16 %v2927, %v2925
        %v2952 = vpack.c.b16 %v2930, %v2928
        %v2953 = vpack.c.b16 %v2931, %v2929
        %v2954 = vpack.c.b16 %v2934, %v2932
        %v2955 = vpack.c.b16 %v2935, %v2933
        %v2956 = vpack.c.b16 %v2938, %v2936
        %v2957 = vpack.c.b16 %v2939, %v2937
        %v2958 = vpack.c.b16 %v2942, %v2940
        %v2959 = vpack.c.b16 %v2943, %v2941
        %2976 = vmatprep.subr.bf16.mxu0 %v2959
        %2977 = vmatpush1.bf16.msra.mxu0 %v2958
        %2978 = vmatprep.subr.bf16.mxu0 %v2957
        %2979 = vmatpush1.bf16.msra.mxu0 %v2956
        %2980 = vmatprep.subr.bf16.mxu0 %v2955
        %2981 = vmatpush1.bf16.msra.mxu0 %v2954
        %2982 = vmatprep.subr.bf16.mxu0 %v2953
        %2983 = vmatpush1.bf16.msra.mxu0 %v2952
        %2984 = vmatprep.subr.bf16.mxu0 %v2951
        %2985 = vmatpush1.bf16.msra.mxu0 %v2950
        %2986 = vmatprep.subr.bf16.mxu0 %v2949
        %2987 = vmatpush1.bf16.msra.mxu0 %v2948
        %2988 = vmatprep.subr.bf16.mxu0 %v2947
        %2989 = vmatpush1.bf16.msra.mxu0 %v2946
        %2990 = vmatprep.subr.bf16.mxu0 %v2945
        %2991 = vmatpush1.bf16.msra.mxu0 %v2944
        %2992 = vmatprep.subr.bf16.mxu0 0
        %2993 = vmatpush2.bf16.msra.mxu0 0
        %2994 = vmatprep.subr.bf16.mxu0 0
        %2995 = vmatpush2.bf16.msra.mxu0 0
        %2996 = vmatprep.subr.bf16.mxu0 0
        %2997 = vmatpush2.bf16.msra.mxu0 0
        %2998 = vmatprep.subr.bf16.mxu0 0
        %2999 = vmatpush2.bf16.msra.mxu0 0
        %3000 = vmatprep.subr.bf16.mxu0 0
        %3001 = vmatpush2.bf16.msra.mxu0 0
        %3002 = vmatprep.subr.bf16.mxu0 0
        %3003 = vmatpush2.bf16.msra.mxu0 0
        %3004 = vmatprep.subr.bf16.mxu0 0
        %3005 = vmatpush2.bf16.msra.mxu0 0
        %3006 = vmatprep.subr.bf16.mxu0 0
        %3007 = vmatpush2.bf16.msra.mxu0 0
        %3008 = vmatprep.mubr.bf16.mxu0 0
        %3009 = vmatmul.mubr.bf16.gmra.mxu0 %v1081
        %v3010 = vpop.f32.mrf.mxu0
        %v3011 = vadd.f32 %v2889, %v3010
        %v3012 = vpop.f32.mrf.mxu0
        %v3013 = vadd.f32 %v2893, %v3012
        %v3014 = vpop.f32.mrf.mxu0
        %v3015 = vpop.f32.mrf.mxu0
        %3016 = vdwg.mxu0
        %v3017 = vmax.f32 %v3011, %v3013
        %3018 = vmax.xlane.f32.xlu0 %v3017
        %v3019 = vpop.xlane.xlu0 %3018
        %v3020 = vsub.f32 %v3011, %v3019
        %v3021 = vsub.f32 %v3013, %v3019
        %v3022 = vmul.f32 %v3020, 1.442695
        %v3023 = vpow.pop %v3022
        %v3024 = vmul.f32 %v3021, 1.442695
        %v3025 = vpow.pop %v3024
        %v3026 = vadd.f32 %v3023, %v3025
        %3027 = vadd.xlane.f32.xlu0 %v3026
        %v3028 = vpop.xlane.xlu0 %3027
        %v3029 = vlog2.pop %v3028
        %v3030 = vmul.f32 %v3029, 0.6931472
        %v3031 = vadd.f32 %v3019, %v3030
        %3032 = vset.pattern.permute.xlu0 10
        %3033 = vperm.xlu0 %3032, %v1084
        %v3034 = vpop.permute.xlu0 %3033
        %vm3035 = vcmp.eq.s32.totalorder %v1086, %v3034
        %vm3036 = vcmp.eq.s32.totalorder %v1087, %v3034
        %v3037 = vsel %vm3035, %v3011, 0.0
        %v3038 = vsel %vm3036, %v3013, 0.0
        %v3039 = vadd.f32 %v3037, %v3038
        %3040 = vadd.xlane.f32.xlu0 %v3039
        %v3041 = vpop.xlane.xlu0 %3040
        %v3042 = vsub.f32 %v3041, %v3031
        %v3043 = vmax.f32 %v3042, -11.512925
        %v3044 = vmin.f32 %v3043, -1.000005e-05
        %v3045 = vadd.f32 %v2867, %v3044
        %v3046 = vld [vmem:[%s528 + $0x58] sm:$0xff]
        %v3047 = vld [vmem:[%s528 + $0x158] sm:$0xff]
        %v3048 = vld [vmem:[%s528 + $0x258] sm:$0xff]
        %v3049 = vld [vmem:[%s528 + $0x358] sm:$0xff]
        %v3050 = vld [vmem:[%s528 + $0x458] sm:$0xff]
        %v3051 = vld [vmem:[%s528 + $0x558] sm:$0xff]
        %v3052 = vld [vmem:[%s528 + $0x658] sm:$0xff]
        %v3053 = vld [vmem:[%s528 + $0x758] sm:$0xff]
        %v3054 = vld [vmem:[%s528 + $0x858] sm:$0xff]
        %v3055 = vld [vmem:[%s528 + $0x958] sm:$0xff]
        %v3056 = vld [vmem:[%s528 + $0xa58] sm:$0xff]
        %v3057 = vld [vmem:[%s528 + $0xb58] sm:$0xff]
        %v3058 = vld [vmem:[%s528 + $0xc58] sm:$0xff]
        %v3059 = vld [vmem:[%s528 + $0xd58] sm:$0xff]
        %v3060 = vld [vmem:[%s528 + $0xe58] sm:$0xff]
        %v3061 = vld [vmem:[%s528 + $0xf58] sm:$0xff]
        %v3062 = vld [vmem:[%s537 + $0x16] sm:$0x3]
        %v3064 = vlaneseq
        %v3065 = vshrl.u32 %v3064, 7
        %v3066 = vsub.s32 0, %v3065
        %v3067 = vrot.slane %v3062, %v3066
        %v3068 = vlaneseq
        %v3069 = vshrl.u32 %v3068, 7
        %v3070 = vsub.s32 1, %v3069
        %v3071 = vrot.slane %v3062, %v3070
        %v3090 = vunpack.c.l.b16 %v3046
        %v3091 = vunpack.c.h.b16 %v3046
        %v3092 = vunpack.c.l.b16 %v3047
        %v3093 = vunpack.c.h.b16 %v3047
        %v3094 = vunpack.c.l.b16 %v3048
        %v3095 = vunpack.c.h.b16 %v3048
        %v3096 = vunpack.c.l.b16 %v3049
        %v3097 = vunpack.c.h.b16 %v3049
        %v3098 = vunpack.c.l.b16 %v3050
        %v3099 = vunpack.c.h.b16 %v3050
        %v3100 = vunpack.c.l.b16 %v3051
        %v3101 = vunpack.c.h.b16 %v3051
        %v3102 = vunpack.c.l.b16 %v3052
        %v3103 = vunpack.c.h.b16 %v3052
        %v3104 = vunpack.c.l.b16 %v3053
        %v3105 = vunpack.c.h.b16 %v3053
        %v3106 = vunpack.c.l.b16 %v3054
        %v3107 = vunpack.c.h.b16 %v3054
        %v3108 = vunpack.c.l.b16 %v3055
        %v3109 = vunpack.c.h.b16 %v3055
        %v3110 = vunpack.c.l.b16 %v3056
        %v3111 = vunpack.c.h.b16 %v3056
        %v3112 = vunpack.c.l.b16 %v3057
        %v3113 = vunpack.c.h.b16 %v3057
        %v3114 = vunpack.c.l.b16 %v3058
        %v3115 = vunpack.c.h.b16 %v3058
        %v3116 = vunpack.c.l.b16 %v3059
        %v3117 = vunpack.c.h.b16 %v3059
        %v3118 = vunpack.c.l.b16 %v3060
        %v3119 = vunpack.c.h.b16 %v3060
        %v3120 = vunpack.c.l.b16 %v3061
        %v3121 = vunpack.c.h.b16 %v3061
        %v3122 = vpack.c.b16 %v3092, %v3090
        %v3123 = vpack.c.b16 %v3093, %v3091
        %v3124 = vpack.c.b16 %v3096, %v3094
        %v3125 = vpack.c.b16 %v3097, %v3095
        %v3126 = vpack.c.b16 %v3100, %v3098
        %v3127 = vpack.c.b16 %v3101, %v3099
        %v3128 = vpack.c.b16 %v3104, %v3102
        %v3129 = vpack.c.b16 %v3105, %v3103
        %v3130 = vpack.c.b16 %v3108, %v3106
        %v3131 = vpack.c.b16 %v3109, %v3107
        %v3132 = vpack.c.b16 %v3112, %v3110
        %v3133 = vpack.c.b16 %v3113, %v3111
        %v3134 = vpack.c.b16 %v3116, %v3114
        %v3135 = vpack.c.b16 %v3117, %v3115
        %v3136 = vpack.c.b16 %v3120, %v3118
        %v3137 = vpack.c.b16 %v3121, %v3119
        %3154 = vmatprep.subr.bf16.mxu0 %v3137
        %3155 = vmatpush1.bf16.msra.mxu0 %v3136
        %3156 = vmatprep.subr.bf16.mxu0 %v3135
        %3157 = vmatpush1.bf16.msra.mxu0 %v3134
        %3158 = vmatprep.subr.bf16.mxu0 %v3133
        %3159 = vmatpush1.bf16.msra.mxu0 %v3132
        %3160 = vmatprep.subr.bf16.mxu0 %v3131
        %3161 = vmatpush1.bf16.msra.mxu0 %v3130
        %3162 = vmatprep.subr.bf16.mxu0 %v3129
        %3163 = vmatpush1.bf16.msra.mxu0 %v3128
        %3164 = vmatprep.subr.bf16.mxu0 %v3127
        %3165 = vmatpush1.bf16.msra.mxu0 %v3126
        %3166 = vmatprep.subr.bf16.mxu0 %v3125
        %3167 = vmatpush1.bf16.msra.mxu0 %v3124
        %3168 = vmatprep.subr.bf16.mxu0 %v3123
        %3169 = vmatpush1.bf16.msra.mxu0 %v3122
        %3170 = vmatprep.subr.bf16.mxu0 0
        %3171 = vmatpush2.bf16.msra.mxu0 0
        %3172 = vmatprep.subr.bf16.mxu0 0
        %3173 = vmatpush2.bf16.msra.mxu0 0
        %3174 = vmatprep.subr.bf16.mxu0 0
        %3175 = vmatpush2.bf16.msra.mxu0 0
        %3176 = vmatprep.subr.bf16.mxu0 0
        %3177 = vmatpush2.bf16.msra.mxu0 0
        %3178 = vmatprep.subr.bf16.mxu0 0
        %3179 = vmatpush2.bf16.msra.mxu0 0
        %3180 = vmatprep.subr.bf16.mxu0 0
        %3181 = vmatpush2.bf16.msra.mxu0 0
        %3182 = vmatprep.subr.bf16.mxu0 0
        %3183 = vmatpush2.bf16.msra.mxu0 0
        %3184 = vmatprep.subr.bf16.mxu0 0
        %3185 = vmatpush2.bf16.msra.mxu0 0
        %3186 = vmatprep.mubr.bf16.mxu0 0
        %3187 = vmatmul.mubr.bf16.gmra.mxu0 %v1081
        %v3188 = vpop.f32.mrf.mxu0
        %v3189 = vadd.f32 %v3067, %v3188
        %v3190 = vpop.f32.mrf.mxu0
        %v3191 = vadd.f32 %v3071, %v3190
        %v3192 = vpop.f32.mrf.mxu0
        %v3193 = vpop.f32.mrf.mxu0
        %3194 = vdwg.mxu0
        %v3195 = vmax.f32 %v3189, %v3191
        %3196 = vmax.xlane.f32.xlu0 %v3195
        %v3197 = vpop.xlane.xlu0 %3196
        %v3198 = vsub.f32 %v3189, %v3197
        %v3199 = vsub.f32 %v3191, %v3197
        %v3200 = vmul.f32 %v3198, 1.442695
        %v3201 = vpow.pop %v3200
        %v3202 = vmul.f32 %v3199, 1.442695
        %v3203 = vpow.pop %v3202
        %v3204 = vadd.f32 %v3201, %v3203
        %3205 = vadd.xlane.f32.xlu0 %v3204
        %v3206 = vpop.xlane.xlu0 %3205
        %v3207 = vlog2.pop %v3206
        %v3208 = vmul.f32 %v3207, 0.6931472
        %v3209 = vadd.f32 %v3197, %v3208
        %3210 = vset.pattern.permute.xlu0 11
        %3211 = vperm.xlu0 %3210, %v1084
        %v3212 = vpop.permute.xlu0 %3211
        %vm3213 = vcmp.eq.s32.totalorder %v1086, %v3212
        %vm3214 = vcmp.eq.s32.totalorder %v1087, %v3212
        %v3215 = vsel %vm3213, %v3189, 0.0
        %v3216 = vsel %vm3214, %v3191, 0.0
        %v3217 = vadd.f32 %v3215, %v3216
        %3218 = vadd.xlane.f32.xlu0 %v3217
        %v3219 = vpop.xlane.xlu0 %3218
        %v3220 = vsub.f32 %v3219, %v3209
        %v3221 = vmax.f32 %v3220, -11.512925
        %v3222 = vmin.f32 %v3221, -1.000005e-05
        %v3223 = vadd.f32 %v3045, %v3222
        %v3224 = vld [vmem:[%s528 + $0x60] sm:$0xff]
        %v3225 = vld [vmem:[%s528 + $0x160] sm:$0xff]
        %v3226 = vld [vmem:[%s528 + $0x260] sm:$0xff]
        %v3227 = vld [vmem:[%s528 + $0x360] sm:$0xff]
        %v3228 = vld [vmem:[%s528 + $0x460] sm:$0xff]
        %v3229 = vld [vmem:[%s528 + $0x560] sm:$0xff]
        %v3230 = vld [vmem:[%s528 + $0x660] sm:$0xff]
        %v3231 = vld [vmem:[%s528 + $0x760] sm:$0xff]
        %v3232 = vld [vmem:[%s528 + $0x860] sm:$0xff]
        %v3233 = vld [vmem:[%s528 + $0x960] sm:$0xff]
        %v3234 = vld [vmem:[%s528 + $0xa60] sm:$0xff]
        %v3235 = vld [vmem:[%s528 + $0xb60] sm:$0xff]
        %v3236 = vld [vmem:[%s528 + $0xc60] sm:$0xff]
        %v3237 = vld [vmem:[%s528 + $0xd60] sm:$0xff]
        %v3238 = vld [vmem:[%s528 + $0xe60] sm:$0xff]
        %v3239 = vld [vmem:[%s528 + $0xf60] sm:$0xff]
        %v3240 = vld [vmem:[%s537 + $0x18] sm:$0x3]
        %v3242 = vlaneseq
        %v3243 = vshrl.u32 %v3242, 7
        %v3244 = vsub.s32 0, %v3243
        %v3245 = vrot.slane %v3240, %v3244
        %v3246 = vlaneseq
        %v3247 = vshrl.u32 %v3246, 7
        %v3248 = vsub.s32 1, %v3247
        %v3249 = vrot.slane %v3240, %v3248
        %v3268 = vunpack.c.l.b16 %v3224
        %v3269 = vunpack.c.h.b16 %v3224
        %v3270 = vunpack.c.l.b16 %v3225
        %v3271 = vunpack.c.h.b16 %v3225
        %v3272 = vunpack.c.l.b16 %v3226
        %v3273 = vunpack.c.h.b16 %v3226
        %v3274 = vunpack.c.l.b16 %v3227
        %v3275 = vunpack.c.h.b16 %v3227
        %v3276 = vunpack.c.l.b16 %v3228
        %v3277 = vunpack.c.h.b16 %v3228
        %v3278 = vunpack.c.l.b16 %v3229
        %v3279 = vunpack.c.h.b16 %v3229
        %v3280 = vunpack.c.l.b16 %v3230
        %v3281 = vunpack.c.h.b16 %v3230
        %v3282 = vunpack.c.l.b16 %v3231
        %v3283 = vunpack.c.h.b16 %v3231
        %v3284 = vunpack.c.l.b16 %v3232
        %v3285 = vunpack.c.h.b16 %v3232
        %v3286 = vunpack.c.l.b16 %v3233
        %v3287 = vunpack.c.h.b16 %v3233
        %v3288 = vunpack.c.l.b16 %v3234
        %v3289 = vunpack.c.h.b16 %v3234
        %v3290 = vunpack.c.l.b16 %v3235
        %v3291 = vunpack.c.h.b16 %v3235
        %v3292 = vunpack.c.l.b16 %v3236
        %v3293 = vunpack.c.h.b16 %v3236
        %v3294 = vunpack.c.l.b16 %v3237
        %v3295 = vunpack.c.h.b16 %v3237
        %v3296 = vunpack.c.l.b16 %v3238
        %v3297 = vunpack.c.h.b16 %v3238
        %v3298 = vunpack.c.l.b16 %v3239
        %v3299 = vunpack.c.h.b16 %v3239
        %v3300 = vpack.c.b16 %v3270, %v3268
        %v3301 = vpack.c.b16 %v3271, %v3269
        %v3302 = vpack.c.b16 %v3274, %v3272
        %v3303 = vpack.c.b16 %v3275, %v3273
        %v3304 = vpack.c.b16 %v3278, %v3276
        %v3305 = vpack.c.b16 %v3279, %v3277
        %v3306 = vpack.c.b16 %v3282, %v3280
        %v3307 = vpack.c.b16 %v3283, %v3281
        %v3308 = vpack.c.b16 %v3286, %v3284
        %v3309 = vpack.c.b16 %v3287, %v3285
        %v3310 = vpack.c.b16 %v3290, %v3288
        %v3311 = vpack.c.b16 %v3291, %v3289
        %v3312 = vpack.c.b16 %v3294, %v3292
        %v3313 = vpack.c.b16 %v3295, %v3293
        %v3314 = vpack.c.b16 %v3298, %v3296
        %v3315 = vpack.c.b16 %v3299, %v3297
        %3332 = vmatprep.subr.bf16.mxu0 %v3315
        %3333 = vmatpush1.bf16.msra.mxu0 %v3314
        %3334 = vmatprep.subr.bf16.mxu0 %v3313
        %3335 = vmatpush1.bf16.msra.mxu0 %v3312
        %3336 = vmatprep.subr.bf16.mxu0 %v3311
        %3337 = vmatpush1.bf16.msra.mxu0 %v3310
        %3338 = vmatprep.subr.bf16.mxu0 %v3309
        %3339 = vmatpush1.bf16.msra.mxu0 %v3308
        %3340 = vmatprep.subr.bf16.mxu0 %v3307
        %3341 = vmatpush1.bf16.msra.mxu0 %v3306
        %3342 = vmatprep.subr.bf16.mxu0 %v3305
        %3343 = vmatpush1.bf16.msra.mxu0 %v3304
        %3344 = vmatprep.subr.bf16.mxu0 %v3303
        %3345 = vmatpush1.bf16.msra.mxu0 %v3302
        %3346 = vmatprep.subr.bf16.mxu0 %v3301
        %3347 = vmatpush1.bf16.msra.mxu0 %v3300
        %3348 = vmatprep.subr.bf16.mxu0 0
        %3349 = vmatpush2.bf16.msra.mxu0 0
        %3350 = vmatprep.subr.bf16.mxu0 0
        %3351 = vmatpush2.bf16.msra.mxu0 0
        %3352 = vmatprep.subr.bf16.mxu0 0
        %3353 = vmatpush2.bf16.msra.mxu0 0
        %3354 = vmatprep.subr.bf16.mxu0 0
        %3355 = vmatpush2.bf16.msra.mxu0 0
        %3356 = vmatprep.subr.bf16.mxu0 0
        %3357 = vmatpush2.bf16.msra.mxu0 0
        %3358 = vmatprep.subr.bf16.mxu0 0
        %3359 = vmatpush2.bf16.msra.mxu0 0
        %3360 = vmatprep.subr.bf16.mxu0 0
        %3361 = vmatpush2.bf16.msra.mxu0 0
        %3362 = vmatprep.subr.bf16.mxu0 0
        %3363 = vmatpush2.bf16.msra.mxu0 0
        %3364 = vmatprep.mubr.bf16.mxu0 0
        %3365 = vmatmul.mubr.bf16.gmra.mxu0 %v1081
        %v3366 = vpop.f32.mrf.mxu0
        %v3367 = vadd.f32 %v3245, %v3366
        %v3368 = vpop.f32.mrf.mxu0
        %v3369 = vadd.f32 %v3249, %v3368
        %v3370 = vpop.f32.mrf.mxu0
        %v3371 = vpop.f32.mrf.mxu0
        %3372 = vdwg.mxu0
        %v3373 = vmax.f32 %v3367, %v3369
        %3374 = vmax.xlane.f32.xlu0 %v3373
        %v3375 = vpop.xlane.xlu0 %3374
        %v3376 = vsub.f32 %v3367, %v3375
        %v3377 = vsub.f32 %v3369, %v3375
        %v3378 = vmul.f32 %v3376, 1.442695
        %v3379 = vpow.pop %v3378
        %v3380 = vmul.f32 %v3377, 1.442695
        %v3381 = vpow.pop %v3380
        %v3382 = vadd.f32 %v3379, %v3381
        %3383 = vadd.xlane.f32.xlu0 %v3382
        %v3384 = vpop.xlane.xlu0 %3383
        %v3385 = vlog2.pop %v3384
        %v3386 = vmul.f32 %v3385, 0.6931472
        %v3387 = vadd.f32 %v3375, %v3386
        %3388 = vset.pattern.permute.xlu0 12
        %3389 = vperm.xlu0 %3388, %v1084
        %v3390 = vpop.permute.xlu0 %3389
        %vm3391 = vcmp.eq.s32.totalorder %v1086, %v3390
        %vm3392 = vcmp.eq.s32.totalorder %v1087, %v3390
        %v3393 = vsel %vm3391, %v3367, 0.0
        %v3394 = vsel %vm3392, %v3369, 0.0
        %v3395 = vadd.f32 %v3393, %v3394
        %3396 = vadd.xlane.f32.xlu0 %v3395
        %v3397 = vpop.xlane.xlu0 %3396
        %v3398 = vsub.f32 %v3397, %v3387
        %v3399 = vmax.f32 %v3398, -11.512925
        %v3400 = vmin.f32 %v3399, -1.000005e-05
        %v3401 = vadd.f32 %v3223, %v3400
        %v3402 = vld [vmem:[%s528 + $0x68] sm:$0xff]
        %v3403 = vld [vmem:[%s528 + $0x168] sm:$0xff]
        %v3404 = vld [vmem:[%s528 + $0x268] sm:$0xff]
        %v3405 = vld [vmem:[%s528 + $0x368] sm:$0xff]
        %v3406 = vld [vmem:[%s528 + $0x468] sm:$0xff]
        %v3407 = vld [vmem:[%s528 + $0x568] sm:$0xff]
        %v3408 = vld [vmem:[%s528 + $0x668] sm:$0xff]
        %v3409 = vld [vmem:[%s528 + $0x768] sm:$0xff]
        %v3410 = vld [vmem:[%s528 + $0x868] sm:$0xff]
        %v3411 = vld [vmem:[%s528 + $0x968] sm:$0xff]
        %v3412 = vld [vmem:[%s528 + $0xa68] sm:$0xff]
        %v3413 = vld [vmem:[%s528 + $0xb68] sm:$0xff]
        %v3414 = vld [vmem:[%s528 + $0xc68] sm:$0xff]
        %v3415 = vld [vmem:[%s528 + $0xd68] sm:$0xff]
        %v3416 = vld [vmem:[%s528 + $0xe68] sm:$0xff]
        %v3417 = vld [vmem:[%s528 + $0xf68] sm:$0xff]
        %v3418 = vld [vmem:[%s537 + $0x1a] sm:$0x3]
        %v3420 = vlaneseq
        %v3421 = vshrl.u32 %v3420, 7
        %v3422 = vsub.s32 0, %v3421
        %v3423 = vrot.slane %v3418, %v3422
        %v3424 = vlaneseq
        %v3425 = vshrl.u32 %v3424, 7
        %v3426 = vsub.s32 1, %v3425
        %v3427 = vrot.slane %v3418, %v3426
        %v3446 = vunpack.c.l.b16 %v3402
        %v3447 = vunpack.c.h.b16 %v3402
        %v3448 = vunpack.c.l.b16 %v3403
        %v3449 = vunpack.c.h.b16 %v3403
        %v3450 = vunpack.c.l.b16 %v3404
        %v3451 = vunpack.c.h.b16 %v3404
        %v3452 = vunpack.c.l.b16 %v3405
        %v3453 = vunpack.c.h.b16 %v3405
        %v3454 = vunpack.c.l.b16 %v3406
        %v3455 = vunpack.c.h.b16 %v3406
        %v3456 = vunpack.c.l.b16 %v3407
        %v3457 = vunpack.c.h.b16 %v3407
        %v3458 = vunpack.c.l.b16 %v3408
        %v3459 = vunpack.c.h.b16 %v3408
        %v3460 = vunpack.c.l.b16 %v3409
        %v3461 = vunpack.c.h.b16 %v3409
        %v3462 = vunpack.c.l.b16 %v3410
        %v3463 = vunpack.c.h.b16 %v3410
        %v3464 = vunpack.c.l.b16 %v3411
        %v3465 = vunpack.c.h.b16 %v3411
        %v3466 = vunpack.c.l.b16 %v3412
        %v3467 = vunpack.c.h.b16 %v3412
        %v3468 = vunpack.c.l.b16 %v3413
        %v3469 = vunpack.c.h.b16 %v3413
        %v3470 = vunpack.c.l.b16 %v3414
        %v3471 = vunpack.c.h.b16 %v3414
        %v3472 = vunpack.c.l.b16 %v3415
        %v3473 = vunpack.c.h.b16 %v3415
        %v3474 = vunpack.c.l.b16 %v3416
        %v3475 = vunpack.c.h.b16 %v3416
        %v3476 = vunpack.c.l.b16 %v3417
        %v3477 = vunpack.c.h.b16 %v3417
        %v3478 = vpack.c.b16 %v3448, %v3446
        %v3479 = vpack.c.b16 %v3449, %v3447
        %v3480 = vpack.c.b16 %v3452, %v3450
        %v3481 = vpack.c.b16 %v3453, %v3451
        %v3482 = vpack.c.b16 %v3456, %v3454
        %v3483 = vpack.c.b16 %v3457, %v3455
        %v3484 = vpack.c.b16 %v3460, %v3458
        %v3485 = vpack.c.b16 %v3461, %v3459
        %v3486 = vpack.c.b16 %v3464, %v3462
        %v3487 = vpack.c.b16 %v3465, %v3463
        %v3488 = vpack.c.b16 %v3468, %v3466
        %v3489 = vpack.c.b16 %v3469, %v3467
        %v3490 = vpack.c.b16 %v3472, %v3470
        %v3491 = vpack.c.b16 %v3473, %v3471
        %v3492 = vpack.c.b16 %v3476, %v3474
        %v3493 = vpack.c.b16 %v3477, %v3475
        %3510 = vmatprep.subr.bf16.mxu0 %v3493
        %3511 = vmatpush1.bf16.msra.mxu0 %v3492
        %3512 = vmatprep.subr.bf16.mxu0 %v3491
        %3513 = vmatpush1.bf16.msra.mxu0 %v3490
        %3514 = vmatprep.subr.bf16.mxu0 %v3489
        %3515 = vmatpush1.bf16.msra.mxu0 %v3488
        %3516 = vmatprep.subr.bf16.mxu0 %v3487
        %3517 = vmatpush1.bf16.msra.mxu0 %v3486
        %3518 = vmatprep.subr.bf16.mxu0 %v3485
        %3519 = vmatpush1.bf16.msra.mxu0 %v3484
        %3520 = vmatprep.subr.bf16.mxu0 %v3483
        %3521 = vmatpush1.bf16.msra.mxu0 %v3482
        %3522 = vmatprep.subr.bf16.mxu0 %v3481
        %3523 = vmatpush1.bf16.msra.mxu0 %v3480
        %3524 = vmatprep.subr.bf16.mxu0 %v3479
        %3525 = vmatpush1.bf16.msra.mxu0 %v3478
        %3526 = vmatprep.subr.bf16.mxu0 0
        %3527 = vmatpush2.bf16.msra.mxu0 0
        %3528 = vmatprep.subr.bf16.mxu0 0
        %3529 = vmatpush2.bf16.msra.mxu0 0
        %3530 = vmatprep.subr.bf16.mxu0 0
        %3531 = vmatpush2.bf16.msra.mxu0 0
        %3532 = vmatprep.subr.bf16.mxu0 0
        %3533 = vmatpush2.bf16.msra.mxu0 0
        %3534 = vmatprep.subr.bf16.mxu0 0
        %3535 = vmatpush2.bf16.msra.mxu0 0
        %3536 = vmatprep.subr.bf16.mxu0 0
        %3537 = vmatpush2.bf16.msra.mxu0 0
        %3538 = vmatprep.subr.bf16.mxu0 0
        %3539 = vmatpush2.bf16.msra.mxu0 0
        %3540 = vmatprep.subr.bf16.mxu0 0
        %3541 = vmatpush2.bf16.msra.mxu0 0
        %3542 = vmatprep.mubr.bf16.mxu0 0
        %3543 = vmatmul.mubr.bf16.gmra.mxu0 %v1081
        %v3544 = vpop.f32.mrf.mxu0
        %v3545 = vadd.f32 %v3423, %v3544
        %v3546 = vpop.f32.mrf.mxu0
        %v3547 = vadd.f32 %v3427, %v3546
        %v3548 = vpop.f32.mrf.mxu0
        %v3549 = vpop.f32.mrf.mxu0
        %3550 = vdwg.mxu0
        %v3551 = vmax.f32 %v3545, %v3547
        %3552 = vmax.xlane.f32.xlu0 %v3551
        %v3553 = vpop.xlane.xlu0 %3552
        %v3554 = vsub.f32 %v3545, %v3553
        %v3555 = vsub.f32 %v3547, %v3553
        %v3556 = vmul.f32 %v3554, 1.442695
        %v3557 = vpow.pop %v3556
        %v3558 = vmul.f32 %v3555, 1.442695
        %v3559 = vpow.pop %v3558
        %v3560 = vadd.f32 %v3557, %v3559
        %3561 = vadd.xlane.f32.xlu0 %v3560
        %v3562 = vpop.xlane.xlu0 %3561
        %v3563 = vlog2.pop %v3562
        %v3564 = vmul.f32 %v3563, 0.6931472
        %v3565 = vadd.f32 %v3553, %v3564
        %3566 = vset.pattern.permute.xlu0 13
        %3567 = vperm.xlu0 %3566, %v1084
        %v3568 = vpop.permute.xlu0 %3567
        %vm3569 = vcmp.eq.s32.totalorder %v1086, %v3568
        %vm3570 = vcmp.eq.s32.totalorder %v1087, %v3568
        %v3571 = vsel %vm3569, %v3545, 0.0
        %v3572 = vsel %vm3570, %v3547, 0.0
        %v3573 = vadd.f32 %v3571, %v3572
        %3574 = vadd.xlane.f32.xlu0 %v3573
        %v3575 = vpop.xlane.xlu0 %3574
        %v3576 = vsub.f32 %v3575, %v3565
        %v3577 = vmax.f32 %v3576, -11.512925
        %v3578 = vmin.f32 %v3577, -1.000005e-05
        %v3579 = vadd.f32 %v3401, %v3578
        %v3580 = vld [vmem:[%s528 + $0x70] sm:$0xff]
        %v3581 = vld [vmem:[%s528 + $0x170] sm:$0xff]
        %v3582 = vld [vmem:[%s528 + $0x270] sm:$0xff]
        %v3583 = vld [vmem:[%s528 + $0x370] sm:$0xff]
        %v3584 = vld [vmem:[%s528 + $0x470] sm:$0xff]
        %v3585 = vld [vmem:[%s528 + $0x570] sm:$0xff]
        %v3586 = vld [vmem:[%s528 + $0x670] sm:$0xff]
        %v3587 = vld [vmem:[%s528 + $0x770] sm:$0xff]
        %v3588 = vld [vmem:[%s528 + $0x870] sm:$0xff]
        %v3589 = vld [vmem:[%s528 + $0x970] sm:$0xff]
        %v3590 = vld [vmem:[%s528 + $0xa70] sm:$0xff]
        %v3591 = vld [vmem:[%s528 + $0xb70] sm:$0xff]
        %v3592 = vld [vmem:[%s528 + $0xc70] sm:$0xff]
        %v3593 = vld [vmem:[%s528 + $0xd70] sm:$0xff]
        %v3594 = vld [vmem:[%s528 + $0xe70] sm:$0xff]
        %v3595 = vld [vmem:[%s528 + $0xf70] sm:$0xff]
        %v3596 = vld [vmem:[%s537 + $0x1c] sm:$0x3]
        %v3598 = vlaneseq
        %v3599 = vshrl.u32 %v3598, 7
        %v3600 = vsub.s32 0, %v3599
        %v3601 = vrot.slane %v3596, %v3600
        %v3602 = vlaneseq
        %v3603 = vshrl.u32 %v3602, 7
        %v3604 = vsub.s32 1, %v3603
        %v3605 = vrot.slane %v3596, %v3604
        %v3624 = vunpack.c.l.b16 %v3580
        %v3625 = vunpack.c.h.b16 %v3580
        %v3626 = vunpack.c.l.b16 %v3581
        %v3627 = vunpack.c.h.b16 %v3581
        %v3628 = vunpack.c.l.b16 %v3582
        %v3629 = vunpack.c.h.b16 %v3582
        %v3630 = vunpack.c.l.b16 %v3583
        %v3631 = vunpack.c.h.b16 %v3583
        %v3632 = vunpack.c.l.b16 %v3584
        %v3633 = vunpack.c.h.b16 %v3584
        %v3634 = vunpack.c.l.b16 %v3585
        %v3635 = vunpack.c.h.b16 %v3585
        %v3636 = vunpack.c.l.b16 %v3586
        %v3637 = vunpack.c.h.b16 %v3586
        %v3638 = vunpack.c.l.b16 %v3587
        %v3639 = vunpack.c.h.b16 %v3587
        %v3640 = vunpack.c.l.b16 %v3588
        %v3641 = vunpack.c.h.b16 %v3588
        %v3642 = vunpack.c.l.b16 %v3589
        %v3643 = vunpack.c.h.b16 %v3589
        %v3644 = vunpack.c.l.b16 %v3590
        %v3645 = vunpack.c.h.b16 %v3590
        %v3646 = vunpack.c.l.b16 %v3591
        %v3647 = vunpack.c.h.b16 %v3591
        %v3648 = vunpack.c.l.b16 %v3592
        %v3649 = vunpack.c.h.b16 %v3592
        %v3650 = vunpack.c.l.b16 %v3593
        %v3651 = vunpack.c.h.b16 %v3593
        %v3652 = vunpack.c.l.b16 %v3594
        %v3653 = vunpack.c.h.b16 %v3594
        %v3654 = vunpack.c.l.b16 %v3595
        %v3655 = vunpack.c.h.b16 %v3595
        %v3656 = vpack.c.b16 %v3626, %v3624
        %v3657 = vpack.c.b16 %v3627, %v3625
        %v3658 = vpack.c.b16 %v3630, %v3628
        %v3659 = vpack.c.b16 %v3631, %v3629
        %v3660 = vpack.c.b16 %v3634, %v3632
        %v3661 = vpack.c.b16 %v3635, %v3633
        %v3662 = vpack.c.b16 %v3638, %v3636
        %v3663 = vpack.c.b16 %v3639, %v3637
        %v3664 = vpack.c.b16 %v3642, %v3640
        %v3665 = vpack.c.b16 %v3643, %v3641
        %v3666 = vpack.c.b16 %v3646, %v3644
        %v3667 = vpack.c.b16 %v3647, %v3645
        %v3668 = vpack.c.b16 %v3650, %v3648
        %v3669 = vpack.c.b16 %v3651, %v3649
        %v3670 = vpack.c.b16 %v3654, %v3652
        %v3671 = vpack.c.b16 %v3655, %v3653
        %3688 = vmatprep.subr.bf16.mxu0 %v3671
        %3689 = vmatpush1.bf16.msra.mxu0 %v3670
        %3690 = vmatprep.subr.bf16.mxu0 %v3669
        %3691 = vmatpush1.bf16.msra.mxu0 %v3668
        %3692 = vmatprep.subr.bf16.mxu0 %v3667
        %3693 = vmatpush1.bf16.msra.mxu0 %v3666
        %3694 = vmatprep.subr.bf16.mxu0 %v3665
        %3695 = vmatpush1.bf16.msra.mxu0 %v3664
        %3696 = vmatprep.subr.bf16.mxu0 %v3663
        %3697 = vmatpush1.bf16.msra.mxu0 %v3662
        %3698 = vmatprep.subr.bf16.mxu0 %v3661
        %3699 = vmatpush1.bf16.msra.mxu0 %v3660
        %3700 = vmatprep.subr.bf16.mxu0 %v3659
        %3701 = vmatpush1.bf16.msra.mxu0 %v3658
        %3702 = vmatprep.subr.bf16.mxu0 %v3657
        %3703 = vmatpush1.bf16.msra.mxu0 %v3656
        %3704 = vmatprep.subr.bf16.mxu0 0
        %3705 = vmatpush2.bf16.msra.mxu0 0
        %3706 = vmatprep.subr.bf16.mxu0 0
        %3707 = vmatpush2.bf16.msra.mxu0 0
        %3708 = vmatprep.subr.bf16.mxu0 0
        %3709 = vmatpush2.bf16.msra.mxu0 0
        %3710 = vmatprep.subr.bf16.mxu0 0
        %3711 = vmatpush2.bf16.msra.mxu0 0
        %3712 = vmatprep.subr.bf16.mxu0 0
        %3713 = vmatpush2.bf16.msra.mxu0 0
        %3714 = vmatprep.subr.bf16.mxu0 0
        %3715 = vmatpush2.bf16.msra.mxu0 0
        %3716 = vmatprep.subr.bf16.mxu0 0
        %3717 = vmatpush2.bf16.msra.mxu0 0
        %3718 = vmatprep.subr.bf16.mxu0 0
        %3719 = vmatpush2.bf16.msra.mxu0 0
        %3720 = vmatprep.mubr.bf16.mxu0 0
        %3721 = vmatmul.mubr.bf16.gmra.mxu0 %v1081
        %v3722 = vpop.f32.mrf.mxu0
        %v3723 = vadd.f32 %v3601, %v3722
        %v3724 = vpop.f32.mrf.mxu0
        %v3725 = vadd.f32 %v3605, %v3724
        %v3726 = vpop.f32.mrf.mxu0
        %v3727 = vpop.f32.mrf.mxu0
        %3728 = vdwg.mxu0
        %v3729 = vmax.f32 %v3723, %v3725
        %3730 = vmax.xlane.f32.xlu0 %v3729
        %v3731 = vpop.xlane.xlu0 %3730
        %v3732 = vsub.f32 %v3723, %v3731
        %v3733 = vsub.f32 %v3725, %v3731
        %v3734 = vmul.f32 %v3732, 1.442695
        %v3735 = vpow.pop %v3734
        %v3736 = vmul.f32 %v3733, 1.442695
        %v3737 = vpow.pop %v3736
        %v3738 = vadd.f32 %v3735, %v3737
        %3739 = vadd.xlane.f32.xlu0 %v3738
        %v3740 = vpop.xlane.xlu0 %3739
        %v3741 = vlog2.pop %v3740
        %v3742 = vmul.f32 %v3741, 0.6931472
        %v3743 = vadd.f32 %v3731, %v3742
        %3744 = vset.pattern.permute.xlu0 14
        %3745 = vperm.xlu0 %3744, %v1084
        %v3746 = vpop.permute.xlu0 %3745
        %vm3747 = vcmp.eq.s32.totalorder %v1086, %v3746
        %vm3748 = vcmp.eq.s32.totalorder %v1087, %v3746
        %v3749 = vsel %vm3747, %v3723, 0.0
        %v3750 = vsel %vm3748, %v3725, 0.0
        %v3751 = vadd.f32 %v3749, %v3750
        %3752 = vadd.xlane.f32.xlu0 %v3751
        %v3753 = vpop.xlane.xlu0 %3752
        %v3754 = vsub.f32 %v3753, %v3743
        %v3755 = vmax.f32 %v3754, -11.512925
        %v3756 = vmin.f32 %v3755, -1.000005e-05
        %v3757 = vadd.f32 %v3579, %v3756
        %v3758 = vld [vmem:[%s528 + $0x78] sm:$0xff]
        %v3759 = vld [vmem:[%s528 + $0x178] sm:$0xff]
        %v3760 = vld [vmem:[%s528 + $0x278] sm:$0xff]
        %v3761 = vld [vmem:[%s528 + $0x378] sm:$0xff]
        %v3762 = vld [vmem:[%s528 + $0x478] sm:$0xff]
        %v3763 = vld [vmem:[%s528 + $0x578] sm:$0xff]
        %v3764 = vld [vmem:[%s528 + $0x678] sm:$0xff]
        %v3765 = vld [vmem:[%s528 + $0x778] sm:$0xff]
        %v3766 = vld [vmem:[%s528 + $0x878] sm:$0xff]
        %v3767 = vld [vmem:[%s528 + $0x978] sm:$0xff]
        %v3768 = vld [vmem:[%s528 + $0xa78] sm:$0xff]
        %v3769 = vld [vmem:[%s528 + $0xb78] sm:$0xff]
        %v3770 = vld [vmem:[%s528 + $0xc78] sm:$0xff]
        %v3771 = vld [vmem:[%s528 + $0xd78] sm:$0xff]
        %v3772 = vld [vmem:[%s528 + $0xe78] sm:$0xff]
        %v3773 = vld [vmem:[%s528 + $0xf78] sm:$0xff]
        %v3774 = vld [vmem:[%s537 + $0x1e] sm:$0x3]
        %v3776 = vlaneseq
        %v3777 = vshrl.u32 %v3776, 7
        %v3778 = vsub.s32 0, %v3777
        %v3779 = vrot.slane %v3774, %v3778
        %v3780 = vlaneseq
        %v3781 = vshrl.u32 %v3780, 7
        %v3782 = vsub.s32 1, %v3781
        %v3783 = vrot.slane %v3774, %v3782
        %v3802 = vunpack.c.l.b16 %v3758
        %v3803 = vunpack.c.h.b16 %v3758
        %v3804 = vunpack.c.l.b16 %v3759
        %v3805 = vunpack.c.h.b16 %v3759
        %v3806 = vunpack.c.l.b16 %v3760
        %v3807 = vunpack.c.h.b16 %v3760
        %v3808 = vunpack.c.l.b16 %v3761
        %v3809 = vunpack.c.h.b16 %v3761
        %v3810 = vunpack.c.l.b16 %v3762
        %v3811 = vunpack.c.h.b16 %v3762
        %v3812 = vunpack.c.l.b16 %v3763
        %v3813 = vunpack.c.h.b16 %v3763
        %v3814 = vunpack.c.l.b16 %v3764
        %v3815 = vunpack.c.h.b16 %v3764
        %v3816 = vunpack.c.l.b16 %v3765
        %v3817 = vunpack.c.h.b16 %v3765
        %v3818 = vunpack.c.l.b16 %v3766
        %v3819 = vunpack.c.h.b16 %v3766
        %v3820 = vunpack.c.l.b16 %v3767
        %v3821 = vunpack.c.h.b16 %v3767
        %v3822 = vunpack.c.l.b16 %v3768
        %v3823 = vunpack.c.h.b16 %v3768
        %v3824 = vunpack.c.l.b16 %v3769
        %v3825 = vunpack.c.h.b16 %v3769
        %v3826 = vunpack.c.l.b16 %v3770
        %v3827 = vunpack.c.h.b16 %v3770
        %v3828 = vunpack.c.l.b16 %v3771
        %v3829 = vunpack.c.h.b16 %v3771
        %v3830 = vunpack.c.l.b16 %v3772
        %v3831 = vunpack.c.h.b16 %v3772
        %v3832 = vunpack.c.l.b16 %v3773
        %v3833 = vunpack.c.h.b16 %v3773
        %v3834 = vpack.c.b16 %v3804, %v3802
        %v3835 = vpack.c.b16 %v3805, %v3803
        %v3836 = vpack.c.b16 %v3808, %v3806
        %v3837 = vpack.c.b16 %v3809, %v3807
        %v3838 = vpack.c.b16 %v3812, %v3810
        %v3839 = vpack.c.b16 %v3813, %v3811
        %v3840 = vpack.c.b16 %v3816, %v3814
        %v3841 = vpack.c.b16 %v3817, %v3815
        %v3842 = vpack.c.b16 %v3820, %v3818
        %v3843 = vpack.c.b16 %v3821, %v3819
        %v3844 = vpack.c.b16 %v3824, %v3822
        %v3845 = vpack.c.b16 %v3825, %v3823
        %v3846 = vpack.c.b16 %v3828, %v3826
        %v3847 = vpack.c.b16 %v3829, %v3827
        %v3848 = vpack.c.b16 %v3832, %v3830
        %v3849 = vpack.c.b16 %v3833, %v3831
        %3866 = vmatprep.subr.bf16.mxu0 %v3849
        %3867 = vmatpush1.bf16.msra.mxu0 %v3848
        %3868 = vmatprep.subr.bf16.mxu0 %v3847
        %3869 = vmatpush1.bf16.msra.mxu0 %v3846
        %3870 = vmatprep.subr.bf16.mxu0 %v3845
        %3871 = vmatpush1.bf16.msra.mxu0 %v3844
        %3872 = vmatprep.subr.bf16.mxu0 %v3843
        %3873 = vmatpush1.bf16.msra.mxu0 %v3842
        %3874 = vmatprep.subr.bf16.mxu0 %v3841
        %3875 = vmatpush1.bf16.msra.mxu0 %v3840
        %3876 = vmatprep.subr.bf16.mxu0 %v3839
        %3877 = vmatpush1.bf16.msra.mxu0 %v3838
        %3878 = vmatprep.subr.bf16.mxu0 %v3837
        %3879 = vmatpush1.bf16.msra.mxu0 %v3836
        %3880 = vmatprep.subr.bf16.mxu0 %v3835
        %3881 = vmatpush1.bf16.msra.mxu0 %v3834
        %3882 = vmatprep.subr.bf16.mxu0 0
        %3883 = vmatpush2.bf16.msra.mxu0 0
        %3884 = vmatprep.subr.bf16.mxu0 0
        %3885 = vmatpush2.bf16.msra.mxu0 0
        %3886 = vmatprep.subr.bf16.mxu0 0
        %3887 = vmatpush2.bf16.msra.mxu0 0
        %3888 = vmatprep.subr.bf16.mxu0 0
        %3889 = vmatpush2.bf16.msra.mxu0 0
        %3890 = vmatprep.subr.bf16.mxu0 0
        %3891 = vmatpush2.bf16.msra.mxu0 0
        %3892 = vmatprep.subr.bf16.mxu0 0
        %3893 = vmatpush2.bf16.msra.mxu0 0
        %3894 = vmatprep.subr.bf16.mxu0 0
        %3895 = vmatpush2.bf16.msra.mxu0 0
        %3896 = vmatprep.subr.bf16.mxu0 0
        %3897 = vmatpush2.bf16.msra.mxu0 0
        %3898 = vmatprep.mubr.bf16.mxu0 0
        %3899 = vmatmul.mubr.bf16.gmra.mxu0 %v1081
        %v3900 = vpop.f32.mrf.mxu0
        %v3901 = vadd.f32 %v3779, %v3900
        %v3902 = vpop.f32.mrf.mxu0
        %v3903 = vadd.f32 %v3783, %v3902
        %v3904 = vpop.f32.mrf.mxu0
        %v3905 = vpop.f32.mrf.mxu0
        %3906 = vdwg.mxu0
        %v3907 = vmax.f32 %v3901, %v3903
        %3908 = vmax.xlane.f32.xlu0 %v3907
        %v3909 = vpop.xlane.xlu0 %3908
        %v3910 = vsub.f32 %v3901, %v3909
        %v3911 = vsub.f32 %v3903, %v3909
        %v3912 = vmul.f32 %v3910, 1.442695
        %v3913 = vpow.pop %v3912
        %v3914 = vmul.f32 %v3911, 1.442695
        %v3915 = vpow.pop %v3914
        %v3916 = vadd.f32 %v3913, %v3915
        %3917 = vadd.xlane.f32.xlu0 %v3916
        %v3918 = vpop.xlane.xlu0 %3917
        %v3919 = vlog2.pop %v3918
        %v3920 = vmul.f32 %v3919, 0.6931472
        %v3921 = vadd.f32 %v3909, %v3920
        %3922 = vset.pattern.permute.xlu0 15
        %3923 = vperm.xlu0 %3922, %v1084
        %v3924 = vpop.permute.xlu0 %3923
        %vm3925 = vcmp.eq.s32.totalorder %v1086, %v3924
        %vm3926 = vcmp.eq.s32.totalorder %v1087, %v3924
        %v3927 = vsel %vm3925, %v3901, 0.0
        %v3928 = vsel %vm3926, %v3903, 0.0
        %v3929 = vadd.f32 %v3927, %v3928
        %3930 = vadd.xlane.f32.xlu0 %v3929
        %v3931 = vpop.xlane.xlu0 %3930
        %v3932 = vsub.f32 %v3931, %v3921
        %v3933 = vmax.f32 %v3932, -11.512925
        %v3934 = vmin.f32 %v3933, -1.000005e-05
        %v3935 = vadd.f32 %v3757, %v3934
        %v3936 = vld [vmem:[%s528 + $0x80] sm:$0xff]
        %v3937 = vld [vmem:[%s528 + $0x180] sm:$0xff]
        %v3938 = vld [vmem:[%s528 + $0x280] sm:$0xff]
        %v3939 = vld [vmem:[%s528 + $0x380] sm:$0xff]
        %v3940 = vld [vmem:[%s528 + $0x480] sm:$0xff]
        %v3941 = vld [vmem:[%s528 + $0x580] sm:$0xff]
        %v3942 = vld [vmem:[%s528 + $0x680] sm:$0xff]
        %v3943 = vld [vmem:[%s528 + $0x780] sm:$0xff]
        %v3944 = vld [vmem:[%s528 + $0x880] sm:$0xff]
        %v3945 = vld [vmem:[%s528 + $0x980] sm:$0xff]
        %v3946 = vld [vmem:[%s528 + $0xa80] sm:$0xff]
        %v3947 = vld [vmem:[%s528 + $0xb80] sm:$0xff]
        %v3948 = vld [vmem:[%s528 + $0xc80] sm:$0xff]
        %v3949 = vld [vmem:[%s528 + $0xd80] sm:$0xff]
        %v3950 = vld [vmem:[%s528 + $0xe80] sm:$0xff]
        %v3951 = vld [vmem:[%s528 + $0xf80] sm:$0xff]
        %v3952 = vld [vmem:[%s537 + $0x20] sm:$0x3]
        %v3954 = vlaneseq
        %v3955 = vshrl.u32 %v3954, 7
        %v3956 = vsub.s32 0, %v3955
        %v3957 = vrot.slane %v3952, %v3956
        %v3958 = vlaneseq
        %v3959 = vshrl.u32 %v3958, 7
        %v3960 = vsub.s32 1, %v3959
        %v3961 = vrot.slane %v3952, %v3960
        %v3980 = vunpack.c.l.b16 %v3936
        %v3981 = vunpack.c.h.b16 %v3936
        %v3982 = vunpack.c.l.b16 %v3937
        %v3983 = vunpack.c.h.b16 %v3937
        %v3984 = vunpack.c.l.b16 %v3938
        %v3985 = vunpack.c.h.b16 %v3938
        %v3986 = vunpack.c.l.b16 %v3939
        %v3987 = vunpack.c.h.b16 %v3939
        %v3988 = vunpack.c.l.b16 %v3940
        %v3989 = vunpack.c.h.b16 %v3940
        %v3990 = vunpack.c.l.b16 %v3941
        %v3991 = vunpack.c.h.b16 %v3941
        %v3992 = vunpack.c.l.b16 %v3942
        %v3993 = vunpack.c.h.b16 %v3942
        %v3994 = vunpack.c.l.b16 %v3943
        %v3995 = vunpack.c.h.b16 %v3943
        %v3996 = vunpack.c.l.b16 %v3944
        %v3997 = vunpack.c.h.b16 %v3944
        %v3998 = vunpack.c.l.b16 %v3945
        %v3999 = vunpack.c.h.b16 %v3945
        %v4000 = vunpack.c.l.b16 %v3946
        %v4001 = vunpack.c.h.b16 %v3946
        %v4002 = vunpack.c.l.b16 %v3947
        %v4003 = vunpack.c.h.b16 %v3947
        %v4004 = vunpack.c.l.b16 %v3948
        %v4005 = vunpack.c.h.b16 %v3948
        %v4006 = vunpack.c.l.b16 %v3949
        %v4007 = vunpack.c.h.b16 %v3949
        %v4008 = vunpack.c.l.b16 %v3950
        %v4009 = vunpack.c.h.b16 %v3950
        %v4010 = vunpack.c.l.b16 %v3951
        %v4011 = vunpack.c.h.b16 %v3951
        %v4012 = vpack.c.b16 %v3982, %v3980
        %v4013 = vpack.c.b16 %v3983, %v3981
        %v4014 = vpack.c.b16 %v3986, %v3984
        %v4015 = vpack.c.b16 %v3987, %v3985
        %v4016 = vpack.c.b16 %v3990, %v3988
        %v4017 = vpack.c.b16 %v3991, %v3989
        %v4018 = vpack.c.b16 %v3994, %v3992
        %v4019 = vpack.c.b16 %v3995, %v3993
        %v4020 = vpack.c.b16 %v3998, %v3996
        %v4021 = vpack.c.b16 %v3999, %v3997
        %v4022 = vpack.c.b16 %v4002, %v4000
        %v4023 = vpack.c.b16 %v4003, %v4001
        %v4024 = vpack.c.b16 %v4006, %v4004
        %v4025 = vpack.c.b16 %v4007, %v4005
        %v4026 = vpack.c.b16 %v4010, %v4008
        %v4027 = vpack.c.b16 %v4011, %v4009
        %4044 = vmatprep.subr.bf16.mxu0 %v4027
        %4045 = vmatpush1.bf16.msra.mxu0 %v4026
        %4046 = vmatprep.subr.bf16.mxu0 %v4025
        %4047 = vmatpush1.bf16.msra.mxu0 %v4024
        %4048 = vmatprep.subr.bf16.mxu0 %v4023
        %4049 = vmatpush1.bf16.msra.mxu0 %v4022
        %4050 = vmatprep.subr.bf16.mxu0 %v4021
        %4051 = vmatpush1.bf16.msra.mxu0 %v4020
        %4052 = vmatprep.subr.bf16.mxu0 %v4019
        %4053 = vmatpush1.bf16.msra.mxu0 %v4018
        %4054 = vmatprep.subr.bf16.mxu0 %v4017
        %4055 = vmatpush1.bf16.msra.mxu0 %v4016
        %4056 = vmatprep.subr.bf16.mxu0 %v4015
        %4057 = vmatpush1.bf16.msra.mxu0 %v4014
        %4058 = vmatprep.subr.bf16.mxu0 %v4013
        %4059 = vmatpush1.bf16.msra.mxu0 %v4012
        %4060 = vmatprep.subr.bf16.mxu0 0
        %4061 = vmatpush2.bf16.msra.mxu0 0
        %4062 = vmatprep.subr.bf16.mxu0 0
        %4063 = vmatpush2.bf16.msra.mxu0 0
        %4064 = vmatprep.subr.bf16.mxu0 0
        %4065 = vmatpush2.bf16.msra.mxu0 0
        %4066 = vmatprep.subr.bf16.mxu0 0
        %4067 = vmatpush2.bf16.msra.mxu0 0
        %4068 = vmatprep.subr.bf16.mxu0 0
        %4069 = vmatpush2.bf16.msra.mxu0 0
        %4070 = vmatprep.subr.bf16.mxu0 0
        %4071 = vmatpush2.bf16.msra.mxu0 0
        %4072 = vmatprep.subr.bf16.mxu0 0
        %4073 = vmatpush2.bf16.msra.mxu0 0
        %4074 = vmatprep.subr.bf16.mxu0 0
        %4075 = vmatpush2.bf16.msra.mxu0 0
        %4076 = vmatprep.mubr.bf16.mxu0 0
        %4077 = vmatmul.mubr.bf16.gmra.mxu0 %v1081
        %v4078 = vpop.f32.mrf.mxu0
        %v4079 = vadd.f32 %v3957, %v4078
        %v4080 = vpop.f32.mrf.mxu0
        %v4081 = vadd.f32 %v3961, %v4080
        %v4082 = vpop.f32.mrf.mxu0
        %v4083 = vpop.f32.mrf.mxu0
        %4084 = vdwg.mxu0
        %v4085 = vmax.f32 %v4079, %v4081
        %4086 = vmax.xlane.f32.xlu0 %v4085
        %v4087 = vpop.xlane.xlu0 %4086
        %v4088 = vsub.f32 %v4079, %v4087
        %v4089 = vsub.f32 %v4081, %v4087
        %v4090 = vmul.f32 %v4088, 1.442695
        %v4091 = vpow.pop %v4090
        %v4092 = vmul.f32 %v4089, 1.442695
        %v4093 = vpow.pop %v4092
        %v4094 = vadd.f32 %v4091, %v4093
        %4095 = vadd.xlane.f32.xlu0 %v4094
        %v4096 = vpop.xlane.xlu0 %4095
        %v4097 = vlog2.pop %v4096
        %v4098 = vmul.f32 %v4097, 0.6931472
        %v4099 = vadd.f32 %v4087, %v4098
        %4100 = vset.pattern.permute.xlu0 16
        %4101 = vperm.xlu0 %4100, %v1084
        %v4102 = vpop.permute.xlu0 %4101
        %vm4103 = vcmp.eq.s32.totalorder %v1086, %v4102
        %vm4104 = vcmp.eq.s32.totalorder %v1087, %v4102
        %v4105 = vsel %vm4103, %v4079, 0.0
        %v4106 = vsel %vm4104, %v4081, 0.0
        %v4107 = vadd.f32 %v4105, %v4106
        %4108 = vadd.xlane.f32.xlu0 %v4107
        %v4109 = vpop.xlane.xlu0 %4108
        %v4110 = vsub.f32 %v4109, %v4099
        %v4111 = vmax.f32 %v4110, -11.512925
        %v4112 = vmin.f32 %v4111, -1.000005e-05
        %v4113 = vadd.f32 %v3935, %v4112
        %v4114 = vld [vmem:[%s528 + $0x88] sm:$0xff]
        %v4115 = vld [vmem:[%s528 + $0x188] sm:$0xff]
        %v4116 = vld [vmem:[%s528 + $0x288] sm:$0xff]
        %v4117 = vld [vmem:[%s528 + $0x388] sm:$0xff]
        %v4118 = vld [vmem:[%s528 + $0x488] sm:$0xff]
        %v4119 = vld [vmem:[%s528 + $0x588] sm:$0xff]
        %v4120 = vld [vmem:[%s528 + $0x688] sm:$0xff]
        %v4121 = vld [vmem:[%s528 + $0x788] sm:$0xff]
        %v4122 = vld [vmem:[%s528 + $0x888] sm:$0xff]
        %v4123 = vld [vmem:[%s528 + $0x988] sm:$0xff]
        %v4124 = vld [vmem:[%s528 + $0xa88] sm:$0xff]
        %v4125 = vld [vmem:[%s528 + $0xb88] sm:$0xff]
        %v4126 = vld [vmem:[%s528 + $0xc88] sm:$0xff]
        %v4127 = vld [vmem:[%s528 + $0xd88] sm:$0xff]
        %v4128 = vld [vmem:[%s528 + $0xe88] sm:$0xff]
        %v4129 = vld [vmem:[%s528 + $0xf88] sm:$0xff]
        %v4130 = vld [vmem:[%s537 + $0x22] sm:$0x3]
        %v4132 = vlaneseq
        %v4133 = vshrl.u32 %v4132, 7
        %v4134 = vsub.s32 0, %v4133
        %v4135 = vrot.slane %v4130, %v4134
        %v4136 = vlaneseq
        %v4137 = vshrl.u32 %v4136, 7
        %v4138 = vsub.s32 1, %v4137
        %v4139 = vrot.slane %v4130, %v4138
        %v4158 = vunpack.c.l.b16 %v4114
        %v4159 = vunpack.c.h.b16 %v4114
        %v4160 = vunpack.c.l.b16 %v4115
        %v4161 = vunpack.c.h.b16 %v4115
        %v4162 = vunpack.c.l.b16 %v4116
        %v4163 = vunpack.c.h.b16 %v4116
        %v4164 = vunpack.c.l.b16 %v4117
        %v4165 = vunpack.c.h.b16 %v4117
        %v4166 = vunpack.c.l.b16 %v4118
        %v4167 = vunpack.c.h.b16 %v4118
        %v4168 = vunpack.c.l.b16 %v4119
        %v4169 = vunpack.c.h.b16 %v4119
        %v4170 = vunpack.c.l.b16 %v4120
        %v4171 = vunpack.c.h.b16 %v4120
        %v4172 = vunpack.c.l.b16 %v4121
        %v4173 = vunpack.c.h.b16 %v4121
        %v4174 = vunpack.c.l.b16 %v4122
        %v4175 = vunpack.c.h.b16 %v4122
        %v4176 = vunpack.c.l.b16 %v4123
        %v4177 = vunpack.c.h.b16 %v4123
        %v4178 = vunpack.c.l.b16 %v4124
        %v4179 = vunpack.c.h.b16 %v4124
        %v4180 = vunpack.c.l.b16 %v4125
        %v4181 = vunpack.c.h.b16 %v4125
        %v4182 = vunpack.c.l.b16 %v4126
        %v4183 = vunpack.c.h.b16 %v4126
        %v4184 = vunpack.c.l.b16 %v4127
        %v4185 = vunpack.c.h.b16 %v4127
        %v4186 = vunpack.c.l.b16 %v4128
        %v4187 = vunpack.c.h.b16 %v4128
        %v4188 = vunpack.c.l.b16 %v4129
        %v4189 = vunpack.c.h.b16 %v4129
        %v4190 = vpack.c.b16 %v4160, %v4158
        %v4191 = vpack.c.b16 %v4161, %v4159
        %v4192 = vpack.c.b16 %v4164, %v4162
        %v4193 = vpack.c.b16 %v4165, %v4163
        %v4194 = vpack.c.b16 %v4168, %v4166
        %v4195 = vpack.c.b16 %v4169, %v4167
        %v4196 = vpack.c.b16 %v4172, %v4170
        %v4197 = vpack.c.b16 %v4173, %v4171
        %v4198 = vpack.c.b16 %v4176, %v4174
        %v4199 = vpack.c.b16 %v4177, %v4175
        %v4200 = vpack.c.b16 %v4180, %v4178
        %v4201 = vpack.c.b16 %v4181, %v4179
        %v4202 = vpack.c.b16 %v4184, %v4182
        %v4203 = vpack.c.b16 %v4185, %v4183
        %v4204 = vpack.c.b16 %v4188, %v4186
        %v4205 = vpack.c.b16 %v4189, %v4187
        %4222 = vmatprep.subr.bf16.mxu0 %v4205
        %4223 = vmatpush1.bf16.msra.mxu0 %v4204
        %4224 = vmatprep.subr.bf16.mxu0 %v4203
        %4225 = vmatpush1.bf16.msra.mxu0 %v4202
        %4226 = vmatprep.subr.bf16.mxu0 %v4201
        %4227 = vmatpush1.bf16.msra.mxu0 %v4200
        %4228 = vmatprep.subr.bf16.mxu0 %v4199
        %4229 = vmatpush1.bf16.msra.mxu0 %v4198
        %4230 = vmatprep.subr.bf16.mxu0 %v4197
        %4231 = vmatpush1.bf16.msra.mxu0 %v4196
        %4232 = vmatprep.subr.bf16.mxu0 %v4195
        %4233 = vmatpush1.bf16.msra.mxu0 %v4194
        %4234 = vmatprep.subr.bf16.mxu0 %v4193
        %4235 = vmatpush1.bf16.msra.mxu0 %v4192
        %4236 = vmatprep.subr.bf16.mxu0 %v4191
        %4237 = vmatpush1.bf16.msra.mxu0 %v4190
        %4238 = vmatprep.subr.bf16.mxu0 0
        %4239 = vmatpush2.bf16.msra.mxu0 0
        %4240 = vmatprep.subr.bf16.mxu0 0
        %4241 = vmatpush2.bf16.msra.mxu0 0
        %4242 = vmatprep.subr.bf16.mxu0 0
        %4243 = vmatpush2.bf16.msra.mxu0 0
        %4244 = vmatprep.subr.bf16.mxu0 0
        %4245 = vmatpush2.bf16.msra.mxu0 0
        %4246 = vmatprep.subr.bf16.mxu0 0
        %4247 = vmatpush2.bf16.msra.mxu0 0
        %4248 = vmatprep.subr.bf16.mxu0 0
        %4249 = vmatpush2.bf16.msra.mxu0 0
        %4250 = vmatprep.subr.bf16.mxu0 0
        %4251 = vmatpush2.bf16.msra.mxu0 0
        %4252 = vmatprep.subr.bf16.mxu0 0
        %4253 = vmatpush2.bf16.msra.mxu0 0
        %4254 = vmatprep.mubr.bf16.mxu0 0
        %4255 = vmatmul.mubr.bf16.gmra.mxu0 %v1081
        %v4256 = vpop.f32.mrf.mxu0
        %v4257 = vadd.f32 %v4135, %v4256
        %v4258 = vpop.f32.mrf.mxu0
        %v4259 = vadd.f32 %v4139, %v4258
        %v4260 = vpop.f32.mrf.mxu0
        %v4261 = vpop.f32.mrf.mxu0
        %4262 = vdwg.mxu0
        %v4263 = vmax.f32 %v4257, %v4259
        %4264 = vmax.xlane.f32.xlu0 %v4263
        %v4265 = vpop.xlane.xlu0 %4264
        %v4266 = vsub.f32 %v4257, %v4265
        %v4267 = vsub.f32 %v4259, %v4265
        %v4268 = vmul.f32 %v4266, 1.442695
        %v4269 = vpow.pop %v4268
        %v4270 = vmul.f32 %v4267, 1.442695
        %v4271 = vpow.pop %v4270
        %v4272 = vadd.f32 %v4269, %v4271
        %4273 = vadd.xlane.f32.xlu0 %v4272
        %v4274 = vpop.xlane.xlu0 %4273
        %v4275 = vlog2.pop %v4274
        %v4276 = vmul.f32 %v4275, 0.6931472
        %v4277 = vadd.f32 %v4265, %v4276
        %4278 = vset.pattern.permute.xlu0 17
        %4279 = vperm.xlu0 %4278, %v1084
        %v4280 = vpop.permute.xlu0 %4279
        %vm4281 = vcmp.eq.s32.totalorder %v1086, %v4280
        %vm4282 = vcmp.eq.s32.totalorder %v1087, %v4280
        %v4283 = vsel %vm4281, %v4257, 0.0
        %v4284 = vsel %vm4282, %v4259, 0.0
        %v4285 = vadd.f32 %v4283, %v4284
        %4286 = vadd.xlane.f32.xlu0 %v4285
        %v4287 = vpop.xlane.xlu0 %4286
        %v4288 = vsub.f32 %v4287, %v4277
        %v4289 = vmax.f32 %v4288, -11.512925
        %v4290 = vmin.f32 %v4289, -1.000005e-05
        %v4291 = vadd.f32 %v4113, %v4290
        %v4292 = vld [vmem:[%s528 + $0x90] sm:$0xff]
        %v4293 = vld [vmem:[%s528 + $0x190] sm:$0xff]
        %v4294 = vld [vmem:[%s528 + $0x290] sm:$0xff]
        %v4295 = vld [vmem:[%s528 + $0x390] sm:$0xff]
        %v4296 = vld [vmem:[%s528 + $0x490] sm:$0xff]
        %v4297 = vld [vmem:[%s528 + $0x590] sm:$0xff]
        %v4298 = vld [vmem:[%s528 + $0x690] sm:$0xff]
        %v4299 = vld [vmem:[%s528 + $0x790] sm:$0xff]
        %v4300 = vld [vmem:[%s528 + $0x890] sm:$0xff]
        %v4301 = vld [vmem:[%s528 + $0x990] sm:$0xff]
        %v4302 = vld [vmem:[%s528 + $0xa90] sm:$0xff]
        %v4303 = vld [vmem:[%s528 + $0xb90] sm:$0xff]
        %v4304 = vld [vmem:[%s528 + $0xc90] sm:$0xff]
        %v4305 = vld [vmem:[%s528 + $0xd90] sm:$0xff]
        %v4306 = vld [vmem:[%s528 + $0xe90] sm:$0xff]
        %v4307 = vld [vmem:[%s528 + $0xf90] sm:$0xff]
        %v4308 = vld [vmem:[%s537 + $0x24] sm:$0x3]
        %v4310 = vlaneseq
        %v4311 = vshrl.u32 %v4310, 7
        %v4312 = vsub.s32 0, %v4311
        %v4313 = vrot.slane %v4308, %v4312
        %v4314 = vlaneseq
        %v4315 = vshrl.u32 %v4314, 7
        %v4316 = vsub.s32 1, %v4315
        %v4317 = vrot.slane %v4308, %v4316
        %v4336 = vunpack.c.l.b16 %v4292
        %v4337 = vunpack.c.h.b16 %v4292
        %v4338 = vunpack.c.l.b16 %v4293
        %v4339 = vunpack.c.h.b16 %v4293
        %v4340 = vunpack.c.l.b16 %v4294
        %v4341 = vunpack.c.h.b16 %v4294
        %v4342 = vunpack.c.l.b16 %v4295
        %v4343 = vunpack.c.h.b16 %v4295
        %v4344 = vunpack.c.l.b16 %v4296
        %v4345 = vunpack.c.h.b16 %v4296
        %v4346 = vunpack.c.l.b16 %v4297
        %v4347 = vunpack.c.h.b16 %v4297
        %v4348 = vunpack.c.l.b16 %v4298
        %v4349 = vunpack.c.h.b16 %v4298
        %v4350 = vunpack.c.l.b16 %v4299
        %v4351 = vunpack.c.h.b16 %v4299
        %v4352 = vunpack.c.l.b16 %v4300
        %v4353 = vunpack.c.h.b16 %v4300
        %v4354 = vunpack.c.l.b16 %v4301
        %v4355 = vunpack.c.h.b16 %v4301
        %v4356 = vunpack.c.l.b16 %v4302
        %v4357 = vunpack.c.h.b16 %v4302
        %v4358 = vunpack.c.l.b16 %v4303
        %v4359 = vunpack.c.h.b16 %v4303
        %v4360 = vunpack.c.l.b16 %v4304
        %v4361 = vunpack.c.h.b16 %v4304
        %v4362 = vunpack.c.l.b16 %v4305
        %v4363 = vunpack.c.h.b16 %v4305
        %v4364 = vunpack.c.l.b16 %v4306
        %v4365 = vunpack.c.h.b16 %v4306
        %v4366 = vunpack.c.l.b16 %v4307
        %v4367 = vunpack.c.h.b16 %v4307
        %v4368 = vpack.c.b16 %v4338, %v4336
        %v4369 = vpack.c.b16 %v4339, %v4337
        %v4370 = vpack.c.b16 %v4342, %v4340
        %v4371 = vpack.c.b16 %v4343, %v4341
        %v4372 = vpack.c.b16 %v4346, %v4344
        %v4373 = vpack.c.b16 %v4347, %v4345
        %v4374 = vpack.c.b16 %v4350, %v4348
        %v4375 = vpack.c.b16 %v4351, %v4349
        %v4376 = vpack.c.b16 %v4354, %v4352
        %v4377 = vpack.c.b16 %v4355, %v4353
        %v4378 = vpack.c.b16 %v4358, %v4356
        %v4379 = vpack.c.b16 %v4359, %v4357
        %v4380 = vpack.c.b16 %v4362, %v4360
        %v4381 = vpack.c.b16 %v4363, %v4361
        %v4382 = vpack.c.b16 %v4366, %v4364
        %v4383 = vpack.c.b16 %v4367, %v4365
        %4400 = vmatprep.subr.bf16.mxu0 %v4383
        %4401 = vmatpush1.bf16.msra.mxu0 %v4382
        %4402 = vmatprep.subr.bf16.mxu0 %v4381
        %4403 = vmatpush1.bf16.msra.mxu0 %v4380
        %4404 = vmatprep.subr.bf16.mxu0 %v4379
        %4405 = vmatpush1.bf16.msra.mxu0 %v4378
        %4406 = vmatprep.subr.bf16.mxu0 %v4377
        %4407 = vmatpush1.bf16.msra.mxu0 %v4376
        %4408 = vmatprep.subr.bf16.mxu0 %v4375
        %4409 = vmatpush1.bf16.msra.mxu0 %v4374
        %4410 = vmatprep.subr.bf16.mxu0 %v4373
        %4411 = vmatpush1.bf16.msra.mxu0 %v4372
        %4412 = vmatprep.subr.bf16.mxu0 %v4371
        %4413 = vmatpush1.bf16.msra.mxu0 %v4370
        %4414 = vmatprep.subr.bf16.mxu0 %v4369
        %4415 = vmatpush1.bf16.msra.mxu0 %v4368
        %4416 = vmatprep.subr.bf16.mxu0 0
        %4417 = vmatpush2.bf16.msra.mxu0 0
        %4418 = vmatprep.subr.bf16.mxu0 0
        %4419 = vmatpush2.bf16.msra.mxu0 0
        %4420 = vmatprep.subr.bf16.mxu0 0
        %4421 = vmatpush2.bf16.msra.mxu0 0
        %4422 = vmatprep.subr.bf16.mxu0 0
        %4423 = vmatpush2.bf16.msra.mxu0 0
        %4424 = vmatprep.subr.bf16.mxu0 0
        %4425 = vmatpush2.bf16.msra.mxu0 0
        %4426 = vmatprep.subr.bf16.mxu0 0
        %4427 = vmatpush2.bf16.msra.mxu0 0
        %4428 = vmatprep.subr.bf16.mxu0 0
        %4429 = vmatpush2.bf16.msra.mxu0 0
        %4430 = vmatprep.subr.bf16.mxu0 0
        %4431 = vmatpush2.bf16.msra.mxu0 0
        %4432 = vmatprep.mubr.bf16.mxu0 0
        %4433 = vmatmul.mubr.bf16.gmra.mxu0 %v1081
        %v4434 = vpop.f32.mrf.mxu0
        %v4435 = vadd.f32 %v4313, %v4434
        %v4436 = vpop.f32.mrf.mxu0
        %v4437 = vadd.f32 %v4317, %v4436
        %v4438 = vpop.f32.mrf.mxu0
        %v4439 = vpop.f32.mrf.mxu0
        %4440 = vdwg.mxu0
        %v4441 = vmax.f32 %v4435, %v4437
        %4442 = vmax.xlane.f32.xlu0 %v4441
        %v4443 = vpop.xlane.xlu0 %4442
        %v4444 = vsub.f32 %v4435, %v4443
        %v4445 = vsub.f32 %v4437, %v4443
        %v4446 = vmul.f32 %v4444, 1.442695
        %v4447 = vpow.pop %v4446
        %v4448 = vmul.f32 %v4445, 1.442695
        %v4449 = vpow.pop %v4448
        %v4450 = vadd.f32 %v4447, %v4449
        %4451 = vadd.xlane.f32.xlu0 %v4450
        %v4452 = vpop.xlane.xlu0 %4451
        %v4453 = vlog2.pop %v4452
        %v4454 = vmul.f32 %v4453, 0.6931472
        %v4455 = vadd.f32 %v4443, %v4454
        %4456 = vset.pattern.permute.xlu0 18
        %4457 = vperm.xlu0 %4456, %v1084
        %v4458 = vpop.permute.xlu0 %4457
        %vm4459 = vcmp.eq.s32.totalorder %v1086, %v4458
        %vm4460 = vcmp.eq.s32.totalorder %v1087, %v4458
        %v4461 = vsel %vm4459, %v4435, 0.0
        %v4462 = vsel %vm4460, %v4437, 0.0
        %v4463 = vadd.f32 %v4461, %v4462
        %4464 = vadd.xlane.f32.xlu0 %v4463
        %v4465 = vpop.xlane.xlu0 %4464
        %v4466 = vsub.f32 %v4465, %v4455
        %v4467 = vmax.f32 %v4466, -11.512925
        %v4468 = vmin.f32 %v4467, -1.000005e-05
        %v4469 = vadd.f32 %v4291, %v4468
        %v4470 = vld [vmem:[%s528 + $0x98] sm:$0xff]
        %v4471 = vld [vmem:[%s528 + $0x198] sm:$0xff]
        %v4472 = vld [vmem:[%s528 + $0x298] sm:$0xff]
        %v4473 = vld [vmem:[%s528 + $0x398] sm:$0xff]
        %v4474 = vld [vmem:[%s528 + $0x498] sm:$0xff]
        %v4475 = vld [vmem:[%s528 + $0x598] sm:$0xff]
        %v4476 = vld [vmem:[%s528 + $0x698] sm:$0xff]
        %v4477 = vld [vmem:[%s528 + $0x798] sm:$0xff]
        %v4478 = vld [vmem:[%s528 + $0x898] sm:$0xff]
        %v4479 = vld [vmem:[%s528 + $0x998] sm:$0xff]
        %v4480 = vld [vmem:[%s528 + $0xa98] sm:$0xff]
        %v4481 = vld [vmem:[%s528 + $0xb98] sm:$0xff]
        %v4482 = vld [vmem:[%s528 + $0xc98] sm:$0xff]
        %v4483 = vld [vmem:[%s528 + $0xd98] sm:$0xff]
        %v4484 = vld [vmem:[%s528 + $0xe98] sm:$0xff]
        %v4485 = vld [vmem:[%s528 + $0xf98] sm:$0xff]
        %v4486 = vld [vmem:[%s537 + $0x26] sm:$0x3]
        %v4488 = vlaneseq
        %v4489 = vshrl.u32 %v4488, 7
        %v4490 = vsub.s32 0, %v4489
        %v4491 = vrot.slane %v4486, %v4490
        %v4492 = vlaneseq
        %v4493 = vshrl.u32 %v4492, 7
        %v4494 = vsub.s32 1, %v4493
        %v4495 = vrot.slane %v4486, %v4494
        %v4514 = vunpack.c.l.b16 %v4470
        %v4515 = vunpack.c.h.b16 %v4470
        %v4516 = vunpack.c.l.b16 %v4471
        %v4517 = vunpack.c.h.b16 %v4471
        %v4518 = vunpack.c.l.b16 %v4472
        %v4519 = vunpack.c.h.b16 %v4472
        %v4520 = vunpack.c.l.b16 %v4473
        %v4521 = vunpack.c.h.b16 %v4473
        %v4522 = vunpack.c.l.b16 %v4474
        %v4523 = vunpack.c.h.b16 %v4474
        %v4524 = vunpack.c.l.b16 %v4475
        %v4525 = vunpack.c.h.b16 %v4475
        %v4526 = vunpack.c.l.b16 %v4476
        %v4527 = vunpack.c.h.b16 %v4476
        %v4528 = vunpack.c.l.b16 %v4477
        %v4529 = vunpack.c.h.b16 %v4477
        %v4530 = vunpack.c.l.b16 %v4478
        %v4531 = vunpack.c.h.b16 %v4478
        %v4532 = vunpack.c.l.b16 %v4479
        %v4533 = vunpack.c.h.b16 %v4479
        %v4534 = vunpack.c.l.b16 %v4480
        %v4535 = vunpack.c.h.b16 %v4480
        %v4536 = vunpack.c.l.b16 %v4481
        %v4537 = vunpack.c.h.b16 %v4481
        %v4538 = vunpack.c.l.b16 %v4482
        %v4539 = vunpack.c.h.b16 %v4482
        %v4540 = vunpack.c.l.b16 %v4483
        %v4541 = vunpack.c.h.b16 %v4483
        %v4542 = vunpack.c.l.b16 %v4484
        %v4543 = vunpack.c.h.b16 %v4484
        %v4544 = vunpack.c.l.b16 %v4485
        %v4545 = vunpack.c.h.b16 %v4485
        %v4546 = vpack.c.b16 %v4516, %v4514
        %v4547 = vpack.c.b16 %v4517, %v4515
        %v4548 = vpack.c.b16 %v4520, %v4518
        %v4549 = vpack.c.b16 %v4521, %v4519
        %v4550 = vpack.c.b16 %v4524, %v4522
        %v4551 = vpack.c.b16 %v4525, %v4523
        %v4552 = vpack.c.b16 %v4528, %v4526
        %v4553 = vpack.c.b16 %v4529, %v4527
        %v4554 = vpack.c.b16 %v4532, %v4530
        %v4555 = vpack.c.b16 %v4533, %v4531
        %v4556 = vpack.c.b16 %v4536, %v4534
        %v4557 = vpack.c.b16 %v4537, %v4535
        %v4558 = vpack.c.b16 %v4540, %v4538
        %v4559 = vpack.c.b16 %v4541, %v4539
        %v4560 = vpack.c.b16 %v4544, %v4542
        %v4561 = vpack.c.b16 %v4545, %v4543
        %4578 = vmatprep.subr.bf16.mxu0 %v4561
        %4579 = vmatpush1.bf16.msra.mxu0 %v4560
        %4580 = vmatprep.subr.bf16.mxu0 %v4559
        %4581 = vmatpush1.bf16.msra.mxu0 %v4558
        %4582 = vmatprep.subr.bf16.mxu0 %v4557
        %4583 = vmatpush1.bf16.msra.mxu0 %v4556
        %4584 = vmatprep.subr.bf16.mxu0 %v4555
        %4585 = vmatpush1.bf16.msra.mxu0 %v4554
        %4586 = vmatprep.subr.bf16.mxu0 %v4553
        %4587 = vmatpush1.bf16.msra.mxu0 %v4552
        %4588 = vmatprep.subr.bf16.mxu0 %v4551
        %4589 = vmatpush1.bf16.msra.mxu0 %v4550
        %4590 = vmatprep.subr.bf16.mxu0 %v4549
        %4591 = vmatpush1.bf16.msra.mxu0 %v4548
        %4592 = vmatprep.subr.bf16.mxu0 %v4547
        %4593 = vmatpush1.bf16.msra.mxu0 %v4546
        %4594 = vmatprep.subr.bf16.mxu0 0
        %4595 = vmatpush2.bf16.msra.mxu0 0
        %4596 = vmatprep.subr.bf16.mxu0 0
        %4597 = vmatpush2.bf16.msra.mxu0 0
        %4598 = vmatprep.subr.bf16.mxu0 0
        %4599 = vmatpush2.bf16.msra.mxu0 0
        %4600 = vmatprep.subr.bf16.mxu0 0
        %4601 = vmatpush2.bf16.msra.mxu0 0
        %4602 = vmatprep.subr.bf16.mxu0 0
        %4603 = vmatpush2.bf16.msra.mxu0 0
        %4604 = vmatprep.subr.bf16.mxu0 0
        %4605 = vmatpush2.bf16.msra.mxu0 0
        %4606 = vmatprep.subr.bf16.mxu0 0
        %4607 = vmatpush2.bf16.msra.mxu0 0
        %4608 = vmatprep.subr.bf16.mxu0 0
        %4609 = vmatpush2.bf16.msra.mxu0 0
        %4610 = vmatprep.mubr.bf16.mxu0 0
        %4611 = vmatmul.mubr.bf16.gmra.mxu0 %v1081
        %v4612 = vpop.f32.mrf.mxu0
        %v4613 = vadd.f32 %v4491, %v4612
        %v4614 = vpop.f32.mrf.mxu0
        %v4615 = vadd.f32 %v4495, %v4614
        %v4616 = vpop.f32.mrf.mxu0
        %v4617 = vpop.f32.mrf.mxu0
        %4618 = vdwg.mxu0
        %v4619 = vmax.f32 %v4613, %v4615
        %4620 = vmax.xlane.f32.xlu0 %v4619
        %v4621 = vpop.xlane.xlu0 %4620
        %v4622 = vsub.f32 %v4613, %v4621
        %v4623 = vsub.f32 %v4615, %v4621
        %v4624 = vmul.f32 %v4622, 1.442695
        %v4625 = vpow.pop %v4624
        %v4626 = vmul.f32 %v4623, 1.442695
        %v4627 = vpow.pop %v4626
        %v4628 = vadd.f32 %v4625, %v4627
        %4629 = vadd.xlane.f32.xlu0 %v4628
        %v4630 = vpop.xlane.xlu0 %4629
        %v4631 = vlog2.pop %v4630
        %v4632 = vmul.f32 %v4631, 0.6931472
        %v4633 = vadd.f32 %v4621, %v4632
        %4634 = vset.pattern.permute.xlu0 19
        %4635 = vperm.xlu0 %4634, %v1084
        %v4636 = vpop.permute.xlu0 %4635
        %vm4637 = vcmp.eq.s32.totalorder %v1086, %v4636
        %vm4638 = vcmp.eq.s32.totalorder %v1087, %v4636
        %v4639 = vsel %vm4637, %v4613, 0.0
        %v4640 = vsel %vm4638, %v4615, 0.0
        %v4641 = vadd.f32 %v4639, %v4640
        %4642 = vadd.xlane.f32.xlu0 %v4641
        %v4643 = vpop.xlane.xlu0 %4642
        %v4644 = vsub.f32 %v4643, %v4633
        %v4645 = vmax.f32 %v4644, -11.512925
        %v4646 = vmin.f32 %v4645, -1.000005e-05
        %v4647 = vadd.f32 %v4469, %v4646
        %v4648 = vld [vmem:[%s528 + $0xa0] sm:$0xff]
        %v4649 = vld [vmem:[%s528 + $0x1a0] sm:$0xff]
        %v4650 = vld [vmem:[%s528 + $0x2a0] sm:$0xff]
        %v4651 = vld [vmem:[%s528 + $0x3a0] sm:$0xff]
        %v4652 = vld [vmem:[%s528 + $0x4a0] sm:$0xff]
        %v4653 = vld [vmem:[%s528 + $0x5a0] sm:$0xff]
        %v4654 = vld [vmem:[%s528 + $0x6a0] sm:$0xff]
        %v4655 = vld [vmem:[%s528 + $0x7a0] sm:$0xff]
        %v4656 = vld [vmem:[%s528 + $0x8a0] sm:$0xff]
        %v4657 = vld [vmem:[%s528 + $0x9a0] sm:$0xff]
        %v4658 = vld [vmem:[%s528 + $0xaa0] sm:$0xff]
        %v4659 = vld [vmem:[%s528 + $0xba0] sm:$0xff]
        %v4660 = vld [vmem:[%s528 + $0xca0] sm:$0xff]
        %v4661 = vld [vmem:[%s528 + $0xda0] sm:$0xff]
        %v4662 = vld [vmem:[%s528 + $0xea0] sm:$0xff]
        %v4663 = vld [vmem:[%s528 + $0xfa0] sm:$0xff]
        %v4664 = vld [vmem:[%s537 + $0x28] sm:$0x3]
        %v4666 = vlaneseq
        %v4667 = vshrl.u32 %v4666, 7
        %v4668 = vsub.s32 0, %v4667
        %v4669 = vrot.slane %v4664, %v4668
        %v4670 = vlaneseq
        %v4671 = vshrl.u32 %v4670, 7
        %v4672 = vsub.s32 1, %v4671
        %v4673 = vrot.slane %v4664, %v4672
        %v4692 = vunpack.c.l.b16 %v4648
        %v4693 = vunpack.c.h.b16 %v4648
        %v4694 = vunpack.c.l.b16 %v4649
        %v4695 = vunpack.c.h.b16 %v4649
        %v4696 = vunpack.c.l.b16 %v4650
        %v4697 = vunpack.c.h.b16 %v4650
        %v4698 = vunpack.c.l.b16 %v4651
        %v4699 = vunpack.c.h.b16 %v4651
        %v4700 = vunpack.c.l.b16 %v4652
        %v4701 = vunpack.c.h.b16 %v4652
        %v4702 = vunpack.c.l.b16 %v4653
        %v4703 = vunpack.c.h.b16 %v4653
        %v4704 = vunpack.c.l.b16 %v4654
        %v4705 = vunpack.c.h.b16 %v4654
        %v4706 = vunpack.c.l.b16 %v4655
        %v4707 = vunpack.c.h.b16 %v4655
        %v4708 = vunpack.c.l.b16 %v4656
        %v4709 = vunpack.c.h.b16 %v4656
        %v4710 = vunpack.c.l.b16 %v4657
        %v4711 = vunpack.c.h.b16 %v4657
        %v4712 = vunpack.c.l.b16 %v4658
        %v4713 = vunpack.c.h.b16 %v4658
        %v4714 = vunpack.c.l.b16 %v4659
        %v4715 = vunpack.c.h.b16 %v4659
        %v4716 = vunpack.c.l.b16 %v4660
        %v4717 = vunpack.c.h.b16 %v4660
        %v4718 = vunpack.c.l.b16 %v4661
        %v4719 = vunpack.c.h.b16 %v4661
        %v4720 = vunpack.c.l.b16 %v4662
        %v4721 = vunpack.c.h.b16 %v4662
        %v4722 = vunpack.c.l.b16 %v4663
        %v4723 = vunpack.c.h.b16 %v4663
        %v4724 = vpack.c.b16 %v4694, %v4692
        %v4725 = vpack.c.b16 %v4695, %v4693
        %v4726 = vpack.c.b16 %v4698, %v4696
        %v4727 = vpack.c.b16 %v4699, %v4697
        %v4728 = vpack.c.b16 %v4702, %v4700
        %v4729 = vpack.c.b16 %v4703, %v4701
        %v4730 = vpack.c.b16 %v4706, %v4704
        %v4731 = vpack.c.b16 %v4707, %v4705
        %v4732 = vpack.c.b16 %v4710, %v4708
        %v4733 = vpack.c.b16 %v4711, %v4709
        %v4734 = vpack.c.b16 %v4714, %v4712
        %v4735 = vpack.c.b16 %v4715, %v4713
        %v4736 = vpack.c.b16 %v4718, %v4716
        %v4737 = vpack.c.b16 %v4719, %v4717
        %v4738 = vpack.c.b16 %v4722, %v4720
        %v4739 = vpack.c.b16 %v4723, %v4721
        %4756 = vmatprep.subr.bf16.mxu0 %v4739
        %4757 = vmatpush1.bf16.msra.mxu0 %v4738
        %4758 = vmatprep.subr.bf16.mxu0 %v4737
        %4759 = vmatpush1.bf16.msra.mxu0 %v4736
        %4760 = vmatprep.subr.bf16.mxu0 %v4735
        %4761 = vmatpush1.bf16.msra.mxu0 %v4734
        %4762 = vmatprep.subr.bf16.mxu0 %v4733
        %4763 = vmatpush1.bf16.msra.mxu0 %v4732
        %4764 = vmatprep.subr.bf16.mxu0 %v4731
        %4765 = vmatpush1.bf16.msra.mxu0 %v4730
        %4766 = vmatprep.subr.bf16.mxu0 %v4729
        %4767 = vmatpush1.bf16.msra.mxu0 %v4728
        %4768 = vmatprep.subr.bf16.mxu0 %v4727
        %4769 = vmatpush1.bf16.msra.mxu0 %v4726
        %4770 = vmatprep.subr.bf16.mxu0 %v4725
        %4771 = vmatpush1.bf16.msra.mxu0 %v4724
        %4772 = vmatprep.subr.bf16.mxu0 0
        %4773 = vmatpush2.bf16.msra.mxu0 0
        %4774 = vmatprep.subr.bf16.mxu0 0
        %4775 = vmatpush2.bf16.msra.mxu0 0
        %4776 = vmatprep.subr.bf16.mxu0 0
        %4777 = vmatpush2.bf16.msra.mxu0 0
        %4778 = vmatprep.subr.bf16.mxu0 0
        %4779 = vmatpush2.bf16.msra.mxu0 0
        %4780 = vmatprep.subr.bf16.mxu0 0
        %4781 = vmatpush2.bf16.msra.mxu0 0
        %4782 = vmatprep.subr.bf16.mxu0 0
        %4783 = vmatpush2.bf16.msra.mxu0 0
        %4784 = vmatprep.subr.bf16.mxu0 0
        %4785 = vmatpush2.bf16.msra.mxu0 0
        %4786 = vmatprep.subr.bf16.mxu0 0
        %4787 = vmatpush2.bf16.msra.mxu0 0
        %4788 = vmatprep.mubr.bf16.mxu0 0
        %4789 = vmatmul.mubr.bf16.gmra.mxu0 %v1081
        %v4790 = vpop.f32.mrf.mxu0
        %v4791 = vadd.f32 %v4669, %v4790
        %v4792 = vpop.f32.mrf.mxu0
        %v4793 = vadd.f32 %v4673, %v4792
        %v4794 = vpop.f32.mrf.mxu0
        %v4795 = vpop.f32.mrf.mxu0
        %4796 = vdwg.mxu0
        %v4797 = vmax.f32 %v4791, %v4793
        %4798 = vmax.xlane.f32.xlu0 %v4797
        %v4799 = vpop.xlane.xlu0 %4798
        %v4800 = vsub.f32 %v4791, %v4799
        %v4801 = vsub.f32 %v4793, %v4799
        %v4802 = vmul.f32 %v4800, 1.442695
        %v4803 = vpow.pop %v4802
        %v4804 = vmul.f32 %v4801, 1.442695
        %v4805 = vpow.pop %v4804
        %v4806 = vadd.f32 %v4803, %v4805
        %4807 = vadd.xlane.f32.xlu0 %v4806
        %v4808 = vpop.xlane.xlu0 %4807
        %v4809 = vlog2.pop %v4808
        %v4810 = vmul.f32 %v4809, 0.6931472
        %v4811 = vadd.f32 %v4799, %v4810
        %4812 = vset.pattern.permute.xlu0 20
        %4813 = vperm.xlu0 %4812, %v1084
        %v4814 = vpop.permute.xlu0 %4813
        %vm4815 = vcmp.eq.s32.totalorder %v1086, %v4814
        %vm4816 = vcmp.eq.s32.totalorder %v1087, %v4814
        %v4817 = vsel %vm4815, %v4791, 0.0
        %v4818 = vsel %vm4816, %v4793, 0.0
        %v4819 = vadd.f32 %v4817, %v4818
        %4820 = vadd.xlane.f32.xlu0 %v4819
        %v4821 = vpop.xlane.xlu0 %4820
        %v4822 = vsub.f32 %v4821, %v4811
        %v4823 = vmax.f32 %v4822, -11.512925
        %v4824 = vmin.f32 %v4823, -1.000005e-05
        %v4825 = vadd.f32 %v4647, %v4824
        %v4826 = vld [vmem:[%s528 + $0xa8] sm:$0xff]
        %v4827 = vld [vmem:[%s528 + $0x1a8] sm:$0xff]
        %v4828 = vld [vmem:[%s528 + $0x2a8] sm:$0xff]
        %v4829 = vld [vmem:[%s528 + $0x3a8] sm:$0xff]
        %v4830 = vld [vmem:[%s528 + $0x4a8] sm:$0xff]
        %v4831 = vld [vmem:[%s528 + $0x5a8] sm:$0xff]
        %v4832 = vld [vmem:[%s528 + $0x6a8] sm:$0xff]
        %v4833 = vld [vmem:[%s528 + $0x7a8] sm:$0xff]
        %v4834 = vld [vmem:[%s528 + $0x8a8] sm:$0xff]
        %v4835 = vld [vmem:[%s528 + $0x9a8] sm:$0xff]
        %v4836 = vld [vmem:[%s528 + $0xaa8] sm:$0xff]
        %v4837 = vld [vmem:[%s528 + $0xba8] sm:$0xff]
        %v4838 = vld [vmem:[%s528 + $0xca8] sm:$0xff]
        %v4839 = vld [vmem:[%s528 + $0xda8] sm:$0xff]
        %v4840 = vld [vmem:[%s528 + $0xea8] sm:$0xff]
        %v4841 = vld [vmem:[%s528 + $0xfa8] sm:$0xff]
        %v4842 = vld [vmem:[%s537 + $0x2a] sm:$0x3]
        %v4844 = vlaneseq
        %v4845 = vshrl.u32 %v4844, 7
        %v4846 = vsub.s32 0, %v4845
        %v4847 = vrot.slane %v4842, %v4846
        %v4848 = vlaneseq
        %v4849 = vshrl.u32 %v4848, 7
        %v4850 = vsub.s32 1, %v4849
        %v4851 = vrot.slane %v4842, %v4850
        %v4870 = vunpack.c.l.b16 %v4826
        %v4871 = vunpack.c.h.b16 %v4826
        %v4872 = vunpack.c.l.b16 %v4827
        %v4873 = vunpack.c.h.b16 %v4827
        %v4874 = vunpack.c.l.b16 %v4828
        %v4875 = vunpack.c.h.b16 %v4828
        %v4876 = vunpack.c.l.b16 %v4829
        %v4877 = vunpack.c.h.b16 %v4829
        %v4878 = vunpack.c.l.b16 %v4830
        %v4879 = vunpack.c.h.b16 %v4830
        %v4880 = vunpack.c.l.b16 %v4831
        %v4881 = vunpack.c.h.b16 %v4831
        %v4882 = vunpack.c.l.b16 %v4832
        %v4883 = vunpack.c.h.b16 %v4832
        %v4884 = vunpack.c.l.b16 %v4833
        %v4885 = vunpack.c.h.b16 %v4833
        %v4886 = vunpack.c.l.b16 %v4834
        %v4887 = vunpack.c.h.b16 %v4834
        %v4888 = vunpack.c.l.b16 %v4835
        %v4889 = vunpack.c.h.b16 %v4835
        %v4890 = vunpack.c.l.b16 %v4836
        %v4891 = vunpack.c.h.b16 %v4836
        %v4892 = vunpack.c.l.b16 %v4837
        %v4893 = vunpack.c.h.b16 %v4837
        %v4894 = vunpack.c.l.b16 %v4838
        %v4895 = vunpack.c.h.b16 %v4838
        %v4896 = vunpack.c.l.b16 %v4839
        %v4897 = vunpack.c.h.b16 %v4839
        %v4898 = vunpack.c.l.b16 %v4840
        %v4899 = vunpack.c.h.b16 %v4840
        %v4900 = vunpack.c.l.b16 %v4841
        %v4901 = vunpack.c.h.b16 %v4841
        %v4902 = vpack.c.b16 %v4872, %v4870
        %v4903 = vpack.c.b16 %v4873, %v4871
        %v4904 = vpack.c.b16 %v4876, %v4874
        %v4905 = vpack.c.b16 %v4877, %v4875
        %v4906 = vpack.c.b16 %v4880, %v4878
        %v4907 = vpack.c.b16 %v4881, %v4879
        %v4908 = vpack.c.b16 %v4884, %v4882
        %v4909 = vpack.c.b16 %v4885, %v4883
        %v4910 = vpack.c.b16 %v4888, %v4886
        %v4911 = vpack.c.b16 %v4889, %v4887
        %v4912 = vpack.c.b16 %v4892, %v4890
        %v4913 = vpack.c.b16 %v4893, %v4891
        %v4914 = vpack.c.b16 %v4896, %v4894
        %v4915 = vpack.c.b16 %v4897, %v4895
        %v4916 = vpack.c.b16 %v4900, %v4898
        %v4917 = vpack.c.b16 %v4901, %v4899
        %4934 = vmatprep.subr.bf16.mxu0 %v4917
        %4935 = vmatpush1.bf16.msra.mxu0 %v4916
        %4936 = vmatprep.subr.bf16.mxu0 %v4915
        %4937 = vmatpush1.bf16.msra.mxu0 %v4914
        %4938 = vmatprep.subr.bf16.mxu0 %v4913
        %4939 = vmatpush1.bf16.msra.mxu0 %v4912
        %4940 = vmatprep.subr.bf16.mxu0 %v4911
        %4941 = vmatpush1.bf16.msra.mxu0 %v4910
        %4942 = vmatprep.subr.bf16.mxu0 %v4909
        %4943 = vmatpush1.bf16.msra.mxu0 %v4908
        %4944 = vmatprep.subr.bf16.mxu0 %v4907
        %4945 = vmatpush1.bf16.msra.mxu0 %v4906
        %4946 = vmatprep.subr.bf16.mxu0 %v4905
        %4947 = vmatpush1.bf16.msra.mxu0 %v4904
        %4948 = vmatprep.subr.bf16.mxu0 %v4903
        %4949 = vmatpush1.bf16.msra.mxu0 %v4902
        %4950 = vmatprep.subr.bf16.mxu0 0
        %4951 = vmatpush2.bf16.msra.mxu0 0
        %4952 = vmatprep.subr.bf16.mxu0 0
        %4953 = vmatpush2.bf16.msra.mxu0 0
        %4954 = vmatprep.subr.bf16.mxu0 0
        %4955 = vmatpush2.bf16.msra.mxu0 0
        %4956 = vmatprep.subr.bf16.mxu0 0
        %4957 = vmatpush2.bf16.msra.mxu0 0
        %4958 = vmatprep.subr.bf16.mxu0 0
        %4959 = vmatpush2.bf16.msra.mxu0 0
        %4960 = vmatprep.subr.bf16.mxu0 0
        %4961 = vmatpush2.bf16.msra.mxu0 0
        %4962 = vmatprep.subr.bf16.mxu0 0
        %4963 = vmatpush2.bf16.msra.mxu0 0
        %4964 = vmatprep.subr.bf16.mxu0 0
        %4965 = vmatpush2.bf16.msra.mxu0 0
        %4966 = vmatprep.mubr.bf16.mxu0 0
        %4967 = vmatmul.mubr.bf16.gmra.mxu0 %v1081
        %v4968 = vpop.f32.mrf.mxu0
        %v4969 = vadd.f32 %v4847, %v4968
        %v4970 = vpop.f32.mrf.mxu0
        %v4971 = vadd.f32 %v4851, %v4970
        %v4972 = vpop.f32.mrf.mxu0
        %v4973 = vpop.f32.mrf.mxu0
        %4974 = vdwg.mxu0
        %v4975 = vmax.f32 %v4969, %v4971
        %4976 = vmax.xlane.f32.xlu0 %v4975
        %v4977 = vpop.xlane.xlu0 %4976
        %v4978 = vsub.f32 %v4969, %v4977
        %v4979 = vsub.f32 %v4971, %v4977
        %v4980 = vmul.f32 %v4978, 1.442695
        %v4981 = vpow.pop %v4980
        %v4982 = vmul.f32 %v4979, 1.442695
        %v4983 = vpow.pop %v4982
        %v4984 = vadd.f32 %v4981, %v4983
        %4985 = vadd.xlane.f32.xlu0 %v4984
        %v4986 = vpop.xlane.xlu0 %4985
        %v4987 = vlog2.pop %v4986
        %v4988 = vmul.f32 %v4987, 0.6931472
        %v4989 = vadd.f32 %v4977, %v4988
        %4990 = vset.pattern.permute.xlu0 21
        %4991 = vperm.xlu0 %4990, %v1084
        %v4992 = vpop.permute.xlu0 %4991
        %vm4993 = vcmp.eq.s32.totalorder %v1086, %v4992
        %vm4994 = vcmp.eq.s32.totalorder %v1087, %v4992
        %v4995 = vsel %vm4993, %v4969, 0.0
        %v4996 = vsel %vm4994, %v4971, 0.0
        %v4997 = vadd.f32 %v4995, %v4996
        %4998 = vadd.xlane.f32.xlu0 %v4997
        %v4999 = vpop.xlane.xlu0 %4998
        %v5000 = vsub.f32 %v4999, %v4989
        %v5001 = vmax.f32 %v5000, -11.512925
        %v5002 = vmin.f32 %v5001, -1.000005e-05
        %v5003 = vadd.f32 %v4825, %v5002
        %v5004 = vld [vmem:[%s528 + $0xb0] sm:$0xff]
        %v5005 = vld [vmem:[%s528 + $0x1b0] sm:$0xff]
        %v5006 = vld [vmem:[%s528 + $0x2b0] sm:$0xff]
        %v5007 = vld [vmem:[%s528 + $0x3b0] sm:$0xff]
        %v5008 = vld [vmem:[%s528 + $0x4b0] sm:$0xff]
        %v5009 = vld [vmem:[%s528 + $0x5b0] sm:$0xff]
        %v5010 = vld [vmem:[%s528 + $0x6b0] sm:$0xff]
        %v5011 = vld [vmem:[%s528 + $0x7b0] sm:$0xff]
        %v5012 = vld [vmem:[%s528 + $0x8b0] sm:$0xff]
        %v5013 = vld [vmem:[%s528 + $0x9b0] sm:$0xff]
        %v5014 = vld [vmem:[%s528 + $0xab0] sm:$0xff]
        %v5015 = vld [vmem:[%s528 + $0xbb0] sm:$0xff]
        %v5016 = vld [vmem:[%s528 + $0xcb0] sm:$0xff]
        %v5017 = vld [vmem:[%s528 + $0xdb0] sm:$0xff]
        %v5018 = vld [vmem:[%s528 + $0xeb0] sm:$0xff]
        %v5019 = vld [vmem:[%s528 + $0xfb0] sm:$0xff]
        %v5020 = vld [vmem:[%s537 + $0x2c] sm:$0x3]
        %v5022 = vlaneseq
        %v5023 = vshrl.u32 %v5022, 7
        %v5024 = vsub.s32 0, %v5023
        %v5025 = vrot.slane %v5020, %v5024
        %v5026 = vlaneseq
        %v5027 = vshrl.u32 %v5026, 7
        %v5028 = vsub.s32 1, %v5027
        %v5029 = vrot.slane %v5020, %v5028
        %v5048 = vunpack.c.l.b16 %v5004
        %v5049 = vunpack.c.h.b16 %v5004
        %v5050 = vunpack.c.l.b16 %v5005
        %v5051 = vunpack.c.h.b16 %v5005
        %v5052 = vunpack.c.l.b16 %v5006
        %v5053 = vunpack.c.h.b16 %v5006
        %v5054 = vunpack.c.l.b16 %v5007
        %v5055 = vunpack.c.h.b16 %v5007
        %v5056 = vunpack.c.l.b16 %v5008
        %v5057 = vunpack.c.h.b16 %v5008
        %v5058 = vunpack.c.l.b16 %v5009
        %v5059 = vunpack.c.h.b16 %v5009
        %v5060 = vunpack.c.l.b16 %v5010
        %v5061 = vunpack.c.h.b16 %v5010
        %v5062 = vunpack.c.l.b16 %v5011
        %v5063 = vunpack.c.h.b16 %v5011
        %v5064 = vunpack.c.l.b16 %v5012
        %v5065 = vunpack.c.h.b16 %v5012
        %v5066 = vunpack.c.l.b16 %v5013
        %v5067 = vunpack.c.h.b16 %v5013
        %v5068 = vunpack.c.l.b16 %v5014
        %v5069 = vunpack.c.h.b16 %v5014
        %v5070 = vunpack.c.l.b16 %v5015
        %v5071 = vunpack.c.h.b16 %v5015
        %v5072 = vunpack.c.l.b16 %v5016
        %v5073 = vunpack.c.h.b16 %v5016
        %v5074 = vunpack.c.l.b16 %v5017
        %v5075 = vunpack.c.h.b16 %v5017
        %v5076 = vunpack.c.l.b16 %v5018
        %v5077 = vunpack.c.h.b16 %v5018
        %v5078 = vunpack.c.l.b16 %v5019
        %v5079 = vunpack.c.h.b16 %v5019
        %v5080 = vpack.c.b16 %v5050, %v5048
        %v5081 = vpack.c.b16 %v5051, %v5049
        %v5082 = vpack.c.b16 %v5054, %v5052
        %v5083 = vpack.c.b16 %v5055, %v5053
        %v5084 = vpack.c.b16 %v5058, %v5056
        %v5085 = vpack.c.b16 %v5059, %v5057
        %v5086 = vpack.c.b16 %v5062, %v5060
        %v5087 = vpack.c.b16 %v5063, %v5061
        %v5088 = vpack.c.b16 %v5066, %v5064
        %v5089 = vpack.c.b16 %v5067, %v5065
        %v5090 = vpack.c.b16 %v5070, %v5068
        %v5091 = vpack.c.b16 %v5071, %v5069
        %v5092 = vpack.c.b16 %v5074, %v5072
        %v5093 = vpack.c.b16 %v5075, %v5073
        %v5094 = vpack.c.b16 %v5078, %v5076
        %v5095 = vpack.c.b16 %v5079, %v5077
        %5112 = vmatprep.subr.bf16.mxu0 %v5095
        %5113 = vmatpush1.bf16.msra.mxu0 %v5094
        %5114 = vmatprep.subr.bf16.mxu0 %v5093
        %5115 = vmatpush1.bf16.msra.mxu0 %v5092
        %5116 = vmatprep.subr.bf16.mxu0 %v5091
        %5117 = vmatpush1.bf16.msra.mxu0 %v5090
        %5118 = vmatprep.subr.bf16.mxu0 %v5089
        %5119 = vmatpush1.bf16.msra.mxu0 %v5088
        %5120 = vmatprep.subr.bf16.mxu0 %v5087
        %5121 = vmatpush1.bf16.msra.mxu0 %v5086
        %5122 = vmatprep.subr.bf16.mxu0 %v5085
        %5123 = vmatpush1.bf16.msra.mxu0 %v5084
        %5124 = vmatprep.subr.bf16.mxu0 %v5083
        %5125 = vmatpush1.bf16.msra.mxu0 %v5082
        %5126 = vmatprep.subr.bf16.mxu0 %v5081
        %5127 = vmatpush1.bf16.msra.mxu0 %v5080
        %5128 = vmatprep.subr.bf16.mxu0 0
        %5129 = vmatpush2.bf16.msra.mxu0 0
        %5130 = vmatprep.subr.bf16.mxu0 0
        %5131 = vmatpush2.bf16.msra.mxu0 0
        %5132 = vmatprep.subr.bf16.mxu0 0
        %5133 = vmatpush2.bf16.msra.mxu0 0
        %5134 = vmatprep.subr.bf16.mxu0 0
        %5135 = vmatpush2.bf16.msra.mxu0 0
        %5136 = vmatprep.subr.bf16.mxu0 0
        %5137 = vmatpush2.bf16.msra.mxu0 0
        %5138 = vmatprep.subr.bf16.mxu0 0
        %5139 = vmatpush2.bf16.msra.mxu0 0
        %5140 = vmatprep.subr.bf16.mxu0 0
        %5141 = vmatpush2.bf16.msra.mxu0 0
        %5142 = vmatprep.subr.bf16.mxu0 0
        %5143 = vmatpush2.bf16.msra.mxu0 0
        %5144 = vmatprep.mubr.bf16.mxu0 0
        %5145 = vmatmul.mubr.bf16.gmra.mxu0 %v1081
        %v5146 = vpop.f32.mrf.mxu0
        %v5147 = vadd.f32 %v5025, %v5146
        %v5148 = vpop.f32.mrf.mxu0
        %v5149 = vadd.f32 %v5029, %v5148
        %v5150 = vpop.f32.mrf.mxu0
        %v5151 = vpop.f32.mrf.mxu0
        %5152 = vdwg.mxu0
        %v5153 = vmax.f32 %v5147, %v5149
        %5154 = vmax.xlane.f32.xlu0 %v5153
        %v5155 = vpop.xlane.xlu0 %5154
        %v5156 = vsub.f32 %v5147, %v5155
        %v5157 = vsub.f32 %v5149, %v5155
        %v5158 = vmul.f32 %v5156, 1.442695
        %v5159 = vpow.pop %v5158
        %v5160 = vmul.f32 %v5157, 1.442695
        %v5161 = vpow.pop %v5160
        %v5162 = vadd.f32 %v5159, %v5161
        %5163 = vadd.xlane.f32.xlu0 %v5162
        %v5164 = vpop.xlane.xlu0 %5163
        %v5165 = vlog2.pop %v5164
        %v5166 = vmul.f32 %v5165, 0.6931472
        %v5167 = vadd.f32 %v5155, %v5166
        %5168 = vset.pattern.permute.xlu0 22
        %5169 = vperm.xlu0 %5168, %v1084
        %v5170 = vpop.permute.xlu0 %5169
        %vm5171 = vcmp.eq.s32.totalorder %v1086, %v5170
        %vm5172 = vcmp.eq.s32.totalorder %v1087, %v5170
        %v5173 = vsel %vm5171, %v5147, 0.0
        %v5174 = vsel %vm5172, %v5149, 0.0
        %v5175 = vadd.f32 %v5173, %v5174
        %5176 = vadd.xlane.f32.xlu0 %v5175
        %v5177 = vpop.xlane.xlu0 %5176
        %v5178 = vsub.f32 %v5177, %v5167
        %v5179 = vmax.f32 %v5178, -11.512925
        %v5180 = vmin.f32 %v5179, -1.000005e-05
        %v5181 = vadd.f32 %v5003, %v5180
        %v5182 = vld [vmem:[%s528 + $0xb8] sm:$0xff]
        %v5183 = vld [vmem:[%s528 + $0x1b8] sm:$0xff]
        %v5184 = vld [vmem:[%s528 + $0x2b8] sm:$0xff]
        %v5185 = vld [vmem:[%s528 + $0x3b8] sm:$0xff]
        %v5186 = vld [vmem:[%s528 + $0x4b8] sm:$0xff]
        %v5187 = vld [vmem:[%s528 + $0x5b8] sm:$0xff]
        %v5188 = vld [vmem:[%s528 + $0x6b8] sm:$0xff]
        %v5189 = vld [vmem:[%s528 + $0x7b8] sm:$0xff]
        %v5190 = vld [vmem:[%s528 + $0x8b8] sm:$0xff]
        %v5191 = vld [vmem:[%s528 + $0x9b8] sm:$0xff]
        %v5192 = vld [vmem:[%s528 + $0xab8] sm:$0xff]
        %v5193 = vld [vmem:[%s528 + $0xbb8] sm:$0xff]
        %v5194 = vld [vmem:[%s528 + $0xcb8] sm:$0xff]
        %v5195 = vld [vmem:[%s528 + $0xdb8] sm:$0xff]
        %v5196 = vld [vmem:[%s528 + $0xeb8] sm:$0xff]
        %v5197 = vld [vmem:[%s528 + $0xfb8] sm:$0xff]
        %v5198 = vld [vmem:[%s537 + $0x2e] sm:$0x3]
        %v5200 = vlaneseq
        %v5201 = vshrl.u32 %v5200, 7
        %v5202 = vsub.s32 0, %v5201
        %v5203 = vrot.slane %v5198, %v5202
        %v5204 = vlaneseq
        %v5205 = vshrl.u32 %v5204, 7
        %v5206 = vsub.s32 1, %v5205
        %v5207 = vrot.slane %v5198, %v5206
        %v5226 = vunpack.c.l.b16 %v5182
        %v5227 = vunpack.c.h.b16 %v5182
        %v5228 = vunpack.c.l.b16 %v5183
        %v5229 = vunpack.c.h.b16 %v5183
        %v5230 = vunpack.c.l.b16 %v5184
        %v5231 = vunpack.c.h.b16 %v5184
        %v5232 = vunpack.c.l.b16 %v5185
        %v5233 = vunpack.c.h.b16 %v5185
        %v5234 = vunpack.c.l.b16 %v5186
        %v5235 = vunpack.c.h.b16 %v5186
        %v5236 = vunpack.c.l.b16 %v5187
        %v5237 = vunpack.c.h.b16 %v5187
        %v5238 = vunpack.c.l.b16 %v5188
        %v5239 = vunpack.c.h.b16 %v5188
        %v5240 = vunpack.c.l.b16 %v5189
        %v5241 = vunpack.c.h.b16 %v5189
        %v5242 = vunpack.c.l.b16 %v5190
        %v5243 = vunpack.c.h.b16 %v5190
        %v5244 = vunpack.c.l.b16 %v5191
        %v5245 = vunpack.c.h.b16 %v5191
        %v5246 = vunpack.c.l.b16 %v5192
        %v5247 = vunpack.c.h.b16 %v5192
        %v5248 = vunpack.c.l.b16 %v5193
        %v5249 = vunpack.c.h.b16 %v5193
        %v5250 = vunpack.c.l.b16 %v5194
        %v5251 = vunpack.c.h.b16 %v5194
        %v5252 = vunpack.c.l.b16 %v5195
        %v5253 = vunpack.c.h.b16 %v5195
        %v5254 = vunpack.c.l.b16 %v5196
        %v5255 = vunpack.c.h.b16 %v5196
        %v5256 = vunpack.c.l.b16 %v5197
        %v5257 = vunpack.c.h.b16 %v5197
        %v5258 = vpack.c.b16 %v5228, %v5226
        %v5259 = vpack.c.b16 %v5229, %v5227
        %v5260 = vpack.c.b16 %v5232, %v5230
        %v5261 = vpack.c.b16 %v5233, %v5231
        %v5262 = vpack.c.b16 %v5236, %v5234
        %v5263 = vpack.c.b16 %v5237, %v5235
        %v5264 = vpack.c.b16 %v5240, %v5238
        %v5265 = vpack.c.b16 %v5241, %v5239
        %v5266 = vpack.c.b16 %v5244, %v5242
        %v5267 = vpack.c.b16 %v5245, %v5243
        %v5268 = vpack.c.b16 %v5248, %v5246
        %v5269 = vpack.c.b16 %v5249, %v5247
        %v5270 = vpack.c.b16 %v5252, %v5250
        %v5271 = vpack.c.b16 %v5253, %v5251
        %v5272 = vpack.c.b16 %v5256, %v5254
        %v5273 = vpack.c.b16 %v5257, %v5255
        %5290 = vmatprep.subr.bf16.mxu0 %v5273
        %5291 = vmatpush1.bf16.msra.mxu0 %v5272
        %5292 = vmatprep.subr.bf16.mxu0 %v5271
        %5293 = vmatpush1.bf16.msra.mxu0 %v5270
        %5294 = vmatprep.subr.bf16.mxu0 %v5269
        %5295 = vmatpush1.bf16.msra.mxu0 %v5268
        %5296 = vmatprep.subr.bf16.mxu0 %v5267
        %5297 = vmatpush1.bf16.msra.mxu0 %v5266
        %5298 = vmatprep.subr.bf16.mxu0 %v5265
        %5299 = vmatpush1.bf16.msra.mxu0 %v5264
        %5300 = vmatprep.subr.bf16.mxu0 %v5263
        %5301 = vmatpush1.bf16.msra.mxu0 %v5262
        %5302 = vmatprep.subr.bf16.mxu0 %v5261
        %5303 = vmatpush1.bf16.msra.mxu0 %v5260
        %5304 = vmatprep.subr.bf16.mxu0 %v5259
        %5305 = vmatpush1.bf16.msra.mxu0 %v5258
        %5306 = vmatprep.subr.bf16.mxu0 0
        %5307 = vmatpush2.bf16.msra.mxu0 0
        %5308 = vmatprep.subr.bf16.mxu0 0
        %5309 = vmatpush2.bf16.msra.mxu0 0
        %5310 = vmatprep.subr.bf16.mxu0 0
        %5311 = vmatpush2.bf16.msra.mxu0 0
        %5312 = vmatprep.subr.bf16.mxu0 0
        %5313 = vmatpush2.bf16.msra.mxu0 0
        %5314 = vmatprep.subr.bf16.mxu0 0
        %5315 = vmatpush2.bf16.msra.mxu0 0
        %5316 = vmatprep.subr.bf16.mxu0 0
        %5317 = vmatpush2.bf16.msra.mxu0 0
        %5318 = vmatprep.subr.bf16.mxu0 0
        %5319 = vmatpush2.bf16.msra.mxu0 0
        %5320 = vmatprep.subr.bf16.mxu0 0
        %5321 = vmatpush2.bf16.msra.mxu0 0
        %5322 = vmatprep.mubr.bf16.mxu0 0
        %5323 = vmatmul.mubr.bf16.gmra.mxu0 %v1081
        %v5324 = vpop.f32.mrf.mxu0
        %v5325 = vadd.f32 %v5203, %v5324
        %v5326 = vpop.f32.mrf.mxu0
        %v5327 = vadd.f32 %v5207, %v5326
        %v5328 = vpop.f32.mrf.mxu0
        %v5329 = vpop.f32.mrf.mxu0
        %5330 = vdwg.mxu0
        %v5331 = vmax.f32 %v5325, %v5327
        %5332 = vmax.xlane.f32.xlu0 %v5331
        %v5333 = vpop.xlane.xlu0 %5332
        %v5334 = vsub.f32 %v5325, %v5333
        %v5335 = vsub.f32 %v5327, %v5333
        %v5336 = vmul.f32 %v5334, 1.442695
        %v5337 = vpow.pop %v5336
        %v5338 = vmul.f32 %v5335, 1.442695
        %v5339 = vpow.pop %v5338
        %v5340 = vadd.f32 %v5337, %v5339
        %5341 = vadd.xlane.f32.xlu0 %v5340
        %v5342 = vpop.xlane.xlu0 %5341
        %v5343 = vlog2.pop %v5342
        %v5344 = vmul.f32 %v5343, 0.6931472
        %v5345 = vadd.f32 %v5333, %v5344
        %5346 = vset.pattern.permute.xlu0 23
        %5347 = vperm.xlu0 %5346, %v1084
        %v5348 = vpop.permute.xlu0 %5347
        %vm5349 = vcmp.eq.s32.totalorder %v1086, %v5348
        %vm5350 = vcmp.eq.s32.totalorder %v1087, %v5348
        %v5351 = vsel %vm5349, %v5325, 0.0
        %v5352 = vsel %vm5350, %v5327, 0.0
        %v5353 = vadd.f32 %v5351, %v5352
        %5354 = vadd.xlane.f32.xlu0 %v5353
        %v5355 = vpop.xlane.xlu0 %5354
        %v5356 = vsub.f32 %v5355, %v5345
        %v5357 = vmax.f32 %v5356, -11.512925
        %v5358 = vmin.f32 %v5357, -1.000005e-05
        %v5359 = vadd.f32 %v5181, %v5358
        %v5360 = vld [vmem:[%s528 + $0xc0] sm:$0xff]
        %v5361 = vld [vmem:[%s528 + $0x1c0] sm:$0xff]
        %v5362 = vld [vmem:[%s528 + $0x2c0] sm:$0xff]
        %v5363 = vld [vmem:[%s528 + $0x3c0] sm:$0xff]
        %v5364 = vld [vmem:[%s528 + $0x4c0] sm:$0xff]
        %v5365 = vld [vmem:[%s528 + $0x5c0] sm:$0xff]
        %v5366 = vld [vmem:[%s528 + $0x6c0] sm:$0xff]
        %v5367 = vld [vmem:[%s528 + $0x7c0] sm:$0xff]
        %v5368 = vld [vmem:[%s528 + $0x8c0] sm:$0xff]
        %v5369 = vld [vmem:[%s528 + $0x9c0] sm:$0xff]
        %v5370 = vld [vmem:[%s528 + $0xac0] sm:$0xff]
        %v5371 = vld [vmem:[%s528 + $0xbc0] sm:$0xff]
        %v5372 = vld [vmem:[%s528 + $0xcc0] sm:$0xff]
        %v5373 = vld [vmem:[%s528 + $0xdc0] sm:$0xff]
        %v5374 = vld [vmem:[%s528 + $0xec0] sm:$0xff]
        %v5375 = vld [vmem:[%s528 + $0xfc0] sm:$0xff]
        %v5376 = vld [vmem:[%s537 + $0x30] sm:$0x3]
        %v5378 = vlaneseq
        %v5379 = vshrl.u32 %v5378, 7
        %v5380 = vsub.s32 0, %v5379
        %v5381 = vrot.slane %v5376, %v5380
        %v5382 = vlaneseq
        %v5383 = vshrl.u32 %v5382, 7
        %v5384 = vsub.s32 1, %v5383
        %v5385 = vrot.slane %v5376, %v5384
        %v5404 = vunpack.c.l.b16 %v5360
        %v5405 = vunpack.c.h.b16 %v5360
        %v5406 = vunpack.c.l.b16 %v5361
        %v5407 = vunpack.c.h.b16 %v5361
        %v5408 = vunpack.c.l.b16 %v5362
        %v5409 = vunpack.c.h.b16 %v5362
        %v5410 = vunpack.c.l.b16 %v5363
        %v5411 = vunpack.c.h.b16 %v5363
        %v5412 = vunpack.c.l.b16 %v5364
        %v5413 = vunpack.c.h.b16 %v5364
        %v5414 = vunpack.c.l.b16 %v5365
        %v5415 = vunpack.c.h.b16 %v5365
        %v5416 = vunpack.c.l.b16 %v5366
        %v5417 = vunpack.c.h.b16 %v5366
        %v5418 = vunpack.c.l.b16 %v5367
        %v5419 = vunpack.c.h.b16 %v5367
        %v5420 = vunpack.c.l.b16 %v5368
        %v5421 = vunpack.c.h.b16 %v5368
        %v5422 = vunpack.c.l.b16 %v5369
        %v5423 = vunpack.c.h.b16 %v5369
        %v5424 = vunpack.c.l.b16 %v5370
        %v5425 = vunpack.c.h.b16 %v5370
        %v5426 = vunpack.c.l.b16 %v5371
        %v5427 = vunpack.c.h.b16 %v5371
        %v5428 = vunpack.c.l.b16 %v5372
        %v5429 = vunpack.c.h.b16 %v5372
        %v5430 = vunpack.c.l.b16 %v5373
        %v5431 = vunpack.c.h.b16 %v5373
        %v5432 = vunpack.c.l.b16 %v5374
        %v5433 = vunpack.c.h.b16 %v5374
        %v5434 = vunpack.c.l.b16 %v5375
        %v5435 = vunpack.c.h.b16 %v5375
        %v5436 = vpack.c.b16 %v5406, %v5404
        %v5437 = vpack.c.b16 %v5407, %v5405
        %v5438 = vpack.c.b16 %v5410, %v5408
        %v5439 = vpack.c.b16 %v5411, %v5409
        %v5440 = vpack.c.b16 %v5414, %v5412
        %v5441 = vpack.c.b16 %v5415, %v5413
        %v5442 = vpack.c.b16 %v5418, %v5416
        %v5443 = vpack.c.b16 %v5419, %v5417
        %v5444 = vpack.c.b16 %v5422, %v5420
        %v5445 = vpack.c.b16 %v5423, %v5421
        %v5446 = vpack.c.b16 %v5426, %v5424
        %v5447 = vpack.c.b16 %v5427, %v5425
        %v5448 = vpack.c.b16 %v5430, %v5428
        %v5449 = vpack.c.b16 %v5431, %v5429
        %v5450 = vpack.c.b16 %v5434, %v5432
        %v5451 = vpack.c.b16 %v5435, %v5433
        %5468 = vmatprep.subr.bf16.mxu0 %v5451
        %5469 = vmatpush1.bf16.msra.mxu0 %v5450
        %5470 = vmatprep.subr.bf16.mxu0 %v5449
        %5471 = vmatpush1.bf16.msra.mxu0 %v5448
        %5472 = vmatprep.subr.bf16.mxu0 %v5447
        %5473 = vmatpush1.bf16.msra.mxu0 %v5446
        %5474 = vmatprep.subr.bf16.mxu0 %v5445
        %5475 = vmatpush1.bf16.msra.mxu0 %v5444
        %5476 = vmatprep.subr.bf16.mxu0 %v5443
        %5477 = vmatpush1.bf16.msra.mxu0 %v5442
        %5478 = vmatprep.subr.bf16.mxu0 %v5441
        %5479 = vmatpush1.bf16.msra.mxu0 %v5440
        %5480 = vmatprep.subr.bf16.mxu0 %v5439
        %5481 = vmatpush1.bf16.msra.mxu0 %v5438
        %5482 = vmatprep.subr.bf16.mxu0 %v5437
        %5483 = vmatpush1.bf16.msra.mxu0 %v5436
        %5484 = vmatprep.subr.bf16.mxu0 0
        %5485 = vmatpush2.bf16.msra.mxu0 0
        %5486 = vmatprep.subr.bf16.mxu0 0
        %5487 = vmatpush2.bf16.msra.mxu0 0
        %5488 = vmatprep.subr.bf16.mxu0 0
        %5489 = vmatpush2.bf16.msra.mxu0 0
        %5490 = vmatprep.subr.bf16.mxu0 0
        %5491 = vmatpush2.bf16.msra.mxu0 0
        %5492 = vmatprep.subr.bf16.mxu0 0
        %5493 = vmatpush2.bf16.msra.mxu0 0
        %5494 = vmatprep.subr.bf16.mxu0 0
        %5495 = vmatpush2.bf16.msra.mxu0 0
        %5496 = vmatprep.subr.bf16.mxu0 0
        %5497 = vmatpush2.bf16.msra.mxu0 0
        %5498 = vmatprep.subr.bf16.mxu0 0
        %5499 = vmatpush2.bf16.msra.mxu0 0
        %5500 = vmatprep.mubr.bf16.mxu0 0
        %5501 = vmatmul.mubr.bf16.gmra.mxu0 %v1081
        %v5502 = vpop.f32.mrf.mxu0
        %v5503 = vadd.f32 %v5381, %v5502
        %v5504 = vpop.f32.mrf.mxu0
        %v5505 = vadd.f32 %v5385, %v5504
        %v5506 = vpop.f32.mrf.mxu0
        %v5507 = vpop.f32.mrf.mxu0
        %5508 = vdwg.mxu0
        %v5509 = vmax.f32 %v5503, %v5505
        %5510 = vmax.xlane.f32.xlu0 %v5509
        %v5511 = vpop.xlane.xlu0 %5510
        %v5512 = vsub.f32 %v5503, %v5511
        %v5513 = vsub.f32 %v5505, %v5511
        %v5514 = vmul.f32 %v5512, 1.442695
        %v5515 = vpow.pop %v5514
        %v5516 = vmul.f32 %v5513, 1.442695
        %v5517 = vpow.pop %v5516
        %v5518 = vadd.f32 %v5515, %v5517
        %5519 = vadd.xlane.f32.xlu0 %v5518
        %v5520 = vpop.xlane.xlu0 %5519
        %v5521 = vlog2.pop %v5520
        %v5522 = vmul.f32 %v5521, 0.6931472
        %v5523 = vadd.f32 %v5511, %v5522
        %5524 = vset.pattern.permute.xlu0 24
        %5525 = vperm.xlu0 %5524, %v1084
        %v5526 = vpop.permute.xlu0 %5525
        %vm5527 = vcmp.eq.s32.totalorder %v1086, %v5526
        %vm5528 = vcmp.eq.s32.totalorder %v1087, %v5526
        %v5529 = vsel %vm5527, %v5503, 0.0
        %v5530 = vsel %vm5528, %v5505, 0.0
        %v5531 = vadd.f32 %v5529, %v5530
        %5532 = vadd.xlane.f32.xlu0 %v5531
        %v5533 = vpop.xlane.xlu0 %5532
        %v5534 = vsub.f32 %v5533, %v5523
        %v5535 = vmax.f32 %v5534, -11.512925
        %v5536 = vmin.f32 %v5535, -1.000005e-05
        %v5537 = vadd.f32 %v5359, %v5536
        %v5538 = vld [vmem:[%s528 + $0xc8] sm:$0xff]
        %v5539 = vld [vmem:[%s528 + $0x1c8] sm:$0xff]
        %v5540 = vld [vmem:[%s528 + $0x2c8] sm:$0xff]
        %v5541 = vld [vmem:[%s528 + $0x3c8] sm:$0xff]
        %v5542 = vld [vmem:[%s528 + $0x4c8] sm:$0xff]
        %v5543 = vld [vmem:[%s528 + $0x5c8] sm:$0xff]
        %v5544 = vld [vmem:[%s528 + $0x6c8] sm:$0xff]
        %v5545 = vld [vmem:[%s528 + $0x7c8] sm:$0xff]
        %v5546 = vld [vmem:[%s528 + $0x8c8] sm:$0xff]
        %v5547 = vld [vmem:[%s528 + $0x9c8] sm:$0xff]
        %v5548 = vld [vmem:[%s528 + $0xac8] sm:$0xff]
        %v5549 = vld [vmem:[%s528 + $0xbc8] sm:$0xff]
        %v5550 = vld [vmem:[%s528 + $0xcc8] sm:$0xff]
        %v5551 = vld [vmem:[%s528 + $0xdc8] sm:$0xff]
        %v5552 = vld [vmem:[%s528 + $0xec8] sm:$0xff]
        %v5553 = vld [vmem:[%s528 + $0xfc8] sm:$0xff]
        %v5554 = vld [vmem:[%s537 + $0x32] sm:$0x3]
        %v5556 = vlaneseq
        %v5557 = vshrl.u32 %v5556, 7
        %v5558 = vsub.s32 0, %v5557
        %v5559 = vrot.slane %v5554, %v5558
        %v5560 = vlaneseq
        %v5561 = vshrl.u32 %v5560, 7
        %v5562 = vsub.s32 1, %v5561
        %v5563 = vrot.slane %v5554, %v5562
        %v5582 = vunpack.c.l.b16 %v5538
        %v5583 = vunpack.c.h.b16 %v5538
        %v5584 = vunpack.c.l.b16 %v5539
        %v5585 = vunpack.c.h.b16 %v5539
        %v5586 = vunpack.c.l.b16 %v5540
        %v5587 = vunpack.c.h.b16 %v5540
        %v5588 = vunpack.c.l.b16 %v5541
        %v5589 = vunpack.c.h.b16 %v5541
        %v5590 = vunpack.c.l.b16 %v5542
        %v5591 = vunpack.c.h.b16 %v5542
        %v5592 = vunpack.c.l.b16 %v5543
        %v5593 = vunpack.c.h.b16 %v5543
        %v5594 = vunpack.c.l.b16 %v5544
        %v5595 = vunpack.c.h.b16 %v5544
        %v5596 = vunpack.c.l.b16 %v5545
        %v5597 = vunpack.c.h.b16 %v5545
        %v5598 = vunpack.c.l.b16 %v5546
        %v5599 = vunpack.c.h.b16 %v5546
        %v5600 = vunpack.c.l.b16 %v5547
        %v5601 = vunpack.c.h.b16 %v5547
        %v5602 = vunpack.c.l.b16 %v5548
        %v5603 = vunpack.c.h.b16 %v5548
        %v5604 = vunpack.c.l.b16 %v5549
        %v5605 = vunpack.c.h.b16 %v5549
        %v5606 = vunpack.c.l.b16 %v5550
        %v5607 = vunpack.c.h.b16 %v5550
        %v5608 = vunpack.c.l.b16 %v5551
        %v5609 = vunpack.c.h.b16 %v5551
        %v5610 = vunpack.c.l.b16 %v5552
        %v5611 = vunpack.c.h.b16 %v5552
        %v5612 = vunpack.c.l.b16 %v5553
        %v5613 = vunpack.c.h.b16 %v5553
        %v5614 = vpack.c.b16 %v5584, %v5582
        %v5615 = vpack.c.b16 %v5585, %v5583
        %v5616 = vpack.c.b16 %v5588, %v5586
        %v5617 = vpack.c.b16 %v5589, %v5587
        %v5618 = vpack.c.b16 %v5592, %v5590
        %v5619 = vpack.c.b16 %v5593, %v5591
        %v5620 = vpack.c.b16 %v5596, %v5594
        %v5621 = vpack.c.b16 %v5597, %v5595
        %v5622 = vpack.c.b16 %v5600, %v5598
        %v5623 = vpack.c.b16 %v5601, %v5599
        %v5624 = vpack.c.b16 %v5604, %v5602
        %v5625 = vpack.c.b16 %v5605, %v5603
        %v5626 = vpack.c.b16 %v5608, %v5606
        %v5627 = vpack.c.b16 %v5609, %v5607
        %v5628 = vpack.c.b16 %v5612, %v5610
        %v5629 = vpack.c.b16 %v5613, %v5611
        %5646 = vmatprep.subr.bf16.mxu0 %v5629
        %5647 = vmatpush1.bf16.msra.mxu0 %v5628
        %5648 = vmatprep.subr.bf16.mxu0 %v5627
        %5649 = vmatpush1.bf16.msra.mxu0 %v5626
        %5650 = vmatprep.subr.bf16.mxu0 %v5625
        %5651 = vmatpush1.bf16.msra.mxu0 %v5624
        %5652 = vmatprep.subr.bf16.mxu0 %v5623
        %5653 = vmatpush1.bf16.msra.mxu0 %v5622
        %5654 = vmatprep.subr.bf16.mxu0 %v5621
        %5655 = vmatpush1.bf16.msra.mxu0 %v5620
        %5656 = vmatprep.subr.bf16.mxu0 %v5619
        %5657 = vmatpush1.bf16.msra.mxu0 %v5618
        %5658 = vmatprep.subr.bf16.mxu0 %v5617
        %5659 = vmatpush1.bf16.msra.mxu0 %v5616
        %5660 = vmatprep.subr.bf16.mxu0 %v5615
        %5661 = vmatpush1.bf16.msra.mxu0 %v5614
        %5662 = vmatprep.subr.bf16.mxu0 0
        %5663 = vmatpush2.bf16.msra.mxu0 0
        %5664 = vmatprep.subr.bf16.mxu0 0
        %5665 = vmatpush2.bf16.msra.mxu0 0
        %5666 = vmatprep.subr.bf16.mxu0 0
        %5667 = vmatpush2.bf16.msra.mxu0 0
        %5668 = vmatprep.subr.bf16.mxu0 0
        %5669 = vmatpush2.bf16.msra.mxu0 0
        %5670 = vmatprep.subr.bf16.mxu0 0
        %5671 = vmatpush2.bf16.msra.mxu0 0
        %5672 = vmatprep.subr.bf16.mxu0 0
        %5673 = vmatpush2.bf16.msra.mxu0 0
        %5674 = vmatprep.subr.bf16.mxu0 0
        %5675 = vmatpush2.bf16.msra.mxu0 0
        %5676 = vmatprep.subr.bf16.mxu0 0
        %5677 = vmatpush2.bf16.msra.mxu0 0
        %5678 = vmatprep.mubr.bf16.mxu0 0
        %5679 = vmatmul.mubr.bf16.gmra.mxu0 %v1081
        %v5680 = vpop.f32.mrf.mxu0
        %v5681 = vadd.f32 %v5559, %v5680
        %v5682 = vpop.f32.mrf.mxu0
        %v5683 = vadd.f32 %v5563, %v5682
        %v5684 = vpop.f32.mrf.mxu0
        %v5685 = vpop.f32.mrf.mxu0
        %5686 = vdwg.mxu0
        %v5687 = vmax.f32 %v5681, %v5683
        %5688 = vmax.xlane.f32.xlu0 %v5687
        %v5689 = vpop.xlane.xlu0 %5688
        %v5690 = vsub.f32 %v5681, %v5689
        %v5691 = vsub.f32 %v5683, %v5689
        %v5692 = vmul.f32 %v5690, 1.442695
        %v5693 = vpow.pop %v5692
        %v5694 = vmul.f32 %v5691, 1.442695
        %v5695 = vpow.pop %v5694
        %v5696 = vadd.f32 %v5693, %v5695
        %5697 = vadd.xlane.f32.xlu0 %v5696
        %v5698 = vpop.xlane.xlu0 %5697
        %v5699 = vlog2.pop %v5698
        %v5700 = vmul.f32 %v5699, 0.6931472
        %v5701 = vadd.f32 %v5689, %v5700
        %5702 = vset.pattern.permute.xlu0 25
        %5703 = vperm.xlu0 %5702, %v1084
        %v5704 = vpop.permute.xlu0 %5703
        %vm5705 = vcmp.eq.s32.totalorder %v1086, %v5704
        %vm5706 = vcmp.eq.s32.totalorder %v1087, %v5704
        %v5707 = vsel %vm5705, %v5681, 0.0
        %v5708 = vsel %vm5706, %v5683, 0.0
        %v5709 = vadd.f32 %v5707, %v5708
        %5710 = vadd.xlane.f32.xlu0 %v5709
        %v5711 = vpop.xlane.xlu0 %5710
        %v5712 = vsub.f32 %v5711, %v5701
        %v5713 = vmax.f32 %v5712, -11.512925
        %v5714 = vmin.f32 %v5713, -1.000005e-05
        %v5715 = vadd.f32 %v5537, %v5714
        %v5716 = vld [vmem:[%s528 + $0xd0] sm:$0xff]
        %v5717 = vld [vmem:[%s528 + $0x1d0] sm:$0xff]
        %v5718 = vld [vmem:[%s528 + $0x2d0] sm:$0xff]
        %v5719 = vld [vmem:[%s528 + $0x3d0] sm:$0xff]
        %v5720 = vld [vmem:[%s528 + $0x4d0] sm:$0xff]
        %v5721 = vld [vmem:[%s528 + $0x5d0] sm:$0xff]
        %v5722 = vld [vmem:[%s528 + $0x6d0] sm:$0xff]
        %v5723 = vld [vmem:[%s528 + $0x7d0] sm:$0xff]
        %v5724 = vld [vmem:[%s528 + $0x8d0] sm:$0xff]
        %v5725 = vld [vmem:[%s528 + $0x9d0] sm:$0xff]
        %v5726 = vld [vmem:[%s528 + $0xad0] sm:$0xff]
        %v5727 = vld [vmem:[%s528 + $0xbd0] sm:$0xff]
        %v5728 = vld [vmem:[%s528 + $0xcd0] sm:$0xff]
        %v5729 = vld [vmem:[%s528 + $0xdd0] sm:$0xff]
        %v5730 = vld [vmem:[%s528 + $0xed0] sm:$0xff]
        %v5731 = vld [vmem:[%s528 + $0xfd0] sm:$0xff]
        %v5732 = vld [vmem:[%s537 + $0x34] sm:$0x3]
        %v5734 = vlaneseq
        %v5735 = vshrl.u32 %v5734, 7
        %v5736 = vsub.s32 0, %v5735
        %v5737 = vrot.slane %v5732, %v5736
        %v5738 = vlaneseq
        %v5739 = vshrl.u32 %v5738, 7
        %v5740 = vsub.s32 1, %v5739
        %v5741 = vrot.slane %v5732, %v5740
        %v5760 = vunpack.c.l.b16 %v5716
        %v5761 = vunpack.c.h.b16 %v5716
        %v5762 = vunpack.c.l.b16 %v5717
        %v5763 = vunpack.c.h.b16 %v5717
        %v5764 = vunpack.c.l.b16 %v5718
        %v5765 = vunpack.c.h.b16 %v5718
        %v5766 = vunpack.c.l.b16 %v5719
        %v5767 = vunpack.c.h.b16 %v5719
        %v5768 = vunpack.c.l.b16 %v5720
        %v5769 = vunpack.c.h.b16 %v5720
        %v5770 = vunpack.c.l.b16 %v5721
        %v5771 = vunpack.c.h.b16 %v5721
        %v5772 = vunpack.c.l.b16 %v5722
        %v5773 = vunpack.c.h.b16 %v5722
        %v5774 = vunpack.c.l.b16 %v5723
        %v5775 = vunpack.c.h.b16 %v5723
        %v5776 = vunpack.c.l.b16 %v5724
        %v5777 = vunpack.c.h.b16 %v5724
        %v5778 = vunpack.c.l.b16 %v5725
        %v5779 = vunpack.c.h.b16 %v5725
        %v5780 = vunpack.c.l.b16 %v5726
        %v5781 = vunpack.c.h.b16 %v5726
        %v5782 = vunpack.c.l.b16 %v5727
        %v5783 = vunpack.c.h.b16 %v5727
        %v5784 = vunpack.c.l.b16 %v5728
        %v5785 = vunpack.c.h.b16 %v5728
        %v5786 = vunpack.c.l.b16 %v5729
        %v5787 = vunpack.c.h.b16 %v5729
        %v5788 = vunpack.c.l.b16 %v5730
        %v5789 = vunpack.c.h.b16 %v5730
        %v5790 = vunpack.c.l.b16 %v5731
        %v5791 = vunpack.c.h.b16 %v5731
        %v5792 = vpack.c.b16 %v5762, %v5760
        %v5793 = vpack.c.b16 %v5763, %v5761
        %v5794 = vpack.c.b16 %v5766, %v5764
        %v5795 = vpack.c.b16 %v5767, %v5765
        %v5796 = vpack.c.b16 %v5770, %v5768
        %v5797 = vpack.c.b16 %v5771, %v5769
        %v5798 = vpack.c.b16 %v5774, %v5772
        %v5799 = vpack.c.b16 %v5775, %v5773
        %v5800 = vpack.c.b16 %v5778, %v5776
        %v5801 = vpack.c.b16 %v5779, %v5777
        %v5802 = vpack.c.b16 %v5782, %v5780
        %v5803 = vpack.c.b16 %v5783, %v5781
        %v5804 = vpack.c.b16 %v5786, %v5784
        %v5805 = vpack.c.b16 %v5787, %v5785
        %v5806 = vpack.c.b16 %v5790, %v5788
        %v5807 = vpack.c.b16 %v5791, %v5789
        %5824 = vmatprep.subr.bf16.mxu0 %v5807
        %5825 = vmatpush1.bf16.msra.mxu0 %v5806
        %5826 = vmatprep.subr.bf16.mxu0 %v5805
        %5827 = vmatpush1.bf16.msra.mxu0 %v5804
        %5828 = vmatprep.subr.bf16.mxu0 %v5803
        %5829 = vmatpush1.bf16.msra.mxu0 %v5802
        %5830 = vmatprep.subr.bf16.mxu0 %v5801
        %5831 = vmatpush1.bf16.msra.mxu0 %v5800
        %5832 = vmatprep.subr.bf16.mxu0 %v5799
        %5833 = vmatpush1.bf16.msra.mxu0 %v5798
        %5834 = vmatprep.subr.bf16.mxu0 %v5797
        %5835 = vmatpush1.bf16.msra.mxu0 %v5796
        %5836 = vmatprep.subr.bf16.mxu0 %v5795
        %5837 = vmatpush1.bf16.msra.mxu0 %v5794
        %5838 = vmatprep.subr.bf16.mxu0 %v5793
        %5839 = vmatpush1.bf16.msra.mxu0 %v5792
        %5840 = vmatprep.subr.bf16.mxu0 0
        %5841 = vmatpush2.bf16.msra.mxu0 0
        %5842 = vmatprep.subr.bf16.mxu0 0
        %5843 = vmatpush2.bf16.msra.mxu0 0
        %5844 = vmatprep.subr.bf16.mxu0 0
        %5845 = vmatpush2.bf16.msra.mxu0 0
        %5846 = vmatprep.subr.bf16.mxu0 0
        %5847 = vmatpush2.bf16.msra.mxu0 0
        %5848 = vmatprep.subr.bf16.mxu0 0
        %5849 = vmatpush2.bf16.msra.mxu0 0
        %5850 = vmatprep.subr.bf16.mxu0 0
        %5851 = vmatpush2.bf16.msra.mxu0 0
        %5852 = vmatprep.subr.bf16.mxu0 0
        %5853 = vmatpush2.bf16.msra.mxu0 0
        %5854 = vmatprep.subr.bf16.mxu0 0
        %5855 = vmatpush2.bf16.msra.mxu0 0
        %5856 = vmatprep.mubr.bf16.mxu0 0
        %5857 = vmatmul.mubr.bf16.gmra.mxu0 %v1081
        %v5858 = vpop.f32.mrf.mxu0
        %v5859 = vadd.f32 %v5737, %v5858
        %v5860 = vpop.f32.mrf.mxu0
        %v5861 = vadd.f32 %v5741, %v5860
        %v5862 = vpop.f32.mrf.mxu0
        %v5863 = vpop.f32.mrf.mxu0
        %5864 = vdwg.mxu0
        %v5865 = vmax.f32 %v5859, %v5861
        %5866 = vmax.xlane.f32.xlu0 %v5865
        %v5867 = vpop.xlane.xlu0 %5866
        %v5868 = vsub.f32 %v5859, %v5867
        %v5869 = vsub.f32 %v5861, %v5867
        %v5870 = vmul.f32 %v5868, 1.442695
        %v5871 = vpow.pop %v5870
        %v5872 = vmul.f32 %v5869, 1.442695
        %v5873 = vpow.pop %v5872
        %v5874 = vadd.f32 %v5871, %v5873
        %5875 = vadd.xlane.f32.xlu0 %v5874
        %v5876 = vpop.xlane.xlu0 %5875
        %v5877 = vlog2.pop %v5876
        %v5878 = vmul.f32 %v5877, 0.6931472
        %v5879 = vadd.f32 %v5867, %v5878
        %5880 = vset.pattern.permute.xlu0 26
        %5881 = vperm.xlu0 %5880, %v1084
        %v5882 = vpop.permute.xlu0 %5881
        %vm5883 = vcmp.eq.s32.totalorder %v1086, %v5882
        %vm5884 = vcmp.eq.s32.totalorder %v1087, %v5882
        %v5885 = vsel %vm5883, %v5859, 0.0
        %v5886 = vsel %vm5884, %v5861, 0.0
        %v5887 = vadd.f32 %v5885, %v5886
        %5888 = vadd.xlane.f32.xlu0 %v5887
        %v5889 = vpop.xlane.xlu0 %5888
        %v5890 = vsub.f32 %v5889, %v5879
        %v5891 = vmax.f32 %v5890, -11.512925
        %v5892 = vmin.f32 %v5891, -1.000005e-05
        %v5893 = vadd.f32 %v5715, %v5892
        %v5894 = vld [vmem:[%s528 + $0xd8] sm:$0xff]
        %v5895 = vld [vmem:[%s528 + $0x1d8] sm:$0xff]
        %v5896 = vld [vmem:[%s528 + $0x2d8] sm:$0xff]
        %v5897 = vld [vmem:[%s528 + $0x3d8] sm:$0xff]
        %v5898 = vld [vmem:[%s528 + $0x4d8] sm:$0xff]
        %v5899 = vld [vmem:[%s528 + $0x5d8] sm:$0xff]
        %v5900 = vld [vmem:[%s528 + $0x6d8] sm:$0xff]
        %v5901 = vld [vmem:[%s528 + $0x7d8] sm:$0xff]
        %v5902 = vld [vmem:[%s528 + $0x8d8] sm:$0xff]
        %v5903 = vld [vmem:[%s528 + $0x9d8] sm:$0xff]
        %v5904 = vld [vmem:[%s528 + $0xad8] sm:$0xff]
        %v5905 = vld [vmem:[%s528 + $0xbd8] sm:$0xff]
        %v5906 = vld [vmem:[%s528 + $0xcd8] sm:$0xff]
        %v5907 = vld [vmem:[%s528 + $0xdd8] sm:$0xff]
        %v5908 = vld [vmem:[%s528 + $0xed8] sm:$0xff]
        %v5909 = vld [vmem:[%s528 + $0xfd8] sm:$0xff]
        %v5910 = vld [vmem:[%s537 + $0x36] sm:$0x3]
        %v5912 = vlaneseq
        %v5913 = vshrl.u32 %v5912, 7
        %v5914 = vsub.s32 0, %v5913
        %v5915 = vrot.slane %v5910, %v5914
        %v5916 = vlaneseq
        %v5917 = vshrl.u32 %v5916, 7
        %v5918 = vsub.s32 1, %v5917
        %v5919 = vrot.slane %v5910, %v5918
        %v5938 = vunpack.c.l.b16 %v5894
        %v5939 = vunpack.c.h.b16 %v5894
        %v5940 = vunpack.c.l.b16 %v5895
        %v5941 = vunpack.c.h.b16 %v5895
        %v5942 = vunpack.c.l.b16 %v5896
        %v5943 = vunpack.c.h.b16 %v5896
        %v5944 = vunpack.c.l.b16 %v5897
        %v5945 = vunpack.c.h.b16 %v5897
        %v5946 = vunpack.c.l.b16 %v5898
        %v5947 = vunpack.c.h.b16 %v5898
        %v5948 = vunpack.c.l.b16 %v5899
        %v5949 = vunpack.c.h.b16 %v5899
        %v5950 = vunpack.c.l.b16 %v5900
        %v5951 = vunpack.c.h.b16 %v5900
        %v5952 = vunpack.c.l.b16 %v5901
        %v5953 = vunpack.c.h.b16 %v5901
        %v5954 = vunpack.c.l.b16 %v5902
        %v5955 = vunpack.c.h.b16 %v5902
        %v5956 = vunpack.c.l.b16 %v5903
        %v5957 = vunpack.c.h.b16 %v5903
        %v5958 = vunpack.c.l.b16 %v5904
        %v5959 = vunpack.c.h.b16 %v5904
        %v5960 = vunpack.c.l.b16 %v5905
        %v5961 = vunpack.c.h.b16 %v5905
        %v5962 = vunpack.c.l.b16 %v5906
        %v5963 = vunpack.c.h.b16 %v5906
        %v5964 = vunpack.c.l.b16 %v5907
        %v5965 = vunpack.c.h.b16 %v5907
        %v5966 = vunpack.c.l.b16 %v5908
        %v5967 = vunpack.c.h.b16 %v5908
        %v5968 = vunpack.c.l.b16 %v5909
        %v5969 = vunpack.c.h.b16 %v5909
        %v5970 = vpack.c.b16 %v5940, %v5938
        %v5971 = vpack.c.b16 %v5941, %v5939
        %v5972 = vpack.c.b16 %v5944, %v5942
        %v5973 = vpack.c.b16 %v5945, %v5943
        %v5974 = vpack.c.b16 %v5948, %v5946
        %v5975 = vpack.c.b16 %v5949, %v5947
        %v5976 = vpack.c.b16 %v5952, %v5950
        %v5977 = vpack.c.b16 %v5953, %v5951
        %v5978 = vpack.c.b16 %v5956, %v5954
        %v5979 = vpack.c.b16 %v5957, %v5955
        %v5980 = vpack.c.b16 %v5960, %v5958
        %v5981 = vpack.c.b16 %v5961, %v5959
        %v5982 = vpack.c.b16 %v5964, %v5962
        %v5983 = vpack.c.b16 %v5965, %v5963
        %v5984 = vpack.c.b16 %v5968, %v5966
        %v5985 = vpack.c.b16 %v5969, %v5967
        %6002 = vmatprep.subr.bf16.mxu0 %v5985
        %6003 = vmatpush1.bf16.msra.mxu0 %v5984
        %6004 = vmatprep.subr.bf16.mxu0 %v5983
        %6005 = vmatpush1.bf16.msra.mxu0 %v5982
        %6006 = vmatprep.subr.bf16.mxu0 %v5981
        %6007 = vmatpush1.bf16.msra.mxu0 %v5980
        %6008 = vmatprep.subr.bf16.mxu0 %v5979
        %6009 = vmatpush1.bf16.msra.mxu0 %v5978
        %6010 = vmatprep.subr.bf16.mxu0 %v5977
        %6011 = vmatpush1.bf16.msra.mxu0 %v5976
        %6012 = vmatprep.subr.bf16.mxu0 %v5975
        %6013 = vmatpush1.bf16.msra.mxu0 %v5974
        %6014 = vmatprep.subr.bf16.mxu0 %v5973
        %6015 = vmatpush1.bf16.msra.mxu0 %v5972
        %6016 = vmatprep.subr.bf16.mxu0 %v5971
        %6017 = vmatpush1.bf16.msra.mxu0 %v5970
        %6018 = vmatprep.subr.bf16.mxu0 0
        %6019 = vmatpush2.bf16.msra.mxu0 0
        %6020 = vmatprep.subr.bf16.mxu0 0
        %6021 = vmatpush2.bf16.msra.mxu0 0
        %6022 = vmatprep.subr.bf16.mxu0 0
        %6023 = vmatpush2.bf16.msra.mxu0 0
        %6024 = vmatprep.subr.bf16.mxu0 0
        %6025 = vmatpush2.bf16.msra.mxu0 0
        %6026 = vmatprep.subr.bf16.mxu0 0
        %6027 = vmatpush2.bf16.msra.mxu0 0
        %6028 = vmatprep.subr.bf16.mxu0 0
        %6029 = vmatpush2.bf16.msra.mxu0 0
        %6030 = vmatprep.subr.bf16.mxu0 0
        %6031 = vmatpush2.bf16.msra.mxu0 0
        %6032 = vmatprep.subr.bf16.mxu0 0
        %6033 = vmatpush2.bf16.msra.mxu0 0
        %6034 = vmatprep.mubr.bf16.mxu0 0
        %6035 = vmatmul.mubr.bf16.gmra.mxu0 %v1081
        %v6036 = vpop.f32.mrf.mxu0
        %v6037 = vadd.f32 %v5915, %v6036
        %v6038 = vpop.f32.mrf.mxu0
        %v6039 = vadd.f32 %v5919, %v6038
        %v6040 = vpop.f32.mrf.mxu0
        %v6041 = vpop.f32.mrf.mxu0
        %6042 = vdwg.mxu0
        %v6043 = vmax.f32 %v6037, %v6039
        %6044 = vmax.xlane.f32.xlu0 %v6043
        %v6045 = vpop.xlane.xlu0 %6044
        %v6046 = vsub.f32 %v6037, %v6045
        %v6047 = vsub.f32 %v6039, %v6045
        %v6048 = vmul.f32 %v6046, 1.442695
        %v6049 = vpow.pop %v6048
        %v6050 = vmul.f32 %v6047, 1.442695
        %v6051 = vpow.pop %v6050
        %v6052 = vadd.f32 %v6049, %v6051
        %6053 = vadd.xlane.f32.xlu0 %v6052
        %v6054 = vpop.xlane.xlu0 %6053
        %v6055 = vlog2.pop %v6054
        %v6056 = vmul.f32 %v6055, 0.6931472
        %v6057 = vadd.f32 %v6045, %v6056
        %6058 = vset.pattern.permute.xlu0 27
        %6059 = vperm.xlu0 %6058, %v1084
        %v6060 = vpop.permute.xlu0 %6059
        %vm6061 = vcmp.eq.s32.totalorder %v1086, %v6060
        %vm6062 = vcmp.eq.s32.totalorder %v1087, %v6060
        %v6063 = vsel %vm6061, %v6037, 0.0
        %v6064 = vsel %vm6062, %v6039, 0.0
        %v6065 = vadd.f32 %v6063, %v6064
        %6066 = vadd.xlane.f32.xlu0 %v6065
        %v6067 = vpop.xlane.xlu0 %6066
        %v6068 = vsub.f32 %v6067, %v6057
        %v6069 = vmax.f32 %v6068, -11.512925
        %v6070 = vmin.f32 %v6069, -1.000005e-05
        %v6071 = vadd.f32 %v5893, %v6070
        %v6072 = vld [vmem:[%s528 + $0xe0] sm:$0xff]
        %v6073 = vld [vmem:[%s528 + $0x1e0] sm:$0xff]
        %v6074 = vld [vmem:[%s528 + $0x2e0] sm:$0xff]
        %v6075 = vld [vmem:[%s528 + $0x3e0] sm:$0xff]
        %v6076 = vld [vmem:[%s528 + $0x4e0] sm:$0xff]
        %v6077 = vld [vmem:[%s528 + $0x5e0] sm:$0xff]
        %v6078 = vld [vmem:[%s528 + $0x6e0] sm:$0xff]
        %v6079 = vld [vmem:[%s528 + $0x7e0] sm:$0xff]
        %v6080 = vld [vmem:[%s528 + $0x8e0] sm:$0xff]
        %v6081 = vld [vmem:[%s528 + $0x9e0] sm:$0xff]
        %v6082 = vld [vmem:[%s528 + $0xae0] sm:$0xff]
        %v6083 = vld [vmem:[%s528 + $0xbe0] sm:$0xff]
        %v6084 = vld [vmem:[%s528 + $0xce0] sm:$0xff]
        %v6085 = vld [vmem:[%s528 + $0xde0] sm:$0xff]
        %v6086 = vld [vmem:[%s528 + $0xee0] sm:$0xff]
        %v6087 = vld [vmem:[%s528 + $0xfe0] sm:$0xff]
        %v6088 = vld [vmem:[%s537 + $0x38] sm:$0x3]
        %v6090 = vlaneseq
        %v6091 = vshrl.u32 %v6090, 7
        %v6092 = vsub.s32 0, %v6091
        %v6093 = vrot.slane %v6088, %v6092
        %v6094 = vlaneseq
        %v6095 = vshrl.u32 %v6094, 7
        %v6096 = vsub.s32 1, %v6095
        %v6097 = vrot.slane %v6088, %v6096
        %v6116 = vunpack.c.l.b16 %v6072
        %v6117 = vunpack.c.h.b16 %v6072
        %v6118 = vunpack.c.l.b16 %v6073
        %v6119 = vunpack.c.h.b16 %v6073
        %v6120 = vunpack.c.l.b16 %v6074
        %v6121 = vunpack.c.h.b16 %v6074
        %v6122 = vunpack.c.l.b16 %v6075
        %v6123 = vunpack.c.h.b16 %v6075
        %v6124 = vunpack.c.l.b16 %v6076
        %v6125 = vunpack.c.h.b16 %v6076
        %v6126 = vunpack.c.l.b16 %v6077
        %v6127 = vunpack.c.h.b16 %v6077
        %v6128 = vunpack.c.l.b16 %v6078
        %v6129 = vunpack.c.h.b16 %v6078
        %v6130 = vunpack.c.l.b16 %v6079
        %v6131 = vunpack.c.h.b16 %v6079
        %v6132 = vunpack.c.l.b16 %v6080
        %v6133 = vunpack.c.h.b16 %v6080
        %v6134 = vunpack.c.l.b16 %v6081
        %v6135 = vunpack.c.h.b16 %v6081
        %v6136 = vunpack.c.l.b16 %v6082
        %v6137 = vunpack.c.h.b16 %v6082
        %v6138 = vunpack.c.l.b16 %v6083
        %v6139 = vunpack.c.h.b16 %v6083
        %v6140 = vunpack.c.l.b16 %v6084
        %v6141 = vunpack.c.h.b16 %v6084
        %v6142 = vunpack.c.l.b16 %v6085
        %v6143 = vunpack.c.h.b16 %v6085
        %v6144 = vunpack.c.l.b16 %v6086
        %v6145 = vunpack.c.h.b16 %v6086
        %v6146 = vunpack.c.l.b16 %v6087
        %v6147 = vunpack.c.h.b16 %v6087
        %v6148 = vpack.c.b16 %v6118, %v6116
        %v6149 = vpack.c.b16 %v6119, %v6117
        %v6150 = vpack.c.b16 %v6122, %v6120
        %v6151 = vpack.c.b16 %v6123, %v6121
        %v6152 = vpack.c.b16 %v6126, %v6124
        %v6153 = vpack.c.b16 %v6127, %v6125
        %v6154 = vpack.c.b16 %v6130, %v6128
        %v6155 = vpack.c.b16 %v6131, %v6129
        %v6156 = vpack.c.b16 %v6134, %v6132
        %v6157 = vpack.c.b16 %v6135, %v6133
        %v6158 = vpack.c.b16 %v6138, %v6136
        %v6159 = vpack.c.b16 %v6139, %v6137
        %v6160 = vpack.c.b16 %v6142, %v6140
        %v6161 = vpack.c.b16 %v6143, %v6141
        %v6162 = vpack.c.b16 %v6146, %v6144
        %v6163 = vpack.c.b16 %v6147, %v6145
        %6180 = vmatprep.subr.bf16.mxu0 %v6163
        %6181 = vmatpush1.bf16.msra.mxu0 %v6162
        %6182 = vmatprep.subr.bf16.mxu0 %v6161
        %6183 = vmatpush1.bf16.msra.mxu0 %v6160
        %6184 = vmatprep.subr.bf16.mxu0 %v6159
        %6185 = vmatpush1.bf16.msra.mxu0 %v6158
        %6186 = vmatprep.subr.bf16.mxu0 %v6157
        %6187 = vmatpush1.bf16.msra.mxu0 %v6156
        %6188 = vmatprep.subr.bf16.mxu0 %v6155
        %6189 = vmatpush1.bf16.msra.mxu0 %v6154
        %6190 = vmatprep.subr.bf16.mxu0 %v6153
        %6191 = vmatpush1.bf16.msra.mxu0 %v6152
        %6192 = vmatprep.subr.bf16.mxu0 %v6151
        %6193 = vmatpush1.bf16.msra.mxu0 %v6150
        %6194 = vmatprep.subr.bf16.mxu0 %v6149
        %6195 = vmatpush1.bf16.msra.mxu0 %v6148
        %6196 = vmatprep.subr.bf16.mxu0 0
        %6197 = vmatpush2.bf16.msra.mxu0 0
        %6198 = vmatprep.subr.bf16.mxu0 0
        %6199 = vmatpush2.bf16.msra.mxu0 0
        %6200 = vmatprep.subr.bf16.mxu0 0
        %6201 = vmatpush2.bf16.msra.mxu0 0
        %6202 = vmatprep.subr.bf16.mxu0 0
        %6203 = vmatpush2.bf16.msra.mxu0 0
        %6204 = vmatprep.subr.bf16.mxu0 0
        %6205 = vmatpush2.bf16.msra.mxu0 0
        %6206 = vmatprep.subr.bf16.mxu0 0
        %6207 = vmatpush2.bf16.msra.mxu0 0
        %6208 = vmatprep.subr.bf16.mxu0 0
        %6209 = vmatpush2.bf16.msra.mxu0 0
        %6210 = vmatprep.subr.bf16.mxu0 0
        %6211 = vmatpush2.bf16.msra.mxu0 0
        %6212 = vmatprep.mubr.bf16.mxu0 0
        %6213 = vmatmul.mubr.bf16.gmra.mxu0 %v1081
        %v6214 = vpop.f32.mrf.mxu0
        %v6215 = vadd.f32 %v6093, %v6214
        %v6216 = vpop.f32.mrf.mxu0
        %v6217 = vadd.f32 %v6097, %v6216
        %v6218 = vpop.f32.mrf.mxu0
        %v6219 = vpop.f32.mrf.mxu0
        %6220 = vdwg.mxu0
        %v6221 = vmax.f32 %v6215, %v6217
        %6222 = vmax.xlane.f32.xlu0 %v6221
        %v6223 = vpop.xlane.xlu0 %6222
        %v6224 = vsub.f32 %v6215, %v6223
        %v6225 = vsub.f32 %v6217, %v6223
        %v6226 = vmul.f32 %v6224, 1.442695
        %v6227 = vpow.pop %v6226
        %v6228 = vmul.f32 %v6225, 1.442695
        %v6229 = vpow.pop %v6228
        %v6230 = vadd.f32 %v6227, %v6229
        %6231 = vadd.xlane.f32.xlu0 %v6230
        %v6232 = vpop.xlane.xlu0 %6231
        %v6233 = vlog2.pop %v6232
        %v6234 = vmul.f32 %v6233, 0.6931472
        %v6235 = vadd.f32 %v6223, %v6234
        %6236 = vset.pattern.permute.xlu0 28
        %6237 = vperm.xlu0 %6236, %v1084
        %v6238 = vpop.permute.xlu0 %6237
        %vm6239 = vcmp.eq.s32.totalorder %v1086, %v6238
        %vm6240 = vcmp.eq.s32.totalorder %v1087, %v6238
        %v6241 = vsel %vm6239, %v6215, 0.0
        %v6242 = vsel %vm6240, %v6217, 0.0
        %v6243 = vadd.f32 %v6241, %v6242
        %6244 = vadd.xlane.f32.xlu0 %v6243
        %v6245 = vpop.xlane.xlu0 %6244
        %v6246 = vsub.f32 %v6245, %v6235
        %v6247 = vmax.f32 %v6246, -11.512925
        %v6248 = vmin.f32 %v6247, -1.000005e-05
        %v6249 = vadd.f32 %v6071, %v6248
        %v6250 = vld [vmem:[%s528 + $0xe8] sm:$0xff]
        %v6251 = vld [vmem:[%s528 + $0x1e8] sm:$0xff]
        %v6252 = vld [vmem:[%s528 + $0x2e8] sm:$0xff]
        %v6253 = vld [vmem:[%s528 + $0x3e8] sm:$0xff]
        %v6254 = vld [vmem:[%s528 + $0x4e8] sm:$0xff]
        %v6255 = vld [vmem:[%s528 + $0x5e8] sm:$0xff]
        %v6256 = vld [vmem:[%s528 + $0x6e8] sm:$0xff]
        %v6257 = vld [vmem:[%s528 + $0x7e8] sm:$0xff]
        %v6258 = vld [vmem:[%s528 + $0x8e8] sm:$0xff]
        %v6259 = vld [vmem:[%s528 + $0x9e8] sm:$0xff]
        %v6260 = vld [vmem:[%s528 + $0xae8] sm:$0xff]
        %v6261 = vld [vmem:[%s528 + $0xbe8] sm:$0xff]
        %v6262 = vld [vmem:[%s528 + $0xce8] sm:$0xff]
        %v6263 = vld [vmem:[%s528 + $0xde8] sm:$0xff]
        %v6264 = vld [vmem:[%s528 + $0xee8] sm:$0xff]
        %v6265 = vld [vmem:[%s528 + $0xfe8] sm:$0xff]
        %v6266 = vld [vmem:[%s537 + $0x3a] sm:$0x3]
        %v6268 = vlaneseq
        %v6269 = vshrl.u32 %v6268, 7
        %v6270 = vsub.s32 0, %v6269
        %v6271 = vrot.slane %v6266, %v6270
        %v6272 = vlaneseq
        %v6273 = vshrl.u32 %v6272, 7
        %v6274 = vsub.s32 1, %v6273
        %v6275 = vrot.slane %v6266, %v6274
        %v6294 = vunpack.c.l.b16 %v6250
        %v6295 = vunpack.c.h.b16 %v6250
        %v6296 = vunpack.c.l.b16 %v6251
        %v6297 = vunpack.c.h.b16 %v6251
        %v6298 = vunpack.c.l.b16 %v6252
        %v6299 = vunpack.c.h.b16 %v6252
        %v6300 = vunpack.c.l.b16 %v6253
        %v6301 = vunpack.c.h.b16 %v6253
        %v6302 = vunpack.c.l.b16 %v6254
        %v6303 = vunpack.c.h.b16 %v6254
        %v6304 = vunpack.c.l.b16 %v6255
        %v6305 = vunpack.c.h.b16 %v6255
        %v6306 = vunpack.c.l.b16 %v6256
        %v6307 = vunpack.c.h.b16 %v6256
        %v6308 = vunpack.c.l.b16 %v6257
        %v6309 = vunpack.c.h.b16 %v6257
        %v6310 = vunpack.c.l.b16 %v6258
        %v6311 = vunpack.c.h.b16 %v6258
        %v6312 = vunpack.c.l.b16 %v6259
        %v6313 = vunpack.c.h.b16 %v6259
        %v6314 = vunpack.c.l.b16 %v6260
        %v6315 = vunpack.c.h.b16 %v6260
        %v6316 = vunpack.c.l.b16 %v6261
        %v6317 = vunpack.c.h.b16 %v6261
        %v6318 = vunpack.c.l.b16 %v6262
        %v6319 = vunpack.c.h.b16 %v6262
        %v6320 = vunpack.c.l.b16 %v6263
        %v6321 = vunpack.c.h.b16 %v6263
        %v6322 = vunpack.c.l.b16 %v6264
        %v6323 = vunpack.c.h.b16 %v6264
        %v6324 = vunpack.c.l.b16 %v6265
        %v6325 = vunpack.c.h.b16 %v6265
        %v6326 = vpack.c.b16 %v6296, %v6294
        %v6327 = vpack.c.b16 %v6297, %v6295
        %v6328 = vpack.c.b16 %v6300, %v6298
        %v6329 = vpack.c.b16 %v6301, %v6299
        %v6330 = vpack.c.b16 %v6304, %v6302
        %v6331 = vpack.c.b16 %v6305, %v6303
        %v6332 = vpack.c.b16 %v6308, %v6306
        %v6333 = vpack.c.b16 %v6309, %v6307
        %v6334 = vpack.c.b16 %v6312, %v6310
        %v6335 = vpack.c.b16 %v6313, %v6311
        %v6336 = vpack.c.b16 %v6316, %v6314
        %v6337 = vpack.c.b16 %v6317, %v6315
        %v6338 = vpack.c.b16 %v6320, %v6318
        %v6339 = vpack.c.b16 %v6321, %v6319
        %v6340 = vpack.c.b16 %v6324, %v6322
        %v6341 = vpack.c.b16 %v6325, %v6323
        %6358 = vmatprep.subr.bf16.mxu0 %v6341
        %6359 = vmatpush1.bf16.msra.mxu0 %v6340
        %6360 = vmatprep.subr.bf16.mxu0 %v6339
        %6361 = vmatpush1.bf16.msra.mxu0 %v6338
        %6362 = vmatprep.subr.bf16.mxu0 %v6337
        %6363 = vmatpush1.bf16.msra.mxu0 %v6336
        %6364 = vmatprep.subr.bf16.mxu0 %v6335
        %6365 = vmatpush1.bf16.msra.mxu0 %v6334
        %6366 = vmatprep.subr.bf16.mxu0 %v6333
        %6367 = vmatpush1.bf16.msra.mxu0 %v6332
        %6368 = vmatprep.subr.bf16.mxu0 %v6331
        %6369 = vmatpush1.bf16.msra.mxu0 %v6330
        %6370 = vmatprep.subr.bf16.mxu0 %v6329
        %6371 = vmatpush1.bf16.msra.mxu0 %v6328
        %6372 = vmatprep.subr.bf16.mxu0 %v6327
        %6373 = vmatpush1.bf16.msra.mxu0 %v6326
        %6374 = vmatprep.subr.bf16.mxu0 0
        %6375 = vmatpush2.bf16.msra.mxu0 0
        %6376 = vmatprep.subr.bf16.mxu0 0
        %6377 = vmatpush2.bf16.msra.mxu0 0
        %6378 = vmatprep.subr.bf16.mxu0 0
        %6379 = vmatpush2.bf16.msra.mxu0 0
        %6380 = vmatprep.subr.bf16.mxu0 0
        %6381 = vmatpush2.bf16.msra.mxu0 0
        %6382 = vmatprep.subr.bf16.mxu0 0
        %6383 = vmatpush2.bf16.msra.mxu0 0
        %6384 = vmatprep.subr.bf16.mxu0 0
        %6385 = vmatpush2.bf16.msra.mxu0 0
        %6386 = vmatprep.subr.bf16.mxu0 0
        %6387 = vmatpush2.bf16.msra.mxu0 0
        %6388 = vmatprep.subr.bf16.mxu0 0
        %6389 = vmatpush2.bf16.msra.mxu0 0
        %6390 = vmatprep.mubr.bf16.mxu0 0
        %6391 = vmatmul.mubr.bf16.gmra.mxu0 %v1081
        %v6392 = vpop.f32.mrf.mxu0
        %v6393 = vadd.f32 %v6271, %v6392
        %v6394 = vpop.f32.mrf.mxu0
        %v6395 = vadd.f32 %v6275, %v6394
        %v6396 = vpop.f32.mrf.mxu0
        %v6397 = vpop.f32.mrf.mxu0
        %6398 = vdwg.mxu0
        %v6399 = vmax.f32 %v6393, %v6395
        %6400 = vmax.xlane.f32.xlu0 %v6399
        %v6401 = vpop.xlane.xlu0 %6400
        %v6402 = vsub.f32 %v6393, %v6401
        %v6403 = vsub.f32 %v6395, %v6401
        %v6404 = vmul.f32 %v6402, 1.442695
        %v6405 = vpow.pop %v6404
        %v6406 = vmul.f32 %v6403, 1.442695
        %v6407 = vpow.pop %v6406
        %v6408 = vadd.f32 %v6405, %v6407
        %6409 = vadd.xlane.f32.xlu0 %v6408
        %v6410 = vpop.xlane.xlu0 %6409
        %v6411 = vlog2.pop %v6410
        %v6412 = vmul.f32 %v6411, 0.6931472
        %v6413 = vadd.f32 %v6401, %v6412
        %6414 = vset.pattern.permute.xlu0 29
        %6415 = vperm.xlu0 %6414, %v1084
        %v6416 = vpop.permute.xlu0 %6415
        %vm6417 = vcmp.eq.s32.totalorder %v1086, %v6416
        %vm6418 = vcmp.eq.s32.totalorder %v1087, %v6416
        %v6419 = vsel %vm6417, %v6393, 0.0
        %v6420 = vsel %vm6418, %v6395, 0.0
        %v6421 = vadd.f32 %v6419, %v6420
        %6422 = vadd.xlane.f32.xlu0 %v6421
        %v6423 = vpop.xlane.xlu0 %6422
        %v6424 = vsub.f32 %v6423, %v6413
        %v6425 = vmax.f32 %v6424, -11.512925
        %v6426 = vmin.f32 %v6425, -1.000005e-05
        %v6427 = vadd.f32 %v6249, %v6426
        %v6428 = vld [vmem:[%s528 + $0xf0] sm:$0xff]
        %v6429 = vld [vmem:[%s528 + $0x1f0] sm:$0xff]
        %v6430 = vld [vmem:[%s528 + $0x2f0] sm:$0xff]
        %v6431 = vld [vmem:[%s528 + $0x3f0] sm:$0xff]
        %v6432 = vld [vmem:[%s528 + $0x4f0] sm:$0xff]
        %v6433 = vld [vmem:[%s528 + $0x5f0] sm:$0xff]
        %v6434 = vld [vmem:[%s528 + $0x6f0] sm:$0xff]
        %v6435 = vld [vmem:[%s528 + $0x7f0] sm:$0xff]
        %v6436 = vld [vmem:[%s528 + $0x8f0] sm:$0xff]
        %v6437 = vld [vmem:[%s528 + $0x9f0] sm:$0xff]
        %v6438 = vld [vmem:[%s528 + $0xaf0] sm:$0xff]
        %v6439 = vld [vmem:[%s528 + $0xbf0] sm:$0xff]
        %v6440 = vld [vmem:[%s528 + $0xcf0] sm:$0xff]
        %v6441 = vld [vmem:[%s528 + $0xdf0] sm:$0xff]
        %v6442 = vld [vmem:[%s528 + $0xef0] sm:$0xff]
        %v6443 = vld [vmem:[%s528 + $0xff0] sm:$0xff]
        %v6444 = vld [vmem:[%s537 + $0x3c] sm:$0x3]
        %v6446 = vlaneseq
        %v6447 = vshrl.u32 %v6446, 7
        %v6448 = vsub.s32 0, %v6447
        %v6449 = vrot.slane %v6444, %v6448
        %v6450 = vlaneseq
        %v6451 = vshrl.u32 %v6450, 7
        %v6452 = vsub.s32 1, %v6451
        %v6453 = vrot.slane %v6444, %v6452
        %v6472 = vunpack.c.l.b16 %v6428
        %v6473 = vunpack.c.h.b16 %v6428
        %v6474 = vunpack.c.l.b16 %v6429
        %v6475 = vunpack.c.h.b16 %v6429
        %v6476 = vunpack.c.l.b16 %v6430
        %v6477 = vunpack.c.h.b16 %v6430
        %v6478 = vunpack.c.l.b16 %v6431
        %v6479 = vunpack.c.h.b16 %v6431
        %v6480 = vunpack.c.l.b16 %v6432
        %v6481 = vunpack.c.h.b16 %v6432
        %v6482 = vunpack.c.l.b16 %v6433
        %v6483 = vunpack.c.h.b16 %v6433
        %v6484 = vunpack.c.l.b16 %v6434
        %v6485 = vunpack.c.h.b16 %v6434
        %v6486 = vunpack.c.l.b16 %v6435
        %v6487 = vunpack.c.h.b16 %v6435
        %v6488 = vunpack.c.l.b16 %v6436
        %v6489 = vunpack.c.h.b16 %v6436
        %v6490 = vunpack.c.l.b16 %v6437
        %v6491 = vunpack.c.h.b16 %v6437
        %v6492 = vunpack.c.l.b16 %v6438
        %v6493 = vunpack.c.h.b16 %v6438
        %v6494 = vunpack.c.l.b16 %v6439
        %v6495 = vunpack.c.h.b16 %v6439
        %v6496 = vunpack.c.l.b16 %v6440
        %v6497 = vunpack.c.h.b16 %v6440
        %v6498 = vunpack.c.l.b16 %v6441
        %v6499 = vunpack.c.h.b16 %v6441
        %v6500 = vunpack.c.l.b16 %v6442
        %v6501 = vunpack.c.h.b16 %v6442
        %v6502 = vunpack.c.l.b16 %v6443
        %v6503 = vunpack.c.h.b16 %v6443
        %v6504 = vpack.c.b16 %v6474, %v6472
        %v6505 = vpack.c.b16 %v6475, %v6473
        %v6506 = vpack.c.b16 %v6478, %v6476
        %v6507 = vpack.c.b16 %v6479, %v6477
        %v6508 = vpack.c.b16 %v6482, %v6480
        %v6509 = vpack.c.b16 %v6483, %v6481
        %v6510 = vpack.c.b16 %v6486, %v6484
        %v6511 = vpack.c.b16 %v6487, %v6485
        %v6512 = vpack.c.b16 %v6490, %v6488
        %v6513 = vpack.c.b16 %v6491, %v6489
        %v6514 = vpack.c.b16 %v6494, %v6492
        %v6515 = vpack.c.b16 %v6495, %v6493
        %v6516 = vpack.c.b16 %v6498, %v6496
        %v6517 = vpack.c.b16 %v6499, %v6497
        %v6518 = vpack.c.b16 %v6502, %v6500
        %v6519 = vpack.c.b16 %v6503, %v6501
        %6536 = vmatprep.subr.bf16.mxu0 %v6519
        %6537 = vmatpush1.bf16.msra.mxu0 %v6518
        %6538 = vmatprep.subr.bf16.mxu0 %v6517
        %6539 = vmatpush1.bf16.msra.mxu0 %v6516
        %6540 = vmatprep.subr.bf16.mxu0 %v6515
        %6541 = vmatpush1.bf16.msra.mxu0 %v6514
        %6542 = vmatprep.subr.bf16.mxu0 %v6513
        %6543 = vmatpush1.bf16.msra.mxu0 %v6512
        %6544 = vmatprep.subr.bf16.mxu0 %v6511
        %6545 = vmatpush1.bf16.msra.mxu0 %v6510
        %6546 = vmatprep.subr.bf16.mxu0 %v6509
        %6547 = vmatpush1.bf16.msra.mxu0 %v6508
        %6548 = vmatprep.subr.bf16.mxu0 %v6507
        %6549 = vmatpush1.bf16.msra.mxu0 %v6506
        %6550 = vmatprep.subr.bf16.mxu0 %v6505
        %6551 = vmatpush1.bf16.msra.mxu0 %v6504
        %6552 = vmatprep.subr.bf16.mxu0 0
        %6553 = vmatpush2.bf16.msra.mxu0 0
        %6554 = vmatprep.subr.bf16.mxu0 0
        %6555 = vmatpush2.bf16.msra.mxu0 0
        %6556 = vmatprep.subr.bf16.mxu0 0
        %6557 = vmatpush2.bf16.msra.mxu0 0
        %6558 = vmatprep.subr.bf16.mxu0 0
        %6559 = vmatpush2.bf16.msra.mxu0 0
        %6560 = vmatprep.subr.bf16.mxu0 0
        %6561 = vmatpush2.bf16.msra.mxu0 0
        %6562 = vmatprep.subr.bf16.mxu0 0
        %6563 = vmatpush2.bf16.msra.mxu0 0
        %6564 = vmatprep.subr.bf16.mxu0 0
        %6565 = vmatpush2.bf16.msra.mxu0 0
        %6566 = vmatprep.subr.bf16.mxu0 0
        %6567 = vmatpush2.bf16.msra.mxu0 0
        %6568 = vmatprep.mubr.bf16.mxu0 0
        %6569 = vmatmul.mubr.bf16.gmra.mxu0 %v1081
        %v6570 = vpop.f32.mrf.mxu0
        %v6571 = vadd.f32 %v6449, %v6570
        %v6572 = vpop.f32.mrf.mxu0
        %v6573 = vadd.f32 %v6453, %v6572
        %v6574 = vpop.f32.mrf.mxu0
        %v6575 = vpop.f32.mrf.mxu0
        %6576 = vdwg.mxu0
        %v6577 = vmax.f32 %v6571, %v6573
        %6578 = vmax.xlane.f32.xlu0 %v6577
        %v6579 = vpop.xlane.xlu0 %6578
        %v6580 = vsub.f32 %v6571, %v6579
        %v6581 = vsub.f32 %v6573, %v6579
        %v6582 = vmul.f32 %v6580, 1.442695
        %v6583 = vpow.pop %v6582
        %v6584 = vmul.f32 %v6581, 1.442695
        %v6585 = vpow.pop %v6584
        %v6586 = vadd.f32 %v6583, %v6585
        %6587 = vadd.xlane.f32.xlu0 %v6586
        %v6588 = vpop.xlane.xlu0 %6587
        %v6589 = vlog2.pop %v6588
        %v6590 = vmul.f32 %v6589, 0.6931472
        %v6591 = vadd.f32 %v6579, %v6590
        %6592 = vset.pattern.permute.xlu0 30
        %6593 = vperm.xlu0 %6592, %v1084
        %v6594 = vpop.permute.xlu0 %6593
        %vm6595 = vcmp.eq.s32.totalorder %v1086, %v6594
        %vm6596 = vcmp.eq.s32.totalorder %v1087, %v6594
        %v6597 = vsel %vm6595, %v6571, 0.0
        %v6598 = vsel %vm6596, %v6573, 0.0
        %v6599 = vadd.f32 %v6597, %v6598
        %6600 = vadd.xlane.f32.xlu0 %v6599
        %v6601 = vpop.xlane.xlu0 %6600
        %v6602 = vsub.f32 %v6601, %v6591
        %v6603 = vmax.f32 %v6602, -11.512925
        %v6604 = vmin.f32 %v6603, -1.000005e-05
        %v6605 = vadd.f32 %v6427, %v6604
        %v6606 = vld [vmem:[%s528 + $0xf8] sm:$0xff]
        %v6607 = vld [vmem:[%s528 + $0x1f8] sm:$0xff]
        %v6608 = vld [vmem:[%s528 + $0x2f8] sm:$0xff]
        %v6609 = vld [vmem:[%s528 + $0x3f8] sm:$0xff]
        %v6610 = vld [vmem:[%s528 + $0x4f8] sm:$0xff]
        %v6611 = vld [vmem:[%s528 + $0x5f8] sm:$0xff]
        %v6612 = vld [vmem:[%s528 + $0x6f8] sm:$0xff]
        %v6613 = vld [vmem:[%s528 + $0x7f8] sm:$0xff]
        %v6614 = vld [vmem:[%s528 + $0x8f8] sm:$0xff]
        %v6615 = vld [vmem:[%s528 + $0x9f8] sm:$0xff]
        %v6616 = vld [vmem:[%s528 + $0xaf8] sm:$0xff]
        %v6617 = vld [vmem:[%s528 + $0xbf8] sm:$0xff]
        %v6618 = vld [vmem:[%s528 + $0xcf8] sm:$0xff]
        %v6619 = vld [vmem:[%s528 + $0xdf8] sm:$0xff]
        %v6620 = vld [vmem:[%s528 + $0xef8] sm:$0xff]
        %v6621 = vld [vmem:[%s528 + $0xff8] sm:$0xff]
        %v6622 = vld [vmem:[%s537 + $0x3e] sm:$0x3]
        %v6624 = vlaneseq
        %v6625 = vshrl.u32 %v6624, 7
        %v6626 = vsub.s32 0, %v6625
        %v6627 = vrot.slane %v6622, %v6626
        %v6628 = vlaneseq
        %v6629 = vshrl.u32 %v6628, 7
        %v6630 = vsub.s32 1, %v6629
        %v6631 = vrot.slane %v6622, %v6630
        %v6650 = vunpack.c.l.b16 %v6606
        %v6651 = vunpack.c.h.b16 %v6606
        %v6652 = vunpack.c.l.b16 %v6607
        %v6653 = vunpack.c.h.b16 %v6607
        %v6654 = vunpack.c.l.b16 %v6608
        %v6655 = vunpack.c.h.b16 %v6608
        %v6656 = vunpack.c.l.b16 %v6609
        %v6657 = vunpack.c.h.b16 %v6609
        %v6658 = vunpack.c.l.b16 %v6610
        %v6659 = vunpack.c.h.b16 %v6610
        %v6660 = vunpack.c.l.b16 %v6611
        %v6661 = vunpack.c.h.b16 %v6611
        %v6662 = vunpack.c.l.b16 %v6612
        %v6663 = vunpack.c.h.b16 %v6612
        %v6664 = vunpack.c.l.b16 %v6613
        %v6665 = vunpack.c.h.b16 %v6613
        %v6666 = vunpack.c.l.b16 %v6614
        %v6667 = vunpack.c.h.b16 %v6614
        %v6668 = vunpack.c.l.b16 %v6615
        %v6669 = vunpack.c.h.b16 %v6615
        %v6670 = vunpack.c.l.b16 %v6616
        %v6671 = vunpack.c.h.b16 %v6616
        %v6672 = vunpack.c.l.b16 %v6617
        %v6673 = vunpack.c.h.b16 %v6617
        %v6674 = vunpack.c.l.b16 %v6618
        %v6675 = vunpack.c.h.b16 %v6618
        %v6676 = vunpack.c.l.b16 %v6619
        %v6677 = vunpack.c.h.b16 %v6619
        %v6678 = vunpack.c.l.b16 %v6620
        %v6679 = vunpack.c.h.b16 %v6620
        %v6680 = vunpack.c.l.b16 %v6621
        %v6681 = vunpack.c.h.b16 %v6621
        %v6682 = vpack.c.b16 %v6652, %v6650
        %v6683 = vpack.c.b16 %v6653, %v6651
        %v6684 = vpack.c.b16 %v6656, %v6654
        %v6685 = vpack.c.b16 %v6657, %v6655
        %v6686 = vpack.c.b16 %v6660, %v6658
        %v6687 = vpack.c.b16 %v6661, %v6659
        %v6688 = vpack.c.b16 %v6664, %v6662
        %v6689 = vpack.c.b16 %v6665, %v6663
        %v6690 = vpack.c.b16 %v6668, %v6666
        %v6691 = vpack.c.b16 %v6669, %v6667
        %v6692 = vpack.c.b16 %v6672, %v6670
        %v6693 = vpack.c.b16 %v6673, %v6671
        %v6694 = vpack.c.b16 %v6676, %v6674
        %v6695 = vpack.c.b16 %v6677, %v6675
        %v6696 = vpack.c.b16 %v6680, %v6678
        %v6697 = vpack.c.b16 %v6681, %v6679
        %6714 = vmatprep.subr.bf16.mxu0 %v6697
        %6715 = vmatpush1.bf16.msra.mxu0 %v6696
        %6716 = vmatprep.subr.bf16.mxu0 %v6695
        %6717 = vmatpush1.bf16.msra.mxu0 %v6694
        %6718 = vmatprep.subr.bf16.mxu0 %v6693
        %6719 = vmatpush1.bf16.msra.mxu0 %v6692
        %6720 = vmatprep.subr.bf16.mxu0 %v6691
        %6721 = vmatpush1.bf16.msra.mxu0 %v6690
        %6722 = vmatprep.subr.bf16.mxu0 %v6689
        %6723 = vmatpush1.bf16.msra.mxu0 %v6688
        %6724 = vmatprep.subr.bf16.mxu0 %v6687
        %6725 = vmatpush1.bf16.msra.mxu0 %v6686
        %6726 = vmatprep.subr.bf16.mxu0 %v6685
        %6727 = vmatpush1.bf16.msra.mxu0 %v6684
        %6728 = vmatprep.subr.bf16.mxu0 %v6683
        %6729 = vmatpush1.bf16.msra.mxu0 %v6682
        %6730 = vmatprep.subr.bf16.mxu0 0
        %6731 = vmatpush2.bf16.msra.mxu0 0
        %6732 = vmatprep.subr.bf16.mxu0 0
        %6733 = vmatpush2.bf16.msra.mxu0 0
        %6734 = vmatprep.subr.bf16.mxu0 0
        %6735 = vmatpush2.bf16.msra.mxu0 0
        %6736 = vmatprep.subr.bf16.mxu0 0
        %6737 = vmatpush2.bf16.msra.mxu0 0
        %6738 = vmatprep.subr.bf16.mxu0 0
        %6739 = vmatpush2.bf16.msra.mxu0 0
        %6740 = vmatprep.subr.bf16.mxu0 0
        %6741 = vmatpush2.bf16.msra.mxu0 0
        %6742 = vmatprep.subr.bf16.mxu0 0
        %6743 = vmatpush2.bf16.msra.mxu0 0
        %6744 = vmatprep.subr.bf16.mxu0 0
        %6745 = vmatpush2.bf16.msra.mxu0 0
        %6746 = vmatprep.mubr.bf16.mxu0 0
        %6747 = vmatmul.mubr.bf16.gmra.mxu0 %v1081
        %v6748 = vpop.f32.mrf.mxu0
        %v6749 = vadd.f32 %v6627, %v6748
        %v6750 = vpop.f32.mrf.mxu0
        %v6751 = vadd.f32 %v6631, %v6750
        %v6752 = vpop.f32.mrf.mxu0
        %v6753 = vpop.f32.mrf.mxu0
        %6754 = vdwg.mxu0
        %v6755 = vmax.f32 %v6749, %v6751
        %6756 = vmax.xlane.f32.xlu0 %v6755
        %v6757 = vpop.xlane.xlu0 %6756
        %v6758 = vsub.f32 %v6749, %v6757
        %v6759 = vsub.f32 %v6751, %v6757
        %v6760 = vmul.f32 %v6758, 1.442695
        %v6761 = vpow.pop %v6760
        %v6762 = vmul.f32 %v6759, 1.442695
        %v6763 = vpow.pop %v6762
        %v6764 = vadd.f32 %v6761, %v6763
        %6765 = vadd.xlane.f32.xlu0 %v6764
        %v6766 = vpop.xlane.xlu0 %6765
        %v6767 = vlog2.pop %v6766
        %v6768 = vmul.f32 %v6767, 0.6931472
        %v6769 = vadd.f32 %v6757, %v6768
        %6770 = vset.pattern.permute.xlu0 31
        %6771 = vperm.xlu0 %6770, %v1084
        %v6772 = vpop.permute.xlu0 %6771
        %vm6773 = vcmp.eq.s32.totalorder %v1086, %v6772
        %vm6774 = vcmp.eq.s32.totalorder %v1087, %v6772
        %v6775 = vsel %vm6773, %v6749, 0.0
        %v6776 = vsel %vm6774, %v6751, 0.0
        %v6777 = vadd.f32 %v6775, %v6776
        %6778 = vadd.xlane.f32.xlu0 %v6777
        %v6779 = vpop.xlane.xlu0 %6778
        %v6780 = vsub.f32 %v6779, %v6769
        %v6781 = vmax.f32 %v6780, -11.512925
        %v6782 = vmin.f32 %v6781, -1.000005e-05
        %v6783 = vadd.f32 %v6605, %v6782
        %v6784 = vld [vmem:[#allocation3] sm:$0xff]
        %v6785 = vadd.f32 %v6784, %v6783
        %vm6786 = vcmask 7168
        %6787 = vst.msk [vmem:[#allocation3] sm:$0xff] %vm6786, %v6785
        %p6788 = scmp.eq.s32.totalorder %s32, 1
        // Predicated region
        $region117: #{tpu_custom_call.1} parent=67 // pred_check
          %p6789 = pneg %p6788
        $region118: #{tpu_custom_call.1} parent=67 // pred_check_branch
          %6791 = sbr.rel (%p6789) target = $region120
        $region119: #{tpu_custom_call.1} parent=67 // pred_region
          %v6792 = vld [vmem:[#allocation3] sm:$0xff]
          %v6793 = vsel %vm6786, %v6792, 0.0
          %6794 = vadd.xlane.f32.xlu0 %v6793
          %v6795 = vpop.xlane.xlu0 %6794
          %v6796 = vrot.slane %v6795, 4
          %v6797 = vadd.f32 %v6795, %v6796
          %v6798 = vrot.slane %v6797, 2
          %v6799 = vadd.f32 %v6797, %v6798
          %v6800 = vrot.slane %v6799, 1
          %v6801 = vadd.f32 %v6799, %v6800
          %s6802 = vtos %v6801
          %s6803 = ssub.f32 0.0, %s6802
          %v6804 = vrcp.pop 8.0
          %s6805 = vtos %v6804
          %s6806 = smul.f32 %s6803, %s6805
          %s6807 = scalar_lea.smem [#allocation22], 0
          %6808 = sst [smem:[%s6807]] %s6806
        $region120: #{tpu_custom_call.1} parent=67 // pred_fallthru
          _
        // Predicated region
        $region121: #{tpu_custom_call.1} parent=67 // pred_check
          %p6809 = pneg %p307
        $region122: #{tpu_custom_call.1} parent=67 // pred_check_branch
          %6811 = sbr.rel (%p6809) target = $region124
        $region123: #{tpu_custom_call.1} parent=67 // pred_region
          %s6813 = ssub.s32 16, 16
          %6814 = vsyncadd [#allocation6], %s6813
          %6817 = dma.smem_to_hbm [#allocation22], 16, %s12, [#allocation6]
        $region124: #{tpu_custom_call.1} parent=67 // pred_fallthru
          _
        // Predicated region
        $region125: #{tpu_custom_call.1} parent=67 // pred_check
          %p6818 = pneg %p307
        $region126: #{tpu_custom_call.1} parent=67 // pred_check_branch
          %6820 = sbr.rel (%p6818) target = $region128
        $region127: #{tpu_custom_call.1} parent=67 // pred_region
          %6821 = dma.done [#allocation6], 16
        $region128: #{tpu_custom_call.1} parent=67 // pred_fallthru
          _
        %6822 = sfence
      $region68: #{tpu_custom_call.1} parent=5 // pred_fallthru
        _
      %p6823 = scmp.le.s32.totalorder 2, %s27
      // Predicated region
      $region129: #{tpu_custom_call.1} parent=5 // pred_check
        %p6824 = pneg %p6823
      $region130: #{tpu_custom_call.1} parent=5 // pred_check_branch
        %6826 = sbr.rel (%p6824) target = $region132
      $region131: #{tpu_custom_call.1} parent=5 // pred_region
        %s6827 = ssub.s32 %s27, 2
      $region132: #{tpu_custom_call.1} parent=5 // pred_fallthru
        _
    $region6: #{tpu_custom_call.1} parent=1 // loop_footer
      %s31 = sadd.s32 1, %s27
    $region7: #{tpu_custom_call.1} parent=1 // loop_footer_branch
      %26 = sbr.rel target = $region3
    $region8: #{tpu_custom_call.1} parent=1 // loop_exit
      _
    %6828 = vsyncpa [#allocation5], 1
    %s6829 = scalar_lea.sflag [#allocation5], 1
    %6830 = vsyncpa %s6829, 1
    %6831 = vsyncpa [#allocation8], 1
    %6832 = vsyncpa [#allocation11], 1
    %6833 = vsyncpa [#allocation14], 1
    %6834 = vsyncpa [#allocation17], 1
    %6835 = vsyncpa [#allocation20], 1
    %s6836 = scalar_lea.sflag [#allocation20], 1
    %6837 = vsyncpa %s6836, 1
    %6838 = vsyncpa [#allocation6], 1
    %s6839 = scalar_lea.sflag [#allocation6], 1
    %6840 = vsyncpa %s6839, 1

</llo_original>
